<compile_context>
chip_gen: v6e
topology: v6e:2x2x1
jax: 0.10.0
libtpu: 0.0.40
codegen_flags: <defaults>
</compile_context>

<pallas_src>
import math
import functools

import jax
import jax.numpy as jnp
from jax import lax
from jax.experimental import pallas as pl
from jax.experimental.pallas import tpu as pltpu

F32 = jnp.float32
BF16 = jnp.bfloat16

VMEM_LIMIT = 48 * 1024 * 1024   # explicit scoped-VMEM limit (fits v7x's 64 MiB)


# ----------------------------------------------------------------------------
# BlockSpec helpers
# ----------------------------------------------------------------------------
def _w_spec(shape, single_buffer=True):
    """Full-array block, constant index_map (weights / packed aux)."""
    n = len(shape)

    def idx(b):
        return (0,) * n

    if single_buffer:
        # Weights never change across grid steps -> single buffer halves their
        # VMEM footprint (matters on v7x's 64 MiB VMEM).
        try:
            return pl.BlockSpec(tuple(shape), idx, pipeline_mode=pl.Buffered(1))
        except Exception:
            pass
    return pl.BlockSpec(tuple(shape), idx)


def _batch_spec(shape, bt):
    """Block = bt batch rows, full remaining dims; grid axis 0 = batch tile."""
    n = len(shape)

    def idx(b):
        return (b,) + (0,) * (n - 1)

    return pl.BlockSpec((bt,) + tuple(shape[1:]), idx)


def _pick_batch_tile(B, S, h_dim, target_m=512,
                     act_budget_bytes=40 * 1024 * 1024):
    """Pick Bt (a divisor of B) so Bt*S approaches the MXU-friendly M target
    without blowing the per-step f32 activation VMEM budget, and keep the
    batch grid >= 2 steps when possible (v7x megacore)."""
    per_row_bytes = S * h_dim * 4 * 16     # x, qkv, attn scratch, mlp, dbl-buf io
    best = 1
    for bt in range(1, B + 1):
        if B % bt != 0:
            continue
        if bt > 1 and bt * per_row_bytes > act_budget_bytes:
            break
        best = bt
        if bt * S >= target_m:
            break
    if B // best < 2:
        cands = [d for d in range(1, best + 1) if B % d == 0 and B // d >= 2]
        if cands:
            best = max(cands)
    return best


def _ln(x, g, b, eps=1e-5):
    """LayerNorm over last axis, f32 math."""
    mu = jnp.mean(x, axis=-1, keepdims=True)
    var = jnp.mean(jnp.square(x - mu), axis=-1, keepdims=True)
    return (x - mu) * lax.rsqrt(var + eps) * g + b


# ----------------------------------------------------------------------------
# Kernel 1: fused token embeddings (+timestep add) + embed LayerNorm
# Output is already token-interleaved: (B, T, 3, h) with order (state,rtg,act)
# ----------------------------------------------------------------------------
def _embed_kernel(s_ref, a_ref, r_ref, t_ref, ws_ref, wa_ref, aux_ref, o_ref):
    bt, T, sdim = s_ref.shape
    adim = a_ref.shape[-1]
    h_dim = t_ref.shape[-1]

    aux = aux_ref[...]                 # (8, h) f32
    bs, ba, br = aux[0:1], aux[1:2], aux[2:3]
    wr = aux[3:4]                      # embed_rtg weight (K=1 -> VPU broadcast)
    g, beta = aux[4:5], aux[5:6]       # embed_ln

    te = t_ref[...].reshape(bt * T, h_dim)
    s_in = s_ref[...].reshape(bt * T, sdim)
    a_in = a_ref[...].reshape(bt * T, adim)
    r_in = r_ref[...].reshape(bt * T, 1)

    se = jnp.dot(s_in.astype(BF16), ws_ref[...],
                 preferred_element_type=F32) + bs + te
    ae = jnp.dot(a_in.astype(BF16), wa_ref[...],
                 preferred_element_type=F32) + ba + te
    re = r_in * wr + br + te

    # embed_ln is per-token, so applying it per stream == applying after
    # interleave.  Store directly in interleaved (T, 3, h) layout.
    o_ref[:, :, 0:1, :] = _ln(se, g, beta).reshape(bt, T, 1, h_dim)   # state
    o_ref[:, :, 1:2, :] = _ln(re, g, beta).reshape(bt, T, 1, h_dim)   # rtg
    o_ref[:, :, 2:3, :] = _ln(ae, g, beta).reshape(bt, T, 1, h_dim)   # action


def embed_tokens(states, actions, rtg, time_emb, params, bt, single_buffer):
    B, T, _ = states.shape
    h_dim = time_emb.shape[-1]
    ws = params["embed_state_w"]
    wa = params["embed_action_w"]
    aux = params["embed_aux"]

    def out_idx(b):
        return (b, 0, 0, 0)

    return pl.pallas_call(
        _embed_kernel,
        grid=(B // bt,),
        in_specs=[
            _batch_spec(states.shape, bt),
            _batch_spec(actions.shape, bt),
            _batch_spec(rtg.shape, bt),
            _batch_spec(time_emb.shape, bt),
            _w_spec(ws.shape, single_buffer),
            _w_spec(wa.shape, single_buffer),
            _w_spec(aux.shape, single_buffer),
        ],
        out_specs=pl.BlockSpec((bt, T, 3, h_dim), out_idx),
        out_shape=jax.ShapeDtypeStruct((B, T, 3, h_dim), F32),
        compiler_params=pltpu.CompilerParams(
            dimension_semantics=("parallel",),
            vmem_limit_bytes=VMEM_LIMIT),
    )(states, actions, rtg, time_emb, ws, wa, aux)


# ----------------------------------------------------------------------------
# Kernel 2: one fused transformer block (QKV + attention + proj + LN + MLP)
# ----------------------------------------------------------------------------
def _block_kernel(n_heads, head_dim,
                  x_ref, wqkv_ref, wo_ref, w1_ref, w2_ref, aux_ref,
                  o_ref, attn_scr):
    bt, S, h_dim = x_ref.shape
    scale = 1.0 / math.sqrt(head_dim)

    aux = aux_ref[...]                         # (8, 4h) f32
    bqkv = aux[0:1, :3 * h_dim]
    bo = aux[1:2, :h_dim]
    b1 = aux[2:3, :4 * h_dim]
    b2 = aux[3:4, :h_dim]
    ln1g = aux[4:5, :h_dim]
    ln1b = aux[5:6, :h_dim]
    ln2g = aux[6:7, :h_dim]
    ln2b = aux[7:8, :h_dim]

    x = x_ref[...].reshape(bt * S, h_dim)      # (M, h) f32, M = bt*S

    # Single fused QKV projection over the whole batch tile (bf16 MXU, f32 acc)
    qkv = jnp.dot(x.astype(BF16), wqkv_ref[...],
                  preferred_element_type=F32) + bqkv        # (M, 3h)

    # Causal mask generated in-kernel (no SxS mask DMA).
    row = lax.broadcasted_iota(jnp.int32, (S, S), 0)
    col = lax.broadcasted_iota(jnp.int32, (S, S), 1)
    causal = row >= col

    # Attention per batch row / head; each head's output lands in a lane slice
    # of the (M, h) VMEM scratch so the output projection is one full-K matmul.
    for r in range(bt):
        base = r * S
        for hh in range(n_heads):
            lo = hh * head_dim
            qh = qkv[base:base + S, lo:lo + head_dim].astype(BF16)
            kh = qkv[base:base + S, h_dim + lo:h_dim + lo + head_dim].astype(BF16)
            vh = qkv[base:base + S, 2 * h_dim + lo:2 * h_dim + lo + head_dim].astype(BF16)
            s = lax.dot_general(qh, kh, (((1,), (1,)), ((), ())),
                                preferred_element_type=F32) * scale   # (S, S)
            s = jnp.where(causal, s, -1e30)
            s = s - jnp.max(s, axis=-1, keepdims=True)
            p = jnp.exp(s)
            p = p * pl.reciprocal(jnp.sum(p, axis=-1, keepdims=True), approx=True)
            attn_scr[base:base + S, lo:lo + head_dim] = jnp.dot(
                p.astype(BF16), vh, preferred_element_type=F32)

    # One full-K output projection over the whole batch tile.
    attn = jnp.dot(attn_scr[...].astype(BF16), wo_ref[...],
                   preferred_element_type=F32) + bo

    # Residual + post-LN (f32 VPU math).
    y = _ln(x + attn, ln1g, ln1b)

    # MLP with fused bias + GELU epilogue.
    m = jnp.dot(y.astype(BF16), w1_ref[...],
                preferred_element_type=F32) + b1
    # TODO(synk): torch nn.GELU default is erf-exact; tanh approximation used.
    m = jax.nn.gelu(m, approximate=True)
    m = jnp.dot(m.astype(BF16), w2_ref[...],
                preferred_element_type=F32) + b2
    y = _ln(y + m, ln2g, ln2b)

    o_ref[...] = y.reshape(bt, S, h_dim)


def transformer_block(hseq, blk, n_heads, bt, single_buffer):
    B, S, h_dim = hseq.shape
    head_dim = h_dim // n_heads
    wqkv, wo, w1, w2, aux = blk["wqkv"], blk["wo"], blk["w1"], blk["w2"], blk["aux"]

    kern = functools.partial(_block_kernel, n_heads, head_dim)
    return pl.pallas_call(
        kern,
        grid=(B // bt,),
        in_specs=[
            _batch_spec(hseq.shape, bt),
            _w_spec(wqkv.shape, single_buffer),
            _w_spec(wo.shape, single_buffer),
            _w_spec(w1.shape, single_buffer),
            _w_spec(w2.shape, single_buffer),
            _w_spec(aux.shape, single_buffer),
        ],
        out_specs=_batch_spec(hseq.shape, bt),
        out_shape=jax.ShapeDtypeStruct((B, S, h_dim), F32),
        scratch_shapes=[pltpu.VMEM((bt * S, h_dim), F32)],
        compiler_params=pltpu.CompilerParams(
            dimension_semantics=("parallel",),
            vmem_limit_bytes=VMEM_LIMIT),
    )(hseq, wqkv, wo, w1, w2, aux)


# ----------------------------------------------------------------------------
# Kernel 3: fused prediction heads as ONE lane-packed matmul over all tokens
#   columns: [rtg(1) | mu(act) | log_std(act) | state(state_dim) | 0-pad]
# ----------------------------------------------------------------------------
def _heads_kernel(x_ref, w_ref, b_ref, o_ref):
    bt, S, h_dim = x_ref.shape
    n_pad = w_ref.shape[-1]
    xf = x_ref[...].reshape(bt * S, h_dim).astype(BF16)
    y = jnp.dot(xf, w_ref[...], preferred_element_type=F32) + b_ref[...]
    o_ref[...] = y.reshape(bt, S, n_pad)


def prediction_heads(hseq, params, bt, single_buffer):
    B, S, _ = hseq.shape
    w = params["heads_w"]
    b = params["heads_b"]
    n_pad = w.shape[-1]
    return pl.pallas_call(
        _heads_kernel,
        grid=(B // bt,),
        in_specs=[
            _batch_spec(hseq.shape, bt),
            _w_spec(w.shape, single_buffer),
            _w_spec(b.shape, single_buffer),
        ],
        out_specs=pl.BlockSpec((bt, S, n_pad), lambda i: (i, 0, 0)),
        out_shape=jax.ShapeDtypeStruct((B, S, n_pad), F32),
        compiler_params=pltpu.CompilerParams(
            dimension_semantics=("parallel",),
            vmem_limit_bytes=VMEM_LIMIT),
    )(hseq, w, b)


# ----------------------------------------------------------------------------
# Parameter init (deterministic, synthetic).  Matmul weights bf16; packed
# biases / LN params / rtg-embed weight f32.
# ----------------------------------------------------------------------------
def init_params(key, state_dim, act_dim, n_blocks, h_dim, n_heads, max_timestep):
    keys = iter(jax.random.split(key, 10 + 4 * n_blocks))
    h4 = 4 * h_dim

    def w(din, dout, dtype=BF16):
        return (jax.random.normal(next(keys), (din, dout), F32) * 0.02).astype(dtype)

    ws = w(state_dim, h_dim)
    wa = w(act_dim, h_dim)
    wr = w(1, h_dim, F32)                        # K=1 linear -> VPU broadcast row

    # packed embed aux: rows [bs, ba, br, wr, ln_g, ln_b, 0, 0], all (h,)
    embed_aux = jnp.zeros((8, h_dim), F32)
    embed_aux = embed_aux.at[3].set(wr[0])
    embed_aux = embed_aux.at[4].set(jnp.ones((h_dim,), F32))

    params = {
        "embed_timestep": jax.random.normal(next(keys), (max_timestep, h_dim), F32) * 0.02,
        "embed_state_w": ws,
        "embed_action_w": wa,
        "embed_aux": embed_aux,
        "blocks": [],
    }

    # fused, lane-padded prediction-head weight [rtg | mu | log_std | state]
    n_out = 1 + 2 * act_dim + state_dim
    n_pad = max(128, ((n_out + 127) // 128) * 128)
    w_heads = jnp.concatenate(
        [w(h_dim, 1, F32), w(h_dim, act_dim, F32),
         w(h_dim, act_dim, F32), w(h_dim, state_dim, F32)], axis=1)
    params["heads_w"] = jnp.pad(w_heads, ((0, 0), (0, n_pad - n_out))).astype(BF16)
    params["heads_b"] = jnp.zeros((1, n_pad), F32)

    for _ in range(n_blocks):
        blk = {
            "wqkv": w(h_dim, 3 * h_dim),      # fused Q|K|V weight
            "wo": w(h_dim, h_dim),
            "w1": w(h_dim, h4),
            "w2": w(h4, h_dim),
        }
        # packed aux rows: [bqkv(3h), bo(h), b1(4h), b2(h), ln1g, ln1b, ln2g, ln2b]
        aux = jnp.zeros((8, h4), F32)
        aux = aux.at[4, :h_dim].set(1.0)      # ln1 gamma
        aux = aux.at[6, :h_dim].set(1.0)      # ln2 gamma
        blk["aux"] = aux
        params["blocks"].append(blk)
    return params


# ----------------------------------------------------------------------------
# ReinFormer forward
# ----------------------------------------------------------------------------
def reinformer_forward(params, timesteps, states, actions, returns_to_go,
                       n_heads, single_buffer_weights=True):
    B, T, state_dim = states.shape
    act_dim = actions.shape[-1]
    h_dim = params["embed_state_w"].shape[-1]
    assert h_dim % n_heads == 0
    S = 3 * T
    bt = _pick_batch_tile(B, S, h_dim)

    # TODO(synk): embedding-table gather stays in XLA glue (scalar-index gather).
    time_emb = jnp.take(params["embed_timestep"], timesteps, axis=0)   # (B,T,h)

    # Fused embeddings + embed LN, stored already token-interleaved.
    emb = embed_tokens(states, actions, returns_to_go, time_emb, params,
                       bt, single_buffer_weights)                      # (B,T,3,h)
    hseq = emb.reshape(B, S, h_dim)                                    # free reshape

    for blk in params["blocks"]:
        hseq = transformer_block(hseq, blk, n_heads, bt, single_buffer_weights)

    # One lane-packed heads matmul over all tokens; split the small slab in XLA.
    packed = prediction_heads(hseq, params, bt, single_buffer_weights)  # (B,S,Npad)
    out = packed.reshape(B, T, 3, packed.shape[-1])
    rtg_preds = out[:, :, 0, 0:1]                                       # state tok
    mu = out[:, :, 1, 1:1 + act_dim]                                    # rtg tok
    log_std = jnp.clip(out[:, :, 1, 1 + act_dim:1 + 2 * act_dim], -5.0, 2.0)
    std = jnp.exp(log_std)
    state_preds = out[:, :, 2, 1 + 2 * act_dim:1 + 2 * act_dim + state_dim]  # act tok

    # TODO(synk): BaseActor returns a Normal distribution; represented here as
    # (mean, std) with log_std clipped to [-5, 2].
    return rtg_preds, (mu, std), state_preds


# ----------------------------------------------------------------------------
if __name__ == "__main__":
    # small config consistent with the module's __init__
    state_dim, act_dim = 6, 3
    n_blocks, h_dim, context_len, n_heads = 2, 128, 8, 2
    max_timestep = 64
    B, T = 4, context_len

    key = jax.random.PRNGKey(0)
    pkey, dkey = jax.random.split(key)
    params = init_params(pkey, state_dim, act_dim, n_blocks, h_dim, n_heads,
                         max_timestep)

    k1, k2, k3, k4 = jax.random.split(dkey, 4)
    timesteps = jax.random.randint(k1, (B, T), 0, max_timestep, dtype=jnp.int32)
    states = jax.random.normal(k2, (B, T, state_dim), F32)
    actions = jax.random.normal(k3, (B, T, act_dim), F32)
    returns_to_go = jax.random.normal(k4, (B, T, 1), F32)

    def run(single_buffer):
        fwd = jax.jit(functools.partial(reinformer_forward, n_heads=n_heads,
                                        single_buffer_weights=single_buffer))
        out = fwd(params, timesteps, states, actions, returns_to_go)
        jax.block_until_ready(out)
        return out

    try:
        out = run(True)
    except Exception:
        # Fallback: default double-buffered weight BlockSpecs if this JAX build
        # rejects pipeline_mode=pl.Buffered(1).
        out = run(False)

    rtg_preds, (mu, std), state_preds = out
    assert rtg_preds.shape == (B, T, 1)
    assert mu.shape == (B, T, act_dim) and std.shape == (B, T, act_dim)
    assert state_preds.shape == (B, T, state_dim)
    for t in (rtg_preds, mu, std, state_preds):
        assert bool(jnp.all(jnp.isfinite(t)))
    print("KERNEL_OK")
</pallas_src>

<mosaic_0001>
module attributes {stable_mosaic.version = 11 : i64} {
  func.func @_heads_kernel(%arg0: i32, %arg1: memref<2x24x128xf32, #tpu.memory_space<vmem>>, %arg2: memref<128x128xbf16, #tpu.memory_space<vmem>>, %arg3: memref<1x128xf32, #tpu.memory_space<vmem>>, %arg4: memref<2x24x128xf32, #tpu.memory_space<vmem>>) attributes {dimension_semantics = [#tpu.dimension_semantics<parallel>], iteration_bounds = array<i64: 2>, scalar_prefetch = 0 : i64, scratch_operands = 0 : i64, tpu.core_type = #tpu.core_type<tc>, window_params = [{transform_indices = @transform_0, window_bounds = array<i64: 2, 24, 128>}, {pipeline_mode = #tpu.pipeline_mode<synchronous>, transform_indices = @transform_1, window_bounds = array<i64: 128, 128>}, {pipeline_mode = #tpu.pipeline_mode<synchronous>, transform_indices = @transform_2, window_bounds = array<i64: 1, 128>}, {transform_indices = @transform_3, window_bounds = array<i64: 2, 24, 128>}]} {
    %c0 = arith.constant 0 : index
    %c0_0 = arith.constant 0 : index
    %c0_1 = arith.constant 0 : index
    %0 = vector.load %arg1[%c0, %c0_0, %c0_1] : memref<2x24x128xf32, #tpu.memory_space<vmem>>, vector<2x24x128xf32>
    %1 = vector.shape_cast %0 : vector<2x24x128xf32> to vector<48x128xf32>
    %2 = arith.truncf %1 : vector<48x128xf32> to vector<48x128xbf16>
    %c0_2 = arith.constant 0 : index
    %c0_3 = arith.constant 0 : index
    %3 = vector.load %arg2[%c0_2, %c0_3] : memref<128x128xbf16, #tpu.memory_space<vmem>>, vector<128x128xbf16>
    %cst = arith.constant dense<0.000000e+00> : vector<48x128xf32>
    %4 = tpu.matmul %2, %3, %cst {dimension_numbers = #tpu.dot_dimension_numbers<[1], [0], [0], [1], [0, 0, 1, 1], [], []>} : vector<48x128xbf16>, vector<128x128xbf16>, vector<48x128xf32> -> vector<48x128xf32>
    %c0_4 = arith.constant 0 : index
    %c0_5 = arith.constant 0 : index
    %5 = vector.load %arg3[%c0_4, %c0_5] : memref<1x128xf32, #tpu.memory_space<vmem>>, vector<1x128xf32>
    %6 = vector.broadcast %5 : vector<1x128xf32> to vector<48x128xf32>
    %7 = arith.addf %4, %6 : vector<48x128xf32>
    %8 = vector.shape_cast %7 : vector<48x128xf32> to vector<2x24x128xf32>
    %c0_6 = arith.constant 0 : index
    %c0_7 = arith.constant 0 : index
    %c0_8 = arith.constant 0 : index
    %9 = vector.load %arg4[%c0_6, %c0_7, %c0_8] : memref<2x24x128xf32, #tpu.memory_space<vmem>>, vector<2x24x128xf32>
    tpu.vector_store %arg4[%c0_6, %c0_7, %c0_8], %8 {strides = array<i32>} : memref<2x24x128xf32, #tpu.memory_space<vmem>>, vector<2x24x128xf32>,
    return
  }
  func.func @transform_0(%arg0: i32) -> (i32, i32, i32) {
    %c0_i32 = arith.constant 0 : i32
    %c0_i32_0 = arith.constant 0 : i32
    %c0_i32_1 = arith.constant 0 : i32
    return %arg0, %c0_i32, %c0_i32_0 : i32, i32, i32
  }
  func.func @transform_1(%arg0: i32) -> (i32, i32) {
    %c0_i32 = arith.constant 0 : i32
    %c0_i32_0 = arith.constant 0 : i32
    %c0_i32_1 = arith.constant 0 : i32
    return %c0_i32, %c0_i32_0 : i32, i32
  }
  func.func @transform_2(%arg0: i32) -> (i32, i32) {
    %c0_i32 = arith.constant 0 : i32
    %c0_i32_0 = arith.constant 0 : i32
    %c0_i32_1 = arith.constant 0 : i32
    return %c0_i32, %c0_i32_0 : i32, i32
  }
  func.func @transform_3(%arg0: i32) -> (i32, i32, i32) {
    %c0_i32 = arith.constant 0 : i32
    %c0_i32_0 = arith.constant 0 : i32
    %c0_i32_1 = arith.constant 0 : i32
    return %arg0, %c0_i32, %c0_i32_0 : i32, i32, i32
  }
}

module attributes {stable_mosaic.version = 11 : i64} {
  func.func @_embed_kernel(%arg0: i32, %arg1: memref<2x8x6xf32, #tpu.memory_space<vmem>>, %arg2: memref<2x8x3xf32, #tpu.memory_space<vmem>>, %arg3: memref<2x8x1xf32, #tpu.memory_space<vmem>>, %arg4: memref<2x8x128xf32, #tpu.memory_space<vmem>>, %arg5: memref<6x128xbf16, #tpu.memory_space<vmem>>, %arg6: memref<3x128xbf16, #tpu.memory_space<vmem>>, %arg7: memref<8x128xf32, #tpu.memory_space<vmem>>, %arg8: memref<2x8x3x128xf32, #tpu.memory_space<vmem>>) attributes {dimension_semantics = [#tpu.dimension_semantics<parallel>], iteration_bounds = array<i64: 2>, scalar_prefetch = 0 : i64, scratch_operands = 0 : i64, tpu.core_type = #tpu.core_type<tc>, window_params = [{transform_indices = @transform_0, window_bounds = array<i64: 2, 8, 6>}, {transform_indices = @transform_1, window_bounds = array<i64: 2, 8, 3>}, {transform_indices = @transform_2, window_bounds = array<i64: 2, 8, 1>}, {transform_indices = @transform_3, window_bounds = array<i64: 2, 8, 128>}, {pipeline_mode = #tpu.pipeline_mode<synchronous>, transform_indices = @transform_4, window_bounds = array<i64: 6, 128>}, {pipeline_mode = #tpu.pipeline_mode<synchronous>, transform_indices = @transform_5, window_bounds = array<i64: 3, 128>}, {pipeline_mode = #tpu.pipeline_mode<synchronous>, transform_indices = @transform_6, window_bounds = array<i64: 8, 128>}, {transform_indices = @transform_7, window_bounds = array<i64: 2, 8, 3, 128>}]} {
    %c0 = arith.constant 0 : index
    %c0_0 = arith.constant 0 : index
    %0 = vector.load %arg7[%c0, %c0_0] : memref<8x128xf32, #tpu.memory_space<vmem>>, vector<8x128xf32>
    %1 = vector.extract_strided_slice %0 {offsets = [0, 0], sizes = [1, 128], strides = [1, 1]} : vector<8x128xf32> to vector<1x128xf32>
    %2 = vector.extract_strided_slice %0 {offsets = [1, 0], sizes = [1, 128], strides = [1, 1]} : vector<8x128xf32> to vector<1x128xf32>
    %3 = vector.extract_strided_slice %0 {offsets = [2, 0], sizes = [1, 128], strides = [1, 1]} : vector<8x128xf32> to vector<1x128xf32>
    %4 = vector.extract_strided_slice %0 {offsets = [3, 0], sizes = [1, 128], strides = [1, 1]} : vector<8x128xf32> to vector<1x128xf32>
    %5 = vector.extract_strided_slice %0 {offsets = [4, 0], sizes = [1, 128], strides = [1, 1]} : vector<8x128xf32> to vector<1x128xf32>
    %6 = vector.extract_strided_slice %0 {offsets = [5, 0], sizes = [1, 128], strides = [1, 1]} : vector<8x128xf32> to vector<1x128xf32>
    %c0_1 = arith.constant 0 : index
    %c0_2 = arith.constant 0 : index
    %c0_3 = arith.constant 0 : index
    %7 = vector.load %arg4[%c0_1, %c0_2, %c0_3] : memref<2x8x128xf32, #tpu.memory_space<vmem>>, vector<2x8x128xf32>
    %8 = vector.shape_cast %7 : vector<2x8x128xf32> to vector<16x128xf32>
    %c0_4 = arith.constant 0 : index
    %c0_5 = arith.constant 0 : index
    %c0_6 = arith.constant 0 : index
    %9 = vector.load %arg1[%c0_4, %c0_5, %c0_6] : memref<2x8x6xf32, #tpu.memory_space<vmem>>, vector<2x8x6xf32>
    %10 = vector.shape_cast %9 : vector<2x8x6xf32> to vector<16x6xf32>
    %c0_7 = arith.constant 0 : index
    %c0_8 = arith.constant 0 : index
    %c0_9 = arith.constant 0 : index
    %11 = vector.load %arg2[%c0_7, %c0_8, %c0_9] : memref<2x8x3xf32, #tpu.memory_space<vmem>>, vector<2x8x3xf32>
    %12 = vector.shape_cast %11 : vector<2x8x3xf32> to vector<16x3xf32>
    %c0_10 = arith.constant 0 : index
    %c0_11 = arith.constant 0 : index
    %c0_12 = arith.constant 0 : index
    %13 = vector.load %arg3[%c0_10, %c0_11, %c0_12] : memref<2x8x1xf32, #tpu.memory_space<vmem>>, vector<2x8x1xf32>
    %14 = vector.shape_cast %13 : vector<2x8x1xf32> to vector<16x1xf32>
    %15 = arith.truncf %10 : vector<16x6xf32> to vector<16x6xbf16>
    %c0_13 = arith.constant 0 : index
    %c0_14 = arith.constant 0 : index
    %16 = vector.load %arg5[%c0_13, %c0_14] : memref<6x128xbf16, #tpu.memory_space<vmem>>, vector<6x128xbf16>
    %cst = arith.constant dense<0.000000e+00> : vector<16x128xf32>
    %17 = tpu.matmul %15, %16, %cst {dimension_numbers = #tpu.dot_dimension_numbers<[1], [0], [0], [1], [0, 0, 1, 1], [], []>} : vector<16x6xbf16>, vector<6x128xbf16>, vector<16x128xf32> -> vector<16x128xf32>
    %18 = vector.broadcast %1 : vector<1x128xf32> to vector<16x128xf32>
    %19 = arith.addf %17, %18 : vector<16x128xf32>
    %20 = arith.addf %19, %8 : vector<16x128xf32>
    %21 = arith.truncf %12 : vector<16x3xf32> to vector<16x3xbf16>
    %c0_15 = arith.constant 0 : index
    %c0_16 = arith.constant 0 : index
    %22 = vector.load %arg6[%c0_15, %c0_16] : memref<3x128xbf16, #tpu.memory_space<vmem>>, vector<3x128xbf16>
    %cst_17 = arith.constant dense<0.000000e+00> : vector<16x128xf32>
    %23 = tpu.matmul %21, %22, %cst_17 {dimension_numbers = #tpu.dot_dimension_numbers<[1], [0], [0], [1], [0, 0, 1, 1], [], []>} : vector<16x3xbf16>, vector<3x128xbf16>, vector<16x128xf32> -> vector<16x128xf32>
    %24 = vector.broadcast %2 : vector<1x128xf32> to vector<16x128xf32>
    %25 = arith.addf %23, %24 : vector<16x128xf32>
    %26 = arith.addf %25, %8 : vector<16x128xf32>
    %27 = vector.broadcast %14 : vector<16x1xf32> to vector<16x128xf32>
    %28 = vector.broadcast %4 : vector<1x128xf32> to vector<16x128xf32>
    %29 = arith.mulf %27, %28 : vector<16x128xf32>
    %30 = vector.broadcast %3 : vector<1x128xf32> to vector<16x128xf32>
    %31 = arith.addf %29, %30 : vector<16x128xf32>
    %32 = arith.addf %31, %8 : vector<16x128xf32>
    %cst_18 = arith.constant dense<0.000000e+00> : vector<16xf32>
    %33 = vector.multi_reduction <add>, %20, %cst_18 [1] : vector<16x128xf32> to vector<16xf32>
    %34 = vector.shape_cast %33 : vector<16xf32> to vector<16x1xf32>
    %cst_19 = arith.constant 1.280000e+02 : f32
    %35 = vector.broadcast %cst_19 : f32 to vector<16x1xf32>
    %36 = arith.divf %34, %35 : vector<16x1xf32>
    %37 = vector.broadcast %36 : vector<16x1xf32> to vector<16x128xf32>
    %38 = arith.subf %20, %37 : vector<16x128xf32>
    %39 = arith.mulf %38, %38 : vector<16x128xf32>
    %cst_20 = arith.constant dense<0.000000e+00> : vector<16xf32>
    %40 = vector.multi_reduction <add>, %39, %cst_20 [1] : vector<16x128xf32> to vector<16xf32>
    %41 = vector.shape_cast %40 : vector<16xf32> to vector<16x1xf32>
    %cst_21 = arith.constant 1.280000e+02 : f32
    %42 = vector.broadcast %cst_21 : f32 to vector<16x1xf32>
    %43 = arith.divf %41, %42 : vector<16x1xf32>
    %44 = vector.broadcast %36 : vector<16x1xf32> to vector<16x128xf32>
    %45 = arith.subf %20, %44 : vector<16x128xf32>
    %cst_22 = arith.constant 9.99999974E-6 : f32
    %46 = vector.broadcast %cst_22 : f32 to vector<16x1xf32>
    %47 = arith.addf %43, %46 : vector<16x1xf32>
    %48 = math.rsqrt %47 : vector<16x1xf32>
    %49 = vector.broadcast %48 : vector<16x1xf32> to vector<16x128xf32>
    %50 = arith.mulf %45, %49 : vector<16x128xf32>
    %51 = vector.broadcast %5 : vector<1x128xf32> to vector<16x128xf32>
    %52 = arith.mulf %50, %51 : vector<16x128xf32>
    %53 = vector.broadcast %6 : vector<1x128xf32> to vector<16x128xf32>
    %54 = arith.addf %52, %53 : vector<16x128xf32>
    %55 = vector.shape_cast %54 : vector<16x128xf32> to vector<2x8x1x128xf32>
    %c0_23 = arith.constant 0 : index
    %c0_24 = arith.constant 0 : index
    %c0_25 = arith.constant 0 : index
    %c0_26 = arith.constant 0 : index
    %56 = vector.load %arg8[%c0_23, %c0_24, %c0_25, %c0_26] : memref<2x8x3x128xf32, #tpu.memory_space<vmem>>, vector<2x8x1x128xf32>
    tpu.vector_store %arg8[%c0_23, %c0_24, %c0_25, %c0_26], %55 {strides = array<i32>} : memref<2x8x3x128xf32, #tpu.memory_space<vmem>>, vector<2x8x1x128xf32>,
    %cst_27 = arith.constant dense<0.000000e+00> : vector<16xf32>
    %57 = vector.multi_reduction <add>, %32, %cst_27 [1] : vector<16x128xf32> to vector<16xf32>
    %58 = vector.shape_cast %57 : vector<16xf32> to vector<16x1xf32>
    %cst_28 = arith.constant 1.280000e+02 : f32
    %59 = vector.broadcast %cst_28 : f32 to vector<16x1xf32>
    %60 = arith.divf %58, %59 : vector<16x1xf32>
    %61 = vector.broadcast %60 : vector<16x1xf32> to vector<16x128xf32>
    %62 = arith.subf %32, %61 : vector<16x128xf32>
    %63 = arith.mulf %62, %62 : vector<16x128xf32>
    %cst_29 = arith.constant dense<0.000000e+00> : vector<16xf32>
    %64 = vector.multi_reduction <add>, %63, %cst_29 [1] : vector<16x128xf32> to vector<16xf32>
    %65 = vector.shape_cast %64 : vector<16xf32> to vector<16x1xf32>
    %cst_30 = arith.constant 1.280000e+02 : f32
    %66 = vector.broadcast %cst_30 : f32 to vector<16x1xf32>
    %67 = arith.divf %65, %66 : vector<16x1xf32>
    %68 = vector.broadcast %60 : vector<16x1xf32> to vector<16x128xf32>
    %69 = arith.subf %32, %68 : vector<16x128xf32>
    %cst_31 = arith.constant 9.99999974E-6 : f32
    %70 = vector.broadcast %cst_31 : f32 to vector<16x1xf32>
    %71 = arith.addf %67, %70 : vector<16x1xf32>
    %72 = math.rsqrt %71 : vector<16x1xf32>
    %73 = vector.broadcast %72 : vector<16x1xf32> to vector<16x128xf32>
    %74 = arith.mulf %69, %73 : vector<16x128xf32>
    %75 = vector.broadcast %5 : vector<1x128xf32> to vector<16x128xf32>
    %76 = arith.mulf %74, %75 : vector<16x128xf32>
    %77 = vector.broadcast %6 : vector<1x128xf32> to vector<16x128xf32>
    %78 = arith.addf %76, %77 : vector<16x128xf32>
    %79 = vector.shape_cast %78 : vector<16x128xf32> to vector<2x8x1x128xf32>
    %c0_32 = arith.constant 0 : index
    %c0_33 = arith.constant 0 : index
    %c1 = arith.constant 1 : index
    %c0_34 = arith.constant 0 : index
    %80 = vector.load %arg8[%c0_32, %c0_33, %c1, %c0_34] : memref<2x8x3x128xf32, #tpu.memory_space<vmem>>, vector<2x8x1x128xf32>
    tpu.vector_store %arg8[%c0_32, %c0_33, %c1, %c0_34], %79 {strides = array<i32>} : memref<2x8x3x128xf32, #tpu.memory_space<vmem>>, vector<2x8x1x128xf32>,
    %cst_35 = arith.constant dense<0.000000e+00> : vector<16xf32>
    %81 = vector.multi_reduction <add>, %26, %cst_35 [1] : vector<16x128xf32> to vector<16xf32>
    %82 = vector.shape_cast %81 : vector<16xf32> to vector<16x1xf32>
    %cst_36 = arith.constant 1.280000e+02 : f32
    %83 = vector.broadcast %cst_36 : f32 to vector<16x1xf32>
    %84 = arith.divf %82, %83 : vector<16x1xf32>
    %85 = vector.broadcast %84 : vector<16x1xf32> to vector<16x128xf32>
    %86 = arith.subf %26, %85 : vector<16x128xf32>
    %87 = arith.mulf %86, %86 : vector<16x128xf32>
    %cst_37 = arith.constant dense<0.000000e+00> : vector<16xf32>
    %88 = vector.multi_reduction <add>, %87, %cst_37 [1] : vector<16x128xf32> to vector<16xf32>
    %89 = vector.shape_cast %88 : vector<16xf32> to vector<16x1xf32>
    %cst_38 = arith.constant 1.280000e+02 : f32
    %90 = vector.broadcast %cst_38 : f32 to vector<16x1xf32>
    %91 = arith.divf %89, %90 : vector<16x1xf32>
    %92 = vector.broadcast %84 : vector<16x1xf32> to vector<16x128xf32>
    %93 = arith.subf %26, %92 : vector<16x128xf32>
    %cst_39 = arith.constant 9.99999974E-6 : f32
    %94 = vector.broadcast %cst_39 : f32 to vector<16x1xf32>
    %95 = arith.addf %91, %94 : vector<16x1xf32>
    %96 = math.rsqrt %95 : vector<16x1xf32>
    %97 = vector.broadcast %96 : vector<16x1xf32> to vector<16x128xf32>
    %98 = arith.mulf %93, %97 : vector<16x128xf32>
    %99 = vector.broadcast %5 : vector<1x128xf32> to vector<16x128xf32>
    %100 = arith.mulf %98, %99 : vector<16x128xf32>
    %101 = vector.broadcast %6 : vector<1x128xf32> to vector<16x128xf32>
    %102 = arith.addf %100, %101 : vector<16x128xf32>
    %103 = vector.shape_cast %102 : vector<16x128xf32> to vector<2x8x1x128xf32>
    %c0_40 = arith.constant 0 : index
    %c0_41 = arith.constant 0 : index
    %c2 = arith.constant 2 : index
    %c0_42 = arith.constant 0 : index
    %104 = vector.load %arg8[%c0_40, %c0_41, %c2, %c0_42] : memref<2x8x3x128xf32, #tpu.memory_space<vmem>>, vector<2x8x1x128xf32>
    tpu.vector_store %arg8[%c0_40, %c0_41, %c2, %c0_42], %103 {strides = array<i32>} : memref<2x8x3x128xf32, #tpu.memory_space<vmem>>, vector<2x8x1x128xf32>,
    return
  }
  func.func @transform_0(%arg0: i32) -> (i32, i32, i32) {
    %c0_i32 = arith.constant 0 : i32
    %c0_i32_0 = arith.constant 0 : i32
    %c0_i32_1 = arith.constant 0 : i32
    return %arg0, %c0_i32, %c0_i32_0 : i32, i32, i32
  }
  func.func @transform_1(%arg0: i32) -> (i32, i32, i32) {
    %c0_i32 = arith.constant 0 : i32
    %c0_i32_0 = arith.constant 0 : i32
    %c0_i32_1 = arith.constant 0 : i32
    return %arg0, %c0_i32, %c0_i32_0 : i32, i32, i32
  }
  func.func @transform_2(%arg0: i32) -> (i32, i32, i32) {
    %c0_i32 = arith.constant 0 : i32
    %c0_i32_0 = arith.constant 0 : i32
    %c0_i32_1 = arith.constant 0 : i32
    return %arg0, %c0_i32, %c0_i32_0 : i32, i32, i32
  }
  func.func @transform_3(%arg0: i32) -> (i32, i32, i32) {
    %c0_i32 = arith.constant 0 : i32
    %c0_i32_0 = arith.constant 0 : i32
    %c0_i32_1 = arith.constant 0 : i32
    return %arg0, %c0_i32, %c0_i32_0 : i32, i32, i32
  }
  func.func @transform_4(%arg0: i32) -> (i32, i32) {
    %c0_i32 = arith.constant 0 : i32
    %c0_i32_0 = arith.constant 0 : i32
    %c0_i32_1 = arith.constant 0 : i32
    return %c0_i32, %c0_i32_0 : i32, i32
  }
  func.func @transform_5(%arg0: i32) -> (i32, i32) {
    %c0_i32 = arith.constant 0 : i32
    %c0_i32_0 = arith.constant 0 : i32
    %c0_i32_1 = arith.constant 0 : i32
    return %c0_i32, %c0_i32_0 : i32, i32
  }
  func.func @transform_6(%arg0: i32) -> (i32, i32) {
    %c0_i32 = arith.constant 0 : i32
    %c0_i32_0 = arith.constant 0 : i32
    %c0_i32_1 = arith.constant 0 : i32
    return %c0_i32, %c0_i32_0 : i32, i32
  }
  func.func @transform_7(%arg0: i32) -> (i32, i32, i32, i32) {
    %c0_i32 = arith.constant 0 : i32
    %c0_i32_0 = arith.constant 0 : i32
    %c0_i32_1 = arith.constant 0 : i32
    %c0_i32_2 = arith.constant 0 : i32
    return %arg0, %c0_i32, %c0_i32_0, %c0_i32_1 : i32, i32, i32, i32
  }
}

module attributes {stable_mosaic.version = 11 : i64} {
  func.func @_block_kernel(%arg0: i32, %arg1: memref<2x24x128xf32, #tpu.memory_space<vmem>>, %arg2: memref<128x384xbf16, #tpu.memory_space<vmem>>, %arg3: memref<128x128xbf16, #tpu.memory_space<vmem>>, %arg4: memref<128x512xbf16, #tpu.memory_space<vmem>>, %arg5: memref<512x128xbf16, #tpu.memory_space<vmem>>, %arg6: memref<8x512xf32, #tpu.memory_space<vmem>>, %arg7: memref<2x24x128xf32, #tpu.memory_space<vmem>>, %arg8: memref<48x128xf32, #tpu.memory_space<vmem>>) attributes {dimension_semantics = [#tpu.dimension_semantics<parallel>], iteration_bounds = array<i64: 2>, scalar_prefetch = 0 : i64, scratch_operands = 1 : i64, tpu.core_type = #tpu.core_type<tc>, window_params = [{transform_indices = @transform_0, window_bounds = array<i64: 2, 24, 128>}, {pipeline_mode = #tpu.pipeline_mode<synchronous>, transform_indices = @transform_1, window_bounds = array<i64: 128, 384>}, {pipeline_mode = #tpu.pipeline_mode<synchronous>, transform_indices = @transform_2, window_bounds = array<i64: 128, 128>}, {pipeline_mode = #tpu.pipeline_mode<synchronous>, transform_indices = @transform_3, window_bounds = array<i64: 128, 512>}, {pipeline_mode = #tpu.pipeline_mode<synchronous>, transform_indices = @transform_4, window_bounds = array<i64: 512, 128>}, {pipeline_mode = #tpu.pipeline_mode<synchronous>, transform_indices = @transform_5, window_bounds = array<i64: 8, 512>}, {transform_indices = @transform_6, window_bounds = array<i64: 2, 24, 128>}]} {
    %c0 = arith.constant 0 : index
    %c0_0 = arith.constant 0 : index
    %0 = vector.load %arg6[%c0, %c0_0] : memref<8x512xf32, #tpu.memory_space<vmem>>, vector<8x512xf32>
    %1 = vector.extract_strided_slice %0 {offsets = [0, 0], sizes = [1, 384], strides = [1, 1]} : vector<8x512xf32> to vector<1x384xf32>
    %2 = vector.extract_strided_slice %0 {offsets = [1, 0], sizes = [1, 128], strides = [1, 1]} : vector<8x512xf32> to vector<1x128xf32>
    %3 = vector.extract_strided_slice %0 {offsets = [2, 0], sizes = [1, 512], strides = [1, 1]} : vector<8x512xf32> to vector<1x512xf32>
    %4 = vector.extract_strided_slice %0 {offsets = [3, 0], sizes = [1, 128], strides = [1, 1]} : vector<8x512xf32> to vector<1x128xf32>
    %5 = vector.extract_strided_slice %0 {offsets = [4, 0], sizes = [1, 128], strides = [1, 1]} : vector<8x512xf32> to vector<1x128xf32>
    %6 = vector.extract_strided_slice %0 {offsets = [5, 0], sizes = [1, 128], strides = [1, 1]} : vector<8x512xf32> to vector<1x128xf32>
    %7 = vector.extract_strided_slice %0 {offsets = [6, 0], sizes = [1, 128], strides = [1, 1]} : vector<8x512xf32> to vector<1x128xf32>
    %8 = vector.extract_strided_slice %0 {offsets = [7, 0], sizes = [1, 128], strides = [1, 1]} : vector<8x512xf32> to vector<1x128xf32>
    %c0_1 = arith.constant 0 : index
    %c0_2 = arith.constant 0 : index
    %c0_3 = arith.constant 0 : index
    %9 = vector.load %arg1[%c0_1, %c0_2, %c0_3] : memref<2x24x128xf32, #tpu.memory_space<vmem>>, vector<2x24x128xf32>
    %10 = vector.shape_cast %9 : vector<2x24x128xf32> to vector<48x128xf32>
    %11 = arith.truncf %10 : vector<48x128xf32> to vector<48x128xbf16>
    %c0_4 = arith.constant 0 : index
    %c0_5 = arith.constant 0 : index
    %12 = vector.load %arg2[%c0_4, %c0_5] : memref<128x384xbf16, #tpu.memory_space<vmem>>, vector<128x384xbf16>
    %cst = arith.constant dense<0.000000e+00> : vector<48x384xf32>
    %13 = tpu.matmul %11, %12, %cst {dimension_numbers = #tpu.dot_dimension_numbers<[1], [0], [0], [1], [0, 0, 1, 1], [], []>} : vector<48x128xbf16>, vector<128x384xbf16>, vector<48x384xf32> -> vector<48x384xf32>
    %14 = vector.broadcast %1 : vector<1x384xf32> to vector<48x384xf32>
    %15 = arith.addf %13, %14 : vector<48x384xf32>
    %16 = tpu.iota {dimensions = array<i32: 0>} : vector<24x24xi32>
    %17 = tpu.iota {dimensions = array<i32: 1>} : vector<24x24xi32>
    %18 = arith.cmpi sge, %16, %17 : vector<24x24xi32>
    %19 = vector.extract_strided_slice %15 {offsets = [0, 0], sizes = [24, 64], strides = [1, 1]} : vector<48x384xf32> to vector<24x64xf32>
    %20 = arith.truncf %19 : vector<24x64xf32> to vector<24x64xbf16>
    %21 = vector.extract_strided_slice %15 {offsets = [0, 128], sizes = [24, 64], strides = [1, 1]} : vector<48x384xf32> to vector<24x64xf32>
    %22 = arith.truncf %21 : vector<24x64xf32> to vector<24x64xbf16>
    %23 = vector.extract_strided_slice %15 {offsets = [0, 256], sizes = [24, 64], strides = [1, 1]} : vector<48x384xf32> to vector<24x64xf32>
    %24 = arith.truncf %23 : vector<24x64xf32> to vector<24x64xbf16>
    %cst_6 = arith.constant dense<0.000000e+00> : vector<24x24xf32>
    %25 = tpu.matmul %20, %22, %cst_6 {dimension_numbers = #tpu.dot_dimension_numbers<[1], [1], [0], [0], [0, 0, 1, 0], [], []>} : vector<24x64xbf16>, vector<24x64xbf16>, vector<24x24xf32> -> vector<24x24xf32>
    %cst_7 = arith.constant 1.250000e-01 : f32
    %26 = vector.broadcast %cst_7 : f32 to vector<24x24xf32>
    %27 = arith.mulf %25, %26 : vector<24x24xf32>
    %cst_8 = arith.constant -1.000000e+30 : f32
    %28 = vector.broadcast %cst_8 : f32 to vector<24x24xf32>
    %29 = arith.select %18, %27, %28 : vector<24x24xi1>, vector<24x24xf32>
    %cst_9 = arith.constant dense<0xFF800000> : vector<24xf32>
    %30 = vector.multi_reduction <maximumf>, %29, %cst_9 [1] : vector<24x24xf32> to vector<24xf32>
    %31 = vector.shape_cast %30 : vector<24xf32> to vector<24x1xf32>
    %32 = vector.broadcast %31 : vector<24x1xf32> to vector<24x24xf32>
    %33 = arith.subf %29, %32 : vector<24x24xf32>
    %34 = math.exp %33 : vector<24x24xf32>
    %cst_10 = arith.constant dense<0.000000e+00> : vector<24xf32>
    %35 = vector.multi_reduction <add>, %34, %cst_10 [1] : vector<24x24xf32> to vector<24xf32>
    %36 = vector.shape_cast %35 : vector<24xf32> to vector<24x1xf32>
    %37 = tpu.reciprocal %36 {approx = true} : vector<24x1xf32> -> vector<24x1xf32>
    %38 = vector.broadcast %37 : vector<24x1xf32> to vector<24x24xf32>
    %39 = arith.mulf %34, %38 : vector<24x24xf32>
    %40 = arith.truncf %39 : vector<24x24xf32> to vector<24x24xbf16>
    %cst_11 = arith.constant dense<0.000000e+00> : vector<24x64xf32>
    %41 = tpu.matmul %40, %24, %cst_11 {dimension_numbers = #tpu.dot_dimension_numbers<[1], [0], [0], [1], [0, 0, 1, 1], [], []>} : vector<24x24xbf16>, vector<24x64xbf16>, vector<24x64xf32> -> vector<24x64xf32>
    %c0_12 = arith.constant 0 : index
    %c0_13 = arith.constant 0 : index
    %42 = vector.load %arg8[%c0_12, %c0_13] : memref<48x128xf32, #tpu.memory_space<vmem>>, vector<24x64xf32>
    tpu.vector_store %arg8[%c0_12, %c0_13], %41 {strides = array<i32>} : memref<48x128xf32, #tpu.memory_space<vmem>>, vector<24x64xf32>,
    %43 = vector.extract_strided_slice %15 {offsets = [0, 64], sizes = [24, 64], strides = [1, 1]} : vector<48x384xf32> to vector<24x64xf32>
    %44 = arith.truncf %43 : vector<24x64xf32> to vector<24x64xbf16>
    %45 = vector.extract_strided_slice %15 {offsets = [0, 192], sizes = [24, 64], strides = [1, 1]} : vector<48x384xf32> to vector<24x64xf32>
    %46 = arith.truncf %45 : vector<24x64xf32> to vector<24x64xbf16>
    %47 = vector.extract_strided_slice %15 {offsets = [0, 320], sizes = [24, 64], strides = [1, 1]} : vector<48x384xf32> to vector<24x64xf32>
    %48 = arith.truncf %47 : vector<24x64xf32> to vector<24x64xbf16>
    %cst_14 = arith.constant dense<0.000000e+00> : vector<24x24xf32>
    %49 = tpu.matmul %44, %46, %cst_14 {dimension_numbers = #tpu.dot_dimension_numbers<[1], [1], [0], [0], [0, 0, 1, 0], [], []>} : vector<24x64xbf16>, vector<24x64xbf16>, vector<24x24xf32> -> vector<24x24xf32>
    %cst_15 = arith.constant 1.250000e-01 : f32
    %50 = vector.broadcast %cst_15 : f32 to vector<24x24xf32>
    %51 = arith.mulf %49, %50 : vector<24x24xf32>
    %cst_16 = arith.constant -1.000000e+30 : f32
    %52 = vector.broadcast %cst_16 : f32 to vector<24x24xf32>
    %53 = arith.select %18, %51, %52 : vector<24x24xi1>, vector<24x24xf32>
    %cst_17 = arith.constant dense<0xFF800000> : vector<24xf32>
    %54 = vector.multi_reduction <maximumf>, %53, %cst_17 [1] : vector<24x24xf32> to vector<24xf32>
    %55 = vector.shape_cast %54 : vector<24xf32> to vector<24x1xf32>
    %56 = vector.broadcast %55 : vector<24x1xf32> to vector<24x24xf32>
    %57 = arith.subf %53, %56 : vector<24x24xf32>
    %58 = math.exp %57 : vector<24x24xf32>
    %cst_18 = arith.constant dense<0.000000e+00> : vector<24xf32>
    %59 = vector.multi_reduction <add>, %58, %cst_18 [1] : vector<24x24xf32> to vector<24xf32>
    %60 = vector.shape_cast %59 : vector<24xf32> to vector<24x1xf32>
    %61 = tpu.reciprocal %60 {approx = true} : vector<24x1xf32> -> vector<24x1xf32>
    %62 = vector.broadcast %61 : vector<24x1xf32> to vector<24x24xf32>
    %63 = arith.mulf %58, %62 : vector<24x24xf32>
    %64 = arith.truncf %63 : vector<24x24xf32> to vector<24x24xbf16>
    %cst_19 = arith.constant dense<0.000000e+00> : vector<24x64xf32>
    %65 = tpu.matmul %64, %48, %cst_19 {dimension_numbers = #tpu.dot_dimension_numbers<[1], [0], [0], [1], [0, 0, 1, 1], [], []>} : vector<24x24xbf16>, vector<24x64xbf16>, vector<24x64xf32> -> vector<24x64xf32>
    %c0_20 = arith.constant 0 : index
    %c64 = arith.constant 64 : index
    %66 = vector.load %arg8[%c0_20, %c64] : memref<48x128xf32, #tpu.memory_space<vmem>>, vector<24x64xf32>
    tpu.vector_store %arg8[%c0_20, %c64], %65 {strides = array<i32>} : memref<48x128xf32, #tpu.memory_space<vmem>>, vector<24x64xf32>,
    %67 = vector.extract_strided_slice %15 {offsets = [24, 0], sizes = [24, 64], strides = [1, 1]} : vector<48x384xf32> to vector<24x64xf32>
    %68 = arith.truncf %67 : vector<24x64xf32> to vector<24x64xbf16>
    %69 = vector.extract_strided_slice %15 {offsets = [24, 128], sizes = [24, 64], strides = [1, 1]} : vector<48x384xf32> to vector<24x64xf32>
    %70 = arith.truncf %69 : vector<24x64xf32> to vector<24x64xbf16>
    %71 = vector.extract_strided_slice %15 {offsets = [24, 256], sizes = [24, 64], strides = [1, 1]} : vector<48x384xf32> to vector<24x64xf32>
    %72 = arith.truncf %71 : vector<24x64xf32> to vector<24x64xbf16>
    %cst_21 = arith.constant dense<0.000000e+00> : vector<24x24xf32>
    %73 = tpu.matmul %68, %70, %cst_21 {dimension_numbers = #tpu.dot_dimension_numbers<[1], [1], [0], [0], [0, 0, 1, 0], [], []>} : vector<24x64xbf16>, vector<24x64xbf16>, vector<24x24xf32> -> vector<24x24xf32>
    %cst_22 = arith.constant 1.250000e-01 : f32
    %74 = vector.broadcast %cst_22 : f32 to vector<24x24xf32>
    %75 = arith.mulf %73, %74 : vector<24x24xf32>
    %cst_23 = arith.constant -1.000000e+30 : f32
    %76 = vector.broadcast %cst_23 : f32 to vector<24x24xf32>
    %77 = arith.select %18, %75, %76 : vector<24x24xi1>, vector<24x24xf32>
    %cst_24 = arith.constant dense<0xFF800000> : vector<24xf32>
    %78 = vector.multi_reduction <maximumf>, %77, %cst_24 [1] : vector<24x24xf32> to vector<24xf32>
    %79 = vector.shape_cast %78 : vector<24xf32> to vector<24x1xf32>
    %80 = vector.broadcast %79 : vector<24x1xf32> to vector<24x24xf32>
    %81 = arith.subf %77, %80 : vector<24x24xf32>
    %82 = math.exp %81 : vector<24x24xf32>
    %cst_25 = arith.constant dense<0.000000e+00> : vector<24xf32>
    %83 = vector.multi_reduction <add>, %82, %cst_25 [1] : vector<24x24xf32> to vector<24xf32>
    %84 = vector.shape_cast %83 : vector<24xf32> to vector<24x1xf32>
    %85 = tpu.reciprocal %84 {approx = true} : vector<24x1xf32> -> vector<24x1xf32>
    %86 = vector.broadcast %85 : vector<24x1xf32> to vector<24x24xf32>
    %87 = arith.mulf %82, %86 : vector<24x24xf32>
    %88 = arith.truncf %87 : vector<24x24xf32> to vector<24x24xbf16>
    %cst_26 = arith.constant dense<0.000000e+00> : vector<24x64xf32>
    %89 = tpu.matmul %88, %72, %cst_26 {dimension_numbers = #tpu.dot_dimension_numbers<[1], [0], [0], [1], [0, 0, 1, 1], [], []>} : vector<24x24xbf16>, vector<24x64xbf16>, vector<24x64xf32> -> vector<24x64xf32>
    %c24 = arith.constant 24 : index
    %c0_27 = arith.constant 0 : index
    %90 = vector.load %arg8[%c24, %c0_27] : memref<48x128xf32, #tpu.memory_space<vmem>>, vector<24x64xf32>
    tpu.vector_store %arg8[%c24, %c0_27], %89 {strides = array<i32>} : memref<48x128xf32, #tpu.memory_space<vmem>>, vector<24x64xf32>,
    %91 = vector.extract_strided_slice %15 {offsets = [24, 64], sizes = [24, 64], strides = [1, 1]} : vector<48x384xf32> to vector<24x64xf32>
    %92 = arith.truncf %91 : vector<24x64xf32> to vector<24x64xbf16>
    %93 = vector.extract_strided_slice %15 {offsets = [24, 192], sizes = [24, 64], strides = [1, 1]} : vector<48x384xf32> to vector<24x64xf32>
    %94 = arith.truncf %93 : vector<24x64xf32> to vector<24x64xbf16>
    %95 = vector.extract_strided_slice %15 {offsets = [24, 320], sizes = [24, 64], strides = [1, 1]} : vector<48x384xf32> to vector<24x64xf32>
    %96 = arith.truncf %95 : vector<24x64xf32> to vector<24x64xbf16>
    %cst_28 = arith.constant dense<0.000000e+00> : vector<24x24xf32>
    %97 = tpu.matmul %92, %94, %cst_28 {dimension_numbers = #tpu.dot_dimension_numbers<[1], [1], [0], [0], [0, 0, 1, 0], [], []>} : vector<24x64xbf16>, vector<24x64xbf16>, vector<24x24xf32> -> vector<24x24xf32>
    %cst_29 = arith.constant 1.250000e-01 : f32
    %98 = vector.broadcast %cst_29 : f32 to vector<24x24xf32>
    %99 = arith.mulf %97, %98 : vector<24x24xf32>
    %cst_30 = arith.constant -1.000000e+30 : f32
    %100 = vector.broadcast %cst_30 : f32 to vector<24x24xf32>
    %101 = arith.select %18, %99, %100 : vector<24x24xi1>, vector<24x24xf32>
    %cst_31 = arith.constant dense<0xFF800000> : vector<24xf32>
    %102 = vector.multi_reduction <maximumf>, %101, %cst_31 [1] : vector<24x24xf32> to vector<24xf32>
    %103 = vector.shape_cast %102 : vector<24xf32> to vector<24x1xf32>
    %104 = vector.broadcast %103 : vector<24x1xf32> to vector<24x24xf32>
    %105 = arith.subf %101, %104 : vector<24x24xf32>
    %106 = math.exp %105 : vector<24x24xf32>
    %cst_32 = arith.constant dense<0.000000e+00> : vector<24xf32>
    %107 = vector.multi_reduction <add>, %106, %cst_32 [1] : vector<24x24xf32> to vector<24xf32>
    %108 = vector.shape_cast %107 : vector<24xf32> to vector<24x1xf32>
    %109 = tpu.reciprocal %108 {approx = true} : vector<24x1xf32> -> vector<24x1xf32>
    %110 = vector.broadcast %109 : vector<24x1xf32> to vector<24x24xf32>
    %111 = arith.mulf %106, %110 : vector<24x24xf32>
    %112 = arith.truncf %111 : vector<24x24xf32> to vector<24x24xbf16>
    %cst_33 = arith.constant dense<0.000000e+00> : vector<24x64xf32>
    %113 = tpu.matmul %112, %96, %cst_33 {dimension_numbers = #tpu.dot_dimension_numbers<[1], [0], [0], [1], [0, 0, 1, 1], [], []>} : vector<24x24xbf16>, vector<24x64xbf16>, vector<24x64xf32> -> vector<24x64xf32>
    %c24_34 = arith.constant 24 : index
    %c64_35 = arith.constant 64 : index
    %114 = vector.load %arg8[%c24_34, %c64_35] : memref<48x128xf32, #tpu.memory_space<vmem>>, vector<24x64xf32>
    tpu.vector_store %arg8[%c24_34, %c64_35], %113 {strides = array<i32>} : memref<48x128xf32, #tpu.memory_space<vmem>>, vector<24x64xf32>,
    %c0_36 = arith.constant 0 : index
    %c0_37 = arith.constant 0 : index
    %115 = vector.load %arg8[%c0_36, %c0_37] : memref<48x128xf32, #tpu.memory_space<vmem>>, vector<48x128xf32>
    %116 = arith.truncf %115 : vector<48x128xf32> to vector<48x128xbf16>
    %c0_38 = arith.constant 0 : index
    %c0_39 = arith.constant 0 : index
    %117 = vector.load %arg3[%c0_38, %c0_39] : memref<128x128xbf16, #tpu.memory_space<vmem>>, vector<128x128xbf16>
    %cst_40 = arith.constant dense<0.000000e+00> : vector<48x128xf32>
    %118 = tpu.matmul %116, %117, %cst_40 {dimension_numbers = #tpu.dot_dimension_numbers<[1], [0], [0], [1], [0, 0, 1, 1], [], []>} : vector<48x128xbf16>, vector<128x128xbf16>, vector<48x128xf32> -> vector<48x128xf32>
    %119 = vector.broadcast %2 : vector<1x128xf32> to vector<48x128xf32>
    %120 = arith.addf %118, %119 : vector<48x128xf32>
    %121 = arith.addf %10, %120 : vector<48x128xf32>
    %cst_41 = arith.constant dense<0.000000e+00> : vector<48xf32>
    %122 = vector.multi_reduction <add>, %121, %cst_41 [1] : vector<48x128xf32> to vector<48xf32>
    %123 = vector.shape_cast %122 : vector<48xf32> to vector<48x1xf32>
    %cst_42 = arith.constant 1.280000e+02 : f32
    %124 = vector.broadcast %cst_42 : f32 to vector<48x1xf32>
    %125 = arith.divf %123, %124 : vector<48x1xf32>
    %126 = vector.broadcast %125 : vector<48x1xf32> to vector<48x128xf32>
    %127 = arith.subf %121, %126 : vector<48x128xf32>
    %128 = arith.mulf %127, %127 : vector<48x128xf32>
    %cst_43 = arith.constant dense<0.000000e+00> : vector<48xf32>
    %129 = vector.multi_reduction <add>, %128, %cst_43 [1] : vector<48x128xf32> to vector<48xf32>
    %130 = vector.shape_cast %129 : vector<48xf32> to vector<48x1xf32>
    %cst_44 = arith.constant 1.280000e+02 : f32
    %131 = vector.broadcast %cst_44 : f32 to vector<48x1xf32>
    %132 = arith.divf %130, %131 : vector<48x1xf32>
    %133 = vector.broadcast %125 : vector<48x1xf32> to vector<48x128xf32>
    %134 = arith.subf %121, %133 : vector<48x128xf32>
    %cst_45 = arith.constant 9.99999974E-6 : f32
    %135 = vector.broadcast %cst_45 : f32 to vector<48x1xf32>
    %136 = arith.addf %132, %135 : vector<48x1xf32>
    %137 = math.rsqrt %136 : vector<48x1xf32>
    %138 = vector.broadcast %137 : vector<48x1xf32> to vector<48x128xf32>
    %139 = arith.mulf %134, %138 : vector<48x128xf32>
    %140 = vector.broadcast %5 : vector<1x128xf32> to vector<48x128xf32>
    %141 = arith.mulf %139, %140 : vector<48x128xf32>
    %142 = vector.broadcast %6 : vector<1x128xf32> to vector<48x128xf32>
    %143 = arith.addf %141, %142 : vector<48x128xf32>
    %144 = arith.truncf %143 : vector<48x128xf32> to vector<48x128xbf16>
    %c0_46 = arith.constant 0 : index
    %c0_47 = arith.constant 0 : index
    %145 = vector.load %arg4[%c0_46, %c0_47] : memref<128x512xbf16, #tpu.memory_space<vmem>>, vector<128x512xbf16>
    %cst_48 = arith.constant dense<0.000000e+00> : vector<48x512xf32>
    %146 = tpu.matmul %144, %145, %cst_48 {dimension_numbers = #tpu.dot_dimension_numbers<[1], [0], [0], [1], [0, 0, 1, 1], [], []>} : vector<48x128xbf16>, vector<128x512xbf16>, vector<48x512xf32> -> vector<48x512xf32>
    %147 = vector.broadcast %3 : vector<1x512xf32> to vector<48x512xf32>
    %148 = arith.addf %146, %147 : vector<48x512xf32>
    %149 = arith.mulf %148, %148 : vector<48x512xf32>
    %150 = arith.mulf %148, %149 : vector<48x512xf32>
    %cst_49 = arith.constant 4.471500e-02 : f32
    %151 = vector.broadcast %cst_49 : f32 to vector<48x512xf32>
    %152 = arith.mulf %151, %150 : vector<48x512xf32>
    %153 = arith.addf %148, %152 : vector<48x512xf32>
    %cst_50 = arith.constant 0.797884583 : f32
    %154 = vector.broadcast %cst_50 : f32 to vector<48x512xf32>
    %155 = arith.mulf %154, %153 : vector<48x512xf32>
    %156 = math.tanh %155 : vector<48x512xf32>
    %cst_51 = arith.constant 1.000000e+00 : f32
    %157 = vector.broadcast %cst_51 : f32 to vector<48x512xf32>
    %158 = arith.addf %157, %156 : vector<48x512xf32>
    %cst_52 = arith.constant 5.000000e-01 : f32
    %159 = vector.broadcast %cst_52 : f32 to vector<48x512xf32>
    %160 = arith.mulf %159, %158 : vector<48x512xf32>
    %161 = arith.mulf %148, %160 : vector<48x512xf32>
    %162 = arith.truncf %161 : vector<48x512xf32> to vector<48x512xbf16>
    %c0_53 = arith.constant 0 : index
    %c0_54 = arith.constant 0 : index
    %163 = vector.load %arg5[%c0_53, %c0_54] : memref<512x128xbf16, #tpu.memory_space<vmem>>, vector<512x128xbf16>
    %cst_55 = arith.constant dense<0.000000e+00> : vector<48x128xf32>
    %164 = tpu.matmul %162, %163, %cst_55 {dimension_numbers = #tpu.dot_dimension_numbers<[1], [0], [0], [1], [0, 0, 1, 1], [], []>} : vector<48x512xbf16>, vector<512x128xbf16>, vector<48x128xf32> -> vector<48x128xf32>
    %165 = vector.broadcast %4 : vector<1x128xf32> to vector<48x128xf32>
    %166 = arith.addf %164, %165 : vector<48x128xf32>
    %167 = arith.addf %143, %166 : vector<48x128xf32>
    %cst_56 = arith.constant dense<0.000000e+00> : vector<48xf32>
    %168 = vector.multi_reduction <add>, %167, %cst_56 [1] : vector<48x128xf32> to vector<48xf32>
    %169 = vector.shape_cast %168 : vector<48xf32> to vector<48x1xf32>
    %cst_57 = arith.constant 1.280000e+02 : f32
    %170 = vector.broadcast %cst_57 : f32 to vector<48x1xf32>
    %171 = arith.divf %169, %170 : vector<48x1xf32>
    %172 = vector.broadcast %171 : vector<48x1xf32> to vector<48x128xf32>
    %173 = arith.subf %167, %172 : vector<48x128xf32>
    %174 = arith.mulf %173, %173 : vector<48x128xf32>
    %cst_58 = arith.constant dense<0.000000e+00> : vector<48xf32>
    %175 = vector.multi_reduction <add>, %174, %cst_58 [1] : vector<48x128xf32> to vector<48xf32>
    %176 = vector.shape_cast %175 : vector<48xf32> to vector<48x1xf32>
    %cst_59 = arith.constant 1.280000e+02 : f32
    %177 = vector.broadcast %cst_59 : f32 to vector<48x1xf32>
    %178 = arith.divf %176, %177 : vector<48x1xf32>
    %179 = vector.broadcast %171 : vector<48x1xf32> to vector<48x128xf32>
    %180 = arith.subf %167, %179 : vector<48x128xf32>
    %cst_60 = arith.constant 9.99999974E-6 : f32
    %181 = vector.broadcast %cst_60 : f32 to vector<48x1xf32>
    %182 = arith.addf %178, %181 : vector<48x1xf32>
    %183 = math.rsqrt %182 : vector<48x1xf32>
    %184 = vector.broadcast %183 : vector<48x1xf32> to vector<48x128xf32>
    %185 = arith.mulf %180, %184 : vector<48x128xf32>
    %186 = vector.broadcast %7 : vector<1x128xf32> to vector<48x128xf32>
    %187 = arith.mulf %185, %186 : vector<48x128xf32>
    %188 = vector.broadcast %8 : vector<1x128xf32> to vector<48x128xf32>
    %189 = arith.addf %187, %188 : vector<48x128xf32>
    %190 = vector.shape_cast %189 : vector<48x128xf32> to vector<2x24x128xf32>
    %c0_61 = arith.constant 0 : index
    %c0_62 = arith.constant 0 : index
    %c0_63 = arith.constant 0 : index
    %191 = vector.load %arg7[%c0_61, %c0_62, %c0_63] : memref<2x24x128xf32, #tpu.memory_space<vmem>>, vector<2x24x128xf32>
    tpu.vector_store %arg7[%c0_61, %c0_62, %c0_63], %190 {strides = array<i32>} : memref<2x24x128xf32, #tpu.memory_space<vmem>>, vector<2x24x128xf32>,
    return
  }
  func.func @transform_0(%arg0: i32) -> (i32, i32, i32) {
    %c0_i32 = arith.constant 0 : i32
    %c0_i32_0 = arith.constant 0 : i32
    %c0_i32_1 = arith.constant 0 : i32
    return %arg0, %c0_i32, %c0_i32_0 : i32, i32, i32
  }
  func.func @transform_1(%arg0: i32) -> (i32, i32) {
    %c0_i32 = arith.constant 0 : i32
    %c0_i32_0 = arith.constant 0 : i32
    %c0_i32_1 = arith.constant 0 : i32
    return %c0_i32, %c0_i32_0 : i32, i32
  }
  func.func @transform_2(%arg0: i32) -> (i32, i32) {
    %c0_i32 = arith.constant 0 : i32
    %c0_i32_0 = arith.constant 0 : i32
    %c0_i32_1 = arith.constant 0 : i32
    return %c0_i32, %c0_i32_0 : i32, i32
  }
  func.func @transform_3(%arg0: i32) -> (i32, i32) {
    %c0_i32 = arith.constant 0 : i32
    %c0_i32_0 = arith.constant 0 : i32
    %c0_i32_1 = arith.constant 0 : i32
    return %c0_i32, %c0_i32_0 : i32, i32
  }
  func.func @transform_4(%arg0: i32) -> (i32, i32) {
    %c0_i32 = arith.constant 0 : i32
    %c0_i32_0 = arith.constant 0 : i32
    %c0_i32_1 = arith.constant 0 : i32
    return %c0_i32, %c0_i32_0 : i32, i32
  }
  func.func @transform_5(%arg0: i32) -> (i32, i32) {
    %c0_i32 = arith.constant 0 : i32
    %c0_i32_0 = arith.constant 0 : i32
    %c0_i32_1 = arith.constant 0 : i32
    return %c0_i32, %c0_i32_0 : i32, i32
  }
  func.func @transform_6(%arg0: i32) -> (i32, i32, i32) {
    %c0_i32 = arith.constant 0 : i32
    %c0_i32_0 = arith.constant 0 : i32
    %c0_i32_1 = arith.constant 0 : i32
    return %arg0, %c0_i32, %c0_i32_0 : i32, i32, i32
  }
}

module attributes {stable_mosaic.version = 11 : i64} {
  func.func @_embed_kernel(%arg0: i32, %arg1: memref<2x8x6xf32, #tpu.memory_space<vmem>>, %arg2: memref<2x8x3xf32, #tpu.memory_space<vmem>>, %arg3: memref<2x8x1xf32, #tpu.memory_space<vmem>>, %arg4: memref<2x8x128xf32, #tpu.memory_space<vmem>>, %arg5: memref<6x128xbf16, #tpu.memory_space<vmem>>, %arg6: memref<3x128xbf16, #tpu.memory_space<vmem>>, %arg7: memref<8x128xf32, #tpu.memory_space<vmem>>, %arg8: memref<2x8x3x128xf32, #tpu.memory_space<vmem>>) attributes {dimension_semantics = [#tpu.dimension_semantics<parallel>], iteration_bounds = array<i64: 2>, scalar_prefetch = 0 : i64, scratch_operands = 0 : i64, tpu.core_type = #tpu.core_type<tc>, window_params = [{transform_indices = @transform_0, window_bounds = array<i64: 2, 8, 6>}, {transform_indices = @transform_1, window_bounds = array<i64: 2, 8, 3>}, {transform_indices = @transform_2, window_bounds = array<i64: 2, 8, 1>}, {transform_indices = @transform_3, window_bounds = array<i64: 2, 8, 128>}, {pipeline_mode = #tpu.pipeline_mode<synchronous>, transform_indices = @transform_4, window_bounds = array<i64: 6, 128>}, {pipeline_mode = #tpu.pipeline_mode<synchronous>, transform_indices = @transform_5, window_bounds = array<i64: 3, 128>}, {pipeline_mode = #tpu.pipeline_mode<synchronous>, transform_indices = @transform_6, window_bounds = array<i64: 8, 128>}, {transform_indices = @transform_7, window_bounds = array<i64: 2, 8, 3, 128>}]} {
    %c0 = arith.constant 0 : index
    %c0_0 = arith.constant 0 : index
    %0 = vector.load %arg7[%c0, %c0_0] : memref<8x128xf32, #tpu.memory_space<vmem>>, vector<8x128xf32>
    %1 = vector.extract_strided_slice %0 {offsets = [0, 0], sizes = [1, 128], strides = [1, 1]} : vector<8x128xf32> to vector<1x128xf32>
    %2 = vector.extract_strided_slice %0 {offsets = [1, 0], sizes = [1, 128], strides = [1, 1]} : vector<8x128xf32> to vector<1x128xf32>
    %3 = vector.extract_strided_slice %0 {offsets = [2, 0], sizes = [1, 128], strides = [1, 1]} : vector<8x128xf32> to vector<1x128xf32>
    %4 = vector.extract_strided_slice %0 {offsets = [3, 0], sizes = [1, 128], strides = [1, 1]} : vector<8x128xf32> to vector<1x128xf32>
    %5 = vector.extract_strided_slice %0 {offsets = [4, 0], sizes = [1, 128], strides = [1, 1]} : vector<8x128xf32> to vector<1x128xf32>
    %6 = vector.extract_strided_slice %0 {offsets = [5, 0], sizes = [1, 128], strides = [1, 1]} : vector<8x128xf32> to vector<1x128xf32>
    %c0_1 = arith.constant 0 : index
    %c0_2 = arith.constant 0 : index
    %c0_3 = arith.constant 0 : index
    %7 = vector.load %arg4[%c0_1, %c0_2, %c0_3] : memref<2x8x128xf32, #tpu.memory_space<vmem>>, vector<2x8x128xf32>
    %8 = vector.shape_cast %7 : vector<2x8x128xf32> to vector<16x128xf32>
    %c0_4 = arith.constant 0 : index
    %c0_5 = arith.constant 0 : index
    %c0_6 = arith.constant 0 : index
    %9 = vector.load %arg1[%c0_4, %c0_5, %c0_6] : memref<2x8x6xf32, #tpu.memory_space<vmem>>, vector<2x8x6xf32>
    %10 = vector.shape_cast %9 : vector<2x8x6xf32> to vector<16x6xf32>
    %c0_7 = arith.constant 0 : index
    %c0_8 = arith.constant 0 : index
    %c0_9 = arith.constant 0 : index
    %11 = vector.load %arg2[%c0_7, %c0_8, %c0_9] : memref<2x8x3xf32, #tpu.memory_space<vmem>>, vector<2x8x3xf32>
    %12 = vector.shape_cast %11 : vector<2x8x3xf32> to vector<16x3xf32>
    %c0_10 = arith.constant 0 : index
    %c0_11 = arith.constant 0 : index
    %c0_12 = arith.constant 0 : index
    %13 = vector.load %arg3[%c0_10, %c0_11, %c0_12] : memref<2x8x1xf32, #tpu.memory_space<vmem>>, vector<2x8x1xf32>
    %14 = vector.shape_cast %13 : vector<2x8x1xf32> to vector<16x1xf32>
    %15 = arith.truncf %10 : vector<16x6xf32> to vector<16x6xbf16>
    %c0_13 = arith.constant 0 : index
    %c0_14 = arith.constant 0 : index
    %16 = vector.load %arg5[%c0_13, %c0_14] : memref<6x128xbf16, #tpu.memory_space<vmem>>, vector<6x128xbf16>
    %cst = arith.constant dense<0.000000e+00> : vector<16x128xf32>
    %17 = tpu.matmul %15, %16, %cst {dimension_numbers = #tpu.dot_dimension_numbers<[1], [0], [0], [1], [0, 0, 1, 1], [], []>} : vector<16x6xbf16>, vector<6x128xbf16>, vector<16x128xf32> -> vector<16x128xf32>
    %18 = vector.broadcast %1 : vector<1x128xf32> to vector<16x128xf32>
    %19 = arith.addf %17, %18 : vector<16x128xf32>
    %20 = arith.addf %19, %8 : vector<16x128xf32>
    %21 = arith.truncf %12 : vector<16x3xf32> to vector<16x3xbf16>
    %c0_15 = arith.constant 0 : index
    %c0_16 = arith.constant 0 : index
    %22 = vector.load %arg6[%c0_15, %c0_16] : memref<3x128xbf16, #tpu.memory_space<vmem>>, vector<3x128xbf16>
    %cst_17 = arith.constant dense<0.000000e+00> : vector<16x128xf32>
    %23 = tpu.matmul %21, %22, %cst_17 {dimension_numbers = #tpu.dot_dimension_numbers<[1], [0], [0], [1], [0, 0, 1, 1], [], []>} : vector<16x3xbf16>, vector<3x128xbf16>, vector<16x128xf32> -> vector<16x128xf32>
    %24 = vector.broadcast %2 : vector<1x128xf32> to vector<16x128xf32>
    %25 = arith.addf %23, %24 : vector<16x128xf32>
    %26 = arith.addf %25, %8 : vector<16x128xf32>
    %27 = vector.broadcast %14 : vector<16x1xf32> to vector<16x128xf32>
    %28 = vector.broadcast %4 : vector<1x128xf32> to vector<16x128xf32>
    %29 = arith.mulf %27, %28 : vector<16x128xf32>
    %30 = vector.broadcast %3 : vector<1x128xf32> to vector<16x128xf32>
    %31 = arith.addf %29, %30 : vector<16x128xf32>
    %32 = arith.addf %31, %8 : vector<16x128xf32>
    %cst_18 = arith.constant dense<0.000000e+00> : vector<16xf32>
    %33 = vector.multi_reduction <add>, %20, %cst_18 [1] : vector<16x128xf32> to vector<16xf32>
    %34 = vector.shape_cast %33 : vector<16xf32> to vector<16x1xf32>
    %cst_19 = arith.constant 1.280000e+02 : f32
    %35 = vector.broadcast %cst_19 : f32 to vector<16x1xf32>
    %36 = arith.divf %34, %35 : vector<16x1xf32>
    %37 = vector.broadcast %36 : vector<16x1xf32> to vector<16x128xf32>
    %38 = arith.subf %20, %37 : vector<16x128xf32>
    %39 = arith.mulf %38, %38 : vector<16x128xf32>
    %cst_20 = arith.constant dense<0.000000e+00> : vector<16xf32>
    %40 = vector.multi_reduction <add>, %39, %cst_20 [1] : vector<16x128xf32> to vector<16xf32>
    %41 = vector.shape_cast %40 : vector<16xf32> to vector<16x1xf32>
    %cst_21 = arith.constant 1.280000e+02 : f32
    %42 = vector.broadcast %cst_21 : f32 to vector<16x1xf32>
    %43 = arith.divf %41, %42 : vector<16x1xf32>
    %44 = vector.broadcast %36 : vector<16x1xf32> to vector<16x128xf32>
    %45 = arith.subf %20, %44 : vector<16x128xf32>
    %cst_22 = arith.constant 9.99999974E-6 : f32
    %46 = vector.broadcast %cst_22 : f32 to vector<16x1xf32>
    %47 = arith.addf %43, %46 : vector<16x1xf32>
    %48 = math.rsqrt %47 : vector<16x1xf32>
    %49 = vector.broadcast %48 : vector<16x1xf32> to vector<16x128xf32>
    %50 = arith.mulf %45, %49 : vector<16x128xf32>
    %51 = vector.broadcast %5 : vector<1x128xf32> to vector<16x128xf32>
    %52 = arith.mulf %50, %51 : vector<16x128xf32>
    %53 = vector.broadcast %6 : vector<1x128xf32> to vector<16x128xf32>
    %54 = arith.addf %52, %53 : vector<16x128xf32>
    %55 = vector.shape_cast %54 : vector<16x128xf32> to vector<2x8x1x128xf32>
    %c0_23 = arith.constant 0 : index
    %c0_24 = arith.constant 0 : index
    %c0_25 = arith.constant 0 : index
    %c0_26 = arith.constant 0 : index
    %56 = vector.load %arg8[%c0_23, %c0_24, %c0_25, %c0_26] : memref<2x8x3x128xf32, #tpu.memory_space<vmem>>, vector<2x8x1x128xf32>
    tpu.vector_store %arg8[%c0_23, %c0_24, %c0_25, %c0_26], %55 {strides = array<i32>} : memref<2x8x3x128xf32, #tpu.memory_space<vmem>>, vector<2x8x1x128xf32>,
    %cst_27 = arith.constant dense<0.000000e+00> : vector<16xf32>
    %57 = vector.multi_reduction <add>, %32, %cst_27 [1] : vector<16x128xf32> to vector<16xf32>
    %58 = vector.shape_cast %57 : vector<16xf32> to vector<16x1xf32>
    %cst_28 = arith.constant 1.280000e+02 : f32
    %59 = vector.broadcast %cst_28 : f32 to vector<16x1xf32>
    %60 = arith.divf %58, %59 : vector<16x1xf32>
    %61 = vector.broadcast %60 : vector<16x1xf32> to vector<16x128xf32>
    %62 = arith.subf %32, %61 : vector<16x128xf32>
    %63 = arith.mulf %62, %62 : vector<16x128xf32>
    %cst_29 = arith.constant dense<0.000000e+00> : vector<16xf32>
    %64 = vector.multi_reduction <add>, %63, %cst_29 [1] : vector<16x128xf32> to vector<16xf32>
    %65 = vector.shape_cast %64 : vector<16xf32> to vector<16x1xf32>
    %cst_30 = arith.constant 1.280000e+02 : f32
    %66 = vector.broadcast %cst_30 : f32 to vector<16x1xf32>
    %67 = arith.divf %65, %66 : vector<16x1xf32>
    %68 = vector.broadcast %60 : vector<16x1xf32> to vector<16x128xf32>
    %69 = arith.subf %32, %68 : vector<16x128xf32>
    %cst_31 = arith.constant 9.99999974E-6 : f32
    %70 = vector.broadcast %cst_31 : f32 to vector<16x1xf32>
    %71 = arith.addf %67, %70 : vector<16x1xf32>
    %72 = math.rsqrt %71 : vector<16x1xf32>
    %73 = vector.broadcast %72 : vector<16x1xf32> to vector<16x128xf32>
    %74 = arith.mulf %69, %73 : vector<16x128xf32>
    %75 = vector.broadcast %5 : vector<1x128xf32> to vector<16x128xf32>
    %76 = arith.mulf %74, %75 : vector<16x128xf32>
    %77 = vector.broadcast %6 : vector<1x128xf32> to vector<16x128xf32>
    %78 = arith.addf %76, %77 : vector<16x128xf32>
    %79 = vector.shape_cast %78 : vector<16x128xf32> to vector<2x8x1x128xf32>
    %c0_32 = arith.constant 0 : index
    %c0_33 = arith.constant 0 : index
    %c1 = arith.constant 1 : index
    %c0_34 = arith.constant 0 : index
    %80 = vector.load %arg8[%c0_32, %c0_33, %c1, %c0_34] : memref<2x8x3x128xf32, #tpu.memory_space<vmem>>, vector<2x8x1x128xf32>
    tpu.vector_store %arg8[%c0_32, %c0_33, %c1, %c0_34], %79 {strides = array<i32>} : memref<2x8x3x128xf32, #tpu.memory_space<vmem>>, vector<2x8x1x128xf32>,
    %cst_35 = arith.constant dense<0.000000e+00> : vector<16xf32>
    %81 = vector.multi_reduction <add>, %26, %cst_35 [1] : vector<16x128xf32> to vector<16xf32>
    %82 = vector.shape_cast %81 : vector<16xf32> to vector<16x1xf32>
    %cst_36 = arith.constant 1.280000e+02 : f32
    %83 = vector.broadcast %cst_36 : f32 to vector<16x1xf32>
    %84 = arith.divf %82, %83 : vector<16x1xf32>
    %85 = vector.broadcast %84 : vector<16x1xf32> to vector<16x128xf32>
    %86 = arith.subf %26, %85 : vector<16x128xf32>
    %87 = arith.mulf %86, %86 : vector<16x128xf32>
    %cst_37 = arith.constant dense<0.000000e+00> : vector<16xf32>
    %88 = vector.multi_reduction <add>, %87, %cst_37 [1] : vector<16x128xf32> to vector<16xf32>
    %89 = vector.shape_cast %88 : vector<16xf32> to vector<16x1xf32>
    %cst_38 = arith.constant 1.280000e+02 : f32
    %90 = vector.broadcast %cst_38 : f32 to vector<16x1xf32>
    %91 = arith.divf %89, %90 : vector<16x1xf32>
    %92 = vector.broadcast %84 : vector<16x1xf32> to vector<16x128xf32>
    %93 = arith.subf %26, %92 : vector<16x128xf32>
    %cst_39 = arith.constant 9.99999974E-6 : f32
    %94 = vector.broadcast %cst_39 : f32 to vector<16x1xf32>
    %95 = arith.addf %91, %94 : vector<16x1xf32>
    %96 = math.rsqrt %95 : vector<16x1xf32>
    %97 = vector.broadcast %96 : vector<16x1xf32> to vector<16x128xf32>
    %98 = arith.mulf %93, %97 : vector<16x128xf32>
    %99 = vector.broadcast %5 : vector<1x128xf32> to vector<16x128xf32>
    %100 = arith.mulf %98, %99 : vector<16x128xf32>
    %101 = vector.broadcast %6 : vector<1x128xf32> to vector<16x128xf32>
    %102 = arith.addf %100, %101 : vector<16x128xf32>
    %103 = vector.shape_cast %102 : vector<16x128xf32> to vector<2x8x1x128xf32>
    %c0_40 = arith.constant 0 : index
    %c0_41 = arith.constant 0 : index
    %c2 = arith.constant 2 : index
    %c0_42 = arith.constant 0 : index
    %104 = vector.load %arg8[%c0_40, %c0_41, %c2, %c0_42] : memref<2x8x3x128xf32, #tpu.memory_space<vmem>>, vector<2x8x1x128xf32>
    tpu.vector_store %arg8[%c0_40, %c0_41, %c2, %c0_42], %103 {strides = array<i32>} : memref<2x8x3x128xf32, #tpu.memory_space<vmem>>, vector<2x8x1x128xf32>,
    return
  }
  func.func @transform_0(%arg0: i32) -> (i32, i32, i32) {
    %c0_i32 = arith.constant 0 : i32
    %c0_i32_0 = arith.constant 0 : i32
    %c0_i32_1 = arith.constant 0 : i32
    return %arg0, %c0_i32, %c0_i32_0 : i32, i32, i32
  }
  func.func @transform_1(%arg0: i32) -> (i32, i32, i32) {
    %c0_i32 = arith.constant 0 : i32
    %c0_i32_0 = arith.constant 0 : i32
    %c0_i32_1 = arith.constant 0 : i32
    return %arg0, %c0_i32, %c0_i32_0 : i32, i32, i32
  }
  func.func @transform_2(%arg0: i32) -> (i32, i32, i32) {
    %c0_i32 = arith.constant 0 : i32
    %c0_i32_0 = arith.constant 0 : i32
    %c0_i32_1 = arith.constant 0 : i32
    return %arg0, %c0_i32, %c0_i32_0 : i32, i32, i32
  }
  func.func @transform_3(%arg0: i32) -> (i32, i32, i32) {
    %c0_i32 = arith.constant 0 : i32
    %c0_i32_0 = arith.constant 0 : i32
    %c0_i32_1 = arith.constant 0 : i32
    return %arg0, %c0_i32, %c0_i32_0 : i32, i32, i32
  }
  func.func @transform_4(%arg0: i32) -> (i32, i32) {
    %c0_i32 = arith.constant 0 : i32
    %c0_i32_0 = arith.constant 0 : i32
    %c0_i32_1 = arith.constant 0 : i32
    return %c0_i32, %c0_i32_0 : i32, i32
  }
  func.func @transform_5(%arg0: i32) -> (i32, i32) {
    %c0_i32 = arith.constant 0 : i32
    %c0_i32_0 = arith.constant 0 : i32
    %c0_i32_1 = arith.constant 0 : i32
    return %c0_i32, %c0_i32_0 : i32, i32
  }
  func.func @transform_6(%arg0: i32) -> (i32, i32) {
    %c0_i32 = arith.constant 0 : i32
    %c0_i32_0 = arith.constant 0 : i32
    %c0_i32_1 = arith.constant 0 : i32
    return %c0_i32, %c0_i32_0 : i32, i32
  }
  func.func @transform_7(%arg0: i32) -> (i32, i32, i32, i32) {
    %c0_i32 = arith.constant 0 : i32
    %c0_i32_0 = arith.constant 0 : i32
    %c0_i32_1 = arith.constant 0 : i32
    %c0_i32_2 = arith.constant 0 : i32
    return %arg0, %c0_i32, %c0_i32_0, %c0_i32_1 : i32, i32, i32, i32
  }
}

module attributes {stable_mosaic.version = 11 : i64} {
  func.func @_heads_kernel(%arg0: i32, %arg1: memref<2x24x128xf32, #tpu.memory_space<vmem>>, %arg2: memref<128x128xbf16, #tpu.memory_space<vmem>>, %arg3: memref<1x128xf32, #tpu.memory_space<vmem>>, %arg4: memref<2x24x128xf32, #tpu.memory_space<vmem>>) attributes {dimension_semantics = [#tpu.dimension_semantics<parallel>], iteration_bounds = array<i64: 2>, scalar_prefetch = 0 : i64, scratch_operands = 0 : i64, tpu.core_type = #tpu.core_type<tc>, window_params = [{transform_indices = @transform_0, window_bounds = array<i64: 2, 24, 128>}, {pipeline_mode = #tpu.pipeline_mode<synchronous>, transform_indices = @transform_1, window_bounds = array<i64: 128, 128>}, {pipeline_mode = #tpu.pipeline_mode<synchronous>, transform_indices = @transform_2, window_bounds = array<i64: 1, 128>}, {transform_indices = @transform_3, window_bounds = array<i64: 2, 24, 128>}]} {
    %c0 = arith.constant 0 : index
    %c0_0 = arith.constant 0 : index
    %c0_1 = arith.constant 0 : index
    %0 = vector.load %arg1[%c0, %c0_0, %c0_1] : memref<2x24x128xf32, #tpu.memory_space<vmem>>, vector<2x24x128xf32>
    %1 = vector.shape_cast %0 : vector<2x24x128xf32> to vector<48x128xf32>
    %2 = arith.truncf %1 : vector<48x128xf32> to vector<48x128xbf16>
    %c0_2 = arith.constant 0 : index
    %c0_3 = arith.constant 0 : index
    %3 = vector.load %arg2[%c0_2, %c0_3] : memref<128x128xbf16, #tpu.memory_space<vmem>>, vector<128x128xbf16>
    %cst = arith.constant dense<0.000000e+00> : vector<48x128xf32>
    %4 = tpu.matmul %2, %3, %cst {dimension_numbers = #tpu.dot_dimension_numbers<[1], [0], [0], [1], [0, 0, 1, 1], [], []>} : vector<48x128xbf16>, vector<128x128xbf16>, vector<48x128xf32> -> vector<48x128xf32>
    %c0_4 = arith.constant 0 : index
    %c0_5 = arith.constant 0 : index
    %5 = vector.load %arg3[%c0_4, %c0_5] : memref<1x128xf32, #tpu.memory_space<vmem>>, vector<1x128xf32>
    %6 = vector.broadcast %5 : vector<1x128xf32> to vector<48x128xf32>
    %7 = arith.addf %4, %6 : vector<48x128xf32>
    %8 = vector.shape_cast %7 : vector<48x128xf32> to vector<2x24x128xf32>
    %c0_6 = arith.constant 0 : index
    %c0_7 = arith.constant 0 : index
    %c0_8 = arith.constant 0 : index
    %9 = vector.load %arg4[%c0_6, %c0_7, %c0_8] : memref<2x24x128xf32, #tpu.memory_space<vmem>>, vector<2x24x128xf32>
    tpu.vector_store %arg4[%c0_6, %c0_7, %c0_8], %8 {strides = array<i32>} : memref<2x24x128xf32, #tpu.memory_space<vmem>>, vector<2x24x128xf32>,
    return
  }
  func.func @transform_0(%arg0: i32) -> (i32, i32, i32) {
    %c0_i32 = arith.constant 0 : i32
    %c0_i32_0 = arith.constant 0 : i32
    %c0_i32_1 = arith.constant 0 : i32
    return %arg0, %c0_i32, %c0_i32_0 : i32, i32, i32
  }
  func.func @transform_1(%arg0: i32) -> (i32, i32) {
    %c0_i32 = arith.constant 0 : i32
    %c0_i32_0 = arith.constant 0 : i32
    %c0_i32_1 = arith.constant 0 : i32
    return %c0_i32, %c0_i32_0 : i32, i32
  }
  func.func @transform_2(%arg0: i32) -> (i32, i32) {
    %c0_i32 = arith.constant 0 : i32
    %c0_i32_0 = arith.constant 0 : i32
    %c0_i32_1 = arith.constant 0 : i32
    return %c0_i32, %c0_i32_0 : i32, i32
  }
  func.func @transform_3(%arg0: i32) -> (i32, i32, i32) {
    %c0_i32 = arith.constant 0 : i32
    %c0_i32_0 = arith.constant 0 : i32
    %c0_i32_1 = arith.constant 0 : i32
    return %arg0, %c0_i32, %c0_i32_0 : i32, i32, i32
  }
}

module attributes {stable_mosaic.version = 11 : i64} {
  func.func @_block_kernel(%arg0: i32, %arg1: memref<2x24x128xf32, #tpu.memory_space<vmem>>, %arg2: memref<128x384xbf16, #tpu.memory_space<vmem>>, %arg3: memref<128x128xbf16, #tpu.memory_space<vmem>>, %arg4: memref<128x512xbf16, #tpu.memory_space<vmem>>, %arg5: memref<512x128xbf16, #tpu.memory_space<vmem>>, %arg6: memref<8x512xf32, #tpu.memory_space<vmem>>, %arg7: memref<2x24x128xf32, #tpu.memory_space<vmem>>, %arg8: memref<48x128xf32, #tpu.memory_space<vmem>>) attributes {dimension_semantics = [#tpu.dimension_semantics<parallel>], iteration_bounds = array<i64: 2>, scalar_prefetch = 0 : i64, scratch_operands = 1 : i64, tpu.core_type = #tpu.core_type<tc>, window_params = [{transform_indices = @transform_0, window_bounds = array<i64: 2, 24, 128>}, {pipeline_mode = #tpu.pipeline_mode<synchronous>, transform_indices = @transform_1, window_bounds = array<i64: 128, 384>}, {pipeline_mode = #tpu.pipeline_mode<synchronous>, transform_indices = @transform_2, window_bounds = array<i64: 128, 128>}, {pipeline_mode = #tpu.pipeline_mode<synchronous>, transform_indices = @transform_3, window_bounds = array<i64: 128, 512>}, {pipeline_mode = #tpu.pipeline_mode<synchronous>, transform_indices = @transform_4, window_bounds = array<i64: 512, 128>}, {pipeline_mode = #tpu.pipeline_mode<synchronous>, transform_indices = @transform_5, window_bounds = array<i64: 8, 512>}, {transform_indices = @transform_6, window_bounds = array<i64: 2, 24, 128>}]} {
    %c0 = arith.constant 0 : index
    %c0_0 = arith.constant 0 : index
    %0 = vector.load %arg6[%c0, %c0_0] : memref<8x512xf32, #tpu.memory_space<vmem>>, vector<8x512xf32>
    %1 = vector.extract_strided_slice %0 {offsets = [0, 0], sizes = [1, 384], strides = [1, 1]} : vector<8x512xf32> to vector<1x384xf32>
    %2 = vector.extract_strided_slice %0 {offsets = [1, 0], sizes = [1, 128], strides = [1, 1]} : vector<8x512xf32> to vector<1x128xf32>
    %3 = vector.extract_strided_slice %0 {offsets = [2, 0], sizes = [1, 512], strides = [1, 1]} : vector<8x512xf32> to vector<1x512xf32>
    %4 = vector.extract_strided_slice %0 {offsets = [3, 0], sizes = [1, 128], strides = [1, 1]} : vector<8x512xf32> to vector<1x128xf32>
    %5 = vector.extract_strided_slice %0 {offsets = [4, 0], sizes = [1, 128], strides = [1, 1]} : vector<8x512xf32> to vector<1x128xf32>
    %6 = vector.extract_strided_slice %0 {offsets = [5, 0], sizes = [1, 128], strides = [1, 1]} : vector<8x512xf32> to vector<1x128xf32>
    %7 = vector.extract_strided_slice %0 {offsets = [6, 0], sizes = [1, 128], strides = [1, 1]} : vector<8x512xf32> to vector<1x128xf32>
    %8 = vector.extract_strided_slice %0 {offsets = [7, 0], sizes = [1, 128], strides = [1, 1]} : vector<8x512xf32> to vector<1x128xf32>
    %c0_1 = arith.constant 0 : index
    %c0_2 = arith.constant 0 : index
    %c0_3 = arith.constant 0 : index
    %9 = vector.load %arg1[%c0_1, %c0_2, %c0_3] : memref<2x24x128xf32, #tpu.memory_space<vmem>>, vector<2x24x128xf32>
    %10 = vector.shape_cast %9 : vector<2x24x128xf32> to vector<48x128xf32>
    %11 = arith.truncf %10 : vector<48x128xf32> to vector<48x128xbf16>
    %c0_4 = arith.constant 0 : index
    %c0_5 = arith.constant 0 : index
    %12 = vector.load %arg2[%c0_4, %c0_5] : memref<128x384xbf16, #tpu.memory_space<vmem>>, vector<128x384xbf16>
    %cst = arith.constant dense<0.000000e+00> : vector<48x384xf32>
    %13 = tpu.matmul %11, %12, %cst {dimension_numbers = #tpu.dot_dimension_numbers<[1], [0], [0], [1], [0, 0, 1, 1], [], []>} : vector<48x128xbf16>, vector<128x384xbf16>, vector<48x384xf32> -> vector<48x384xf32>
    %14 = vector.broadcast %1 : vector<1x384xf32> to vector<48x384xf32>
    %15 = arith.addf %13, %14 : vector<48x384xf32>
    %16 = tpu.iota {dimensions = array<i32: 0>} : vector<24x24xi32>
    %17 = tpu.iota {dimensions = array<i32: 1>} : vector<24x24xi32>
    %18 = arith.cmpi sge, %16, %17 : vector<24x24xi32>
    %19 = vector.extract_strided_slice %15 {offsets = [0, 0], sizes = [24, 64], strides = [1, 1]} : vector<48x384xf32> to vector<24x64xf32>
    %20 = arith.truncf %19 : vector<24x64xf32> to vector<24x64xbf16>
    %21 = vector.extract_strided_slice %15 {offsets = [0, 128], sizes = [24, 64], strides = [1, 1]} : vector<48x384xf32> to vector<24x64xf32>
    %22 = arith.truncf %21 : vector<24x64xf32> to vector<24x64xbf16>
    %23 = vector.extract_strided_slice %15 {offsets = [0, 256], sizes = [24, 64], strides = [1, 1]} : vector<48x384xf32> to vector<24x64xf32>
    %24 = arith.truncf %23 : vector<24x64xf32> to vector<24x64xbf16>
    %cst_6 = arith.constant dense<0.000000e+00> : vector<24x24xf32>
    %25 = tpu.matmul %20, %22, %cst_6 {dimension_numbers = #tpu.dot_dimension_numbers<[1], [1], [0], [0], [0, 0, 1, 0], [], []>} : vector<24x64xbf16>, vector<24x64xbf16>, vector<24x24xf32> -> vector<24x24xf32>
    %cst_7 = arith.constant 1.250000e-01 : f32
    %26 = vector.broadcast %cst_7 : f32 to vector<24x24xf32>
    %27 = arith.mulf %25, %26 : vector<24x24xf32>
    %cst_8 = arith.constant -1.000000e+30 : f32
    %28 = vector.broadcast %cst_8 : f32 to vector<24x24xf32>
    %29 = arith.select %18, %27, %28 : vector<24x24xi1>, vector<24x24xf32>
    %cst_9 = arith.constant dense<0xFF800000> : vector<24xf32>
    %30 = vector.multi_reduction <maximumf>, %29, %cst_9 [1] : vector<24x24xf32> to vector<24xf32>
    %31 = vector.shape_cast %30 : vector<24xf32> to vector<24x1xf32>
    %32 = vector.broadcast %31 : vector<24x1xf32> to vector<24x24xf32>
    %33 = arith.subf %29, %32 : vector<24x24xf32>
    %34 = math.exp %33 : vector<24x24xf32>
    %cst_10 = arith.constant dense<0.000000e+00> : vector<24xf32>
    %35 = vector.multi_reduction <add>, %34, %cst_10 [1] : vector<24x24xf32> to vector<24xf32>
    %36 = vector.shape_cast %35 : vector<24xf32> to vector<24x1xf32>
    %37 = tpu.reciprocal %36 {approx = true} : vector<24x1xf32> -> vector<24x1xf32>
    %38 = vector.broadcast %37 : vector<24x1xf32> to vector<24x24xf32>
    %39 = arith.mulf %34, %38 : vector<24x24xf32>
    %40 = arith.truncf %39 : vector<24x24xf32> to vector<24x24xbf16>
    %cst_11 = arith.constant dense<0.000000e+00> : vector<24x64xf32>
    %41 = tpu.matmul %40, %24, %cst_11 {dimension_numbers = #tpu.dot_dimension_numbers<[1], [0], [0], [1], [0, 0, 1, 1], [], []>} : vector<24x24xbf16>, vector<24x64xbf16>, vector<24x64xf32> -> vector<24x64xf32>
    %c0_12 = arith.constant 0 : index
    %c0_13 = arith.constant 0 : index
    %42 = vector.load %arg8[%c0_12, %c0_13] : memref<48x128xf32, #tpu.memory_space<vmem>>, vector<24x64xf32>
    tpu.vector_store %arg8[%c0_12, %c0_13], %41 {strides = array<i32>} : memref<48x128xf32, #tpu.memory_space<vmem>>, vector<24x64xf32>,
    %43 = vector.extract_strided_slice %15 {offsets = [0, 64], sizes = [24, 64], strides = [1, 1]} : vector<48x384xf32> to vector<24x64xf32>
    %44 = arith.truncf %43 : vector<24x64xf32> to vector<24x64xbf16>
    %45 = vector.extract_strided_slice %15 {offsets = [0, 192], sizes = [24, 64], strides = [1, 1]} : vector<48x384xf32> to vector<24x64xf32>
    %46 = arith.truncf %45 : vector<24x64xf32> to vector<24x64xbf16>
    %47 = vector.extract_strided_slice %15 {offsets = [0, 320], sizes = [24, 64], strides = [1, 1]} : vector<48x384xf32> to vector<24x64xf32>
    %48 = arith.truncf %47 : vector<24x64xf32> to vector<24x64xbf16>
    %cst_14 = arith.constant dense<0.000000e+00> : vector<24x24xf32>
    %49 = tpu.matmul %44, %46, %cst_14 {dimension_numbers = #tpu.dot_dimension_numbers<[1], [1], [0], [0], [0, 0, 1, 0], [], []>} : vector<24x64xbf16>, vector<24x64xbf16>, vector<24x24xf32> -> vector<24x24xf32>
    %cst_15 = arith.constant 1.250000e-01 : f32
    %50 = vector.broadcast %cst_15 : f32 to vector<24x24xf32>
    %51 = arith.mulf %49, %50 : vector<24x24xf32>
    %cst_16 = arith.constant -1.000000e+30 : f32
    %52 = vector.broadcast %cst_16 : f32 to vector<24x24xf32>
    %53 = arith.select %18, %51, %52 : vector<24x24xi1>, vector<24x24xf32>
    %cst_17 = arith.constant dense<0xFF800000> : vector<24xf32>
    %54 = vector.multi_reduction <maximumf>, %53, %cst_17 [1] : vector<24x24xf32> to vector<24xf32>
    %55 = vector.shape_cast %54 : vector<24xf32> to vector<24x1xf32>
    %56 = vector.broadcast %55 : vector<24x1xf32> to vector<24x24xf32>
    %57 = arith.subf %53, %56 : vector<24x24xf32>
    %58 = math.exp %57 : vector<24x24xf32>
    %cst_18 = arith.constant dense<0.000000e+00> : vector<24xf32>
    %59 = vector.multi_reduction <add>, %58, %cst_18 [1] : vector<24x24xf32> to vector<24xf32>
    %60 = vector.shape_cast %59 : vector<24xf32> to vector<24x1xf32>
    %61 = tpu.reciprocal %60 {approx = true} : vector<24x1xf32> -> vector<24x1xf32>
    %62 = vector.broadcast %61 : vector<24x1xf32> to vector<24x24xf32>
    %63 = arith.mulf %58, %62 : vector<24x24xf32>
    %64 = arith.truncf %63 : vector<24x24xf32> to vector<24x24xbf16>
    %cst_19 = arith.constant dense<0.000000e+00> : vector<24x64xf32>
    %65 = tpu.matmul %64, %48, %cst_19 {dimension_numbers = #tpu.dot_dimension_numbers<[1], [0], [0], [1], [0, 0, 1, 1], [], []>} : vector<24x24xbf16>, vector<24x64xbf16>, vector<24x64xf32> -> vector<24x64xf32>
    %c0_20 = arith.constant 0 : index
    %c64 = arith.constant 64 : index
    %66 = vector.load %arg8[%c0_20, %c64] : memref<48x128xf32, #tpu.memory_space<vmem>>, vector<24x64xf32>
    tpu.vector_store %arg8[%c0_20, %c64], %65 {strides = array<i32>} : memref<48x128xf32, #tpu.memory_space<vmem>>, vector<24x64xf32>,
    %67 = vector.extract_strided_slice %15 {offsets = [24, 0], sizes = [24, 64], strides = [1, 1]} : vector<48x384xf32> to vector<24x64xf32>
    %68 = arith.truncf %67 : vector<24x64xf32> to vector<24x64xbf16>
    %69 = vector.extract_strided_slice %15 {offsets = [24, 128], sizes = [24, 64], strides = [1, 1]} : vector<48x384xf32> to vector<24x64xf32>
    %70 = arith.truncf %69 : vector<24x64xf32> to vector<24x64xbf16>
    %71 = vector.extract_strided_slice %15 {offsets = [24, 256], sizes = [24, 64], strides = [1, 1]} : vector<48x384xf32> to vector<24x64xf32>
    %72 = arith.truncf %71 : vector<24x64xf32> to vector<24x64xbf16>
    %cst_21 = arith.constant dense<0.000000e+00> : vector<24x24xf32>
    %73 = tpu.matmul %68, %70, %cst_21 {dimension_numbers = #tpu.dot_dimension_numbers<[1], [1], [0], [0], [0, 0, 1, 0], [], []>} : vector<24x64xbf16>, vector<24x64xbf16>, vector<24x24xf32> -> vector<24x24xf32>
    %cst_22 = arith.constant 1.250000e-01 : f32
    %74 = vector.broadcast %cst_22 : f32 to vector<24x24xf32>
    %75 = arith.mulf %73, %74 : vector<24x24xf32>
    %cst_23 = arith.constant -1.000000e+30 : f32
    %76 = vector.broadcast %cst_23 : f32 to vector<24x24xf32>
    %77 = arith.select %18, %75, %76 : vector<24x24xi1>, vector<24x24xf32>
    %cst_24 = arith.constant dense<0xFF800000> : vector<24xf32>
    %78 = vector.multi_reduction <maximumf>, %77, %cst_24 [1] : vector<24x24xf32> to vector<24xf32>
    %79 = vector.shape_cast %78 : vector<24xf32> to vector<24x1xf32>
    %80 = vector.broadcast %79 : vector<24x1xf32> to vector<24x24xf32>
    %81 = arith.subf %77, %80 : vector<24x24xf32>
    %82 = math.exp %81 : vector<24x24xf32>
    %cst_25 = arith.constant dense<0.000000e+00> : vector<24xf32>
    %83 = vector.multi_reduction <add>, %82, %cst_25 [1] : vector<24x24xf32> to vector<24xf32>
    %84 = vector.shape_cast %83 : vector<24xf32> to vector<24x1xf32>
    %85 = tpu.reciprocal %84 {approx = true} : vector<24x1xf32> -> vector<24x1xf32>
    %86 = vector.broadcast %85 : vector<24x1xf32> to vector<24x24xf32>
    %87 = arith.mulf %82, %86 : vector<24x24xf32>
    %88 = arith.truncf %87 : vector<24x24xf32> to vector<24x24xbf16>
    %cst_26 = arith.constant dense<0.000000e+00> : vector<24x64xf32>
    %89 = tpu.matmul %88, %72, %cst_26 {dimension_numbers = #tpu.dot_dimension_numbers<[1], [0], [0], [1], [0, 0, 1, 1], [], []>} : vector<24x24xbf16>, vector<24x64xbf16>, vector<24x64xf32> -> vector<24x64xf32>
    %c24 = arith.constant 24 : index
    %c0_27 = arith.constant 0 : index
    %90 = vector.load %arg8[%c24, %c0_27] : memref<48x128xf32, #tpu.memory_space<vmem>>, vector<24x64xf32>
    tpu.vector_store %arg8[%c24, %c0_27], %89 {strides = array<i32>} : memref<48x128xf32, #tpu.memory_space<vmem>>, vector<24x64xf32>,
    %91 = vector.extract_strided_slice %15 {offsets = [24, 64], sizes = [24, 64], strides = [1, 1]} : vector<48x384xf32> to vector<24x64xf32>
    %92 = arith.truncf %91 : vector<24x64xf32> to vector<24x64xbf16>
    %93 = vector.extract_strided_slice %15 {offsets = [24, 192], sizes = [24, 64], strides = [1, 1]} : vector<48x384xf32> to vector<24x64xf32>
    %94 = arith.truncf %93 : vector<24x64xf32> to vector<24x64xbf16>
    %95 = vector.extract_strided_slice %15 {offsets = [24, 320], sizes = [24, 64], strides = [1, 1]} : vector<48x384xf32> to vector<24x64xf32>
    %96 = arith.truncf %95 : vector<24x64xf32> to vector<24x64xbf16>
    %cst_28 = arith.constant dense<0.000000e+00> : vector<24x24xf32>
    %97 = tpu.matmul %92, %94, %cst_28 {dimension_numbers = #tpu.dot_dimension_numbers<[1], [1], [0], [0], [0, 0, 1, 0], [], []>} : vector<24x64xbf16>, vector<24x64xbf16>, vector<24x24xf32> -> vector<24x24xf32>
    %cst_29 = arith.constant 1.250000e-01 : f32
    %98 = vector.broadcast %cst_29 : f32 to vector<24x24xf32>
    %99 = arith.mulf %97, %98 : vector<24x24xf32>
    %cst_30 = arith.constant -1.000000e+30 : f32
    %100 = vector.broadcast %cst_30 : f32 to vector<24x24xf32>
    %101 = arith.select %18, %99, %100 : vector<24x24xi1>, vector<24x24xf32>
    %cst_31 = arith.constant dense<0xFF800000> : vector<24xf32>
    %102 = vector.multi_reduction <maximumf>, %101, %cst_31 [1] : vector<24x24xf32> to vector<24xf32>
    %103 = vector.shape_cast %102 : vector<24xf32> to vector<24x1xf32>
    %104 = vector.broadcast %103 : vector<24x1xf32> to vector<24x24xf32>
    %105 = arith.subf %101, %104 : vector<24x24xf32>
    %106 = math.exp %105 : vector<24x24xf32>
    %cst_32 = arith.constant dense<0.000000e+00> : vector<24xf32>
    %107 = vector.multi_reduction <add>, %106, %cst_32 [1] : vector<24x24xf32> to vector<24xf32>
    %108 = vector.shape_cast %107 : vector<24xf32> to vector<24x1xf32>
    %109 = tpu.reciprocal %108 {approx = true} : vector<24x1xf32> -> vector<24x1xf32>
    %110 = vector.broadcast %109 : vector<24x1xf32> to vector<24x24xf32>
    %111 = arith.mulf %106, %110 : vector<24x24xf32>
    %112 = arith.truncf %111 : vector<24x24xf32> to vector<24x24xbf16>
    %cst_33 = arith.constant dense<0.000000e+00> : vector<24x64xf32>
    %113 = tpu.matmul %112, %96, %cst_33 {dimension_numbers = #tpu.dot_dimension_numbers<[1], [0], [0], [1], [0, 0, 1, 1], [], []>} : vector<24x24xbf16>, vector<24x64xbf16>, vector<24x64xf32> -> vector<24x64xf32>
    %c24_34 = arith.constant 24 : index
    %c64_35 = arith.constant 64 : index
    %114 = vector.load %arg8[%c24_34, %c64_35] : memref<48x128xf32, #tpu.memory_space<vmem>>, vector<24x64xf32>
    tpu.vector_store %arg8[%c24_34, %c64_35], %113 {strides = array<i32>} : memref<48x128xf32, #tpu.memory_space<vmem>>, vector<24x64xf32>,
    %c0_36 = arith.constant 0 : index
    %c0_37 = arith.constant 0 : index
    %115 = vector.load %arg8[%c0_36, %c0_37] : memref<48x128xf32, #tpu.memory_space<vmem>>, vector<48x128xf32>
    %116 = arith.truncf %115 : vector<48x128xf32> to vector<48x128xbf16>
    %c0_38 = arith.constant 0 : index
    %c0_39 = arith.constant 0 : index
    %117 = vector.load %arg3[%c0_38, %c0_39] : memref<128x128xbf16, #tpu.memory_space<vmem>>, vector<128x128xbf16>
    %cst_40 = arith.constant dense<0.000000e+00> : vector<48x128xf32>
    %118 = tpu.matmul %116, %117, %cst_40 {dimension_numbers = #tpu.dot_dimension_numbers<[1], [0], [0], [1], [0, 0, 1, 1], [], []>} : vector<48x128xbf16>, vector<128x128xbf16>, vector<48x128xf32> -> vector<48x128xf32>
    %119 = vector.broadcast %2 : vector<1x128xf32> to vector<48x128xf32>
    %120 = arith.addf %118, %119 : vector<48x128xf32>
    %121 = arith.addf %10, %120 : vector<48x128xf32>
    %cst_41 = arith.constant dense<0.000000e+00> : vector<48xf32>
    %122 = vector.multi_reduction <add>, %121, %cst_41 [1] : vector<48x128xf32> to vector<48xf32>
    %123 = vector.shape_cast %122 : vector<48xf32> to vector<48x1xf32>
    %cst_42 = arith.constant 1.280000e+02 : f32
    %124 = vector.broadcast %cst_42 : f32 to vector<48x1xf32>
    %125 = arith.divf %123, %124 : vector<48x1xf32>
    %126 = vector.broadcast %125 : vector<48x1xf32> to vector<48x128xf32>
    %127 = arith.subf %121, %126 : vector<48x128xf32>
    %128 = arith.mulf %127, %127 : vector<48x128xf32>
    %cst_43 = arith.constant dense<0.000000e+00> : vector<48xf32>
    %129 = vector.multi_reduction <add>, %128, %cst_43 [1] : vector<48x128xf32> to vector<48xf32>
    %130 = vector.shape_cast %129 : vector<48xf32> to vector<48x1xf32>
    %cst_44 = arith.constant 1.280000e+02 : f32
    %131 = vector.broadcast %cst_44 : f32 to vector<48x1xf32>
    %132 = arith.divf %130, %131 : vector<48x1xf32>
    %133 = vector.broadcast %125 : vector<48x1xf32> to vector<48x128xf32>
    %134 = arith.subf %121, %133 : vector<48x128xf32>
    %cst_45 = arith.constant 9.99999974E-6 : f32
    %135 = vector.broadcast %cst_45 : f32 to vector<48x1xf32>
    %136 = arith.addf %132, %135 : vector<48x1xf32>
    %137 = math.rsqrt %136 : vector<48x1xf32>
    %138 = vector.broadcast %137 : vector<48x1xf32> to vector<48x128xf32>
    %139 = arith.mulf %134, %138 : vector<48x128xf32>
    %140 = vector.broadcast %5 : vector<1x128xf32> to vector<48x128xf32>
    %141 = arith.mulf %139, %140 : vector<48x128xf32>
    %142 = vector.broadcast %6 : vector<1x128xf32> to vector<48x128xf32>
    %143 = arith.addf %141, %142 : vector<48x128xf32>
    %144 = arith.truncf %143 : vector<48x128xf32> to vector<48x128xbf16>
    %c0_46 = arith.constant 0 : index
    %c0_47 = arith.constant 0 : index
    %145 = vector.load %arg4[%c0_46, %c0_47] : memref<128x512xbf16, #tpu.memory_space<vmem>>, vector<128x512xbf16>
    %cst_48 = arith.constant dense<0.000000e+00> : vector<48x512xf32>
    %146 = tpu.matmul %144, %145, %cst_48 {dimension_numbers = #tpu.dot_dimension_numbers<[1], [0], [0], [1], [0, 0, 1, 1], [], []>} : vector<48x128xbf16>, vector<128x512xbf16>, vector<48x512xf32> -> vector<48x512xf32>
    %147 = vector.broadcast %3 : vector<1x512xf32> to vector<48x512xf32>
    %148 = arith.addf %146, %147 : vector<48x512xf32>
    %149 = arith.mulf %148, %148 : vector<48x512xf32>
    %150 = arith.mulf %148, %149 : vector<48x512xf32>
    %cst_49 = arith.constant 4.471500e-02 : f32
    %151 = vector.broadcast %cst_49 : f32 to vector<48x512xf32>
    %152 = arith.mulf %151, %150 : vector<48x512xf32>
    %153 = arith.addf %148, %152 : vector<48x512xf32>
    %cst_50 = arith.constant 0.797884583 : f32
    %154 = vector.broadcast %cst_50 : f32 to vector<48x512xf32>
    %155 = arith.mulf %154, %153 : vector<48x512xf32>
    %156 = math.tanh %155 : vector<48x512xf32>
    %cst_51 = arith.constant 1.000000e+00 : f32
    %157 = vector.broadcast %cst_51 : f32 to vector<48x512xf32>
    %158 = arith.addf %157, %156 : vector<48x512xf32>
    %cst_52 = arith.constant 5.000000e-01 : f32
    %159 = vector.broadcast %cst_52 : f32 to vector<48x512xf32>
    %160 = arith.mulf %159, %158 : vector<48x512xf32>
    %161 = arith.mulf %148, %160 : vector<48x512xf32>
    %162 = arith.truncf %161 : vector<48x512xf32> to vector<48x512xbf16>
    %c0_53 = arith.constant 0 : index
    %c0_54 = arith.constant 0 : index
    %163 = vector.load %arg5[%c0_53, %c0_54] : memref<512x128xbf16, #tpu.memory_space<vmem>>, vector<512x128xbf16>
    %cst_55 = arith.constant dense<0.000000e+00> : vector<48x128xf32>
    %164 = tpu.matmul %162, %163, %cst_55 {dimension_numbers = #tpu.dot_dimension_numbers<[1], [0], [0], [1], [0, 0, 1, 1], [], []>} : vector<48x512xbf16>, vector<512x128xbf16>, vector<48x128xf32> -> vector<48x128xf32>
    %165 = vector.broadcast %4 : vector<1x128xf32> to vector<48x128xf32>
    %166 = arith.addf %164, %165 : vector<48x128xf32>
    %167 = arith.addf %143, %166 : vector<48x128xf32>
    %cst_56 = arith.constant dense<0.000000e+00> : vector<48xf32>
    %168 = vector.multi_reduction <add>, %167, %cst_56 [1] : vector<48x128xf32> to vector<48xf32>
    %169 = vector.shape_cast %168 : vector<48xf32> to vector<48x1xf32>
    %cst_57 = arith.constant 1.280000e+02 : f32
    %170 = vector.broadcast %cst_57 : f32 to vector<48x1xf32>
    %171 = arith.divf %169, %170 : vector<48x1xf32>
    %172 = vector.broadcast %171 : vector<48x1xf32> to vector<48x128xf32>
    %173 = arith.subf %167, %172 : vector<48x128xf32>
    %174 = arith.mulf %173, %173 : vector<48x128xf32>
    %cst_58 = arith.constant dense<0.000000e+00> : vector<48xf32>
    %175 = vector.multi_reduction <add>, %174, %cst_58 [1] : vector<48x128xf32> to vector<48xf32>
    %176 = vector.shape_cast %175 : vector<48xf32> to vector<48x1xf32>
    %cst_59 = arith.constant 1.280000e+02 : f32
    %177 = vector.broadcast %cst_59 : f32 to vector<48x1xf32>
    %178 = arith.divf %176, %177 : vector<48x1xf32>
    %179 = vector.broadcast %171 : vector<48x1xf32> to vector<48x128xf32>
    %180 = arith.subf %167, %179 : vector<48x128xf32>
    %cst_60 = arith.constant 9.99999974E-6 : f32
    %181 = vector.broadcast %cst_60 : f32 to vector<48x1xf32>
    %182 = arith.addf %178, %181 : vector<48x1xf32>
    %183 = math.rsqrt %182 : vector<48x1xf32>
    %184 = vector.broadcast %183 : vector<48x1xf32> to vector<48x128xf32>
    %185 = arith.mulf %180, %184 : vector<48x128xf32>
    %186 = vector.broadcast %7 : vector<1x128xf32> to vector<48x128xf32>
    %187 = arith.mulf %185, %186 : vector<48x128xf32>
    %188 = vector.broadcast %8 : vector<1x128xf32> to vector<48x128xf32>
    %189 = arith.addf %187, %188 : vector<48x128xf32>
    %190 = vector.shape_cast %189 : vector<48x128xf32> to vector<2x24x128xf32>
    %c0_61 = arith.constant 0 : index
    %c0_62 = arith.constant 0 : index
    %c0_63 = arith.constant 0 : index
    %191 = vector.load %arg7[%c0_61, %c0_62, %c0_63] : memref<2x24x128xf32, #tpu.memory_space<vmem>>, vector<2x24x128xf32>
    tpu.vector_store %arg7[%c0_61, %c0_62, %c0_63], %190 {strides = array<i32>} : memref<2x24x128xf32, #tpu.memory_space<vmem>>, vector<2x24x128xf32>,
    return
  }
  func.func @transform_0(%arg0: i32) -> (i32, i32, i32) {
    %c0_i32 = arith.constant 0 : i32
    %c0_i32_0 = arith.constant 0 : i32
    %c0_i32_1 = arith.constant 0 : i32
    return %arg0, %c0_i32, %c0_i32_0 : i32, i32, i32
  }
  func.func @transform_1(%arg0: i32) -> (i32, i32) {
    %c0_i32 = arith.constant 0 : i32
    %c0_i32_0 = arith.constant 0 : i32
    %c0_i32_1 = arith.constant 0 : i32
    return %c0_i32, %c0_i32_0 : i32, i32
  }
  func.func @transform_2(%arg0: i32) -> (i32, i32) {
    %c0_i32 = arith.constant 0 : i32
    %c0_i32_0 = arith.constant 0 : i32
    %c0_i32_1 = arith.constant 0 : i32
    return %c0_i32, %c0_i32_0 : i32, i32
  }
  func.func @transform_3(%arg0: i32) -> (i32, i32) {
    %c0_i32 = arith.constant 0 : i32
    %c0_i32_0 = arith.constant 0 : i32
    %c0_i32_1 = arith.constant 0 : i32
    return %c0_i32, %c0_i32_0 : i32, i32
  }
  func.func @transform_4(%arg0: i32) -> (i32, i32) {
    %c0_i32 = arith.constant 0 : i32
    %c0_i32_0 = arith.constant 0 : i32
    %c0_i32_1 = arith.constant 0 : i32
    return %c0_i32, %c0_i32_0 : i32, i32
  }
  func.func @transform_5(%arg0: i32) -> (i32, i32) {
    %c0_i32 = arith.constant 0 : i32
    %c0_i32_0 = arith.constant 0 : i32
    %c0_i32_1 = arith.constant 0 : i32
    return %c0_i32, %c0_i32_0 : i32, i32
  }
  func.func @transform_6(%arg0: i32) -> (i32, i32, i32) {
    %c0_i32 = arith.constant 0 : i32
    %c0_i32_0 = arith.constant 0 : i32
    %c0_i32_1 = arith.constant 0 : i32
    return %arg0, %c0_i32, %c0_i32_0 : i32, i32, i32
  }
}

</mosaic_0001>

<llo_original>
// kernel: reinformer_forward.4
$region0: #{reinformer_forward.4}
  #allocation0 [shape = 'u32[]', space=smem, size = 0x4, offset = 0x4, fixed_abs, tag = 'smem constant byte address 0x4 - core index']
  #allocation1 [shape = 'u32[144,128]{1,0:T(1,128)}', space=vmem, size = 0x12000, scoped, tag = 'internal scratch']
  %s0 = inlined_call_operand.vmem [shape: f32[4,8,6], index: 0, kind: input, shape index: {}]
  %s1 = inlined_call_operand.vmem [shape: f32[4,8,3], index: 1, kind: input, shape index: {}]
  %s2 = inlined_call_operand.vmem [shape: f32[4,8,1], index: 2, kind: input, shape index: {}]
  %s3 = inlined_call_operand.vmem [shape: f32[4,8,128], index: 3, kind: input, shape index: {}]
  %s4 = inlined_call_operand.vmem [shape: bf16[6,128], index: 4, kind: input, shape index: {}]
  %s5 = inlined_call_operand.vmem [shape: bf16[3,128], index: 5, kind: input, shape index: {}]
  %s6 = inlined_call_operand.vmem [shape: f32[8,128], index: 6, kind: input, shape index: {}]
  %s7 = inlined_call_operand.vmem [shape: f32[4,8,3,128], index: 7, kind: output, shape index: {}]
  %s8 = sld [smem:[#allocation0]]
  $region61: #{reinformer_forward.4} parent=0
    _
  %s10 = ssub.s32 1, %s8
  %s11 = scalar_select 0, %s10, %s8
  loop: start=0, step=1, limit=4
  $region2: #{reinformer_forward.4} parent=0 // loop_pre_header
    _
  $region3: #{reinformer_forward.4} parent=0 // loop_header
    %s13 = sphi 0, %s17
    %p14 = scmp.ge.s32.totalorder %s13, 4
    %s23 = sphi 0, %s25
    %s26 = sphi 0, %s23
    %s27 = sphi 0, %s26
    %s43 = sphi 0, %s27
    %s49 = sphi 0, %s51
    %s52 = sphi 0, %s49
    %s53 = sphi 0, %s52
    %s69 = sphi 0, %s53
    %s75 = sphi 0, %s77
    %s78 = sphi 0, %s75
    %s79 = sphi 0, %s78
    %s95 = sphi 0, %s79
    %s101 = sphi 0, %s103
    %s104 = sphi 0, %s101
    %s105 = sphi 0, %s104
    %s121 = sphi 0, %s105
    %s125 = sphi 0, %s125
    %s127 = sphi 0, %s125
    %s128 = sphi 0, %s127
    %s142 = sphi 0, %s128
    %s146 = sphi 0, %s146
    %s148 = sphi 0, %s146
    %s149 = sphi 0, %s148
    %s163 = sphi 0, %s149
    %s167 = sphi 0, %s167
    %s169 = sphi 0, %s167
    %s170 = sphi 0, %s169
    %s184 = sphi 0, %s170
    %s190 = sphi 0, %s192
    %s193 = sphi 0, %s190
    %s194 = sphi 0, %s193
    %s210 = sphi 0, %s194
  $region4: #{reinformer_forward.4} parent=0 // loop_header_branch
    %16 = sbr.rel (%p14) target = $region8
  $region5: #{reinformer_forward.4} parent=0 // loop_body
    %s18 = ssub.s32 %s13, 1
    %s19 = ssub.s32 %s13, 2
    %s20 = sadd.s32 %s13, 1
    %s21 = ssub.s32 %s13, %s20
    %p22 = scmp.eq.s32.totalorder %s21, 0
    %s24 = sadd.s32 %s23, 1
    %s25 = scalar_select %p22, %s23, %s24
    %p28 = pneg %p22
    %p29 = scmp.eq.s32.totalorder %s13, 1
    %p30 = por %p28, %p29
    %p31 = scmp.ne.s32.totalorder %s23, %s26
    %p32 = scmp.eq.s32.totalorder %s13, 0
    %p33 = por %p31, %p32
    %p34 = scmp.ne.s32.totalorder %s23, %s26
    %p35 = scmp.eq.s32.totalorder %s18, 1
    %p36 = por %p34, %p35
    %p37 = scmp.ne.s32.totalorder %s26, %s27
    %p38 = scmp.eq.s32.totalorder %s18, 0
    %p39 = por %p37, %p38
    %p40 = scmp.ne.s32.totalorder %s26, %s27
    %p41 = scmp.eq.s32.totalorder %s19, 1
    %p42 = por %p40, %p41
    %p44 = scmp.ne.s32.totalorder %s27, %s43
    %p45 = scmp.eq.s32.totalorder %s19, 0
    %p46 = por %p44, %p45
    %s47 = ssub.s32 %s13, %s20
    %p48 = scmp.eq.s32.totalorder %s47, 0
    %s50 = sadd.s32 %s49, 1
    %s51 = scalar_select %p48, %s49, %s50
    %p54 = pneg %p48
    %p55 = scmp.eq.s32.totalorder %s13, 1
    %p56 = por %p54, %p55
    %p57 = scmp.ne.s32.totalorder %s49, %s52
    %p58 = scmp.eq.s32.totalorder %s13, 0
    %p59 = por %p57, %p58
    %p60 = scmp.ne.s32.totalorder %s49, %s52
    %p61 = scmp.eq.s32.totalorder %s18, 1
    %p62 = por %p60, %p61
    %p63 = scmp.ne.s32.totalorder %s52, %s53
    %p64 = scmp.eq.s32.totalorder %s18, 0
    %p65 = por %p63, %p64
    %p66 = scmp.ne.s32.totalorder %s52, %s53
    %p67 = scmp.eq.s32.totalorder %s19, 1
    %p68 = por %p66, %p67
    %p70 = scmp.ne.s32.totalorder %s53, %s69
    %p71 = scmp.eq.s32.totalorder %s19, 0
    %p72 = por %p70, %p71
    %s73 = ssub.s32 %s13, %s20
    %p74 = scmp.eq.s32.totalorder %s73, 0
    %s76 = sadd.s32 %s75, 1
    %s77 = scalar_select %p74, %s75, %s76
    %p80 = pneg %p74
    %p81 = scmp.eq.s32.totalorder %s13, 1
    %p82 = por %p80, %p81
    %p83 = scmp.ne.s32.totalorder %s75, %s78
    %p84 = scmp.eq.s32.totalorder %s13, 0
    %p85 = por %p83, %p84
    %p86 = scmp.ne.s32.totalorder %s75, %s78
    %p87 = scmp.eq.s32.totalorder %s18, 1
    %p88 = por %p86, %p87
    %p89 = scmp.ne.s32.totalorder %s78, %s79
    %p90 = scmp.eq.s32.totalorder %s18, 0
    %p91 = por %p89, %p90
    %p92 = scmp.ne.s32.totalorder %s78, %s79
    %p93 = scmp.eq.s32.totalorder %s19, 1
    %p94 = por %p92, %p93
    %p96 = scmp.ne.s32.totalorder %s79, %s95
    %p97 = scmp.eq.s32.totalorder %s19, 0
    %p98 = por %p96, %p97
    %s99 = ssub.s32 %s13, %s20
    %p100 = scmp.eq.s32.totalorder %s99, 0
    %s102 = sadd.s32 %s101, 1
    %s103 = scalar_select %p100, %s101, %s102
    %p106 = pneg %p100
    %p107 = scmp.eq.s32.totalorder %s13, 1
    %p108 = por %p106, %p107
    %p109 = scmp.ne.s32.totalorder %s101, %s104
    %p110 = scmp.eq.s32.totalorder %s13, 0
    %p111 = por %p109, %p110
    %p112 = scmp.ne.s32.totalorder %s101, %s104
    %p113 = scmp.eq.s32.totalorder %s18, 1
    %p114 = por %p112, %p113
    %p115 = scmp.ne.s32.totalorder %s104, %s105
    %p116 = scmp.eq.s32.totalorder %s18, 0
    %p117 = por %p115, %p116
    %p118 = scmp.ne.s32.totalorder %s104, %s105
    %p119 = scmp.eq.s32.totalorder %s19, 1
    %p120 = por %p118, %p119
    %p122 = scmp.ne.s32.totalorder %s105, %s121
    %p123 = scmp.eq.s32.totalorder %s19, 0
    %p124 = por %p122, %p123
    %s126 = sadd.s32 %s125, 1
    %p129 = scmp.eq.s32.totalorder %s13, 1
    %p130 = scmp.ne.s32.totalorder %s125, %s127
    %p131 = scmp.eq.s32.totalorder %s13, 0
    %p132 = por %p130, %p131
    %p133 = scmp.ne.s32.totalorder %s125, %s127
    %p134 = scmp.eq.s32.totalorder %s18, 1
    %p135 = por %p133, %p134
    %p136 = scmp.ne.s32.totalorder %s127, %s128
    %p137 = scmp.eq.s32.totalorder %s18, 0
    %p138 = por %p136, %p137
    %p139 = scmp.ne.s32.totalorder %s127, %s128
    %p140 = scmp.eq.s32.totalorder %s19, 1
    %p141 = por %p139, %p140
    %p143 = scmp.ne.s32.totalorder %s128, %s142
    %p144 = scmp.eq.s32.totalorder %s19, 0
    %p145 = por %p143, %p144
    %s147 = sadd.s32 %s146, 1
    %p150 = scmp.eq.s32.totalorder %s13, 1
    %p151 = scmp.ne.s32.totalorder %s146, %s148
    %p152 = scmp.eq.s32.totalorder %s13, 0
    %p153 = por %p151, %p152
    %p154 = scmp.ne.s32.totalorder %s146, %s148
    %p155 = scmp.eq.s32.totalorder %s18, 1
    %p156 = por %p154, %p155
    %p157 = scmp.ne.s32.totalorder %s148, %s149
    %p158 = scmp.eq.s32.totalorder %s18, 0
    %p159 = por %p157, %p158
    %p160 = scmp.ne.s32.totalorder %s148, %s149
    %p161 = scmp.eq.s32.totalorder %s19, 1
    %p162 = por %p160, %p161
    %p164 = scmp.ne.s32.totalorder %s149, %s163
    %p165 = scmp.eq.s32.totalorder %s19, 0
    %p166 = por %p164, %p165
    %s168 = sadd.s32 %s167, 1
    %p171 = scmp.eq.s32.totalorder %s13, 1
    %p172 = scmp.ne.s32.totalorder %s167, %s169
    %p173 = scmp.eq.s32.totalorder %s13, 0
    %p174 = por %p172, %p173
    %p175 = scmp.ne.s32.totalorder %s167, %s169
    %p176 = scmp.eq.s32.totalorder %s18, 1
    %p177 = por %p175, %p176
    %p178 = scmp.ne.s32.totalorder %s169, %s170
    %p179 = scmp.eq.s32.totalorder %s18, 0
    %p180 = por %p178, %p179
    %p181 = scmp.ne.s32.totalorder %s169, %s170
    %p182 = scmp.eq.s32.totalorder %s19, 1
    %p183 = por %p181, %p182
    %p185 = scmp.ne.s32.totalorder %s170, %s184
    %p186 = scmp.eq.s32.totalorder %s19, 0
    %p187 = por %p185, %p186
    %s188 = ssub.s32 %s13, %s20
    %p189 = scmp.eq.s32.totalorder %s188, 0
    %s191 = sadd.s32 %s190, 1
    %s192 = scalar_select %p189, %s190, %s191
    %p195 = pneg %p189
    %p196 = scmp.eq.s32.totalorder %s13, 1
    %p197 = por %p195, %p196
    %p198 = scmp.ne.s32.totalorder %s190, %s193
    %p199 = scmp.eq.s32.totalorder %s13, 0
    %p200 = por %p198, %p199
    %p201 = scmp.ne.s32.totalorder %s190, %s193
    %p202 = scmp.eq.s32.totalorder %s18, 1
    %p203 = por %p201, %p202
    %p204 = scmp.ne.s32.totalorder %s193, %s194
    %p205 = scmp.eq.s32.totalorder %s18, 0
    %p206 = por %p204, %p205
    %p207 = scmp.ne.s32.totalorder %s193, %s194
    %p208 = scmp.eq.s32.totalorder %s19, 1
    %p209 = por %p207, %p208
    %p211 = scmp.ne.s32.totalorder %s194, %s210
    %p212 = scmp.eq.s32.totalorder %s19, 0
    %p213 = por %p211, %p212
    %p214 = scmp.le.s32.totalorder 1, %s13
    %p215 = scmp.lt.s32.totalorder %s13, 3
    %p216 = pnand %p214, %p215
    %p217 = pneg %p216
    // Predicated region
    $region9: #{reinformer_forward.4} parent=5 // pred_check
      _
    $region10: #{reinformer_forward.4} parent=5 // pred_check_branch
      %219 = sbr.rel (%p216) target = $region12
    $region11: #{reinformer_forward.4} parent=5 // pred_region
      %s220 = ssub.s32 %s13, 1
      // Predicated region
      $region13: #{reinformer_forward.4} parent=11 // pred_check
        %p221 = pneg %p138
      $region14: #{reinformer_forward.4} parent=11 // pred_check_branch
        %223 = sbr.rel (%p221) target = $region16
      $region15: #{reinformer_forward.4} parent=11 // pred_region
        _
      $region16: #{reinformer_forward.4} parent=11 // pred_fallthru
        _
      // Predicated region
      $region17: #{reinformer_forward.4} parent=11 // pred_check
        %p224 = pneg %p159
      $region18: #{reinformer_forward.4} parent=11 // pred_check_branch
        %226 = sbr.rel (%p224) target = $region20
      $region19: #{reinformer_forward.4} parent=11 // pred_region
        _
      $region20: #{reinformer_forward.4} parent=11 // pred_fallthru
        _
      // Predicated region
      $region21: #{reinformer_forward.4} parent=11 // pred_check
        %p227 = pneg %p180
      $region22: #{reinformer_forward.4} parent=11 // pred_check_branch
        %229 = sbr.rel (%p227) target = $region24
      $region23: #{reinformer_forward.4} parent=11 // pred_region
        _
      $region24: #{reinformer_forward.4} parent=11 // pred_fallthru
        _
    $region12: #{reinformer_forward.4} parent=5 // pred_fallthru
      _
    %p230 = scmp.lt.s32.totalorder %s13, 2
    // Predicated region
    $region25: #{reinformer_forward.4} parent=5 // pred_check
      %p231 = pneg %p230
    $region26: #{reinformer_forward.4} parent=5 // pred_check_branch
      %233 = sbr.rel (%p231) target = $region28
    $region27: #{reinformer_forward.4} parent=5 // pred_region
      // Predicated region
      $region29: #{reinformer_forward.4} parent=27 // pred_check
        %p234 = pneg %p33
      $region30: #{reinformer_forward.4} parent=27 // pred_check_branch
        %236 = sbr.rel (%p234) target = $region32
      $region31: #{reinformer_forward.4} parent=27 // pred_region
        %s237 = smul.u32 2, %s13
        %p238 = scmp.lt.s32.totalorder %s237, 3
        %s239 = scalar_select %p238, %s237, 3
        %s240 = smul.addr %s239, 8
        %s241 = scalar_lea.vmem %s0, %s240
        %s242 = smul.u32 2, %s13
      $region32: #{reinformer_forward.4} parent=27 // pred_fallthru
        _
      // Predicated region
      $region33: #{reinformer_forward.4} parent=27 // pred_check
        %p243 = pneg %p59
      $region34: #{reinformer_forward.4} parent=27 // pred_check_branch
        %245 = sbr.rel (%p243) target = $region36
      $region35: #{reinformer_forward.4} parent=27 // pred_region
        %s246 = smul.u32 2, %s13
        %p247 = scmp.lt.s32.totalorder %s246, 3
        %s248 = scalar_select %p247, %s246, 3
        %s249 = smul.addr %s248, 8
        %s250 = scalar_lea.vmem %s1, %s249
        %s251 = smul.u32 2, %s13
      $region36: #{reinformer_forward.4} parent=27 // pred_fallthru
        _
      // Predicated region
      $region37: #{reinformer_forward.4} parent=27 // pred_check
        %p252 = pneg %p85
      $region38: #{reinformer_forward.4} parent=27 // pred_check_branch
        %254 = sbr.rel (%p252) target = $region40
      $region39: #{reinformer_forward.4} parent=27 // pred_region
        %s255 = smul.u32 2, %s13
        %p256 = scmp.lt.s32.totalorder %s255, 3
        %s257 = scalar_select %p256, %s255, 3
        %s258 = smul.addr %s257, 8
        %s259 = scalar_lea.vmem %s2, %s258
        %s260 = smul.u32 2, %s13
      $region40: #{reinformer_forward.4} parent=27 // pred_fallthru
        _
      // Predicated region
      $region41: #{reinformer_forward.4} parent=27 // pred_check
        %p261 = pneg %p111
      $region42: #{reinformer_forward.4} parent=27 // pred_check_branch
        %263 = sbr.rel (%p261) target = $region44
      $region43: #{reinformer_forward.4} parent=27 // pred_region
        %s264 = smul.u32 2, %s13
        %p265 = scmp.lt.s32.totalorder %s264, 3
        %s266 = scalar_select %p265, %s264, 3
        %s267 = smul.addr %s266, 8
        %s268 = scalar_lea.vmem %s3, %s267
        %s269 = smul.u32 2, %s13
      $region44: #{reinformer_forward.4} parent=27 // pred_fallthru
        _
    $region28: #{reinformer_forward.4} parent=5 // pred_fallthru
      _
    %p270 = scmp.le.s32.totalorder 1, %s13
    %p271 = scmp.lt.s32.totalorder %s13, 3
    %p272 = pnand %p270, %p271
    %p273 = pneg %p272
    // Predicated region
    $region45: #{reinformer_forward.4} parent=5 // pred_check
      _
    $region46: #{reinformer_forward.4} parent=5 // pred_check_branch
      %275 = sbr.rel (%p272) target = $region48
    $region47: #{reinformer_forward.4} parent=5 // pred_region
      %s276 = ssub.s32 %s13, 1
      %s277 = smul.u32 2, %s18
      %p278 = scmp.lt.s32.totalorder %s277, 3
      %s279 = scalar_select %p278, %s277, 3
      %s280 = smul.addr %s279, 8
      %s281 = scalar_lea.vmem %s0, %s280
      %p282 = pneg %p39
      %p283 = pneg %p36
      %s284 = smul.u32 2, %s18
      %p285 = scmp.lt.s32.totalorder %s284, 3
      %s286 = scalar_select %p285, %s284, 3
      %s287 = smul.addr %s286, 8
      %s288 = scalar_lea.vmem %s1, %s287
      %p289 = pneg %p65
      %p290 = pneg %p62
      %s291 = smul.u32 2, %s18
      %p292 = scmp.lt.s32.totalorder %s291, 3
      %s293 = scalar_select %p292, %s291, 3
      %s294 = smul.addr %s293, 8
      %s295 = scalar_lea.vmem %s2, %s294
      %p296 = pneg %p91
      %p297 = pneg %p88
      %s298 = smul.u32 2, %s18
      %p299 = scmp.lt.s32.totalorder %s298, 3
      %s300 = scalar_select %p299, %s298, 3
      %s301 = smul.addr %s300, 8
      %s302 = scalar_lea.vmem %s3, %s301
      %p303 = pneg %p117
      %p304 = pneg %p114
      %p305 = pneg %p138
      %p306 = pneg %p135
      %p307 = pneg %p159
      %p308 = pneg %p156
      %p309 = pneg %p180
      %p310 = pneg %p177
      %p311 = pneg %p206
      %p312 = pneg %p203
      %s313 = smul.u32 2, %s18
      %p314 = scmp.lt.s32.totalorder %s313, 3
      %s315 = scalar_select %p314, %s313, 3
      %s316 = smul.addr %s315, 8
      %s317 = smul.addr %s316, 4
      %s318 = scalar_lea.vmem %s7, %s317
      %s319 = smul.u32 2, %s18
      %p320 = scmp.lt.s32.totalorder %s319, 3
      %s321 = scalar_select %p320, %s319, 3
      %s322 = smul.addr %s321, 8
      %s323 = scalar_lea.vmem %s0, %s322
      %s324 = smul.u32 2, %s18
      %s325 = smul.u32 2, %s18
      %p326 = scmp.lt.s32.totalorder %s325, 3
      %s327 = scalar_select %p326, %s325, 3
      %s328 = smul.addr %s327, 8
      %s329 = scalar_lea.vmem %s1, %s328
      %s330 = smul.u32 2, %s18
      %s331 = smul.u32 2, %s18
      %p332 = scmp.lt.s32.totalorder %s331, 3
      %s333 = scalar_select %p332, %s331, 3
      %s334 = smul.addr %s333, 8
      %s335 = scalar_lea.vmem %s2, %s334
      %s336 = smul.u32 2, %s18
      %s337 = smul.u32 2, %s18
      %p338 = scmp.lt.s32.totalorder %s337, 3
      %s339 = scalar_select %p338, %s337, 3
      %s340 = smul.addr %s339, 8
      %s341 = scalar_lea.vmem %s3, %s340
      %s342 = smul.u32 2, %s18
      %s343 = smul.u32 2, %s18
      %p344 = scmp.lt.s32.totalorder %s343, 3
      %s345 = scalar_select %p344, %s343, 3
      %s346 = smul.addr %s345, 8
      %s347 = smul.addr %s346, 4
      %s348 = scalar_lea.vmem %s7, %s347
      %s349 = smul.u32 2, %s18
      %v351 = vld [vmem:[%s6] sm:$0xff]
      %v352 = vld [vmem:[%s341] sm:$0xff]
      %v353 = vld [vmem:[%s341 + $0x8] sm:$0xff]
      %v354 = vld [vmem:[%s323] sm:$0xff]
      %v355 = vld [vmem:[%s323 + $0x8] sm:$0xff]
      %v356 = vld [vmem:[%s329] sm:$0xff]
      %v357 = vld [vmem:[%s329 + $0x8] sm:$0xff]
      %v358 = vld [vmem:[%s335] sm:$0xff]
      %v359 = vld [vmem:[%s335 + $0x8] sm:$0xff]
      %v360 = vpack.c.bf16 %v355, %v354
      %v361 = vld [vmem:[%s4] sm:$0x7]
      %v362 = vlaneseq
      %v363 = vshrl.u32 %v362, 7
      %v364 = vsub.s32 0, %v363
      %v365 = vrot.slane %v351, %v364
      %vm366 = vcmask 48128
      %v368 = vsel %vm366, %v360, 0
      %vm370 = vcmask 1042432
      %v372 = vsel %vm370, %v361, 0
      %374 = vmatprep.subr.bf16.mxu0 0
      %375 = vmatpush1.bf16.msra.mxu0 0
      %376 = vmatprep.subr.bf16.mxu0 0
      %377 = vmatpush1.bf16.msra.mxu0 0
      %378 = vmatprep.subr.bf16.mxu0 0
      %379 = vmatpush1.bf16.msra.mxu0 0
      %380 = vmatprep.subr.bf16.mxu0 0
      %381 = vmatpush1.bf16.msra.mxu0 0
      %382 = vmatprep.subr.bf16.mxu0 0
      %383 = vmatpush1.bf16.msra.mxu0 0
      %384 = vmatprep.subr.bf16.mxu0 0
      %385 = vmatpush1.bf16.msra.mxu0 0
      %386 = vmatprep.subr.bf16.mxu0 0
      %387 = vmatpush1.bf16.msra.mxu0 0
      %388 = vmatprep.subr.bf16.mxu0 0
      %389 = vmatpush1.bf16.msra.mxu0 %v372
      %390 = vmatprep.subr.bf16.mxu0 0
      %391 = vmatpush2.bf16.msra.mxu0 0
      %392 = vmatprep.subr.bf16.mxu0 0
      %393 = vmatpush2.bf16.msra.mxu0 0
      %394 = vmatprep.subr.bf16.mxu0 0
      %395 = vmatpush2.bf16.msra.mxu0 0
      %396 = vmatprep.subr.bf16.mxu0 0
      %397 = vmatpush2.bf16.msra.mxu0 0
      %398 = vmatprep.subr.bf16.mxu0 0
      %399 = vmatpush2.bf16.msra.mxu0 0
      %400 = vmatprep.subr.bf16.mxu0 0
      %401 = vmatpush2.bf16.msra.mxu0 0
      %402 = vmatprep.subr.bf16.mxu0 0
      %403 = vmatpush2.bf16.msra.mxu0 0
      %404 = vmatprep.subr.bf16.mxu0 0
      %405 = vmatpush2.bf16.msra.mxu0 0
      %406 = vmatprep.mubr.bf16.mxu0 0
      %407 = vmatmul.mubr.bf16.gmra.mxu0 %v368
      %v408 = vpop.f32.mrf.mxu0
      %v409 = vadd.f32 %v365, %v408
      %v410 = vpop.f32.mrf.mxu0
      %v411 = vpop.f32.mrf.mxu0
      %v412 = vadd.f32 %v365, %v411
      %v413 = vpop.f32.mrf.mxu0
      %414 = vdwg.mxu0
      %v415 = vadd.f32 %v409, %v352
      %v416 = vadd.f32 %v412, %v353
      %v417 = vpack.c.bf16 %v357, %v356
      %v418 = vld [vmem:[%s5] sm:$0x3]
      %v419 = vlaneseq
      %v420 = vshrl.u32 %v419, 7
      %v421 = vsub.s32 1, %v420
      %v422 = vrot.slane %v351, %v421
      %vm423 = vcmask 23552
      %v425 = vsel %vm423, %v417, 0
      %vm427 = vcmask 1040384
      %vm428 = vcmask 1041408
      %v429 = vsel %vm427, 4294967295, 65535
      %v430 = vsel %vm428, %v429, 0
      %v432 = vand.u32 %v418, %v430
      %434 = vmatprep.subr.bf16.mxu0 0
      %435 = vmatpush1.bf16.msra.mxu0 0
      %436 = vmatprep.subr.bf16.mxu0 0
      %437 = vmatpush1.bf16.msra.mxu0 0
      %438 = vmatprep.subr.bf16.mxu0 0
      %439 = vmatpush1.bf16.msra.mxu0 0
      %440 = vmatprep.subr.bf16.mxu0 0
      %441 = vmatpush1.bf16.msra.mxu0 0
      %442 = vmatprep.subr.bf16.mxu0 0
      %443 = vmatpush1.bf16.msra.mxu0 0
      %444 = vmatprep.subr.bf16.mxu0 0
      %445 = vmatpush1.bf16.msra.mxu0 0
      %446 = vmatprep.subr.bf16.mxu0 0
      %447 = vmatpush1.bf16.msra.mxu0 0
      %448 = vmatprep.subr.bf16.mxu0 0
      %449 = vmatpush1.bf16.msra.mxu0 %v432
      %450 = vmatprep.subr.bf16.mxu0 0
      %451 = vmatpush2.bf16.msra.mxu0 0
      %452 = vmatprep.subr.bf16.mxu0 0
      %453 = vmatpush2.bf16.msra.mxu0 0
      %454 = vmatprep.subr.bf16.mxu0 0
      %455 = vmatpush2.bf16.msra.mxu0 0
      %456 = vmatprep.subr.bf16.mxu0 0
      %457 = vmatpush2.bf16.msra.mxu0 0
      %458 = vmatprep.subr.bf16.mxu0 0
      %459 = vmatpush2.bf16.msra.mxu0 0
      %460 = vmatprep.subr.bf16.mxu0 0
      %461 = vmatpush2.bf16.msra.mxu0 0
      %462 = vmatprep.subr.bf16.mxu0 0
      %463 = vmatpush2.bf16.msra.mxu0 0
      %464 = vmatprep.subr.bf16.mxu0 0
      %465 = vmatpush2.bf16.msra.mxu0 0
      %466 = vmatprep.mubr.bf16.mxu0 0
      %467 = vmatmul.mubr.bf16.gmra.mxu0 %v425
      %v468 = vpop.f32.mrf.mxu0
      %v469 = vadd.f32 %v422, %v468
      %v470 = vpop.f32.mrf.mxu0
      %v471 = vpop.f32.mrf.mxu0
      %v472 = vadd.f32 %v422, %v471
      %v473 = vpop.f32.mrf.mxu0
      %474 = vdwg.mxu0
      %v475 = vadd.f32 %v469, %v352
      %v476 = vadd.f32 %v472, %v353
      %478 = vset.pattern.permute.xlu0 0
      %479 = vperm.xlu0 %478, %v358
      %v480 = vpop.permute.xlu0 %479
      %483 = vset.pattern.permute.xlu0 0
      %484 = vperm.xlu0 %483, %v359
      %v485 = vpop.permute.xlu0 %484
      %v487 = vlaneseq
      %v488 = vshrl.u32 %v487, 7
      %v489 = vsub.s32 3, %v488
      %v490 = vrot.slane %v351, %v489
      %v491 = vmul.f32 %v480, %v490
      %v492 = vmul.f32 %v485, %v490
      %v493 = vlaneseq
      %v494 = vshrl.u32 %v493, 7
      %v495 = vsub.s32 2, %v494
      %v496 = vrot.slane %v351, %v495
      %v497 = vadd.f32 %v491, %v496
      %v498 = vadd.f32 %v492, %v496
      %v499 = vadd.f32 %v497, %v352
      %v500 = vadd.f32 %v498, %v353
      %501 = vadd.xlane.f32.xlu0 %v415
      %v502 = vpop.xlane.xlu0 %501
      %503 = vadd.xlane.f32.xlu0 %v416
      %v504 = vpop.xlane.xlu0 %503
      %v505 = vrcp.pop 128.0
      %v506 = vmul.f32 %v502, %v505
      %v507 = vmul.f32 %v504, %v505
      %v508 = vsub.f32 %v415, %v506
      %v509 = vsub.f32 %v416, %v507
      %v510 = vmul.f32 %v508, %v508
      %v511 = vmul.f32 %v509, %v509
      %512 = vadd.xlane.f32.xlu0 %v510
      %v513 = vpop.xlane.xlu0 %512
      %514 = vadd.xlane.f32.xlu0 %v511
      %v515 = vpop.xlane.xlu0 %514
      %v516 = vmul.f32 %v513, %v505
      %v517 = vmul.f32 %v515, %v505
      %v518 = vadd.f32 %v516, 1e-05
      %v519 = vadd.f32 %v517, 1e-05
      %v520 = vrsqrt.pop %v518
      %v521 = vrsqrt.pop %v519
      %v522 = vmul.f32 %v508, %v520
      %v523 = vmul.f32 %v509, %v521
      %v524 = vlaneseq
      %v525 = vshrl.u32 %v524, 7
      %v526 = vsub.s32 4, %v525
      %v527 = vrot.slane %v351, %v526
      %v528 = vmul.f32 %v522, %v527
      %v529 = vmul.f32 %v523, %v527
      %v530 = vlaneseq
      %v531 = vshrl.u32 %v530, 7
      %v532 = vsub.s32 5, %v531
      %v533 = vrot.slane %v351, %v532
      %v534 = vadd.f32 %v528, %v533
      %v535 = vadd.f32 %v529, %v533
      %v538 = vcombine.high %v534, %v534
      %v540 = vunpack.c.l.s4 1966171168
      %v541 = vunpack.c.0.s8 %v540
      %v542 = vlaneseq
      %v543 = vshrl.u32 %v542, 7
      %v544 = vsub.s32 %v541, %v543
      %v545 = vrot.slane %v534, %v544
      %v547 = vunpack.c.l.s4 1966171168
      %v548 = vunpack.c.0.s8 %v547
      %v549 = vlaneseq
      %v550 = vshrl.u32 %v549, 7
      %v551 = vsub.s32 %v548, %v550
      %v552 = vrot.slane %v538, %v551
      %v553 = vcombine.high %v545, %v545
      %v554 = vcombine.high %v552, %v552
      %v556 = vunpack.c.l.s4 1966171168
      %v557 = vunpack.c.0.s8 %v556
      %v558 = vlaneseq
      %v559 = vshrl.u32 %v558, 7
      %v560 = vsub.s32 %v557, %v559
      %v561 = vrot.slane %v545, %v560
      %v563 = vunpack.c.l.s4 1966171168
      %v564 = vunpack.c.0.s8 %v563
      %v565 = vlaneseq
      %v566 = vshrl.u32 %v565, 7
      %v567 = vsub.s32 %v564, %v566
      %v568 = vrot.slane %v552, %v567
      %v570 = vunpack.c.l.s4 1966171168
      %v571 = vunpack.c.0.s8 %v570
      %v572 = vlaneseq
      %v573 = vshrl.u32 %v572, 7
      %v574 = vsub.s32 %v571, %v573
      %v575 = vrot.slane %v553, %v574
      %v577 = vunpack.c.l.s4 1966171168
      %v578 = vunpack.c.0.s8 %v577
      %v579 = vlaneseq
      %v580 = vshrl.u32 %v579, 7
      %v581 = vsub.s32 %v578, %v580
      %v582 = vrot.slane %v554, %v581
      %v583 = vcombine.high %v561, %v561
      %v584 = vcombine.high %v568, %v568
      %v585 = vcombine.high %v575, %v575
      %v586 = vcombine.high %v582, %v582
      %v587 = vcombine.high %v535, %v535
      %v589 = vunpack.c.l.s4 1966171168
      %v590 = vunpack.c.0.s8 %v589
      %v591 = vlaneseq
      %v592 = vshrl.u32 %v591, 7
      %v593 = vsub.s32 %v590, %v592
      %v594 = vrot.slane %v535, %v593
      %v596 = vunpack.c.l.s4 1966171168
      %v597 = vunpack.c.0.s8 %v596
      %v598 = vlaneseq
      %v599 = vshrl.u32 %v598, 7
      %v600 = vsub.s32 %v597, %v599
      %v601 = vrot.slane %v587, %v600
      %v602 = vcombine.high %v594, %v594
      %v603 = vcombine.high %v601, %v601
      %v605 = vunpack.c.l.s4 1966171168
      %v606 = vunpack.c.0.s8 %v605
      %v607 = vlaneseq
      %v608 = vshrl.u32 %v607, 7
      %v609 = vsub.s32 %v606, %v608
      %v610 = vrot.slane %v594, %v609
      %v612 = vunpack.c.l.s4 1966171168
      %v613 = vunpack.c.0.s8 %v612
      %v614 = vlaneseq
      %v615 = vshrl.u32 %v614, 7
      %v616 = vsub.s32 %v613, %v615
      %v617 = vrot.slane %v601, %v616
      %v619 = vunpack.c.l.s4 1966171168
      %v620 = vunpack.c.0.s8 %v619
      %v621 = vlaneseq
      %v622 = vshrl.u32 %v621, 7
      %v623 = vsub.s32 %v620, %v622
      %v624 = vrot.slane %v602, %v623
      %v626 = vunpack.c.l.s4 1966171168
      %v627 = vunpack.c.0.s8 %v626
      %v628 = vlaneseq
      %v629 = vshrl.u32 %v628, 7
      %v630 = vsub.s32 %v627, %v629
      %v631 = vrot.slane %v603, %v630
      %v632 = vcombine.high %v610, %v610
      %v633 = vcombine.high %v617, %v617
      %v634 = vcombine.high %v624, %v624
      %v635 = vcombine.high %v631, %v631
      %652 = vst [vmem:[%s348] sm:$0x1] %v561
      %653 = vst [vmem:[%s348 + $0x4] sm:$0x1] %v575
      %654 = vst [vmem:[%s348 + $0x8] sm:$0x1] %v583
      %655 = vst [vmem:[%s348 + $0xc] sm:$0x1] %v585
      %656 = vst [vmem:[%s348 + $0x10] sm:$0x1] %v568
      %657 = vst [vmem:[%s348 + $0x14] sm:$0x1] %v582
      %658 = vst [vmem:[%s348 + $0x18] sm:$0x1] %v584
      %659 = vst [vmem:[%s348 + $0x1c] sm:$0x1] %v586
      %660 = vst [vmem:[%s348 + $0x20] sm:$0x1] %v610
      %661 = vst [vmem:[%s348 + $0x24] sm:$0x1] %v624
      %662 = vst [vmem:[%s348 + $0x28] sm:$0x1] %v632
      %663 = vst [vmem:[%s348 + $0x2c] sm:$0x1] %v634
      %664 = vst [vmem:[%s348 + $0x30] sm:$0x1] %v617
      %665 = vst [vmem:[%s348 + $0x34] sm:$0x1] %v631
      %666 = vst [vmem:[%s348 + $0x38] sm:$0x1] %v633
      %667 = vst [vmem:[%s348 + $0x3c] sm:$0x1] %v635
      %668 = vadd.xlane.f32.xlu0 %v499
      %v669 = vpop.xlane.xlu0 %668
      %670 = vadd.xlane.f32.xlu0 %v500
      %v671 = vpop.xlane.xlu0 %670
      %v672 = vmul.f32 %v669, %v505
      %v673 = vmul.f32 %v671, %v505
      %v674 = vsub.f32 %v499, %v672
      %v675 = vsub.f32 %v500, %v673
      %v676 = vmul.f32 %v674, %v674
      %v677 = vmul.f32 %v675, %v675
      %678 = vadd.xlane.f32.xlu0 %v676
      %v679 = vpop.xlane.xlu0 %678
      %680 = vadd.xlane.f32.xlu0 %v677
      %v681 = vpop.xlane.xlu0 %680
      %v682 = vmul.f32 %v679, %v505
      %v683 = vmul.f32 %v681, %v505
      %v684 = vadd.f32 %v682, 1e-05
      %v685 = vadd.f32 %v683, 1e-05
      %v686 = vrsqrt.pop %v684
      %v687 = vrsqrt.pop %v685
      %v688 = vmul.f32 %v674, %v686
      %v689 = vmul.f32 %v675, %v687
      %v690 = vmul.f32 %v688, %v527
      %v691 = vmul.f32 %v689, %v527
      %v692 = vadd.f32 %v690, %v533
      %v693 = vadd.f32 %v691, %v533
      %v696 = vcombine.high %v692, %v692
      %v698 = vunpack.c.l.s4 1966171168
      %v699 = vunpack.c.0.s8 %v698
      %v700 = vlaneseq
      %v701 = vshrl.u32 %v700, 7
      %v702 = vsub.s32 %v699, %v701
      %v703 = vrot.slane %v692, %v702
      %v705 = vunpack.c.l.s4 1966171168
      %v706 = vunpack.c.0.s8 %v705
      %v707 = vlaneseq
      %v708 = vshrl.u32 %v707, 7
      %v709 = vsub.s32 %v706, %v708
      %v710 = vrot.slane %v696, %v709
      %v711 = vcombine.high %v703, %v703
      %v712 = vcombine.high %v710, %v710
      %v714 = vunpack.c.l.s4 1966171168
      %v715 = vunpack.c.0.s8 %v714
      %v716 = vlaneseq
      %v717 = vshrl.u32 %v716, 7
      %v718 = vsub.s32 %v715, %v717
      %v719 = vrot.slane %v703, %v718
      %v721 = vunpack.c.l.s4 1966171168
      %v722 = vunpack.c.0.s8 %v721
      %v723 = vlaneseq
      %v724 = vshrl.u32 %v723, 7
      %v725 = vsub.s32 %v722, %v724
      %v726 = vrot.slane %v710, %v725
      %v728 = vunpack.c.l.s4 1966171168
      %v729 = vunpack.c.0.s8 %v728
      %v730 = vlaneseq
      %v731 = vshrl.u32 %v730, 7
      %v732 = vsub.s32 %v729, %v731
      %v733 = vrot.slane %v711, %v732
      %v735 = vunpack.c.l.s4 1966171168
      %v736 = vunpack.c.0.s8 %v735
      %v737 = vlaneseq
      %v738 = vshrl.u32 %v737, 7
      %v739 = vsub.s32 %v736, %v738
      %v740 = vrot.slane %v712, %v739
      %v741 = vcombine.high %v719, %v719
      %v742 = vcombine.high %v726, %v726
      %v743 = vcombine.high %v733, %v733
      %v744 = vcombine.high %v740, %v740
      %v745 = vcombine.high %v693, %v693
      %v747 = vunpack.c.l.s4 1966171168
      %v748 = vunpack.c.0.s8 %v747
      %v749 = vlaneseq
      %v750 = vshrl.u32 %v749, 7
      %v751 = vsub.s32 %v748, %v750
      %v752 = vrot.slane %v693, %v751
      %v754 = vunpack.c.l.s4 1966171168
      %v755 = vunpack.c.0.s8 %v754
      %v756 = vlaneseq
      %v757 = vshrl.u32 %v756, 7
      %v758 = vsub.s32 %v755, %v757
      %v759 = vrot.slane %v745, %v758
      %v760 = vcombine.high %v752, %v752
      %v761 = vcombine.high %v759, %v759
      %v763 = vunpack.c.l.s4 1966171168
      %v764 = vunpack.c.0.s8 %v763
      %v765 = vlaneseq
      %v766 = vshrl.u32 %v765, 7
      %v767 = vsub.s32 %v764, %v766
      %v768 = vrot.slane %v752, %v767
      %v770 = vunpack.c.l.s4 1966171168
      %v771 = vunpack.c.0.s8 %v770
      %v772 = vlaneseq
      %v773 = vshrl.u32 %v772, 7
      %v774 = vsub.s32 %v771, %v773
      %v775 = vrot.slane %v759, %v774
      %v777 = vunpack.c.l.s4 1966171168
      %v778 = vunpack.c.0.s8 %v777
      %v779 = vlaneseq
      %v780 = vshrl.u32 %v779, 7
      %v781 = vsub.s32 %v778, %v780
      %v782 = vrot.slane %v760, %v781
      %v784 = vunpack.c.l.s4 1966171168
      %v785 = vunpack.c.0.s8 %v784
      %v786 = vlaneseq
      %v787 = vshrl.u32 %v786, 7
      %v788 = vsub.s32 %v785, %v787
      %v789 = vrot.slane %v761, %v788
      %v790 = vcombine.high %v768, %v768
      %v791 = vcombine.high %v775, %v775
      %v792 = vcombine.high %v782, %v782
      %v793 = vcombine.high %v789, %v789
      %810 = vst [vmem:[%s348 + $0x1] sm:$0x1] %v719
      %811 = vst [vmem:[%s348 + $0x5] sm:$0x1] %v733
      %812 = vst [vmem:[%s348 + $0x9] sm:$0x1] %v741
      %813 = vst [vmem:[%s348 + $0xd] sm:$0x1] %v743
      %814 = vst [vmem:[%s348 + $0x11] sm:$0x1] %v726
      %815 = vst [vmem:[%s348 + $0x15] sm:$0x1] %v740
      %816 = vst [vmem:[%s348 + $0x19] sm:$0x1] %v742
      %817 = vst [vmem:[%s348 + $0x1d] sm:$0x1] %v744
      %818 = vst [vmem:[%s348 + $0x21] sm:$0x1] %v768
      %819 = vst [vmem:[%s348 + $0x25] sm:$0x1] %v782
      %820 = vst [vmem:[%s348 + $0x29] sm:$0x1] %v790
      %821 = vst [vmem:[%s348 + $0x2d] sm:$0x1] %v792
      %822 = vst [vmem:[%s348 + $0x31] sm:$0x1] %v775
      %823 = vst [vmem:[%s348 + $0x35] sm:$0x1] %v789
      %824 = vst [vmem:[%s348 + $0x39] sm:$0x1] %v791
      %825 = vst [vmem:[%s348 + $0x3d] sm:$0x1] %v793
      %826 = vadd.xlane.f32.xlu0 %v475
      %v827 = vpop.xlane.xlu0 %826
      %828 = vadd.xlane.f32.xlu0 %v476
      %v829 = vpop.xlane.xlu0 %828
      %v830 = vmul.f32 %v827, %v505
      %v831 = vmul.f32 %v829, %v505
      %v832 = vsub.f32 %v475, %v830
      %v833 = vsub.f32 %v476, %v831
      %v834 = vmul.f32 %v832, %v832
      %v835 = vmul.f32 %v833, %v833
      %836 = vadd.xlane.f32.xlu0 %v834
      %v837 = vpop.xlane.xlu0 %836
      %838 = vadd.xlane.f32.xlu0 %v835
      %v839 = vpop.xlane.xlu0 %838
      %v840 = vmul.f32 %v837, %v505
      %v841 = vmul.f32 %v839, %v505
      %v842 = vadd.f32 %v840, 1e-05
      %v843 = vadd.f32 %v841, 1e-05
      %v844 = vrsqrt.pop %v842
      %v845 = vrsqrt.pop %v843
      %v846 = vmul.f32 %v832, %v844
      %v847 = vmul.f32 %v833, %v845
      %v848 = vmul.f32 %v846, %v527
      %v849 = vmul.f32 %v847, %v527
      %v850 = vadd.f32 %v848, %v533
      %v851 = vadd.f32 %v849, %v533
      %v854 = vcombine.high %v850, %v850
      %v856 = vunpack.c.l.s4 1966171168
      %v857 = vunpack.c.0.s8 %v856
      %v858 = vlaneseq
      %v859 = vshrl.u32 %v858, 7
      %v860 = vsub.s32 %v857, %v859
      %v861 = vrot.slane %v850, %v860
      %v863 = vunpack.c.l.s4 1966171168
      %v864 = vunpack.c.0.s8 %v863
      %v865 = vlaneseq
      %v866 = vshrl.u32 %v865, 7
      %v867 = vsub.s32 %v864, %v866
      %v868 = vrot.slane %v854, %v867
      %v869 = vcombine.high %v861, %v861
      %v870 = vcombine.high %v868, %v868
      %v872 = vunpack.c.l.s4 1966171168
      %v873 = vunpack.c.0.s8 %v872
      %v874 = vlaneseq
      %v875 = vshrl.u32 %v874, 7
      %v876 = vsub.s32 %v873, %v875
      %v877 = vrot.slane %v861, %v876
      %v879 = vunpack.c.l.s4 1966171168
      %v880 = vunpack.c.0.s8 %v879
      %v881 = vlaneseq
      %v882 = vshrl.u32 %v881, 7
      %v883 = vsub.s32 %v880, %v882
      %v884 = vrot.slane %v868, %v883
      %v886 = vunpack.c.l.s4 1966171168
      %v887 = vunpack.c.0.s8 %v886
      %v888 = vlaneseq
      %v889 = vshrl.u32 %v888, 7
      %v890 = vsub.s32 %v887, %v889
      %v891 = vrot.slane %v869, %v890
      %v893 = vunpack.c.l.s4 1966171168
      %v894 = vunpack.c.0.s8 %v893
      %v895 = vlaneseq
      %v896 = vshrl.u32 %v895, 7
      %v897 = vsub.s32 %v894, %v896
      %v898 = vrot.slane %v870, %v897
      %v899 = vcombine.high %v877, %v877
      %v900 = vcombine.high %v884, %v884
      %v901 = vcombine.high %v891, %v891
      %v902 = vcombine.high %v898, %v898
      %v903 = vcombine.high %v851, %v851
      %v905 = vunpack.c.l.s4 1966171168
      %v906 = vunpack.c.0.s8 %v905
      %v907 = vlaneseq
      %v908 = vshrl.u32 %v907, 7
      %v909 = vsub.s32 %v906, %v908
      %v910 = vrot.slane %v851, %v909
      %v912 = vunpack.c.l.s4 1966171168
      %v913 = vunpack.c.0.s8 %v912
      %v914 = vlaneseq
      %v915 = vshrl.u32 %v914, 7
      %v916 = vsub.s32 %v913, %v915
      %v917 = vrot.slane %v903, %v916
      %v918 = vcombine.high %v910, %v910
      %v919 = vcombine.high %v917, %v917
      %v921 = vunpack.c.l.s4 1966171168
      %v922 = vunpack.c.0.s8 %v921
      %v923 = vlaneseq
      %v924 = vshrl.u32 %v923, 7
      %v925 = vsub.s32 %v922, %v924
      %v926 = vrot.slane %v910, %v925
      %v928 = vunpack.c.l.s4 1966171168
      %v929 = vunpack.c.0.s8 %v928
      %v930 = vlaneseq
      %v931 = vshrl.u32 %v930, 7
      %v932 = vsub.s32 %v929, %v931
      %v933 = vrot.slane %v917, %v932
      %v935 = vunpack.c.l.s4 1966171168
      %v936 = vunpack.c.0.s8 %v935
      %v937 = vlaneseq
      %v938 = vshrl.u32 %v937, 7
      %v939 = vsub.s32 %v936, %v938
      %v940 = vrot.slane %v918, %v939
      %v942 = vunpack.c.l.s4 1966171168
      %v943 = vunpack.c.0.s8 %v942
      %v944 = vlaneseq
      %v945 = vshrl.u32 %v944, 7
      %v946 = vsub.s32 %v943, %v945
      %v947 = vrot.slane %v919, %v946
      %v948 = vcombine.high %v926, %v926
      %v949 = vcombine.high %v933, %v933
      %v950 = vcombine.high %v940, %v940
      %v951 = vcombine.high %v947, %v947
      %968 = vst [vmem:[%s348 + $0x2] sm:$0x1] %v877
      %969 = vst [vmem:[%s348 + $0x6] sm:$0x1] %v891
      %970 = vst [vmem:[%s348 + $0xa] sm:$0x1] %v899
      %971 = vst [vmem:[%s348 + $0xe] sm:$0x1] %v901
      %972 = vst [vmem:[%s348 + $0x12] sm:$0x1] %v884
      %973 = vst [vmem:[%s348 + $0x16] sm:$0x1] %v898
      %974 = vst [vmem:[%s348 + $0x1a] sm:$0x1] %v900
      %975 = vst [vmem:[%s348 + $0x1e] sm:$0x1] %v902
      %976 = vst [vmem:[%s348 + $0x22] sm:$0x1] %v926
      %977 = vst [vmem:[%s348 + $0x26] sm:$0x1] %v940
      %978 = vst [vmem:[%s348 + $0x2a] sm:$0x1] %v948
      %979 = vst [vmem:[%s348 + $0x2e] sm:$0x1] %v950
      %980 = vst [vmem:[%s348 + $0x32] sm:$0x1] %v933
      %981 = vst [vmem:[%s348 + $0x36] sm:$0x1] %v947
      %982 = vst [vmem:[%s348 + $0x3a] sm:$0x1] %v949
      %983 = vst [vmem:[%s348 + $0x3e] sm:$0x1] %v951
      %s984 = smul.u32 2, %s18
      %p985 = scmp.lt.s32.totalorder %s984, 3
      %s986 = scalar_select %p985, %s984, 3
      %s987 = smul.addr %s986, 8
      %s988 = smul.addr %s987, 4
      %s989 = scalar_lea.vmem %s7, %s988
      // Predicated region
      $region49: #{reinformer_forward.4} parent=47 // pred_check
        %p990 = pneg %p203
      $region50: #{reinformer_forward.4} parent=47 // pred_check_branch
        %992 = sbr.rel (%p990) target = $region52
      $region51: #{reinformer_forward.4} parent=47 // pred_region
        %s993 = smul.u32 2, %s18
      $region52: #{reinformer_forward.4} parent=47 // pred_fallthru
        _
    $region48: #{reinformer_forward.4} parent=5 // pred_fallthru
      _
    %p994 = scmp.le.s32.totalorder 2, %s13
    // Predicated region
    $region53: #{reinformer_forward.4} parent=5 // pred_check
      %p995 = pneg %p994
    $region54: #{reinformer_forward.4} parent=5 // pred_check_branch
      %997 = sbr.rel (%p995) target = $region56
    $region55: #{reinformer_forward.4} parent=5 // pred_region
      %s998 = ssub.s32 %s13, 2
      // Predicated region
      $region57: #{reinformer_forward.4} parent=55 // pred_check
        %p999 = pneg %p209
      $region58: #{reinformer_forward.4} parent=55 // pred_check_branch
        %1001 = sbr.rel (%p999) target = $region60
      $region59: #{reinformer_forward.4} parent=55 // pred_region
        %s1002 = smul.u32 2, %s19
        %p1003 = scmp.lt.s32.totalorder %s1002, 3
        %s1004 = scalar_select %p1003, %s1002, 3
        %s1005 = smul.addr %s1004, 8
        %s1006 = smul.addr %s1005, 4
        %s1007 = scalar_lea.vmem %s7, %s1006
      $region60: #{reinformer_forward.4} parent=55 // pred_fallthru
        _
    $region56: #{reinformer_forward.4} parent=5 // pred_fallthru
      _
  $region6: #{reinformer_forward.4} parent=0 // loop_footer
    %s17 = sadd.s32 1, %s13
  $region7: #{reinformer_forward.4} parent=0 // loop_footer_branch
    %12 = sbr.rel target = $region3
  $region8: #{reinformer_forward.4} parent=0 // loop_exit
    _

// kernel: reinformer_forward.7
$region0: #{reinformer_forward.7}
  #allocation0 [shape = 'u32[]', space=smem, size = 0x4, offset = 0x4, fixed_abs, tag = 'smem constant byte address 0x4 - core index']
  #allocation1 [shape = 'u32[144,128]{1,0:T(1,128)}', space=vmem, size = 0x12000, scoped, tag = 'internal scratch']
  %s0 = inlined_call_operand.vmem [shape: f32[4,24,128], index: 0, kind: input, shape index: {}]
  %s1 = inlined_call_operand.vmem [shape: bf16[128,128], index: 1, kind: input, shape index: {}]
  %s2 = inlined_call_operand.vmem [shape: f32[1,128], index: 2, kind: input, shape index: {}]
  %s3 = inlined_call_operand.vmem [shape: f32[4,24,128], index: 3, kind: output, shape index: {}]
  %s4 = sld [smem:[#allocation0]]
  $region45: #{reinformer_forward.7} parent=0
    _
  %s6 = ssub.s32 1, %s4
  %s7 = scalar_select 0, %s6, %s4
  loop: start=0, step=1, limit=4
  $region2: #{reinformer_forward.7} parent=0 // loop_pre_header
    _
  $region3: #{reinformer_forward.7} parent=0 // loop_header
    %s9 = sphi 0, %s13
    %p10 = scmp.ge.s32.totalorder %s9, 4
    %s19 = sphi 0, %s21
    %s22 = sphi 0, %s19
    %s23 = sphi 0, %s22
    %s39 = sphi 0, %s23
    %s43 = sphi 0, %s43
    %s45 = sphi 0, %s43
    %s46 = sphi 0, %s45
    %s60 = sphi 0, %s46
    %s64 = sphi 0, %s64
    %s66 = sphi 0, %s64
    %s67 = sphi 0, %s66
    %s81 = sphi 0, %s67
    %s87 = sphi 0, %s89
    %s90 = sphi 0, %s87
    %s91 = sphi 0, %s90
    %s107 = sphi 0, %s91
  $region4: #{reinformer_forward.7} parent=0 // loop_header_branch
    %12 = sbr.rel (%p10) target = $region8
  $region5: #{reinformer_forward.7} parent=0 // loop_body
    %s14 = ssub.s32 %s9, 1
    %s15 = ssub.s32 %s9, 2
    %s16 = sadd.s32 %s9, 1
    %s17 = ssub.s32 %s9, %s16
    %p18 = scmp.eq.s32.totalorder %s17, 0
    %s20 = sadd.s32 %s19, 1
    %s21 = scalar_select %p18, %s19, %s20
    %p24 = pneg %p18
    %p25 = scmp.eq.s32.totalorder %s9, 1
    %p26 = por %p24, %p25
    %p27 = scmp.ne.s32.totalorder %s19, %s22
    %p28 = scmp.eq.s32.totalorder %s9, 0
    %p29 = por %p27, %p28
    %p30 = scmp.ne.s32.totalorder %s19, %s22
    %p31 = scmp.eq.s32.totalorder %s14, 1
    %p32 = por %p30, %p31
    %p33 = scmp.ne.s32.totalorder %s22, %s23
    %p34 = scmp.eq.s32.totalorder %s14, 0
    %p35 = por %p33, %p34
    %p36 = scmp.ne.s32.totalorder %s22, %s23
    %p37 = scmp.eq.s32.totalorder %s15, 1
    %p38 = por %p36, %p37
    %p40 = scmp.ne.s32.totalorder %s23, %s39
    %p41 = scmp.eq.s32.totalorder %s15, 0
    %p42 = por %p40, %p41
    %s44 = sadd.s32 %s43, 1
    %p47 = scmp.eq.s32.totalorder %s9, 1
    %p48 = scmp.ne.s32.totalorder %s43, %s45
    %p49 = scmp.eq.s32.totalorder %s9, 0
    %p50 = por %p48, %p49
    %p51 = scmp.ne.s32.totalorder %s43, %s45
    %p52 = scmp.eq.s32.totalorder %s14, 1
    %p53 = por %p51, %p52
    %p54 = scmp.ne.s32.totalorder %s45, %s46
    %p55 = scmp.eq.s32.totalorder %s14, 0
    %p56 = por %p54, %p55
    %p57 = scmp.ne.s32.totalorder %s45, %s46
    %p58 = scmp.eq.s32.totalorder %s15, 1
    %p59 = por %p57, %p58
    %p61 = scmp.ne.s32.totalorder %s46, %s60
    %p62 = scmp.eq.s32.totalorder %s15, 0
    %p63 = por %p61, %p62
    %s65 = sadd.s32 %s64, 1
    %p68 = scmp.eq.s32.totalorder %s9, 1
    %p69 = scmp.ne.s32.totalorder %s64, %s66
    %p70 = scmp.eq.s32.totalorder %s9, 0
    %p71 = por %p69, %p70
    %p72 = scmp.ne.s32.totalorder %s64, %s66
    %p73 = scmp.eq.s32.totalorder %s14, 1
    %p74 = por %p72, %p73
    %p75 = scmp.ne.s32.totalorder %s66, %s67
    %p76 = scmp.eq.s32.totalorder %s14, 0
    %p77 = por %p75, %p76
    %p78 = scmp.ne.s32.totalorder %s66, %s67
    %p79 = scmp.eq.s32.totalorder %s15, 1
    %p80 = por %p78, %p79
    %p82 = scmp.ne.s32.totalorder %s67, %s81
    %p83 = scmp.eq.s32.totalorder %s15, 0
    %p84 = por %p82, %p83
    %s85 = ssub.s32 %s9, %s16
    %p86 = scmp.eq.s32.totalorder %s85, 0
    %s88 = sadd.s32 %s87, 1
    %s89 = scalar_select %p86, %s87, %s88
    %p92 = pneg %p86
    %p93 = scmp.eq.s32.totalorder %s9, 1
    %p94 = por %p92, %p93
    %p95 = scmp.ne.s32.totalorder %s87, %s90
    %p96 = scmp.eq.s32.totalorder %s9, 0
    %p97 = por %p95, %p96
    %p98 = scmp.ne.s32.totalorder %s87, %s90
    %p99 = scmp.eq.s32.totalorder %s14, 1
    %p100 = por %p98, %p99
    %p101 = scmp.ne.s32.totalorder %s90, %s91
    %p102 = scmp.eq.s32.totalorder %s14, 0
    %p103 = por %p101, %p102
    %p104 = scmp.ne.s32.totalorder %s90, %s91
    %p105 = scmp.eq.s32.totalorder %s15, 1
    %p106 = por %p104, %p105
    %p108 = scmp.ne.s32.totalorder %s91, %s107
    %p109 = scmp.eq.s32.totalorder %s15, 0
    %p110 = por %p108, %p109
    %p111 = scmp.le.s32.totalorder 1, %s9
    %p112 = scmp.lt.s32.totalorder %s9, 3
    %p113 = pnand %p111, %p112
    %p114 = pneg %p113
    // Predicated region
    $region9: #{reinformer_forward.7} parent=5 // pred_check
      _
    $region10: #{reinformer_forward.7} parent=5 // pred_check_branch
      %116 = sbr.rel (%p113) target = $region12
    $region11: #{reinformer_forward.7} parent=5 // pred_region
      %s117 = ssub.s32 %s9, 1
      // Predicated region
      $region13: #{reinformer_forward.7} parent=11 // pred_check
        %p118 = pneg %p56
      $region14: #{reinformer_forward.7} parent=11 // pred_check_branch
        %120 = sbr.rel (%p118) target = $region16
      $region15: #{reinformer_forward.7} parent=11 // pred_region
        _
      $region16: #{reinformer_forward.7} parent=11 // pred_fallthru
        _
      // Predicated region
      $region17: #{reinformer_forward.7} parent=11 // pred_check
        %p121 = pneg %p77
      $region18: #{reinformer_forward.7} parent=11 // pred_check_branch
        %123 = sbr.rel (%p121) target = $region20
      $region19: #{reinformer_forward.7} parent=11 // pred_region
        _
      $region20: #{reinformer_forward.7} parent=11 // pred_fallthru
        _
    $region12: #{reinformer_forward.7} parent=5 // pred_fallthru
      _
    %p124 = scmp.lt.s32.totalorder %s9, 2
    // Predicated region
    $region21: #{reinformer_forward.7} parent=5 // pred_check
      %p125 = pneg %p124
    $region22: #{reinformer_forward.7} parent=5 // pred_check_branch
      %127 = sbr.rel (%p125) target = $region24
    $region23: #{reinformer_forward.7} parent=5 // pred_region
      // Predicated region
      $region25: #{reinformer_forward.7} parent=23 // pred_check
        %p128 = pneg %p29
      $region26: #{reinformer_forward.7} parent=23 // pred_check_branch
        %130 = sbr.rel (%p128) target = $region28
      $region27: #{reinformer_forward.7} parent=23 // pred_region
        %s131 = smul.u32 2, %s9
        %p132 = scmp.lt.s32.totalorder %s131, 3
        %s133 = scalar_select %p132, %s131, 3
        %s134 = smul.addr %s133, 3
        %s135 = smul.addr %s134, 8
        %s136 = scalar_lea.vmem %s0, %s135
        %s137 = smul.u32 2, %s9
      $region28: #{reinformer_forward.7} parent=23 // pred_fallthru
        _
    $region24: #{reinformer_forward.7} parent=5 // pred_fallthru
      _
    %p138 = scmp.le.s32.totalorder 1, %s9
    %p139 = scmp.lt.s32.totalorder %s9, 3
    %p140 = pnand %p138, %p139
    %p141 = pneg %p140
    // Predicated region
    $region29: #{reinformer_forward.7} parent=5 // pred_check
      _
    $region30: #{reinformer_forward.7} parent=5 // pred_check_branch
      %143 = sbr.rel (%p140) target = $region32
    $region31: #{reinformer_forward.7} parent=5 // pred_region
      %s144 = ssub.s32 %s9, 1
      %s145 = smul.u32 2, %s14
      %p146 = scmp.lt.s32.totalorder %s145, 3
      %s147 = scalar_select %p146, %s145, 3
      %s148 = smul.addr %s147, 3
      %s149 = smul.addr %s148, 8
      %s150 = scalar_lea.vmem %s0, %s149
      %p151 = pneg %p35
      %p152 = pneg %p32
      %p153 = pneg %p56
      %p154 = pneg %p53
      %p155 = pneg %p77
      %p156 = pneg %p74
      %p157 = pneg %p103
      %p158 = pneg %p100
      %s159 = smul.u32 2, %s14
      %p160 = scmp.lt.s32.totalorder %s159, 3
      %s161 = scalar_select %p160, %s159, 3
      %s162 = smul.addr %s161, 3
      %s163 = smul.addr %s162, 8
      %s164 = scalar_lea.vmem %s3, %s163
      %s165 = smul.u32 2, %s14
      %p166 = scmp.lt.s32.totalorder %s165, 3
      %s167 = scalar_select %p166, %s165, 3
      %s168 = smul.addr %s167, 3
      %s169 = smul.addr %s168, 8
      %s170 = scalar_lea.vmem %s0, %s169
      %s171 = smul.u32 2, %s14
      %s172 = smul.u32 2, %s14
      %p173 = scmp.lt.s32.totalorder %s172, 3
      %s174 = scalar_select %p173, %s172, 3
      %s175 = smul.addr %s174, 3
      %s176 = smul.addr %s175, 8
      %s177 = scalar_lea.vmem %s3, %s176
      %s178 = smul.u32 2, %s14
      %v180 = vld [vmem:[%s170] sm:$0xff]
      %v181 = vld [vmem:[%s170 + $0x8] sm:$0xff]
      %v182 = vld [vmem:[%s170 + $0x10] sm:$0xff]
      %v183 = vld [vmem:[%s170 + $0x18] sm:$0xff]
      %v184 = vld [vmem:[%s170 + $0x20] sm:$0xff]
      %v185 = vld [vmem:[%s170 + $0x28] sm:$0xff]
      %v186 = vpack.c.bf16 %v181, %v180
      %v187 = vpack.c.bf16 %v183, %v182
      %v188 = vpack.c.bf16 %v185, %v184
      %v189 = vld [vmem:[%s1] sm:$0xf]
      %v190 = vld [vmem:[%s1 + $0x4] sm:$0xf]
      %v191 = vld [vmem:[%s1 + $0x8] sm:$0xf]
      %v192 = vld [vmem:[%s1 + $0xc] sm:$0xf]
      %v193 = vld [vmem:[%s1 + $0x10] sm:$0xf]
      %v194 = vld [vmem:[%s1 + $0x14] sm:$0xf]
      %v195 = vld [vmem:[%s1 + $0x18] sm:$0xf]
      %v196 = vld [vmem:[%s1 + $0x1c] sm:$0xf]
      %v197 = vld [vmem:[%s1 + $0x20] sm:$0xf]
      %v198 = vld [vmem:[%s1 + $0x24] sm:$0xf]
      %v199 = vld [vmem:[%s1 + $0x28] sm:$0xf]
      %v200 = vld [vmem:[%s1 + $0x2c] sm:$0xf]
      %v201 = vld [vmem:[%s1 + $0x30] sm:$0xf]
      %v202 = vld [vmem:[%s1 + $0x34] sm:$0xf]
      %v203 = vld [vmem:[%s1 + $0x38] sm:$0xf]
      %v204 = vld [vmem:[%s1 + $0x3c] sm:$0xf]
      %v205 = vld [vmem:[%s2] sm:$0x1]
      %v207 = vlaneseq
      %v208 = vshrl.u32 %v207, 7
      %v209 = vsub.s32 0, %v208
      %v210 = vrot.slane %v205, %v209
      %v228 = vunpack.c.l.b16 %v189
      %v229 = vunpack.c.l.b16 %v190
      %v230 = vunpack.c.l.b16 %v191
      %v231 = vunpack.c.l.b16 %v192
      %v232 = vunpack.c.l.b16 %v193
      %v233 = vunpack.c.l.b16 %v194
      %v234 = vunpack.c.l.b16 %v195
      %v235 = vunpack.c.l.b16 %v196
      %v236 = vunpack.c.l.b16 %v197
      %v237 = vunpack.c.l.b16 %v198
      %v238 = vunpack.c.l.b16 %v199
      %v239 = vunpack.c.l.b16 %v200
      %v240 = vunpack.c.l.b16 %v201
      %v241 = vunpack.c.l.b16 %v202
      %v242 = vunpack.c.l.b16 %v203
      %v243 = vunpack.c.l.b16 %v204
      %v244 = vpack.c.b16 %v229, %v228
      %v245 = vpack.c.b16 %v231, %v230
      %v246 = vpack.c.b16 %v233, %v232
      %v247 = vpack.c.b16 %v235, %v234
      %v248 = vpack.c.b16 %v237, %v236
      %v249 = vpack.c.b16 %v239, %v238
      %v250 = vpack.c.b16 %v241, %v240
      %v251 = vpack.c.b16 %v243, %v242
      %260 = vmatprep.subr.bf16.mxu0 0
      %261 = vmatpush1.bf16.msra.mxu0 %v251
      %262 = vmatprep.subr.bf16.mxu0 0
      %263 = vmatpush1.bf16.msra.mxu0 %v250
      %264 = vmatprep.subr.bf16.mxu0 0
      %265 = vmatpush1.bf16.msra.mxu0 %v249
      %266 = vmatprep.subr.bf16.mxu0 0
      %267 = vmatpush1.bf16.msra.mxu0 %v248
      %268 = vmatprep.subr.bf16.mxu0 0
      %269 = vmatpush1.bf16.msra.mxu0 %v247
      %270 = vmatprep.subr.bf16.mxu0 0
      %271 = vmatpush1.bf16.msra.mxu0 %v246
      %272 = vmatprep.subr.bf16.mxu0 0
      %273 = vmatpush1.bf16.msra.mxu0 %v245
      %274 = vmatprep.subr.bf16.mxu0 0
      %275 = vmatpush1.bf16.msra.mxu0 %v244
      %276 = vmatprep.subr.bf16.mxu0 0
      %277 = vmatpush2.bf16.msra.mxu0 0
      %278 = vmatprep.subr.bf16.mxu0 0
      %279 = vmatpush2.bf16.msra.mxu0 0
      %280 = vmatprep.subr.bf16.mxu0 0
      %281 = vmatpush2.bf16.msra.mxu0 0
      %282 = vmatprep.subr.bf16.mxu0 0
      %283 = vmatpush2.bf16.msra.mxu0 0
      %284 = vmatprep.subr.bf16.mxu0 0
      %285 = vmatpush2.bf16.msra.mxu0 0
      %286 = vmatprep.subr.bf16.mxu0 0
      %287 = vmatpush2.bf16.msra.mxu0 0
      %288 = vmatprep.subr.bf16.mxu0 0
      %289 = vmatpush2.bf16.msra.mxu0 0
      %290 = vmatprep.subr.bf16.mxu0 0
      %291 = vmatpush2.bf16.msra.mxu0 0
      %292 = vmatprep.mubr.bf16.mxu0 0
      %293 = vmatmul.mubr.bf16.gmra.mxu0 %v186
      %v294 = vpop.f32.mrf.mxu0
      %v295 = vadd.f32 %v210, %v294
      %v296 = vpop.f32.mrf.mxu0
      %v297 = vpop.f32.mrf.mxu0
      %v298 = vadd.f32 %v210, %v297
      %v299 = vpop.f32.mrf.mxu0
      %300 = vmatprep.mubr.bf16.mxu0 0
      %301 = vmatmul.mubr.bf16.gmra.mxu0 %v187
      %v302 = vpop.f32.mrf.mxu0
      %v303 = vadd.f32 %v210, %v302
      %v304 = vpop.f32.mrf.mxu0
      %v305 = vpop.f32.mrf.mxu0
      %v306 = vadd.f32 %v210, %v305
      %v307 = vpop.f32.mrf.mxu0
      %308 = vmatprep.mubr.bf16.mxu0 0
      %309 = vmatmul.mubr.bf16.gmra.mxu0 %v188
      %v310 = vpop.f32.mrf.mxu0
      %v311 = vadd.f32 %v210, %v310
      %v312 = vpop.f32.mrf.mxu0
      %v313 = vpop.f32.mrf.mxu0
      %v314 = vadd.f32 %v210, %v313
      %v315 = vpop.f32.mrf.mxu0
      %316 = vdwg.mxu0
      %317 = vst [vmem:[%s177] sm:$0xff] %v295
      %318 = vst [vmem:[%s177 + $0x8] sm:$0xff] %v298
      %319 = vst [vmem:[%s177 + $0x10] sm:$0xff] %v303
      %320 = vst [vmem:[%s177 + $0x18] sm:$0xff] %v306
      %321 = vst [vmem:[%s177 + $0x20] sm:$0xff] %v311
      %322 = vst [vmem:[%s177 + $0x28] sm:$0xff] %v314
      %s323 = smul.u32 2, %s14
      %p324 = scmp.lt.s32.totalorder %s323, 3
      %s325 = scalar_select %p324, %s323, 3
      %s326 = smul.addr %s325, 3
      %s327 = smul.addr %s326, 8
      %s328 = scalar_lea.vmem %s3, %s327
      // Predicated region
      $region33: #{reinformer_forward.7} parent=31 // pred_check
        %p329 = pneg %p100
      $region34: #{reinformer_forward.7} parent=31 // pred_check_branch
        %331 = sbr.rel (%p329) target = $region36
      $region35: #{reinformer_forward.7} parent=31 // pred_region
        %s332 = smul.u32 2, %s14
      $region36: #{reinformer_forward.7} parent=31 // pred_fallthru
        _
    $region32: #{reinformer_forward.7} parent=5 // pred_fallthru
      _
    %p333 = scmp.le.s32.totalorder 2, %s9
    // Predicated region
    $region37: #{reinformer_forward.7} parent=5 // pred_check
      %p334 = pneg %p333
    $region38: #{reinformer_forward.7} parent=5 // pred_check_branch
      %336 = sbr.rel (%p334) target = $region40
    $region39: #{reinformer_forward.7} parent=5 // pred_region
      %s337 = ssub.s32 %s9, 2
      // Predicated region
      $region41: #{reinformer_forward.7} parent=39 // pred_check
        %p338 = pneg %p106
      $region42: #{reinformer_forward.7} parent=39 // pred_check_branch
        %340 = sbr.rel (%p338) target = $region44
      $region43: #{reinformer_forward.7} parent=39 // pred_region
        %s341 = smul.u32 2, %s15
        %p342 = scmp.lt.s32.totalorder %s341, 3
        %s343 = scalar_select %p342, %s341, 3
        %s344 = smul.addr %s343, 3
        %s345 = smul.addr %s344, 8
        %s346 = scalar_lea.vmem %s3, %s345
      $region44: #{reinformer_forward.7} parent=39 // pred_fallthru
        _
    $region40: #{reinformer_forward.7} parent=5 // pred_fallthru
      _
  $region6: #{reinformer_forward.7} parent=0 // loop_footer
    %s13 = sadd.s32 1, %s9
  $region7: #{reinformer_forward.7} parent=0 // loop_footer_branch
    %8 = sbr.rel target = $region3
  $region8: #{reinformer_forward.7} parent=0 // loop_exit
    _

// kernel: reinformer_forward.5
$region0: #{reinformer_forward.5}
  #allocation0 [shape = 'u32[]', space=smem, size = 0x4, offset = 0x4, fixed_abs, tag = 'smem constant byte address 0x4 - core index']
  #allocation1 [shape = 'u32[144,128]{1,0:T(1,128)}', space=vmem, size = 0x12000, scoped, tag = 'internal scratch']
  #allocation2 [shape = 'f32[48,128]{1,0:T(8,128)}', space=vmem, size = 0x6000, scoped, tag = 'scratch operand']
  %s0 = inlined_call_operand.vmem [shape: f32[4,24,128], index: 0, kind: input, shape index: {}]
  %s1 = inlined_call_operand.vmem [shape: bf16[128,384], index: 1, kind: input, shape index: {}]
  %s2 = inlined_call_operand.vmem [shape: bf16[128,128], index: 2, kind: input, shape index: {}]
  %s3 = inlined_call_operand.vmem [shape: bf16[128,512], index: 3, kind: input, shape index: {}]
  %s4 = inlined_call_operand.vmem [shape: bf16[512,128], index: 4, kind: input, shape index: {}]
  %s5 = inlined_call_operand.vmem [shape: f32[8,512], index: 5, kind: input, shape index: {}]
  %s6 = inlined_call_operand.vmem [shape: f32[4,24,128], index: 6, kind: output, shape index: {}]
  %s7 = sld [smem:[#allocation0]]
  $region57: #{reinformer_forward.5} parent=0
    _
  %s9 = ssub.s32 1, %s7
  %s10 = scalar_select 0, %s9, %s7
  loop: start=0, step=1, limit=4
  $region2: #{reinformer_forward.5} parent=0 // loop_pre_header
    _
  $region3: #{reinformer_forward.5} parent=0 // loop_header
    %s12 = sphi 0, %s16
    %p13 = scmp.ge.s32.totalorder %s12, 4
    %s22 = sphi 0, %s24
    %s25 = sphi 0, %s22
    %s26 = sphi 0, %s25
    %s42 = sphi 0, %s26
    %s46 = sphi 0, %s46
    %s48 = sphi 0, %s46
    %s49 = sphi 0, %s48
    %s63 = sphi 0, %s49
    %s67 = sphi 0, %s67
    %s69 = sphi 0, %s67
    %s70 = sphi 0, %s69
    %s84 = sphi 0, %s70
    %s88 = sphi 0, %s88
    %s90 = sphi 0, %s88
    %s91 = sphi 0, %s90
    %s105 = sphi 0, %s91
    %s109 = sphi 0, %s109
    %s111 = sphi 0, %s109
    %s112 = sphi 0, %s111
    %s126 = sphi 0, %s112
    %s130 = sphi 0, %s130
    %s132 = sphi 0, %s130
    %s133 = sphi 0, %s132
    %s147 = sphi 0, %s133
    %s153 = sphi 0, %s155
    %s156 = sphi 0, %s153
    %s157 = sphi 0, %s156
    %s173 = sphi 0, %s157
  $region4: #{reinformer_forward.5} parent=0 // loop_header_branch
    %15 = sbr.rel (%p13) target = $region8
  $region5: #{reinformer_forward.5} parent=0 // loop_body
    %s17 = ssub.s32 %s12, 1
    %s18 = ssub.s32 %s12, 2
    %s19 = sadd.s32 %s12, 1
    %s20 = ssub.s32 %s12, %s19
    %p21 = scmp.eq.s32.totalorder %s20, 0
    %s23 = sadd.s32 %s22, 1
    %s24 = scalar_select %p21, %s22, %s23
    %p27 = pneg %p21
    %p28 = scmp.eq.s32.totalorder %s12, 1
    %p29 = por %p27, %p28
    %p30 = scmp.ne.s32.totalorder %s22, %s25
    %p31 = scmp.eq.s32.totalorder %s12, 0
    %p32 = por %p30, %p31
    %p33 = scmp.ne.s32.totalorder %s22, %s25
    %p34 = scmp.eq.s32.totalorder %s17, 1
    %p35 = por %p33, %p34
    %p36 = scmp.ne.s32.totalorder %s25, %s26
    %p37 = scmp.eq.s32.totalorder %s17, 0
    %p38 = por %p36, %p37
    %p39 = scmp.ne.s32.totalorder %s25, %s26
    %p40 = scmp.eq.s32.totalorder %s18, 1
    %p41 = por %p39, %p40
    %p43 = scmp.ne.s32.totalorder %s26, %s42
    %p44 = scmp.eq.s32.totalorder %s18, 0
    %p45 = por %p43, %p44
    %s47 = sadd.s32 %s46, 1
    %p50 = scmp.eq.s32.totalorder %s12, 1
    %p51 = scmp.ne.s32.totalorder %s46, %s48
    %p52 = scmp.eq.s32.totalorder %s12, 0
    %p53 = por %p51, %p52
    %p54 = scmp.ne.s32.totalorder %s46, %s48
    %p55 = scmp.eq.s32.totalorder %s17, 1
    %p56 = por %p54, %p55
    %p57 = scmp.ne.s32.totalorder %s48, %s49
    %p58 = scmp.eq.s32.totalorder %s17, 0
    %p59 = por %p57, %p58
    %p60 = scmp.ne.s32.totalorder %s48, %s49
    %p61 = scmp.eq.s32.totalorder %s18, 1
    %p62 = por %p60, %p61
    %p64 = scmp.ne.s32.totalorder %s49, %s63
    %p65 = scmp.eq.s32.totalorder %s18, 0
    %p66 = por %p64, %p65
    %s68 = sadd.s32 %s67, 1
    %p71 = scmp.eq.s32.totalorder %s12, 1
    %p72 = scmp.ne.s32.totalorder %s67, %s69
    %p73 = scmp.eq.s32.totalorder %s12, 0
    %p74 = por %p72, %p73
    %p75 = scmp.ne.s32.totalorder %s67, %s69
    %p76 = scmp.eq.s32.totalorder %s17, 1
    %p77 = por %p75, %p76
    %p78 = scmp.ne.s32.totalorder %s69, %s70
    %p79 = scmp.eq.s32.totalorder %s17, 0
    %p80 = por %p78, %p79
    %p81 = scmp.ne.s32.totalorder %s69, %s70
    %p82 = scmp.eq.s32.totalorder %s18, 1
    %p83 = por %p81, %p82
    %p85 = scmp.ne.s32.totalorder %s70, %s84
    %p86 = scmp.eq.s32.totalorder %s18, 0
    %p87 = por %p85, %p86
    %s89 = sadd.s32 %s88, 1
    %p92 = scmp.eq.s32.totalorder %s12, 1
    %p93 = scmp.ne.s32.totalorder %s88, %s90
    %p94 = scmp.eq.s32.totalorder %s12, 0
    %p95 = por %p93, %p94
    %p96 = scmp.ne.s32.totalorder %s88, %s90
    %p97 = scmp.eq.s32.totalorder %s17, 1
    %p98 = por %p96, %p97
    %p99 = scmp.ne.s32.totalorder %s90, %s91
    %p100 = scmp.eq.s32.totalorder %s17, 0
    %p101 = por %p99, %p100
    %p102 = scmp.ne.s32.totalorder %s90, %s91
    %p103 = scmp.eq.s32.totalorder %s18, 1
    %p104 = por %p102, %p103
    %p106 = scmp.ne.s32.totalorder %s91, %s105
    %p107 = scmp.eq.s32.totalorder %s18, 0
    %p108 = por %p106, %p107
    %s110 = sadd.s32 %s109, 1
    %p113 = scmp.eq.s32.totalorder %s12, 1
    %p114 = scmp.ne.s32.totalorder %s109, %s111
    %p115 = scmp.eq.s32.totalorder %s12, 0
    %p116 = por %p114, %p115
    %p117 = scmp.ne.s32.totalorder %s109, %s111
    %p118 = scmp.eq.s32.totalorder %s17, 1
    %p119 = por %p117, %p118
    %p120 = scmp.ne.s32.totalorder %s111, %s112
    %p121 = scmp.eq.s32.totalorder %s17, 0
    %p122 = por %p120, %p121
    %p123 = scmp.ne.s32.totalorder %s111, %s112
    %p124 = scmp.eq.s32.totalorder %s18, 1
    %p125 = por %p123, %p124
    %p127 = scmp.ne.s32.totalorder %s112, %s126
    %p128 = scmp.eq.s32.totalorder %s18, 0
    %p129 = por %p127, %p128
    %s131 = sadd.s32 %s130, 1
    %p134 = scmp.eq.s32.totalorder %s12, 1
    %p135 = scmp.ne.s32.totalorder %s130, %s132
    %p136 = scmp.eq.s32.totalorder %s12, 0
    %p137 = por %p135, %p136
    %p138 = scmp.ne.s32.totalorder %s130, %s132
    %p139 = scmp.eq.s32.totalorder %s17, 1
    %p140 = por %p138, %p139
    %p141 = scmp.ne.s32.totalorder %s132, %s133
    %p142 = scmp.eq.s32.totalorder %s17, 0
    %p143 = por %p141, %p142
    %p144 = scmp.ne.s32.totalorder %s132, %s133
    %p145 = scmp.eq.s32.totalorder %s18, 1
    %p146 = por %p144, %p145
    %p148 = scmp.ne.s32.totalorder %s133, %s147
    %p149 = scmp.eq.s32.totalorder %s18, 0
    %p150 = por %p148, %p149
    %s151 = ssub.s32 %s12, %s19
    %p152 = scmp.eq.s32.totalorder %s151, 0
    %s154 = sadd.s32 %s153, 1
    %s155 = scalar_select %p152, %s153, %s154
    %p158 = pneg %p152
    %p159 = scmp.eq.s32.totalorder %s12, 1
    %p160 = por %p158, %p159
    %p161 = scmp.ne.s32.totalorder %s153, %s156
    %p162 = scmp.eq.s32.totalorder %s12, 0
    %p163 = por %p161, %p162
    %p164 = scmp.ne.s32.totalorder %s153, %s156
    %p165 = scmp.eq.s32.totalorder %s17, 1
    %p166 = por %p164, %p165
    %p167 = scmp.ne.s32.totalorder %s156, %s157
    %p168 = scmp.eq.s32.totalorder %s17, 0
    %p169 = por %p167, %p168
    %p170 = scmp.ne.s32.totalorder %s156, %s157
    %p171 = scmp.eq.s32.totalorder %s18, 1
    %p172 = por %p170, %p171
    %p174 = scmp.ne.s32.totalorder %s157, %s173
    %p175 = scmp.eq.s32.totalorder %s18, 0
    %p176 = por %p174, %p175
    %p177 = scmp.le.s32.totalorder 1, %s12
    %p178 = scmp.lt.s32.totalorder %s12, 3
    %p179 = pnand %p177, %p178
    %p180 = pneg %p179
    // Predicated region
    $region9: #{reinformer_forward.5} parent=5 // pred_check
      _
    $region10: #{reinformer_forward.5} parent=5 // pred_check_branch
      %182 = sbr.rel (%p179) target = $region12
    $region11: #{reinformer_forward.5} parent=5 // pred_region
      %s183 = ssub.s32 %s12, 1
      // Predicated region
      $region13: #{reinformer_forward.5} parent=11 // pred_check
        %p184 = pneg %p59
      $region14: #{reinformer_forward.5} parent=11 // pred_check_branch
        %186 = sbr.rel (%p184) target = $region16
      $region15: #{reinformer_forward.5} parent=11 // pred_region
        _
      $region16: #{reinformer_forward.5} parent=11 // pred_fallthru
        _
      // Predicated region
      $region17: #{reinformer_forward.5} parent=11 // pred_check
        %p187 = pneg %p80
      $region18: #{reinformer_forward.5} parent=11 // pred_check_branch
        %189 = sbr.rel (%p187) target = $region20
      $region19: #{reinformer_forward.5} parent=11 // pred_region
        _
      $region20: #{reinformer_forward.5} parent=11 // pred_fallthru
        _
      // Predicated region
      $region21: #{reinformer_forward.5} parent=11 // pred_check
        %p190 = pneg %p101
      $region22: #{reinformer_forward.5} parent=11 // pred_check_branch
        %192 = sbr.rel (%p190) target = $region24
      $region23: #{reinformer_forward.5} parent=11 // pred_region
        _
      $region24: #{reinformer_forward.5} parent=11 // pred_fallthru
        _
      // Predicated region
      $region25: #{reinformer_forward.5} parent=11 // pred_check
        %p193 = pneg %p122
      $region26: #{reinformer_forward.5} parent=11 // pred_check_branch
        %195 = sbr.rel (%p193) target = $region28
      $region27: #{reinformer_forward.5} parent=11 // pred_region
        _
      $region28: #{reinformer_forward.5} parent=11 // pred_fallthru
        _
      // Predicated region
      $region29: #{reinformer_forward.5} parent=11 // pred_check
        %p196 = pneg %p143
      $region30: #{reinformer_forward.5} parent=11 // pred_check_branch
        %198 = sbr.rel (%p196) target = $region32
      $region31: #{reinformer_forward.5} parent=11 // pred_region
        _
      $region32: #{reinformer_forward.5} parent=11 // pred_fallthru
        _
    $region12: #{reinformer_forward.5} parent=5 // pred_fallthru
      _
    %p199 = scmp.lt.s32.totalorder %s12, 2
    // Predicated region
    $region33: #{reinformer_forward.5} parent=5 // pred_check
      %p200 = pneg %p199
    $region34: #{reinformer_forward.5} parent=5 // pred_check_branch
      %202 = sbr.rel (%p200) target = $region36
    $region35: #{reinformer_forward.5} parent=5 // pred_region
      // Predicated region
      $region37: #{reinformer_forward.5} parent=35 // pred_check
        %p203 = pneg %p32
      $region38: #{reinformer_forward.5} parent=35 // pred_check_branch
        %205 = sbr.rel (%p203) target = $region40
      $region39: #{reinformer_forward.5} parent=35 // pred_region
        %s206 = smul.u32 2, %s12
        %p207 = scmp.lt.s32.totalorder %s206, 3
        %s208 = scalar_select %p207, %s206, 3
        %s209 = smul.addr %s208, 3
        %s210 = smul.addr %s209, 8
        %s211 = scalar_lea.vmem %s0, %s210
        %s212 = smul.u32 2, %s12
      $region40: #{reinformer_forward.5} parent=35 // pred_fallthru
        _
    $region36: #{reinformer_forward.5} parent=5 // pred_fallthru
      _
    %p213 = scmp.le.s32.totalorder 1, %s12
    %p214 = scmp.lt.s32.totalorder %s12, 3
    %p215 = pnand %p213, %p214
    %p216 = pneg %p215
    // Predicated region
    $region41: #{reinformer_forward.5} parent=5 // pred_check
      _
    $region42: #{reinformer_forward.5} parent=5 // pred_check_branch
      %218 = sbr.rel (%p215) target = $region44
    $region43: #{reinformer_forward.5} parent=5 // pred_region
      %s219 = ssub.s32 %s12, 1
      %s220 = smul.u32 2, %s17
      %p221 = scmp.lt.s32.totalorder %s220, 3
      %s222 = scalar_select %p221, %s220, 3
      %s223 = smul.addr %s222, 3
      %s224 = smul.addr %s223, 8
      %s225 = scalar_lea.vmem %s0, %s224
      %p226 = pneg %p38
      %p227 = pneg %p35
      %p228 = pneg %p59
      %p229 = pneg %p56
      %p230 = pneg %p80
      %p231 = pneg %p77
      %p232 = pneg %p101
      %p233 = pneg %p98
      %p234 = pneg %p122
      %p235 = pneg %p119
      %p236 = pneg %p143
      %p237 = pneg %p140
      %p238 = pneg %p169
      %p239 = pneg %p166
      %s240 = smul.u32 2, %s17
      %p241 = scmp.lt.s32.totalorder %s240, 3
      %s242 = scalar_select %p241, %s240, 3
      %s243 = smul.addr %s242, 3
      %s244 = smul.addr %s243, 8
      %s245 = scalar_lea.vmem %s6, %s244
      %s246 = smul.u32 2, %s17
      %p247 = scmp.lt.s32.totalorder %s246, 3
      %s248 = scalar_select %p247, %s246, 3
      %s249 = smul.addr %s248, 3
      %s250 = smul.addr %s249, 8
      %s251 = scalar_lea.vmem %s0, %s250
      %s252 = smul.u32 2, %s17
      %s253 = smul.u32 2, %s17
      %p254 = scmp.lt.s32.totalorder %s253, 3
      %s255 = scalar_select %p254, %s253, 3
      %s256 = smul.addr %s255, 3
      %s257 = smul.addr %s256, 8
      %s258 = scalar_lea.vmem %s6, %s257
      %s259 = smul.u32 2, %s17
      %v261 = vld [vmem:[%s5] sm:$0xff]
      %v262 = vld [vmem:[%s5 + $0x8] sm:$0xff]
      %v263 = vld [vmem:[%s5 + $0x10] sm:$0xff]
      %v264 = vld [vmem:[%s5 + $0x18] sm:$0xff]
      %v265 = vld [vmem:[%s251] sm:$0xff]
      %v266 = vld [vmem:[%s251 + $0x8] sm:$0xff]
      %v267 = vld [vmem:[%s251 + $0x10] sm:$0xff]
      %v268 = vld [vmem:[%s251 + $0x18] sm:$0xff]
      %v269 = vld [vmem:[%s251 + $0x20] sm:$0xff]
      %v270 = vld [vmem:[%s251 + $0x28] sm:$0xff]
      %v271 = vpack.c.bf16 %v266, %v265
      %v272 = vpack.c.bf16 %v268, %v267
      %v273 = vpack.c.bf16 %v270, %v269
      %v274 = vld [vmem:[%s1] sm:$0xff]
      %v275 = vld [vmem:[%s1 + $0x8] sm:$0xf]
      %v276 = vld [vmem:[%s1 + $0xc] sm:$0xff]
      %v277 = vld [vmem:[%s1 + $0x14] sm:$0xf]
      %v278 = vld [vmem:[%s1 + $0x18] sm:$0xff]
      %v279 = vld [vmem:[%s1 + $0x20] sm:$0xf]
      %v280 = vld [vmem:[%s1 + $0x24] sm:$0xff]
      %v281 = vld [vmem:[%s1 + $0x2c] sm:$0xf]
      %v282 = vld [vmem:[%s1 + $0x30] sm:$0xff]
      %v283 = vld [vmem:[%s1 + $0x38] sm:$0xf]
      %v284 = vld [vmem:[%s1 + $0x3c] sm:$0xff]
      %v285 = vld [vmem:[%s1 + $0x44] sm:$0xf]
      %v286 = vld [vmem:[%s1 + $0x48] sm:$0xff]
      %v287 = vld [vmem:[%s1 + $0x50] sm:$0xf]
      %v288 = vld [vmem:[%s1 + $0x54] sm:$0xff]
      %v289 = vld [vmem:[%s1 + $0x5c] sm:$0xf]
      %v290 = vld [vmem:[%s1 + $0x60] sm:$0xff]
      %v291 = vld [vmem:[%s1 + $0x68] sm:$0xf]
      %v292 = vld [vmem:[%s1 + $0x6c] sm:$0xff]
      %v293 = vld [vmem:[%s1 + $0x74] sm:$0xf]
      %v294 = vld [vmem:[%s1 + $0x78] sm:$0xff]
      %v295 = vld [vmem:[%s1 + $0x80] sm:$0xf]
      %v296 = vld [vmem:[%s1 + $0x84] sm:$0xff]
      %v297 = vld [vmem:[%s1 + $0x8c] sm:$0xf]
      %v298 = vld [vmem:[%s1 + $0x90] sm:$0xff]
      %v299 = vld [vmem:[%s1 + $0x98] sm:$0xf]
      %v300 = vld [vmem:[%s1 + $0x9c] sm:$0xff]
      %v301 = vld [vmem:[%s1 + $0xa4] sm:$0xf]
      %v302 = vld [vmem:[%s1 + $0xa8] sm:$0xff]
      %v303 = vld [vmem:[%s1 + $0xb0] sm:$0xf]
      %v304 = vld [vmem:[%s1 + $0xb4] sm:$0xff]
      %v305 = vld [vmem:[%s1 + $0xbc] sm:$0xf]
      %v306 = vlaneseq
      %v307 = vshrl.u32 %v306, 7
      %v308 = vsub.s32 0, %v307
      %v309 = vrot.slane %v261, %v308
      %v310 = vlaneseq
      %v311 = vshrl.u32 %v310, 7
      %v312 = vsub.s32 0, %v311
      %v313 = vrot.slane %v262, %v312
      %v314 = vlaneseq
      %v315 = vshrl.u32 %v314, 7
      %v316 = vsub.s32 0, %v315
      %v317 = vrot.slane %v263, %v316
      %v350 = vunpack.c.l.b16 %v274
      %v351 = vunpack.c.h.b16 %v274
      %v352 = vunpack.c.l.b16 %v275
      %v353 = vunpack.c.l.b16 %v276
      %v354 = vunpack.c.h.b16 %v276
      %v355 = vunpack.c.l.b16 %v277
      %v356 = vunpack.c.l.b16 %v278
      %v357 = vunpack.c.h.b16 %v278
      %v358 = vunpack.c.l.b16 %v279
      %v359 = vunpack.c.l.b16 %v280
      %v360 = vunpack.c.h.b16 %v280
      %v361 = vunpack.c.l.b16 %v281
      %v362 = vunpack.c.l.b16 %v282
      %v363 = vunpack.c.h.b16 %v282
      %v364 = vunpack.c.l.b16 %v283
      %v365 = vunpack.c.l.b16 %v284
      %v366 = vunpack.c.h.b16 %v284
      %v367 = vunpack.c.l.b16 %v285
      %v368 = vunpack.c.l.b16 %v286
      %v369 = vunpack.c.h.b16 %v286
      %v370 = vunpack.c.l.b16 %v287
      %v371 = vunpack.c.l.b16 %v288
      %v372 = vunpack.c.h.b16 %v288
      %v373 = vunpack.c.l.b16 %v289
      %v374 = vunpack.c.l.b16 %v290
      %v375 = vunpack.c.h.b16 %v290
      %v376 = vunpack.c.l.b16 %v291
      %v377 = vunpack.c.l.b16 %v292
      %v378 = vunpack.c.h.b16 %v292
      %v379 = vunpack.c.l.b16 %v293
      %v380 = vunpack.c.l.b16 %v294
      %v381 = vunpack.c.h.b16 %v294
      %v382 = vunpack.c.l.b16 %v295
      %v383 = vunpack.c.l.b16 %v296
      %v384 = vunpack.c.h.b16 %v296
      %v385 = vunpack.c.l.b16 %v297
      %v386 = vunpack.c.l.b16 %v298
      %v387 = vunpack.c.h.b16 %v298
      %v388 = vunpack.c.l.b16 %v299
      %v389 = vunpack.c.l.b16 %v300
      %v390 = vunpack.c.h.b16 %v300
      %v391 = vunpack.c.l.b16 %v301
      %v392 = vunpack.c.l.b16 %v302
      %v393 = vunpack.c.h.b16 %v302
      %v394 = vunpack.c.l.b16 %v303
      %v395 = vunpack.c.l.b16 %v304
      %v396 = vunpack.c.h.b16 %v304
      %v397 = vunpack.c.l.b16 %v305
      %v398 = vpack.c.b16 %v353, %v350
      %v399 = vpack.c.b16 %v354, %v351
      %v400 = vpack.c.b16 %v355, %v352
      %v401 = vpack.c.b16 %v359, %v356
      %v402 = vpack.c.b16 %v360, %v357
      %v403 = vpack.c.b16 %v361, %v358
      %v404 = vpack.c.b16 %v365, %v362
      %v405 = vpack.c.b16 %v366, %v363
      %v406 = vpack.c.b16 %v367, %v364
      %v407 = vpack.c.b16 %v371, %v368
      %v408 = vpack.c.b16 %v372, %v369
      %v409 = vpack.c.b16 %v373, %v370
      %v410 = vpack.c.b16 %v377, %v374
      %v411 = vpack.c.b16 %v378, %v375
      %v412 = vpack.c.b16 %v379, %v376
      %v413 = vpack.c.b16 %v383, %v380
      %v414 = vpack.c.b16 %v384, %v381
      %v415 = vpack.c.b16 %v385, %v382
      %v416 = vpack.c.b16 %v389, %v386
      %v417 = vpack.c.b16 %v390, %v387
      %v418 = vpack.c.b16 %v391, %v388
      %v419 = vpack.c.b16 %v395, %v392
      %v420 = vpack.c.b16 %v396, %v393
      %v421 = vpack.c.b16 %v397, %v394
      %446 = vmatprep.subr.bf16.mxu0 %v420
      %447 = vmatpush1.bf16.msra.mxu0 %v419
      %448 = vmatprep.subr.bf16.mxu0 %v417
      %449 = vmatpush1.bf16.msra.mxu0 %v416
      %450 = vmatprep.subr.bf16.mxu0 %v414
      %451 = vmatpush1.bf16.msra.mxu0 %v413
      %452 = vmatprep.subr.bf16.mxu0 %v411
      %453 = vmatpush1.bf16.msra.mxu0 %v410
      %454 = vmatprep.subr.bf16.mxu0 %v408
      %455 = vmatpush1.bf16.msra.mxu0 %v407
      %456 = vmatprep.subr.bf16.mxu0 %v405
      %457 = vmatpush1.bf16.msra.mxu0 %v404
      %458 = vmatprep.subr.bf16.mxu0 %v402
      %459 = vmatpush1.bf16.msra.mxu0 %v401
      %460 = vmatprep.subr.bf16.mxu0 %v399
      %461 = vmatpush1.bf16.msra.mxu0 %v398
      %462 = vmatprep.subr.bf16.mxu0 0
      %463 = vmatpush2.bf16.msra.mxu0 0
      %464 = vmatprep.subr.bf16.mxu0 0
      %465 = vmatpush2.bf16.msra.mxu0 0
      %466 = vmatprep.subr.bf16.mxu0 0
      %467 = vmatpush2.bf16.msra.mxu0 0
      %468 = vmatprep.subr.bf16.mxu0 0
      %469 = vmatpush2.bf16.msra.mxu0 0
      %470 = vmatprep.subr.bf16.mxu0 0
      %471 = vmatpush2.bf16.msra.mxu0 0
      %472 = vmatprep.subr.bf16.mxu0 0
      %473 = vmatpush2.bf16.msra.mxu0 0
      %474 = vmatprep.subr.bf16.mxu0 0
      %475 = vmatpush2.bf16.msra.mxu0 0
      %476 = vmatprep.subr.bf16.mxu0 0
      %477 = vmatpush2.bf16.msra.mxu0 0
      %478 = vmatprep.mubr.bf16.mxu0 0
      %479 = vmatmul.mubr.bf16.gmra.mxu0 %v271
      %v480 = vpop.f32.mrf.mxu0
      %v481 = vadd.f32 %v309, %v480
      %v482 = vpop.f32.mrf.mxu0
      %v483 = vadd.f32 %v313, %v482
      %v484 = vpop.f32.mrf.mxu0
      %v485 = vadd.f32 %v309, %v484
      %v486 = vpop.f32.mrf.mxu0
      %v487 = vadd.f32 %v313, %v486
      %488 = vmatprep.mubr.bf16.mxu0 0
      %489 = vmatmul.mubr.bf16.gmra.mxu0 %v272
      %v490 = vpop.f32.mrf.mxu0
      %v491 = vadd.f32 %v309, %v490
      %v492 = vpop.f32.mrf.mxu0
      %v493 = vadd.f32 %v313, %v492
      %v494 = vpop.f32.mrf.mxu0
      %v495 = vadd.f32 %v309, %v494
      %v496 = vpop.f32.mrf.mxu0
      %v497 = vadd.f32 %v313, %v496
      %498 = vmatprep.mubr.bf16.mxu0 0
      %499 = vmatmul.mubr.bf16.gmra.mxu0 %v273
      %v500 = vpop.f32.mrf.mxu0
      %v501 = vadd.f32 %v309, %v500
      %v502 = vpop.f32.mrf.mxu0
      %v503 = vadd.f32 %v313, %v502
      %v504 = vpop.f32.mrf.mxu0
      %v505 = vadd.f32 %v309, %v504
      %v506 = vpop.f32.mrf.mxu0
      %v507 = vadd.f32 %v313, %v506
      %508 = vdwg.mxu0
      %509 = vmatprep.subr.bf16.mxu0 0
      %510 = vmatpush1.bf16.msra.mxu0 %v421
      %511 = vmatprep.subr.bf16.mxu0 0
      %512 = vmatpush1.bf16.msra.mxu0 %v418
      %513 = vmatprep.subr.bf16.mxu0 0
      %514 = vmatpush1.bf16.msra.mxu0 %v415
      %515 = vmatprep.subr.bf16.mxu0 0
      %516 = vmatpush1.bf16.msra.mxu0 %v412
      %517 = vmatprep.subr.bf16.mxu0 0
      %518 = vmatpush1.bf16.msra.mxu0 %v409
      %519 = vmatprep.subr.bf16.mxu0 0
      %520 = vmatpush1.bf16.msra.mxu0 %v406
      %521 = vmatprep.subr.bf16.mxu0 0
      %522 = vmatpush1.bf16.msra.mxu0 %v403
      %523 = vmatprep.subr.bf16.mxu0 0
      %524 = vmatpush1.bf16.msra.mxu0 %v400
      %525 = vmatprep.subr.bf16.mxu0 0
      %526 = vmatpush2.bf16.msra.mxu0 0
      %527 = vmatprep.subr.bf16.mxu0 0
      %528 = vmatpush2.bf16.msra.mxu0 0
      %529 = vmatprep.subr.bf16.mxu0 0
      %530 = vmatpush2.bf16.msra.mxu0 0
      %531 = vmatprep.subr.bf16.mxu0 0
      %532 = vmatpush2.bf16.msra.mxu0 0
      %533 = vmatprep.subr.bf16.mxu0 0
      %534 = vmatpush2.bf16.msra.mxu0 0
      %535 = vmatprep.subr.bf16.mxu0 0
      %536 = vmatpush2.bf16.msra.mxu0 0
      %537 = vmatprep.subr.bf16.mxu0 0
      %538 = vmatpush2.bf16.msra.mxu0 0
      %539 = vmatprep.subr.bf16.mxu0 0
      %540 = vmatpush2.bf16.msra.mxu0 0
      %541 = vmatprep.mubr.bf16.mxu0 0
      %542 = vmatmul.mubr.bf16.gmra.mxu0 %v271
      %v543 = vpop.f32.mrf.mxu0
      %v544 = vadd.f32 %v317, %v543
      %v545 = vpop.f32.mrf.mxu0
      %v546 = vpop.f32.mrf.mxu0
      %v547 = vadd.f32 %v317, %v546
      %v548 = vpop.f32.mrf.mxu0
      %549 = vmatprep.mubr.bf16.mxu0 0
      %550 = vmatmul.mubr.bf16.gmra.mxu0 %v272
      %v551 = vpop.f32.mrf.mxu0
      %v552 = vadd.f32 %v317, %v551
      %v553 = vpop.f32.mrf.mxu0
      %v554 = vpop.f32.mrf.mxu0
      %v555 = vadd.f32 %v317, %v554
      %v556 = vpop.f32.mrf.mxu0
      %557 = vmatprep.mubr.bf16.mxu0 0
      %558 = vmatmul.mubr.bf16.gmra.mxu0 %v273
      %v559 = vpop.f32.mrf.mxu0
      %v560 = vadd.f32 %v317, %v559
      %v561 = vpop.f32.mrf.mxu0
      %v562 = vpop.f32.mrf.mxu0
      %v563 = vadd.f32 %v317, %v562
      %v564 = vpop.f32.mrf.mxu0
      %565 = vdwg.mxu0
      %v566 = vlaneseq
      %v567 = vshrl.u32 %v566, 7
      %v568 = vadd.s32 %v567, 8
      %v569 = vadd.s32 %v567, 16
      %v570 = vlaneseq
      %v571 = vand.u32 %v570, 127
      %vm572 = vcmp.ge.s32.totalorder %v567, %v571
      %vm573 = vcmp.ge.s32.totalorder %v568, %v571
      %vm574 = vcmp.ge.s32.totalorder %v569, %v571
      %v575 = vpack.c.bf16 %v485, %v481
      %v576 = vpack.c.bf16 %v491, %v491
      %v577 = vpack.c.bf16 %v487, %v483
      %v578 = vpack.c.bf16 %v493, %v493
      %v579 = vpack.c.bf16 %v547, %v544
      %v580 = vpack.c.bf16 %v552, %v552
      %vm581 = vcmask 523264
      %v583 = vsel %vm581, %v575, 0
      %v586 = vsel %vm581, %v576, 0
      %v589 = vsel %vm581, %v577, 0
      %v592 = vsel %vm581, %v578, 0
      %594 = vmatprep.subr.bf16.mxu0 0
      %595 = vmatpush1.bf16.xpose.msra.mxu0 0
      %596 = vmatprep.subr.bf16.mxu0 0
      %597 = vmatpush1.bf16.xpose.msra.mxu0 0
      %598 = vmatprep.subr.bf16.mxu0 0
      %599 = vmatpush1.bf16.xpose.msra.mxu0 0
      %600 = vmatprep.subr.bf16.mxu0 0
      %601 = vmatpush1.bf16.xpose.msra.mxu0 0
      %602 = vmatprep.subr.bf16.mxu0 0
      %603 = vmatpush1.bf16.xpose.msra.mxu0 0
      %604 = vmatprep.subr.bf16.mxu0 0
      %605 = vmatpush1.bf16.xpose.msra.mxu0 0
      %606 = vmatprep.subr.bf16.mxu0 0
      %607 = vmatpush1.bf16.xpose.msra.mxu0 %v592
      %608 = vmatprep.subr.bf16.mxu0 0
      %609 = vmatpush1.bf16.xpose.msra.mxu0 %v589
      %610 = vmatprep.subr.bf16.mxu0 0
      %611 = vmatpush2.bf16.xpose.msra.mxu0 0
      %612 = vmatprep.subr.bf16.mxu0 0
      %613 = vmatpush2.bf16.xpose.msra.mxu0 0
      %614 = vmatprep.subr.bf16.mxu0 0
      %615 = vmatpush2.bf16.xpose.msra.mxu0 0
      %616 = vmatprep.subr.bf16.mxu0 0
      %617 = vmatpush2.bf16.xpose.msra.mxu0 0
      %618 = vmatprep.subr.bf16.mxu0 0
      %619 = vmatpush2.bf16.xpose.msra.mxu0 0
      %620 = vmatprep.subr.bf16.mxu0 0
      %621 = vmatpush2.bf16.xpose.msra.mxu0 0
      %622 = vmatprep.subr.bf16.mxu0 0
      %623 = vmatpush2.bf16.xpose.msra.mxu0 0
      %624 = vmatprep.subr.bf16.mxu0 0
      %625 = vmatpush2.bf16.xpose.msra.mxu0 0
      %626 = vmatprep.mubr.bf16.mxu0 0
      %627 = vmatmul.mubr.bf16.gmra.mxu0 %v583
      %v628 = vpop.f32.mrf.mxu0
      %v629 = vadd.f32 0.0, %v628
      %v630 = vpop.f32.mrf.mxu0
      %v631 = vpop.f32.mrf.mxu0
      %v632 = vadd.f32 0.0, %v631
      %v633 = vpop.f32.mrf.mxu0
      %634 = vmatprep.mubr.bf16.mxu0 0
      %635 = vmatmul.mubr.bf16.gmra.mxu0 %v586
      %v636 = vpop.f32.mrf.mxu0
      %v637 = vadd.f32 0.0, %v636
      %v638 = vpop.f32.mrf.mxu0
      %v639 = vpop.f32.mrf.mxu0
      %v640 = vpop.f32.mrf.mxu0
      %641 = vdwg.mxu0
      %v642 = vmul.f32 %v629, 0.125
      %v643 = vmul.f32 %v632, 0.125
      %v644 = vmul.f32 %v637, 0.125
      %v645 = vsel %vm572, %v642, -1e+30
      %v646 = vsel %vm573, %v643, -1e+30
      %v647 = vsel %vm574, %v644, -1e+30
      %vm648 = vcmask 195584
      %v649 = vsel %vm648, %v645, -inf
      %650 = vmax.xlane.f32.xlu0 %v649
      %v651 = vpop.xlane.xlu0 %650
      %v652 = vsel %vm648, %v646, -inf
      %653 = vmax.xlane.f32.xlu0 %v652
      %v654 = vpop.xlane.xlu0 %653
      %v655 = vsel %vm648, %v647, -inf
      %656 = vmax.xlane.f32.xlu0 %v655
      %v657 = vpop.xlane.xlu0 %656
      %v658 = vsub.f32 %v645, %v651
      %v659 = vsub.f32 %v646, %v654
      %v660 = vsub.f32 %v647, %v657
      %v661 = vmul.f32 %v658, 1.442695
      %v662 = vpow.pop %v661
      %v663 = vmul.f32 %v659, 1.442695
      %v664 = vpow.pop %v663
      %v665 = vmul.f32 %v660, 1.442695
      %v666 = vpow.pop %v665
      %v667 = vsel %vm648, %v662, 0.0
      %668 = vadd.xlane.f32.xlu0 %v667
      %v669 = vpop.xlane.xlu0 %668
      %v670 = vsel %vm648, %v664, 0.0
      %671 = vadd.xlane.f32.xlu0 %v670
      %v672 = vpop.xlane.xlu0 %671
      %v673 = vsel %vm648, %v666, 0.0
      %674 = vadd.xlane.f32.xlu0 %v673
      %v675 = vpop.xlane.xlu0 %674
      %v676 = vrcp.pop %v669
      %v677 = vrcp.pop %v672
      %v678 = vrcp.pop %v675
      %v679 = vmul.f32 %v662, %v676
      %v680 = vmul.f32 %v664, %v677
      %v681 = vmul.f32 %v666, %v678
      %v682 = vpack.c.bf16 %v680, %v679
      %v683 = vpack.c.bf16 %v681, %v681
      %v685 = vsel %vm648, %v682, 0
      %v688 = vsel %vm648, %v683, 0
      %vm690 = vcmask 1043456
      %v692 = vsel %vm690, %v580, 0
      %694 = vmatprep.subr.bf16.mxu0 0
      %695 = vmatpush1.bf16.msra.mxu0 0
      %696 = vmatprep.subr.bf16.mxu0 0
      %697 = vmatpush1.bf16.msra.mxu0 0
      %698 = vmatprep.subr.bf16.mxu0 0
      %699 = vmatpush1.bf16.msra.mxu0 0
      %700 = vmatprep.subr.bf16.mxu0 0
      %701 = vmatpush1.bf16.msra.mxu0 0
      %702 = vmatprep.subr.bf16.mxu0 0
      %703 = vmatpush1.bf16.msra.mxu0 0
      %704 = vmatprep.subr.bf16.mxu0 0
      %705 = vmatpush1.bf16.msra.mxu0 0
      %706 = vmatprep.subr.bf16.mxu0 0
      %707 = vmatpush1.bf16.msra.mxu0 %v692
      %708 = vmatprep.subr.bf16.mxu0 0
      %709 = vmatpush1.bf16.msra.mxu0 %v579
      %710 = vmatprep.subr.bf16.mxu0 0
      %711 = vmatpush2.bf16.msra.mxu0 0
      %712 = vmatprep.subr.bf16.mxu0 0
      %713 = vmatpush2.bf16.msra.mxu0 0
      %714 = vmatprep.subr.bf16.mxu0 0
      %715 = vmatpush2.bf16.msra.mxu0 0
      %716 = vmatprep.subr.bf16.mxu0 0
      %717 = vmatpush2.bf16.msra.mxu0 0
      %718 = vmatprep.subr.bf16.mxu0 0
      %719 = vmatpush2.bf16.msra.mxu0 0
      %720 = vmatprep.subr.bf16.mxu0 0
      %721 = vmatpush2.bf16.msra.mxu0 0
      %722 = vmatprep.subr.bf16.mxu0 0
      %723 = vmatpush2.bf16.msra.mxu0 0
      %724 = vmatprep.subr.bf16.mxu0 0
      %725 = vmatpush2.bf16.msra.mxu0 0
      %726 = vmatprep.mubr.bf16.mxu0 0
      %727 = vmatmul.mubr.bf16.gmra.mxu0 %v685
      %v728 = vpop.f32.mrf.mxu0
      %v729 = vadd.f32 0.0, %v728
      %v730 = vpop.f32.mrf.mxu0
      %v731 = vpop.f32.mrf.mxu0
      %v732 = vadd.f32 0.0, %v731
      %v733 = vpop.f32.mrf.mxu0
      %734 = vmatprep.mubr.bf16.mxu0 0
      %735 = vmatmul.mubr.bf16.gmra.mxu0 %v688
      %v736 = vpop.f32.mrf.mxu0
      %v737 = vadd.f32 0.0, %v736
      %v738 = vpop.f32.mrf.mxu0
      %v739 = vpop.f32.mrf.mxu0
      %v740 = vpop.f32.mrf.mxu0
      %741 = vdwg.mxu0
      %742 = vst.msk [vmem:[#allocation2] sm:$0xff] %vm581, %v729
      %743 = vst.msk [vmem:[#allocation2 + $0x8] sm:$0xff] %vm581, %v732
      %744 = vst.msk [vmem:[#allocation2 + $0x10] sm:$0xff] %vm581, %v737
      %747 = vrot.lane.b32.xlu0 %v575, 64
      %v748 = vpop.permute.xlu0 %747
      %749 = vrot.lane.b32.xlu0 %v576, 64
      %v750 = vpop.permute.xlu0 %749
      %753 = vrot.lane.b32.xlu0 %v577, 64
      %v754 = vpop.permute.xlu0 %753
      %755 = vrot.lane.b32.xlu0 %v578, 64
      %v756 = vpop.permute.xlu0 %755
      %v758 = vsel %vm581, %v748, 0
      %v761 = vsel %vm581, %v750, 0
      %v764 = vsel %vm581, %v754, 0
      %v767 = vsel %vm581, %v756, 0
      %769 = vmatprep.subr.bf16.mxu0 0
      %770 = vmatpush1.bf16.xpose.msra.mxu0 0
      %771 = vmatprep.subr.bf16.mxu0 0
      %772 = vmatpush1.bf16.xpose.msra.mxu0 0
      %773 = vmatprep.subr.bf16.mxu0 0
      %774 = vmatpush1.bf16.xpose.msra.mxu0 0
      %775 = vmatprep.subr.bf16.mxu0 0
      %776 = vmatpush1.bf16.xpose.msra.mxu0 0
      %777 = vmatprep.subr.bf16.mxu0 0
      %778 = vmatpush1.bf16.xpose.msra.mxu0 0
      %779 = vmatprep.subr.bf16.mxu0 0
      %780 = vmatpush1.bf16.xpose.msra.mxu0 0
      %781 = vmatprep.subr.bf16.mxu0 0
      %782 = vmatpush1.bf16.xpose.msra.mxu0 %v767
      %783 = vmatprep.subr.bf16.mxu0 0
      %784 = vmatpush1.bf16.xpose.msra.mxu0 %v764
      %785 = vmatprep.subr.bf16.mxu0 0
      %786 = vmatpush2.bf16.xpose.msra.mxu0 0
      %787 = vmatprep.subr.bf16.mxu0 0
      %788 = vmatpush2.bf16.xpose.msra.mxu0 0
      %789 = vmatprep.subr.bf16.mxu0 0
      %790 = vmatpush2.bf16.xpose.msra.mxu0 0
      %791 = vmatprep.subr.bf16.mxu0 0
      %792 = vmatpush2.bf16.xpose.msra.mxu0 0
      %793 = vmatprep.subr.bf16.mxu0 0
      %794 = vmatpush2.bf16.xpose.msra.mxu0 0
      %795 = vmatprep.subr.bf16.mxu0 0
      %796 = vmatpush2.bf16.xpose.msra.mxu0 0
      %797 = vmatprep.subr.bf16.mxu0 0
      %798 = vmatpush2.bf16.xpose.msra.mxu0 0
      %799 = vmatprep.subr.bf16.mxu0 0
      %800 = vmatpush2.bf16.xpose.msra.mxu0 0
      %801 = vmatprep.mubr.bf16.mxu0 0
      %802 = vmatmul.mubr.bf16.gmra.mxu0 %v758
      %v803 = vpop.f32.mrf.mxu0
      %v804 = vadd.f32 0.0, %v803
      %v805 = vpop.f32.mrf.mxu0
      %v806 = vpop.f32.mrf.mxu0
      %v807 = vadd.f32 0.0, %v806
      %v808 = vpop.f32.mrf.mxu0
      %809 = vmatprep.mubr.bf16.mxu0 0
      %810 = vmatmul.mubr.bf16.gmra.mxu0 %v761
      %v811 = vpop.f32.mrf.mxu0
      %v812 = vadd.f32 0.0, %v811
      %v813 = vpop.f32.mrf.mxu0
      %v814 = vpop.f32.mrf.mxu0
      %v815 = vpop.f32.mrf.mxu0
      %816 = vdwg.mxu0
      %v817 = vmul.f32 %v804, 0.125
      %v818 = vmul.f32 %v807, 0.125
      %v819 = vmul.f32 %v812, 0.125
      %v820 = vsel %vm572, %v817, -1e+30
      %v821 = vsel %vm573, %v818, -1e+30
      %v822 = vsel %vm574, %v819, -1e+30
      %v823 = vsel %vm648, %v820, -inf
      %824 = vmax.xlane.f32.xlu0 %v823
      %v825 = vpop.xlane.xlu0 %824
      %v826 = vsel %vm648, %v821, -inf
      %827 = vmax.xlane.f32.xlu0 %v826
      %v828 = vpop.xlane.xlu0 %827
      %v829 = vsel %vm648, %v822, -inf
      %830 = vmax.xlane.f32.xlu0 %v829
      %v831 = vpop.xlane.xlu0 %830
      %v832 = vsub.f32 %v820, %v825
      %v833 = vsub.f32 %v821, %v828
      %v834 = vsub.f32 %v822, %v831
      %v835 = vmul.f32 %v832, 1.442695
      %v836 = vpow.pop %v835
      %v837 = vmul.f32 %v833, 1.442695
      %v838 = vpow.pop %v837
      %v839 = vmul.f32 %v834, 1.442695
      %v840 = vpow.pop %v839
      %v841 = vsel %vm648, %v836, 0.0
      %842 = vadd.xlane.f32.xlu0 %v841
      %v843 = vpop.xlane.xlu0 %842
      %v844 = vsel %vm648, %v838, 0.0
      %845 = vadd.xlane.f32.xlu0 %v844
      %v846 = vpop.xlane.xlu0 %845
      %v847 = vsel %vm648, %v840, 0.0
      %848 = vadd.xlane.f32.xlu0 %v847
      %v849 = vpop.xlane.xlu0 %848
      %v850 = vrcp.pop %v843
      %v851 = vrcp.pop %v846
      %v852 = vrcp.pop %v849
      %v853 = vmul.f32 %v836, %v850
      %v854 = vmul.f32 %v838, %v851
      %v855 = vmul.f32 %v840, %v852
      %v856 = vpack.c.bf16 %v854, %v853
      %v857 = vpack.c.bf16 %v855, %v855
      %860 = vrot.lane.b32.xlu0 %v579, 64
      %v861 = vpop.permute.xlu0 %860
      %862 = vrot.lane.b32.xlu0 %v580, 64
      %v863 = vpop.permute.xlu0 %862
      %v866 = vsel %vm648, %v856, 0
      %v869 = vsel %vm648, %v857, 0
      %v872 = vsel %vm690, %v863, 0
      %874 = vmatprep.subr.bf16.mxu0 0
      %875 = vmatpush1.bf16.msra.mxu0 0
      %876 = vmatprep.subr.bf16.mxu0 0
      %877 = vmatpush1.bf16.msra.mxu0 0
      %878 = vmatprep.subr.bf16.mxu0 0
      %879 = vmatpush1.bf16.msra.mxu0 0
      %880 = vmatprep.subr.bf16.mxu0 0
      %881 = vmatpush1.bf16.msra.mxu0 0
      %882 = vmatprep.subr.bf16.mxu0 0
      %883 = vmatpush1.bf16.msra.mxu0 0
      %884 = vmatprep.subr.bf16.mxu0 0
      %885 = vmatpush1.bf16.msra.mxu0 0
      %886 = vmatprep.subr.bf16.mxu0 0
      %887 = vmatpush1.bf16.msra.mxu0 %v872
      %888 = vmatprep.subr.bf16.mxu0 0
      %889 = vmatpush1.bf16.msra.mxu0 %v861
      %890 = vmatprep.subr.bf16.mxu0 0
      %891 = vmatpush2.bf16.msra.mxu0 0
      %892 = vmatprep.subr.bf16.mxu0 0
      %893 = vmatpush2.bf16.msra.mxu0 0
      %894 = vmatprep.subr.bf16.mxu0 0
      %895 = vmatpush2.bf16.msra.mxu0 0
      %896 = vmatprep.subr.bf16.mxu0 0
      %897 = vmatpush2.bf16.msra.mxu0 0
      %898 = vmatprep.subr.bf16.mxu0 0
      %899 = vmatpush2.bf16.msra.mxu0 0
      %900 = vmatprep.subr.bf16.mxu0 0
      %901 = vmatpush2.bf16.msra.mxu0 0
      %902 = vmatprep.subr.bf16.mxu0 0
      %903 = vmatpush2.bf16.msra.mxu0 0
      %904 = vmatprep.subr.bf16.mxu0 0
      %905 = vmatpush2.bf16.msra.mxu0 0
      %906 = vmatprep.mubr.bf16.mxu0 0
      %907 = vmatmul.mubr.bf16.gmra.mxu0 %v866
      %v908 = vpop.f32.mrf.mxu0
      %v909 = vadd.f32 0.0, %v908
      %v910 = vpop.f32.mrf.mxu0
      %v911 = vpop.f32.mrf.mxu0
      %v912 = vadd.f32 0.0, %v911
      %v913 = vpop.f32.mrf.mxu0
      %914 = vmatprep.mubr.bf16.mxu0 0
      %915 = vmatmul.mubr.bf16.gmra.mxu0 %v869
      %v916 = vpop.f32.mrf.mxu0
      %v917 = vadd.f32 0.0, %v916
      %v918 = vpop.f32.mrf.mxu0
      %v919 = vpop.f32.mrf.mxu0
      %v920 = vpop.f32.mrf.mxu0
      %921 = vdwg.mxu0
      %925 = vrot.lane.b32.xlu0 %v909, 64
      %v926 = vpop.permute.xlu0 %925
      %927 = vrot.lane.b32.xlu0 %v912, 64
      %v928 = vpop.permute.xlu0 %927
      %929 = vrot.lane.b32.xlu0 %v917, 64
      %v930 = vpop.permute.xlu0 %929
      %vm934 = vcmask 1048064
      %935 = vst.msk [vmem:[#allocation2] sm:$0xff] %vm934, %v926
      %936 = vst.msk [vmem:[#allocation2 + $0x8] sm:$0xff] %vm934, %v928
      %937 = vst.msk [vmem:[#allocation2 + $0x10] sm:$0xff] %vm934, %v930
      %v938 = vpack.c.bf16 %v501, %v495
      %v939 = vpack.c.bf16 %v505, %v505
      %v940 = vpack.c.bf16 %v503, %v497
      %v941 = vpack.c.bf16 %v507, %v507
      %v942 = vpack.c.bf16 %v560, %v555
      %v943 = vpack.c.bf16 %v563, %v563
      %v945 = vsel %vm581, %v938, 0
      %v948 = vsel %vm581, %v939, 0
      %v951 = vsel %vm581, %v940, 0
      %v954 = vsel %vm581, %v941, 0
      %956 = vmatprep.subr.bf16.mxu0 0
      %957 = vmatpush1.bf16.xpose.msra.mxu0 0
      %958 = vmatprep.subr.bf16.mxu0 0
      %959 = vmatpush1.bf16.xpose.msra.mxu0 0
      %960 = vmatprep.subr.bf16.mxu0 0
      %961 = vmatpush1.bf16.xpose.msra.mxu0 0
      %962 = vmatprep.subr.bf16.mxu0 0
      %963 = vmatpush1.bf16.xpose.msra.mxu0 0
      %964 = vmatprep.subr.bf16.mxu0 0
      %965 = vmatpush1.bf16.xpose.msra.mxu0 0
      %966 = vmatprep.subr.bf16.mxu0 0
      %967 = vmatpush1.bf16.xpose.msra.mxu0 0
      %968 = vmatprep.subr.bf16.mxu0 0
      %969 = vmatpush1.bf16.xpose.msra.mxu0 %v954
      %970 = vmatprep.subr.bf16.mxu0 0
      %971 = vmatpush1.bf16.xpose.msra.mxu0 %v951
      %972 = vmatprep.subr.bf16.mxu0 0
      %973 = vmatpush2.bf16.xpose.msra.mxu0 0
      %974 = vmatprep.subr.bf16.mxu0 0
      %975 = vmatpush2.bf16.xpose.msra.mxu0 0
      %976 = vmatprep.subr.bf16.mxu0 0
      %977 = vmatpush2.bf16.xpose.msra.mxu0 0
      %978 = vmatprep.subr.bf16.mxu0 0
      %979 = vmatpush2.bf16.xpose.msra.mxu0 0
      %980 = vmatprep.subr.bf16.mxu0 0
      %981 = vmatpush2.bf16.xpose.msra.mxu0 0
      %982 = vmatprep.subr.bf16.mxu0 0
      %983 = vmatpush2.bf16.xpose.msra.mxu0 0
      %984 = vmatprep.subr.bf16.mxu0 0
      %985 = vmatpush2.bf16.xpose.msra.mxu0 0
      %986 = vmatprep.subr.bf16.mxu0 0
      %987 = vmatpush2.bf16.xpose.msra.mxu0 0
      %988 = vmatprep.mubr.bf16.mxu0 0
      %989 = vmatmul.mubr.bf16.gmra.mxu0 %v945
      %v990 = vpop.f32.mrf.mxu0
      %v991 = vadd.f32 0.0, %v990
      %v992 = vpop.f32.mrf.mxu0
      %v993 = vpop.f32.mrf.mxu0
      %v994 = vadd.f32 0.0, %v993
      %v995 = vpop.f32.mrf.mxu0
      %996 = vmatprep.mubr.bf16.mxu0 0
      %997 = vmatmul.mubr.bf16.gmra.mxu0 %v948
      %v998 = vpop.f32.mrf.mxu0
      %v999 = vadd.f32 0.0, %v998
      %v1000 = vpop.f32.mrf.mxu0
      %v1001 = vpop.f32.mrf.mxu0
      %v1002 = vpop.f32.mrf.mxu0
      %1003 = vdwg.mxu0
      %v1004 = vmul.f32 %v991, 0.125
      %v1005 = vmul.f32 %v994, 0.125
      %v1006 = vmul.f32 %v999, 0.125
      %v1007 = vsel %vm572, %v1004, -1e+30
      %v1008 = vsel %vm573, %v1005, -1e+30
      %v1009 = vsel %vm574, %v1006, -1e+30
      %v1010 = vsel %vm648, %v1007, -inf
      %1011 = vmax.xlane.f32.xlu0 %v1010
      %v1012 = vpop.xlane.xlu0 %1011
      %v1013 = vsel %vm648, %v1008, -inf
      %1014 = vmax.xlane.f32.xlu0 %v1013
      %v1015 = vpop.xlane.xlu0 %1014
      %v1016 = vsel %vm648, %v1009, -inf
      %1017 = vmax.xlane.f32.xlu0 %v1016
      %v1018 = vpop.xlane.xlu0 %1017
      %v1019 = vsub.f32 %v1007, %v1012
      %v1020 = vsub.f32 %v1008, %v1015
      %v1021 = vsub.f32 %v1009, %v1018
      %v1022 = vmul.f32 %v1019, 1.442695
      %v1023 = vpow.pop %v1022
      %v1024 = vmul.f32 %v1020, 1.442695
      %v1025 = vpow.pop %v1024
      %v1026 = vmul.f32 %v1021, 1.442695
      %v1027 = vpow.pop %v1026
      %v1028 = vsel %vm648, %v1023, 0.0
      %1029 = vadd.xlane.f32.xlu0 %v1028
      %v1030 = vpop.xlane.xlu0 %1029
      %v1031 = vsel %vm648, %v1025, 0.0
      %1032 = vadd.xlane.f32.xlu0 %v1031
      %v1033 = vpop.xlane.xlu0 %1032
      %v1034 = vsel %vm648, %v1027, 0.0
      %1035 = vadd.xlane.f32.xlu0 %v1034
      %v1036 = vpop.xlane.xlu0 %1035
      %v1037 = vrcp.pop %v1030
      %v1038 = vrcp.pop %v1033
      %v1039 = vrcp.pop %v1036
      %v1040 = vmul.f32 %v1023, %v1037
      %v1041 = vmul.f32 %v1025, %v1038
      %v1042 = vmul.f32 %v1027, %v1039
      %v1043 = vpack.c.bf16 %v1041, %v1040
      %v1044 = vpack.c.bf16 %v1042, %v1042
      %v1046 = vsel %vm648, %v1043, 0
      %v1049 = vsel %vm648, %v1044, 0
      %v1052 = vsel %vm690, %v943, 0
      %1054 = vmatprep.subr.bf16.mxu0 0
      %1055 = vmatpush1.bf16.msra.mxu0 0
      %1056 = vmatprep.subr.bf16.mxu0 0
      %1057 = vmatpush1.bf16.msra.mxu0 0
      %1058 = vmatprep.subr.bf16.mxu0 0
      %1059 = vmatpush1.bf16.msra.mxu0 0
      %1060 = vmatprep.subr.bf16.mxu0 0
      %1061 = vmatpush1.bf16.msra.mxu0 0
      %1062 = vmatprep.subr.bf16.mxu0 0
      %1063 = vmatpush1.bf16.msra.mxu0 0
      %1064 = vmatprep.subr.bf16.mxu0 0
      %1065 = vmatpush1.bf16.msra.mxu0 0
      %1066 = vmatprep.subr.bf16.mxu0 0
      %1067 = vmatpush1.bf16.msra.mxu0 %v1052
      %1068 = vmatprep.subr.bf16.mxu0 0
      %1069 = vmatpush1.bf16.msra.mxu0 %v942
      %1070 = vmatprep.subr.bf16.mxu0 0
      %1071 = vmatpush2.bf16.msra.mxu0 0
      %1072 = vmatprep.subr.bf16.mxu0 0
      %1073 = vmatpush2.bf16.msra.mxu0 0
      %1074 = vmatprep.subr.bf16.mxu0 0
      %1075 = vmatpush2.bf16.msra.mxu0 0
      %1076 = vmatprep.subr.bf16.mxu0 0
      %1077 = vmatpush2.bf16.msra.mxu0 0
      %1078 = vmatprep.subr.bf16.mxu0 0
      %1079 = vmatpush2.bf16.msra.mxu0 0
      %1080 = vmatprep.subr.bf16.mxu0 0
      %1081 = vmatpush2.bf16.msra.mxu0 0
      %1082 = vmatprep.subr.bf16.mxu0 0
      %1083 = vmatpush2.bf16.msra.mxu0 0
      %1084 = vmatprep.subr.bf16.mxu0 0
      %1085 = vmatpush2.bf16.msra.mxu0 0
      %1086 = vmatprep.mubr.bf16.mxu0 0
      %1087 = vmatmul.mubr.bf16.gmra.mxu0 %v1046
      %v1088 = vpop.f32.mrf.mxu0
      %v1089 = vadd.f32 0.0, %v1088
      %v1090 = vpop.f32.mrf.mxu0
      %v1091 = vpop.f32.mrf.mxu0
      %v1092 = vadd.f32 0.0, %v1091
      %v1093 = vpop.f32.mrf.mxu0
      %1094 = vmatprep.mubr.bf16.mxu0 0
      %1095 = vmatmul.mubr.bf16.gmra.mxu0 %v1049
      %v1096 = vpop.f32.mrf.mxu0
      %v1097 = vadd.f32 0.0, %v1096
      %v1098 = vpop.f32.mrf.mxu0
      %v1099 = vpop.f32.mrf.mxu0
      %v1100 = vpop.f32.mrf.mxu0
      %1101 = vdwg.mxu0
      %1102 = vst.msk [vmem:[#allocation2 + $0x18] sm:$0xff] %vm581, %v1089
      %1103 = vst.msk [vmem:[#allocation2 + $0x20] sm:$0xff] %vm581, %v1092
      %1104 = vst.msk [vmem:[#allocation2 + $0x28] sm:$0xff] %vm581, %v1097
      %1107 = vrot.lane.b32.xlu0 %v938, 64
      %v1108 = vpop.permute.xlu0 %1107
      %1109 = vrot.lane.b32.xlu0 %v939, 64
      %v1110 = vpop.permute.xlu0 %1109
      %1113 = vrot.lane.b32.xlu0 %v940, 64
      %v1114 = vpop.permute.xlu0 %1113
      %1115 = vrot.lane.b32.xlu0 %v941, 64
      %v1116 = vpop.permute.xlu0 %1115
      %v1118 = vsel %vm581, %v1108, 0
      %v1121 = vsel %vm581, %v1110, 0
      %v1124 = vsel %vm581, %v1114, 0
      %v1127 = vsel %vm581, %v1116, 0
      %1129 = vmatprep.subr.bf16.mxu0 0
      %1130 = vmatpush1.bf16.xpose.msra.mxu0 0
      %1131 = vmatprep.subr.bf16.mxu0 0
      %1132 = vmatpush1.bf16.xpose.msra.mxu0 0
      %1133 = vmatprep.subr.bf16.mxu0 0
      %1134 = vmatpush1.bf16.xpose.msra.mxu0 0
      %1135 = vmatprep.subr.bf16.mxu0 0
      %1136 = vmatpush1.bf16.xpose.msra.mxu0 0
      %1137 = vmatprep.subr.bf16.mxu0 0
      %1138 = vmatpush1.bf16.xpose.msra.mxu0 0
      %1139 = vmatprep.subr.bf16.mxu0 0
      %1140 = vmatpush1.bf16.xpose.msra.mxu0 0
      %1141 = vmatprep.subr.bf16.mxu0 0
      %1142 = vmatpush1.bf16.xpose.msra.mxu0 %v1127
      %1143 = vmatprep.subr.bf16.mxu0 0
      %1144 = vmatpush1.bf16.xpose.msra.mxu0 %v1124
      %1145 = vmatprep.subr.bf16.mxu0 0
      %1146 = vmatpush2.bf16.xpose.msra.mxu0 0
      %1147 = vmatprep.subr.bf16.mxu0 0
      %1148 = vmatpush2.bf16.xpose.msra.mxu0 0
      %1149 = vmatprep.subr.bf16.mxu0 0
      %1150 = vmatpush2.bf16.xpose.msra.mxu0 0
      %1151 = vmatprep.subr.bf16.mxu0 0
      %1152 = vmatpush2.bf16.xpose.msra.mxu0 0
      %1153 = vmatprep.subr.bf16.mxu0 0
      %1154 = vmatpush2.bf16.xpose.msra.mxu0 0
      %1155 = vmatprep.subr.bf16.mxu0 0
      %1156 = vmatpush2.bf16.xpose.msra.mxu0 0
      %1157 = vmatprep.subr.bf16.mxu0 0
      %1158 = vmatpush2.bf16.xpose.msra.mxu0 0
      %1159 = vmatprep.subr.bf16.mxu0 0
      %1160 = vmatpush2.bf16.xpose.msra.mxu0 0
      %1161 = vmatprep.mubr.bf16.mxu0 0
      %1162 = vmatmul.mubr.bf16.gmra.mxu0 %v1118
      %v1163 = vpop.f32.mrf.mxu0
      %v1164 = vadd.f32 0.0, %v1163
      %v1165 = vpop.f32.mrf.mxu0
      %v1166 = vpop.f32.mrf.mxu0
      %v1167 = vadd.f32 0.0, %v1166
      %v1168 = vpop.f32.mrf.mxu0
      %1169 = vmatprep.mubr.bf16.mxu0 0
      %1170 = vmatmul.mubr.bf16.gmra.mxu0 %v1121
      %v1171 = vpop.f32.mrf.mxu0
      %v1172 = vadd.f32 0.0, %v1171
      %v1173 = vpop.f32.mrf.mxu0
      %v1174 = vpop.f32.mrf.mxu0
      %v1175 = vpop.f32.mrf.mxu0
      %1176 = vdwg.mxu0
      %v1177 = vmul.f32 %v1164, 0.125
      %v1178 = vmul.f32 %v1167, 0.125
      %v1179 = vmul.f32 %v1172, 0.125
      %v1180 = vsel %vm572, %v1177, -1e+30
      %v1181 = vsel %vm573, %v1178, -1e+30
      %v1182 = vsel %vm574, %v1179, -1e+30
      %v1183 = vsel %vm648, %v1180, -inf
      %1184 = vmax.xlane.f32.xlu0 %v1183
      %v1185 = vpop.xlane.xlu0 %1184
      %v1186 = vsel %vm648, %v1181, -inf
      %1187 = vmax.xlane.f32.xlu0 %v1186
      %v1188 = vpop.xlane.xlu0 %1187
      %v1189 = vsel %vm648, %v1182, -inf
      %1190 = vmax.xlane.f32.xlu0 %v1189
      %v1191 = vpop.xlane.xlu0 %1190
      %v1192 = vsub.f32 %v1180, %v1185
      %v1193 = vsub.f32 %v1181, %v1188
      %v1194 = vsub.f32 %v1182, %v1191
      %v1195 = vmul.f32 %v1192, 1.442695
      %v1196 = vpow.pop %v1195
      %v1197 = vmul.f32 %v1193, 1.442695
      %v1198 = vpow.pop %v1197
      %v1199 = vmul.f32 %v1194, 1.442695
      %v1200 = vpow.pop %v1199
      %v1201 = vsel %vm648, %v1196, 0.0
      %1202 = vadd.xlane.f32.xlu0 %v1201
      %v1203 = vpop.xlane.xlu0 %1202
      %v1204 = vsel %vm648, %v1198, 0.0
      %1205 = vadd.xlane.f32.xlu0 %v1204
      %v1206 = vpop.xlane.xlu0 %1205
      %v1207 = vsel %vm648, %v1200, 0.0
      %1208 = vadd.xlane.f32.xlu0 %v1207
      %v1209 = vpop.xlane.xlu0 %1208
      %v1210 = vrcp.pop %v1203
      %v1211 = vrcp.pop %v1206
      %v1212 = vrcp.pop %v1209
      %v1213 = vmul.f32 %v1196, %v1210
      %v1214 = vmul.f32 %v1198, %v1211
      %v1215 = vmul.f32 %v1200, %v1212
      %v1216 = vpack.c.bf16 %v1214, %v1213
      %v1217 = vpack.c.bf16 %v1215, %v1215
      %1220 = vrot.lane.b32.xlu0 %v942, 64
      %v1221 = vpop.permute.xlu0 %1220
      %1222 = vrot.lane.b32.xlu0 %v943, 64
      %v1223 = vpop.permute.xlu0 %1222
      %v1226 = vsel %vm648, %v1216, 0
      %v1229 = vsel %vm648, %v1217, 0
      %v1232 = vsel %vm690, %v1223, 0
      %1234 = vmatprep.subr.bf16.mxu0 0
      %1235 = vmatpush1.bf16.msra.mxu0 0
      %1236 = vmatprep.subr.bf16.mxu0 0
      %1237 = vmatpush1.bf16.msra.mxu0 0
      %1238 = vmatprep.subr.bf16.mxu0 0
      %1239 = vmatpush1.bf16.msra.mxu0 0
      %1240 = vmatprep.subr.bf16.mxu0 0
      %1241 = vmatpush1.bf16.msra.mxu0 0
      %1242 = vmatprep.subr.bf16.mxu0 0
      %1243 = vmatpush1.bf16.msra.mxu0 0
      %1244 = vmatprep.subr.bf16.mxu0 0
      %1245 = vmatpush1.bf16.msra.mxu0 0
      %1246 = vmatprep.subr.bf16.mxu0 0
      %1247 = vmatpush1.bf16.msra.mxu0 %v1232
      %1248 = vmatprep.subr.bf16.mxu0 0
      %1249 = vmatpush1.bf16.msra.mxu0 %v1221
      %1250 = vmatprep.subr.bf16.mxu0 0
      %1251 = vmatpush2.bf16.msra.mxu0 0
      %1252 = vmatprep.subr.bf16.mxu0 0
      %1253 = vmatpush2.bf16.msra.mxu0 0
      %1254 = vmatprep.subr.bf16.mxu0 0
      %1255 = vmatpush2.bf16.msra.mxu0 0
      %1256 = vmatprep.subr.bf16.mxu0 0
      %1257 = vmatpush2.bf16.msra.mxu0 0
      %1258 = vmatprep.subr.bf16.mxu0 0
      %1259 = vmatpush2.bf16.msra.mxu0 0
      %1260 = vmatprep.subr.bf16.mxu0 0
      %1261 = vmatpush2.bf16.msra.mxu0 0
      %1262 = vmatprep.subr.bf16.mxu0 0
      %1263 = vmatpush2.bf16.msra.mxu0 0
      %1264 = vmatprep.subr.bf16.mxu0 0
      %1265 = vmatpush2.bf16.msra.mxu0 0
      %1266 = vmatprep.mubr.bf16.mxu0 0
      %1267 = vmatmul.mubr.bf16.gmra.mxu0 %v1226
      %v1268 = vpop.f32.mrf.mxu0
      %v1269 = vadd.f32 0.0, %v1268
      %v1270 = vpop.f32.mrf.mxu0
      %v1271 = vpop.f32.mrf.mxu0
      %v1272 = vadd.f32 0.0, %v1271
      %v1273 = vpop.f32.mrf.mxu0
      %1274 = vmatprep.mubr.bf16.mxu0 0
      %1275 = vmatmul.mubr.bf16.gmra.mxu0 %v1229
      %v1276 = vpop.f32.mrf.mxu0
      %v1277 = vadd.f32 0.0, %v1276
      %v1278 = vpop.f32.mrf.mxu0
      %v1279 = vpop.f32.mrf.mxu0
      %v1280 = vpop.f32.mrf.mxu0
      %1281 = vdwg.mxu0
      %1285 = vrot.lane.b32.xlu0 %v1269, 64
      %v1286 = vpop.permute.xlu0 %1285
      %1287 = vrot.lane.b32.xlu0 %v1272, 64
      %v1288 = vpop.permute.xlu0 %1287
      %1289 = vrot.lane.b32.xlu0 %v1277, 64
      %v1290 = vpop.permute.xlu0 %1289
      %1294 = vst.msk [vmem:[#allocation2 + $0x18] sm:$0xff] %vm934, %v1286
      %1295 = vst.msk [vmem:[#allocation2 + $0x20] sm:$0xff] %vm934, %v1288
      %1296 = vst.msk [vmem:[#allocation2 + $0x28] sm:$0xff] %vm934, %v1290
      %v1297 = vld [vmem:[#allocation2] sm:$0xff]
      %v1298 = vld [vmem:[#allocation2 + $0x8] sm:$0xff]
      %v1299 = vld [vmem:[#allocation2 + $0x10] sm:$0xff]
      %v1300 = vld [vmem:[#allocation2 + $0x18] sm:$0xff]
      %v1301 = vld [vmem:[#allocation2 + $0x20] sm:$0xff]
      %v1302 = vld [vmem:[#allocation2 + $0x28] sm:$0xff]
      %v1303 = vpack.c.bf16 %v1298, %v1297
      %v1304 = vpack.c.bf16 %v1300, %v1299
      %v1305 = vpack.c.bf16 %v1302, %v1301
      %v1306 = vld [vmem:[%s2] sm:$0xf]
      %v1307 = vld [vmem:[%s2 + $0x4] sm:$0xf]
      %v1308 = vld [vmem:[%s2 + $0x8] sm:$0xf]
      %v1309 = vld [vmem:[%s2 + $0xc] sm:$0xf]
      %v1310 = vld [vmem:[%s2 + $0x10] sm:$0xf]
      %v1311 = vld [vmem:[%s2 + $0x14] sm:$0xf]
      %v1312 = vld [vmem:[%s2 + $0x18] sm:$0xf]
      %v1313 = vld [vmem:[%s2 + $0x1c] sm:$0xf]
      %v1314 = vld [vmem:[%s2 + $0x20] sm:$0xf]
      %v1315 = vld [vmem:[%s2 + $0x24] sm:$0xf]
      %v1316 = vld [vmem:[%s2 + $0x28] sm:$0xf]
      %v1317 = vld [vmem:[%s2 + $0x2c] sm:$0xf]
      %v1318 = vld [vmem:[%s2 + $0x30] sm:$0xf]
      %v1319 = vld [vmem:[%s2 + $0x34] sm:$0xf]
      %v1320 = vld [vmem:[%s2 + $0x38] sm:$0xf]
      %v1321 = vld [vmem:[%s2 + $0x3c] sm:$0xf]
      %v1322 = vlaneseq
      %v1323 = vshrl.u32 %v1322, 7
      %v1324 = vsub.s32 1, %v1323
      %v1325 = vrot.slane %v261, %v1324
      %v1342 = vunpack.c.l.b16 %v1306
      %v1343 = vunpack.c.l.b16 %v1307
      %v1344 = vunpack.c.l.b16 %v1308
      %v1345 = vunpack.c.l.b16 %v1309
      %v1346 = vunpack.c.l.b16 %v1310
      %v1347 = vunpack.c.l.b16 %v1311
      %v1348 = vunpack.c.l.b16 %v1312
      %v1349 = vunpack.c.l.b16 %v1313
      %v1350 = vunpack.c.l.b16 %v1314
      %v1351 = vunpack.c.l.b16 %v1315
      %v1352 = vunpack.c.l.b16 %v1316
      %v1353 = vunpack.c.l.b16 %v1317
      %v1354 = vunpack.c.l.b16 %v1318
      %v1355 = vunpack.c.l.b16 %v1319
      %v1356 = vunpack.c.l.b16 %v1320
      %v1357 = vunpack.c.l.b16 %v1321
      %v1358 = vpack.c.b16 %v1343, %v1342
      %v1359 = vpack.c.b16 %v1345, %v1344
      %v1360 = vpack.c.b16 %v1347, %v1346
      %v1361 = vpack.c.b16 %v1349, %v1348
      %v1362 = vpack.c.b16 %v1351, %v1350
      %v1363 = vpack.c.b16 %v1353, %v1352
      %v1364 = vpack.c.b16 %v1355, %v1354
      %v1365 = vpack.c.b16 %v1357, %v1356
      %1374 = vmatprep.subr.bf16.mxu0 0
      %1375 = vmatpush1.bf16.msra.mxu0 %v1365
      %1376 = vmatprep.subr.bf16.mxu0 0
      %1377 = vmatpush1.bf16.msra.mxu0 %v1364
      %1378 = vmatprep.subr.bf16.mxu0 0
      %1379 = vmatpush1.bf16.msra.mxu0 %v1363
      %1380 = vmatprep.subr.bf16.mxu0 0
      %1381 = vmatpush1.bf16.msra.mxu0 %v1362
      %1382 = vmatprep.subr.bf16.mxu0 0
      %1383 = vmatpush1.bf16.msra.mxu0 %v1361
      %1384 = vmatprep.subr.bf16.mxu0 0
      %1385 = vmatpush1.bf16.msra.mxu0 %v1360
      %1386 = vmatprep.subr.bf16.mxu0 0
      %1387 = vmatpush1.bf16.msra.mxu0 %v1359
      %1388 = vmatprep.subr.bf16.mxu0 0
      %1389 = vmatpush1.bf16.msra.mxu0 %v1358
      %1390 = vmatprep.subr.bf16.mxu0 0
      %1391 = vmatpush2.bf16.msra.mxu0 0
      %1392 = vmatprep.subr.bf16.mxu0 0
      %1393 = vmatpush2.bf16.msra.mxu0 0
      %1394 = vmatprep.subr.bf16.mxu0 0
      %1395 = vmatpush2.bf16.msra.mxu0 0
      %1396 = vmatprep.subr.bf16.mxu0 0
      %1397 = vmatpush2.bf16.msra.mxu0 0
      %1398 = vmatprep.subr.bf16.mxu0 0
      %1399 = vmatpush2.bf16.msra.mxu0 0
      %1400 = vmatprep.subr.bf16.mxu0 0
      %1401 = vmatpush2.bf16.msra.mxu0 0
      %1402 = vmatprep.subr.bf16.mxu0 0
      %1403 = vmatpush2.bf16.msra.mxu0 0
      %1404 = vmatprep.subr.bf16.mxu0 0
      %1405 = vmatpush2.bf16.msra.mxu0 0
      %1406 = vmatprep.mubr.bf16.mxu0 0
      %1407 = vmatmul.mubr.bf16.gmra.mxu0 %v1303
      %v1408 = vpop.f32.mrf.mxu0
      %v1409 = vadd.f32 %v1325, %v1408
      %v1410 = vpop.f32.mrf.mxu0
      %v1411 = vpop.f32.mrf.mxu0
      %v1412 = vadd.f32 %v1325, %v1411
      %v1413 = vpop.f32.mrf.mxu0
      %1414 = vmatprep.mubr.bf16.mxu0 0
      %1415 = vmatmul.mubr.bf16.gmra.mxu0 %v1304
      %v1416 = vpop.f32.mrf.mxu0
      %v1417 = vadd.f32 %v1325, %v1416
      %v1418 = vpop.f32.mrf.mxu0
      %v1419 = vpop.f32.mrf.mxu0
      %v1420 = vadd.f32 %v1325, %v1419
      %v1421 = vpop.f32.mrf.mxu0
      %1422 = vmatprep.mubr.bf16.mxu0 0
      %1423 = vmatmul.mubr.bf16.gmra.mxu0 %v1305
      %v1424 = vpop.f32.mrf.mxu0
      %v1425 = vadd.f32 %v1325, %v1424
      %v1426 = vpop.f32.mrf.mxu0
      %v1427 = vpop.f32.mrf.mxu0
      %v1428 = vadd.f32 %v1325, %v1427
      %v1429 = vpop.f32.mrf.mxu0
      %1430 = vdwg.mxu0
      %v1431 = vadd.f32 %v265, %v1409
      %v1432 = vadd.f32 %v266, %v1412
      %v1433 = vadd.f32 %v267, %v1417
      %v1434 = vadd.f32 %v268, %v1420
      %v1435 = vadd.f32 %v269, %v1425
      %v1436 = vadd.f32 %v270, %v1428
      %1437 = vadd.xlane.f32.xlu0 %v1431
      %v1438 = vpop.xlane.xlu0 %1437
      %1439 = vadd.xlane.f32.xlu0 %v1432
      %v1440 = vpop.xlane.xlu0 %1439
      %1441 = vadd.xlane.f32.xlu0 %v1433
      %v1442 = vpop.xlane.xlu0 %1441
      %1443 = vadd.xlane.f32.xlu0 %v1434
      %v1444 = vpop.xlane.xlu0 %1443
      %1445 = vadd.xlane.f32.xlu0 %v1435
      %v1446 = vpop.xlane.xlu0 %1445
      %1447 = vadd.xlane.f32.xlu0 %v1436
      %v1448 = vpop.xlane.xlu0 %1447
      %v1449 = vrcp.pop 128.0
      %v1450 = vmul.f32 %v1438, %v1449
      %v1451 = vmul.f32 %v1440, %v1449
      %v1452 = vmul.f32 %v1442, %v1449
      %v1453 = vmul.f32 %v1444, %v1449
      %v1454 = vmul.f32 %v1446, %v1449
      %v1455 = vmul.f32 %v1448, %v1449
      %v1456 = vsub.f32 %v1431, %v1450
      %v1457 = vsub.f32 %v1432, %v1451
      %v1458 = vsub.f32 %v1433, %v1452
      %v1459 = vsub.f32 %v1434, %v1453
      %v1460 = vsub.f32 %v1435, %v1454
      %v1461 = vsub.f32 %v1436, %v1455
      %v1462 = vmul.f32 %v1456, %v1456
      %v1463 = vmul.f32 %v1457, %v1457
      %v1464 = vmul.f32 %v1458, %v1458
      %v1465 = vmul.f32 %v1459, %v1459
      %v1466 = vmul.f32 %v1460, %v1460
      %v1467 = vmul.f32 %v1461, %v1461
      %1468 = vadd.xlane.f32.xlu0 %v1462
      %v1469 = vpop.xlane.xlu0 %1468
      %1470 = vadd.xlane.f32.xlu0 %v1463
      %v1471 = vpop.xlane.xlu0 %1470
      %1472 = vadd.xlane.f32.xlu0 %v1464
      %v1473 = vpop.xlane.xlu0 %1472
      %1474 = vadd.xlane.f32.xlu0 %v1465
      %v1475 = vpop.xlane.xlu0 %1474
      %1476 = vadd.xlane.f32.xlu0 %v1466
      %v1477 = vpop.xlane.xlu0 %1476
      %1478 = vadd.xlane.f32.xlu0 %v1467
      %v1479 = vpop.xlane.xlu0 %1478
      %v1480 = vmul.f32 %v1469, %v1449
      %v1481 = vmul.f32 %v1471, %v1449
      %v1482 = vmul.f32 %v1473, %v1449
      %v1483 = vmul.f32 %v1475, %v1449
      %v1484 = vmul.f32 %v1477, %v1449
      %v1485 = vmul.f32 %v1479, %v1449
      %v1486 = vadd.f32 %v1480, 1e-05
      %v1487 = vadd.f32 %v1481, 1e-05
      %v1488 = vadd.f32 %v1482, 1e-05
      %v1489 = vadd.f32 %v1483, 1e-05
      %v1490 = vadd.f32 %v1484, 1e-05
      %v1491 = vadd.f32 %v1485, 1e-05
      %v1492 = vrsqrt.pop %v1486
      %v1493 = vrsqrt.pop %v1487
      %v1494 = vrsqrt.pop %v1488
      %v1495 = vrsqrt.pop %v1489
      %v1496 = vrsqrt.pop %v1490
      %v1497 = vrsqrt.pop %v1491
      %v1498 = vmul.f32 %v1456, %v1492
      %v1499 = vmul.f32 %v1457, %v1493
      %v1500 = vmul.f32 %v1458, %v1494
      %v1501 = vmul.f32 %v1459, %v1495
      %v1502 = vmul.f32 %v1460, %v1496
      %v1503 = vmul.f32 %v1461, %v1497
      %v1504 = vlaneseq
      %v1505 = vshrl.u32 %v1504, 7
      %v1506 = vsub.s32 4, %v1505
      %v1507 = vrot.slane %v261, %v1506
      %v1508 = vmul.f32 %v1498, %v1507
      %v1509 = vmul.f32 %v1499, %v1507
      %v1510 = vmul.f32 %v1500, %v1507
      %v1511 = vmul.f32 %v1501, %v1507
      %v1512 = vmul.f32 %v1502, %v1507
      %v1513 = vmul.f32 %v1503, %v1507
      %v1514 = vlaneseq
      %v1515 = vshrl.u32 %v1514, 7
      %v1516 = vsub.s32 5, %v1515
      %v1517 = vrot.slane %v261, %v1516
      %v1518 = vadd.f32 %v1508, %v1517
      %v1519 = vadd.f32 %v1509, %v1517
      %v1520 = vadd.f32 %v1510, %v1517
      %v1521 = vadd.f32 %v1511, %v1517
      %v1522 = vadd.f32 %v1512, %v1517
      %v1523 = vadd.f32 %v1513, %v1517
      %v1524 = vpack.c.bf16 %v1519, %v1518
      %v1525 = vpack.c.bf16 %v1521, %v1520
      %v1526 = vpack.c.bf16 %v1523, %v1522
      %v1527 = vld [vmem:[%s3] sm:$0xff]
      %v1528 = vld [vmem:[%s3 + $0x8] sm:$0xff]
      %v1529 = vld [vmem:[%s3 + $0x10] sm:$0xff]
      %v1530 = vld [vmem:[%s3 + $0x18] sm:$0xff]
      %v1531 = vld [vmem:[%s3 + $0x20] sm:$0xff]
      %v1532 = vld [vmem:[%s3 + $0x28] sm:$0xff]
      %v1533 = vld [vmem:[%s3 + $0x30] sm:$0xff]
      %v1534 = vld [vmem:[%s3 + $0x38] sm:$0xff]
      %v1535 = vld [vmem:[%s3 + $0x40] sm:$0xff]
      %v1536 = vld [vmem:[%s3 + $0x48] sm:$0xff]
      %v1537 = vld [vmem:[%s3 + $0x50] sm:$0xff]
      %v1538 = vld [vmem:[%s3 + $0x58] sm:$0xff]
      %v1539 = vld [vmem:[%s3 + $0x60] sm:$0xff]
      %v1540 = vld [vmem:[%s3 + $0x68] sm:$0xff]
      %v1541 = vld [vmem:[%s3 + $0x70] sm:$0xff]
      %v1542 = vld [vmem:[%s3 + $0x78] sm:$0xff]
      %v1543 = vld [vmem:[%s3 + $0x80] sm:$0xff]
      %v1544 = vld [vmem:[%s3 + $0x88] sm:$0xff]
      %v1545 = vld [vmem:[%s3 + $0x90] sm:$0xff]
      %v1546 = vld [vmem:[%s3 + $0x98] sm:$0xff]
      %v1547 = vld [vmem:[%s3 + $0xa0] sm:$0xff]
      %v1548 = vld [vmem:[%s3 + $0xa8] sm:$0xff]
      %v1549 = vld [vmem:[%s3 + $0xb0] sm:$0xff]
      %v1550 = vld [vmem:[%s3 + $0xb8] sm:$0xff]
      %v1551 = vld [vmem:[%s3 + $0xc0] sm:$0xff]
      %v1552 = vld [vmem:[%s3 + $0xc8] sm:$0xff]
      %v1553 = vld [vmem:[%s3 + $0xd0] sm:$0xff]
      %v1554 = vld [vmem:[%s3 + $0xd8] sm:$0xff]
      %v1555 = vld [vmem:[%s3 + $0xe0] sm:$0xff]
      %v1556 = vld [vmem:[%s3 + $0xe8] sm:$0xff]
      %v1557 = vld [vmem:[%s3 + $0xf0] sm:$0xff]
      %v1558 = vld [vmem:[%s3 + $0xf8] sm:$0xff]
      %v1559 = vlaneseq
      %v1560 = vshrl.u32 %v1559, 7
      %v1561 = vsub.s32 2, %v1560
      %v1562 = vrot.slane %v261, %v1561
      %v1563 = vlaneseq
      %v1564 = vshrl.u32 %v1563, 7
      %v1565 = vsub.s32 2, %v1564
      %v1566 = vrot.slane %v262, %v1565
      %v1567 = vlaneseq
      %v1568 = vshrl.u32 %v1567, 7
      %v1569 = vsub.s32 2, %v1568
      %v1570 = vrot.slane %v263, %v1569
      %v1571 = vlaneseq
      %v1572 = vshrl.u32 %v1571, 7
      %v1573 = vsub.s32 2, %v1572
      %v1574 = vrot.slane %v264, %v1573
      %v1607 = vunpack.c.l.b16 %v1527
      %v1608 = vunpack.c.h.b16 %v1527
      %v1609 = vunpack.c.l.b16 %v1528
      %v1610 = vunpack.c.h.b16 %v1528
      %v1611 = vunpack.c.l.b16 %v1529
      %v1612 = vunpack.c.h.b16 %v1529
      %v1613 = vunpack.c.l.b16 %v1530
      %v1614 = vunpack.c.h.b16 %v1530
      %v1615 = vunpack.c.l.b16 %v1531
      %v1616 = vunpack.c.h.b16 %v1531
      %v1617 = vunpack.c.l.b16 %v1532
      %v1618 = vunpack.c.h.b16 %v1532
      %v1619 = vunpack.c.l.b16 %v1533
      %v1620 = vunpack.c.h.b16 %v1533
      %v1621 = vunpack.c.l.b16 %v1534
      %v1622 = vunpack.c.h.b16 %v1534
      %v1623 = vunpack.c.l.b16 %v1535
      %v1624 = vunpack.c.h.b16 %v1535
      %v1625 = vunpack.c.l.b16 %v1536
      %v1626 = vunpack.c.h.b16 %v1536
      %v1627 = vunpack.c.l.b16 %v1537
      %v1628 = vunpack.c.h.b16 %v1537
      %v1629 = vunpack.c.l.b16 %v1538
      %v1630 = vunpack.c.h.b16 %v1538
      %v1631 = vunpack.c.l.b16 %v1539
      %v1632 = vunpack.c.h.b16 %v1539
      %v1633 = vunpack.c.l.b16 %v1540
      %v1634 = vunpack.c.h.b16 %v1540
      %v1635 = vunpack.c.l.b16 %v1541
      %v1636 = vunpack.c.h.b16 %v1541
      %v1637 = vunpack.c.l.b16 %v1542
      %v1638 = vunpack.c.h.b16 %v1542
      %v1639 = vunpack.c.l.b16 %v1543
      %v1640 = vunpack.c.h.b16 %v1543
      %v1641 = vunpack.c.l.b16 %v1544
      %v1642 = vunpack.c.h.b16 %v1544
      %v1643 = vunpack.c.l.b16 %v1545
      %v1644 = vunpack.c.h.b16 %v1545
      %v1645 = vunpack.c.l.b16 %v1546
      %v1646 = vunpack.c.h.b16 %v1546
      %v1647 = vunpack.c.l.b16 %v1547
      %v1648 = vunpack.c.h.b16 %v1547
      %v1649 = vunpack.c.l.b16 %v1548
      %v1650 = vunpack.c.h.b16 %v1548
      %v1651 = vunpack.c.l.b16 %v1549
      %v1652 = vunpack.c.h.b16 %v1549
      %v1653 = vunpack.c.l.b16 %v1550
      %v1654 = vunpack.c.h.b16 %v1550
      %v1655 = vunpack.c.l.b16 %v1551
      %v1656 = vunpack.c.h.b16 %v1551
      %v1657 = vunpack.c.l.b16 %v1552
      %v1658 = vunpack.c.h.b16 %v1552
      %v1659 = vunpack.c.l.b16 %v1553
      %v1660 = vunpack.c.h.b16 %v1553
      %v1661 = vunpack.c.l.b16 %v1554
      %v1662 = vunpack.c.h.b16 %v1554
      %v1663 = vunpack.c.l.b16 %v1555
      %v1664 = vunpack.c.h.b16 %v1555
      %v1665 = vunpack.c.l.b16 %v1556
      %v1666 = vunpack.c.h.b16 %v1556
      %v1667 = vunpack.c.l.b16 %v1557
      %v1668 = vunpack.c.h.b16 %v1557
      %v1669 = vunpack.c.l.b16 %v1558
      %v1670 = vunpack.c.h.b16 %v1558
      %v1671 = vpack.c.b16 %v1611, %v1607
      %v1672 = vpack.c.b16 %v1612, %v1608
      %v1673 = vpack.c.b16 %v1613, %v1609
      %v1674 = vpack.c.b16 %v1614, %v1610
      %v1675 = vpack.c.b16 %v1619, %v1615
      %v1676 = vpack.c.b16 %v1620, %v1616
      %v1677 = vpack.c.b16 %v1621, %v1617
      %v1678 = vpack.c.b16 %v1622, %v1618
      %v1679 = vpack.c.b16 %v1627, %v1623
      %v1680 = vpack.c.b16 %v1628, %v1624
      %v1681 = vpack.c.b16 %v1629, %v1625
      %v1682 = vpack.c.b16 %v1630, %v1626
      %v1683 = vpack.c.b16 %v1635, %v1631
      %v1684 = vpack.c.b16 %v1636, %v1632
      %v1685 = vpack.c.b16 %v1637, %v1633
      %v1686 = vpack.c.b16 %v1638, %v1634
      %v1687 = vpack.c.b16 %v1643, %v1639
      %v1688 = vpack.c.b16 %v1644, %v1640
      %v1689 = vpack.c.b16 %v1645, %v1641
      %v1690 = vpack.c.b16 %v1646, %v1642
      %v1691 = vpack.c.b16 %v1651, %v1647
      %v1692 = vpack.c.b16 %v1652, %v1648
      %v1693 = vpack.c.b16 %v1653, %v1649
      %v1694 = vpack.c.b16 %v1654, %v1650
      %v1695 = vpack.c.b16 %v1659, %v1655
      %v1696 = vpack.c.b16 %v1660, %v1656
      %v1697 = vpack.c.b16 %v1661, %v1657
      %v1698 = vpack.c.b16 %v1662, %v1658
      %v1699 = vpack.c.b16 %v1667, %v1663
      %v1700 = vpack.c.b16 %v1668, %v1664
      %v1701 = vpack.c.b16 %v1669, %v1665
      %v1702 = vpack.c.b16 %v1670, %v1666
      %1735 = vmatprep.subr.bf16.mxu0 %v1700
      %1736 = vmatpush1.bf16.msra.mxu0 %v1699
      %1737 = vmatprep.subr.bf16.mxu0 %v1696
      %1738 = vmatpush1.bf16.msra.mxu0 %v1695
      %1739 = vmatprep.subr.bf16.mxu0 %v1692
      %1740 = vmatpush1.bf16.msra.mxu0 %v1691
      %1741 = vmatprep.subr.bf16.mxu0 %v1688
      %1742 = vmatpush1.bf16.msra.mxu0 %v1687
      %1743 = vmatprep.subr.bf16.mxu0 %v1684
      %1744 = vmatpush1.bf16.msra.mxu0 %v1683
      %1745 = vmatprep.subr.bf16.mxu0 %v1680
      %1746 = vmatpush1.bf16.msra.mxu0 %v1679
      %1747 = vmatprep.subr.bf16.mxu0 %v1676
      %1748 = vmatpush1.bf16.msra.mxu0 %v1675
      %1749 = vmatprep.subr.bf16.mxu0 %v1672
      %1750 = vmatpush1.bf16.msra.mxu0 %v1671
      %1751 = vmatprep.subr.bf16.mxu0 0
      %1752 = vmatpush2.bf16.msra.mxu0 0
      %1753 = vmatprep.subr.bf16.mxu0 0
      %1754 = vmatpush2.bf16.msra.mxu0 0
      %1755 = vmatprep.subr.bf16.mxu0 0
      %1756 = vmatpush2.bf16.msra.mxu0 0
      %1757 = vmatprep.subr.bf16.mxu0 0
      %1758 = vmatpush2.bf16.msra.mxu0 0
      %1759 = vmatprep.subr.bf16.mxu0 0
      %1760 = vmatpush2.bf16.msra.mxu0 0
      %1761 = vmatprep.subr.bf16.mxu0 0
      %1762 = vmatpush2.bf16.msra.mxu0 0
      %1763 = vmatprep.subr.bf16.mxu0 0
      %1764 = vmatpush2.bf16.msra.mxu0 0
      %1765 = vmatprep.subr.bf16.mxu0 0
      %1766 = vmatpush2.bf16.msra.mxu0 0
      %1767 = vmatprep.mubr.bf16.mxu0 0
      %1768 = vmatmul.mubr.bf16.gmra.mxu0 %v1524
      %v1769 = vpop.f32.mrf.mxu0
      %v1770 = vadd.f32 %v1562, %v1769
      %v1771 = vpop.f32.mrf.mxu0
      %v1772 = vadd.f32 %v1566, %v1771
      %v1773 = vpop.f32.mrf.mxu0
      %v1774 = vadd.f32 %v1562, %v1773
      %v1775 = vpop.f32.mrf.mxu0
      %v1776 = vadd.f32 %v1566, %v1775
      %1777 = vmatprep.mubr.bf16.mxu0 0
      %1778 = vmatmul.mubr.bf16.gmra.mxu0 %v1525
      %v1779 = vpop.f32.mrf.mxu0
      %v1780 = vadd.f32 %v1562, %v1779
      %v1781 = vpop.f32.mrf.mxu0
      %v1782 = vadd.f32 %v1566, %v1781
      %v1783 = vpop.f32.mrf.mxu0
      %v1784 = vadd.f32 %v1562, %v1783
      %v1785 = vpop.f32.mrf.mxu0
      %v1786 = vadd.f32 %v1566, %v1785
      %1787 = vmatprep.mubr.bf16.mxu0 0
      %1788 = vmatmul.mubr.bf16.gmra.mxu0 %v1526
      %v1789 = vpop.f32.mrf.mxu0
      %v1790 = vadd.f32 %v1562, %v1789
      %v1791 = vpop.f32.mrf.mxu0
      %v1792 = vadd.f32 %v1566, %v1791
      %v1793 = vpop.f32.mrf.mxu0
      %v1794 = vadd.f32 %v1562, %v1793
      %v1795 = vpop.f32.mrf.mxu0
      %v1796 = vadd.f32 %v1566, %v1795
      %1797 = vdwg.mxu0
      %1798 = vmatprep.subr.bf16.mxu0 %v1702
      %1799 = vmatpush1.bf16.msra.mxu0 %v1701
      %1800 = vmatprep.subr.bf16.mxu0 %v1698
      %1801 = vmatpush1.bf16.msra.mxu0 %v1697
      %1802 = vmatprep.subr.bf16.mxu0 %v1694
      %1803 = vmatpush1.bf16.msra.mxu0 %v1693
      %1804 = vmatprep.subr.bf16.mxu0 %v1690
      %1805 = vmatpush1.bf16.msra.mxu0 %v1689
      %1806 = vmatprep.subr.bf16.mxu0 %v1686
      %1807 = vmatpush1.bf16.msra.mxu0 %v1685
      %1808 = vmatprep.subr.bf16.mxu0 %v1682
      %1809 = vmatpush1.bf16.msra.mxu0 %v1681
      %1810 = vmatprep.subr.bf16.mxu0 %v1678
      %1811 = vmatpush1.bf16.msra.mxu0 %v1677
      %1812 = vmatprep.subr.bf16.mxu0 %v1674
      %1813 = vmatpush1.bf16.msra.mxu0 %v1673
      %1814 = vmatprep.subr.bf16.mxu0 0
      %1815 = vmatpush2.bf16.msra.mxu0 0
      %1816 = vmatprep.subr.bf16.mxu0 0
      %1817 = vmatpush2.bf16.msra.mxu0 0
      %1818 = vmatprep.subr.bf16.mxu0 0
      %1819 = vmatpush2.bf16.msra.mxu0 0
      %1820 = vmatprep.subr.bf16.mxu0 0
      %1821 = vmatpush2.bf16.msra.mxu0 0
      %1822 = vmatprep.subr.bf16.mxu0 0
      %1823 = vmatpush2.bf16.msra.mxu0 0
      %1824 = vmatprep.subr.bf16.mxu0 0
      %1825 = vmatpush2.bf16.msra.mxu0 0
      %1826 = vmatprep.subr.bf16.mxu0 0
      %1827 = vmatpush2.bf16.msra.mxu0 0
      %1828 = vmatprep.subr.bf16.mxu0 0
      %1829 = vmatpush2.bf16.msra.mxu0 0
      %1830 = vmatprep.mubr.bf16.mxu0 0
      %1831 = vmatmul.mubr.bf16.gmra.mxu0 %v1524
      %v1832 = vpop.f32.mrf.mxu0
      %v1833 = vadd.f32 %v1570, %v1832
      %v1834 = vpop.f32.mrf.mxu0
      %v1835 = vadd.f32 %v1574, %v1834
      %v1836 = vpop.f32.mrf.mxu0
      %v1837 = vadd.f32 %v1570, %v1836
      %v1838 = vpop.f32.mrf.mxu0
      %v1839 = vadd.f32 %v1574, %v1838
      %1840 = vmatprep.mubr.bf16.mxu0 0
      %1841 = vmatmul.mubr.bf16.gmra.mxu0 %v1525
      %v1842 = vpop.f32.mrf.mxu0
      %v1843 = vadd.f32 %v1570, %v1842
      %v1844 = vpop.f32.mrf.mxu0
      %v1845 = vadd.f32 %v1574, %v1844
      %v1846 = vpop.f32.mrf.mxu0
      %v1847 = vadd.f32 %v1570, %v1846
      %v1848 = vpop.f32.mrf.mxu0
      %v1849 = vadd.f32 %v1574, %v1848
      %1850 = vmatprep.mubr.bf16.mxu0 0
      %1851 = vmatmul.mubr.bf16.gmra.mxu0 %v1526
      %v1852 = vpop.f32.mrf.mxu0
      %v1853 = vadd.f32 %v1570, %v1852
      %v1854 = vpop.f32.mrf.mxu0
      %v1855 = vadd.f32 %v1574, %v1854
      %v1856 = vpop.f32.mrf.mxu0
      %v1857 = vadd.f32 %v1570, %v1856
      %v1858 = vpop.f32.mrf.mxu0
      %v1859 = vadd.f32 %v1574, %v1858
      %1860 = vdwg.mxu0
      %v1861 = vmul.f32 %v1770, %v1770
      %v1862 = vmul.f32 %v1772, %v1772
      %v1863 = vmul.f32 %v1833, %v1833
      %v1864 = vmul.f32 %v1835, %v1835
      %v1865 = vmul.f32 %v1774, %v1774
      %v1866 = vmul.f32 %v1776, %v1776
      %v1867 = vmul.f32 %v1837, %v1837
      %v1868 = vmul.f32 %v1839, %v1839
      %v1869 = vmul.f32 %v1780, %v1780
      %v1870 = vmul.f32 %v1782, %v1782
      %v1871 = vmul.f32 %v1843, %v1843
      %v1872 = vmul.f32 %v1845, %v1845
      %v1873 = vmul.f32 %v1784, %v1784
      %v1874 = vmul.f32 %v1786, %v1786
      %v1875 = vmul.f32 %v1847, %v1847
      %v1876 = vmul.f32 %v1849, %v1849
      %v1877 = vmul.f32 %v1790, %v1790
      %v1878 = vmul.f32 %v1792, %v1792
      %v1879 = vmul.f32 %v1853, %v1853
      %v1880 = vmul.f32 %v1855, %v1855
      %v1881 = vmul.f32 %v1794, %v1794
      %v1882 = vmul.f32 %v1796, %v1796
      %v1883 = vmul.f32 %v1857, %v1857
      %v1884 = vmul.f32 %v1859, %v1859
      %v1885 = vmul.f32 %v1770, %v1861
      %v1886 = vmul.f32 %v1772, %v1862
      %v1887 = vmul.f32 %v1833, %v1863
      %v1888 = vmul.f32 %v1835, %v1864
      %v1889 = vmul.f32 %v1774, %v1865
      %v1890 = vmul.f32 %v1776, %v1866
      %v1891 = vmul.f32 %v1837, %v1867
      %v1892 = vmul.f32 %v1839, %v1868
      %v1893 = vmul.f32 %v1780, %v1869
      %v1894 = vmul.f32 %v1782, %v1870
      %v1895 = vmul.f32 %v1843, %v1871
      %v1896 = vmul.f32 %v1845, %v1872
      %v1897 = vmul.f32 %v1784, %v1873
      %v1898 = vmul.f32 %v1786, %v1874
      %v1899 = vmul.f32 %v1847, %v1875
      %v1900 = vmul.f32 %v1849, %v1876
      %v1901 = vmul.f32 %v1790, %v1877
      %v1902 = vmul.f32 %v1792, %v1878
      %v1903 = vmul.f32 %v1853, %v1879
      %v1904 = vmul.f32 %v1855, %v1880
      %v1905 = vmul.f32 %v1794, %v1881
      %v1906 = vmul.f32 %v1796, %v1882
      %v1907 = vmul.f32 %v1857, %v1883
      %v1908 = vmul.f32 %v1859, %v1884
      %v1909 = vmul.f32 %v1885, 0.044715
      %v1910 = vmul.f32 %v1886, 0.044715
      %v1911 = vmul.f32 %v1887, 0.044715
      %v1912 = vmul.f32 %v1888, 0.044715
      %v1913 = vmul.f32 %v1889, 0.044715
      %v1914 = vmul.f32 %v1890, 0.044715
      %v1915 = vmul.f32 %v1891, 0.044715
      %v1916 = vmul.f32 %v1892, 0.044715
      %v1917 = vmul.f32 %v1893, 0.044715
      %v1918 = vmul.f32 %v1894, 0.044715
      %v1919 = vmul.f32 %v1895, 0.044715
      %v1920 = vmul.f32 %v1896, 0.044715
      %v1921 = vmul.f32 %v1897, 0.044715
      %v1922 = vmul.f32 %v1898, 0.044715
      %v1923 = vmul.f32 %v1899, 0.044715
      %v1924 = vmul.f32 %v1900, 0.044715
      %v1925 = vmul.f32 %v1901, 0.044715
      %v1926 = vmul.f32 %v1902, 0.044715
      %v1927 = vmul.f32 %v1903, 0.044715
      %v1928 = vmul.f32 %v1904, 0.044715
      %v1929 = vmul.f32 %v1905, 0.044715
      %v1930 = vmul.f32 %v1906, 0.044715
      %v1931 = vmul.f32 %v1907, 0.044715
      %v1932 = vmul.f32 %v1908, 0.044715
      %v1933 = vadd.f32 %v1770, %v1909
      %v1934 = vadd.f32 %v1772, %v1910
      %v1935 = vadd.f32 %v1833, %v1911
      %v1936 = vadd.f32 %v1835, %v1912
      %v1937 = vadd.f32 %v1774, %v1913
      %v1938 = vadd.f32 %v1776, %v1914
      %v1939 = vadd.f32 %v1837, %v1915
      %v1940 = vadd.f32 %v1839, %v1916
      %v1941 = vadd.f32 %v1780, %v1917
      %v1942 = vadd.f32 %v1782, %v1918
      %v1943 = vadd.f32 %v1843, %v1919
      %v1944 = vadd.f32 %v1845, %v1920
      %v1945 = vadd.f32 %v1784, %v1921
      %v1946 = vadd.f32 %v1786, %v1922
      %v1947 = vadd.f32 %v1847, %v1923
      %v1948 = vadd.f32 %v1849, %v1924
      %v1949 = vadd.f32 %v1790, %v1925
      %v1950 = vadd.f32 %v1792, %v1926
      %v1951 = vadd.f32 %v1853, %v1927
      %v1952 = vadd.f32 %v1855, %v1928
      %v1953 = vadd.f32 %v1794, %v1929
      %v1954 = vadd.f32 %v1796, %v1930
      %v1955 = vadd.f32 %v1857, %v1931
      %v1956 = vadd.f32 %v1859, %v1932
      %v1957 = vmul.f32 %v1933, 0.7978846
      %v1958 = vmul.f32 %v1934, 0.7978846
      %v1959 = vmul.f32 %v1935, 0.7978846
      %v1960 = vmul.f32 %v1936, 0.7978846
      %v1961 = vmul.f32 %v1937, 0.7978846
      %v1962 = vmul.f32 %v1938, 0.7978846
      %v1963 = vmul.f32 %v1939, 0.7978846
      %v1964 = vmul.f32 %v1940, 0.7978846
      %v1965 = vmul.f32 %v1941, 0.7978846
      %v1966 = vmul.f32 %v1942, 0.7978846
      %v1967 = vmul.f32 %v1943, 0.7978846
      %v1968 = vmul.f32 %v1944, 0.7978846
      %v1969 = vmul.f32 %v1945, 0.7978846
      %v1970 = vmul.f32 %v1946, 0.7978846
      %v1971 = vmul.f32 %v1947, 0.7978846
      %v1972 = vmul.f32 %v1948, 0.7978846
      %v1973 = vmul.f32 %v1949, 0.7978846
      %v1974 = vmul.f32 %v1950, 0.7978846
      %v1975 = vmul.f32 %v1951, 0.7978846
      %v1976 = vmul.f32 %v1952, 0.7978846
      %v1977 = vmul.f32 %v1953, 0.7978846
      %v1978 = vmul.f32 %v1954, 0.7978846
      %v1979 = vmul.f32 %v1955, 0.7978846
      %v1980 = vmul.f32 %v1956, 0.7978846
      %v1981 = vtanh.pop %v1957
      %v1982 = vtanh.pop %v1958
      %v1983 = vtanh.pop %v1959
      %v1984 = vtanh.pop %v1960
      %v1985 = vtanh.pop %v1961
      %v1986 = vtanh.pop %v1962
      %v1987 = vtanh.pop %v1963
      %v1988 = vtanh.pop %v1964
      %v1989 = vtanh.pop %v1965
      %v1990 = vtanh.pop %v1966
      %v1991 = vtanh.pop %v1967
      %v1992 = vtanh.pop %v1968
      %v1993 = vtanh.pop %v1969
      %v1994 = vtanh.pop %v1970
      %v1995 = vtanh.pop %v1971
      %v1996 = vtanh.pop %v1972
      %v1997 = vtanh.pop %v1973
      %v1998 = vtanh.pop %v1974
      %v1999 = vtanh.pop %v1975
      %v2000 = vtanh.pop %v1976
      %v2001 = vtanh.pop %v1977
      %v2002 = vtanh.pop %v1978
      %v2003 = vtanh.pop %v1979
      %v2004 = vtanh.pop %v1980
      %v2005 = vadd.f32 %v1981, 1.0
      %v2006 = vadd.f32 %v1982, 1.0
      %v2007 = vadd.f32 %v1983, 1.0
      %v2008 = vadd.f32 %v1984, 1.0
      %v2009 = vadd.f32 %v1985, 1.0
      %v2010 = vadd.f32 %v1986, 1.0
      %v2011 = vadd.f32 %v1987, 1.0
      %v2012 = vadd.f32 %v1988, 1.0
      %v2013 = vadd.f32 %v1989, 1.0
      %v2014 = vadd.f32 %v1990, 1.0
      %v2015 = vadd.f32 %v1991, 1.0
      %v2016 = vadd.f32 %v1992, 1.0
      %v2017 = vadd.f32 %v1993, 1.0
      %v2018 = vadd.f32 %v1994, 1.0
      %v2019 = vadd.f32 %v1995, 1.0
      %v2020 = vadd.f32 %v1996, 1.0
      %v2021 = vadd.f32 %v1997, 1.0
      %v2022 = vadd.f32 %v1998, 1.0
      %v2023 = vadd.f32 %v1999, 1.0
      %v2024 = vadd.f32 %v2000, 1.0
      %v2025 = vadd.f32 %v2001, 1.0
      %v2026 = vadd.f32 %v2002, 1.0
      %v2027 = vadd.f32 %v2003, 1.0
      %v2028 = vadd.f32 %v2004, 1.0
      %v2029 = vmul.f32 %v2005, 0.5
      %v2030 = vmul.f32 %v2006, 0.5
      %v2031 = vmul.f32 %v2007, 0.5
      %v2032 = vmul.f32 %v2008, 0.5
      %v2033 = vmul.f32 %v2009, 0.5
      %v2034 = vmul.f32 %v2010, 0.5
      %v2035 = vmul.f32 %v2011, 0.5
      %v2036 = vmul.f32 %v2012, 0.5
      %v2037 = vmul.f32 %v2013, 0.5
      %v2038 = vmul.f32 %v2014, 0.5
      %v2039 = vmul.f32 %v2015, 0.5
      %v2040 = vmul.f32 %v2016, 0.5
      %v2041 = vmul.f32 %v2017, 0.5
      %v2042 = vmul.f32 %v2018, 0.5
      %v2043 = vmul.f32 %v2019, 0.5
      %v2044 = vmul.f32 %v2020, 0.5
      %v2045 = vmul.f32 %v2021, 0.5
      %v2046 = vmul.f32 %v2022, 0.5
      %v2047 = vmul.f32 %v2023, 0.5
      %v2048 = vmul.f32 %v2024, 0.5
      %v2049 = vmul.f32 %v2025, 0.5
      %v2050 = vmul.f32 %v2026, 0.5
      %v2051 = vmul.f32 %v2027, 0.5
      %v2052 = vmul.f32 %v2028, 0.5
      %v2053 = vmul.f32 %v1770, %v2029
      %v2054 = vmul.f32 %v1772, %v2030
      %v2055 = vmul.f32 %v1833, %v2031
      %v2056 = vmul.f32 %v1835, %v2032
      %v2057 = vmul.f32 %v1774, %v2033
      %v2058 = vmul.f32 %v1776, %v2034
      %v2059 = vmul.f32 %v1837, %v2035
      %v2060 = vmul.f32 %v1839, %v2036
      %v2061 = vmul.f32 %v1780, %v2037
      %v2062 = vmul.f32 %v1782, %v2038
      %v2063 = vmul.f32 %v1843, %v2039
      %v2064 = vmul.f32 %v1845, %v2040
      %v2065 = vmul.f32 %v1784, %v2041
      %v2066 = vmul.f32 %v1786, %v2042
      %v2067 = vmul.f32 %v1847, %v2043
      %v2068 = vmul.f32 %v1849, %v2044
      %v2069 = vmul.f32 %v1790, %v2045
      %v2070 = vmul.f32 %v1792, %v2046
      %v2071 = vmul.f32 %v1853, %v2047
      %v2072 = vmul.f32 %v1855, %v2048
      %v2073 = vmul.f32 %v1794, %v2049
      %v2074 = vmul.f32 %v1796, %v2050
      %v2075 = vmul.f32 %v1857, %v2051
      %v2076 = vmul.f32 %v1859, %v2052
      %v2077 = vpack.c.bf16 %v2057, %v2053
      %v2078 = vpack.c.bf16 %v2058, %v2054
      %v2079 = vpack.c.bf16 %v2059, %v2055
      %v2080 = vpack.c.bf16 %v2060, %v2056
      %v2081 = vpack.c.bf16 %v2065, %v2061
      %v2082 = vpack.c.bf16 %v2066, %v2062
      %v2083 = vpack.c.bf16 %v2067, %v2063
      %v2084 = vpack.c.bf16 %v2068, %v2064
      %v2085 = vpack.c.bf16 %v2073, %v2069
      %v2086 = vpack.c.bf16 %v2074, %v2070
      %v2087 = vpack.c.bf16 %v2075, %v2071
      %v2088 = vpack.c.bf16 %v2076, %v2072
      %v2089 = vld [vmem:[%s4] sm:$0xf]
      %v2090 = vld [vmem:[%s4 + $0x4] sm:$0xf]
      %v2091 = vld [vmem:[%s4 + $0x8] sm:$0xf]
      %v2092 = vld [vmem:[%s4 + $0xc] sm:$0xf]
      %v2093 = vld [vmem:[%s4 + $0x10] sm:$0xf]
      %v2094 = vld [vmem:[%s4 + $0x14] sm:$0xf]
      %v2095 = vld [vmem:[%s4 + $0x18] sm:$0xf]
      %v2096 = vld [vmem:[%s4 + $0x1c] sm:$0xf]
      %v2097 = vld [vmem:[%s4 + $0x20] sm:$0xf]
      %v2098 = vld [vmem:[%s4 + $0x24] sm:$0xf]
      %v2099 = vld [vmem:[%s4 + $0x28] sm:$0xf]
      %v2100 = vld [vmem:[%s4 + $0x2c] sm:$0xf]
      %v2101 = vld [vmem:[%s4 + $0x30] sm:$0xf]
      %v2102 = vld [vmem:[%s4 + $0x34] sm:$0xf]
      %v2103 = vld [vmem:[%s4 + $0x38] sm:$0xf]
      %v2104 = vld [vmem:[%s4 + $0x3c] sm:$0xf]
      %v2105 = vld [vmem:[%s4 + $0x40] sm:$0xf]
      %v2106 = vld [vmem:[%s4 + $0x44] sm:$0xf]
      %v2107 = vld [vmem:[%s4 + $0x48] sm:$0xf]
      %v2108 = vld [vmem:[%s4 + $0x4c] sm:$0xf]
      %v2109 = vld [vmem:[%s4 + $0x50] sm:$0xf]
      %v2110 = vld [vmem:[%s4 + $0x54] sm:$0xf]
      %v2111 = vld [vmem:[%s4 + $0x58] sm:$0xf]
      %v2112 = vld [vmem:[%s4 + $0x5c] sm:$0xf]
      %v2113 = vld [vmem:[%s4 + $0x60] sm:$0xf]
      %v2114 = vld [vmem:[%s4 + $0x64] sm:$0xf]
      %v2115 = vld [vmem:[%s4 + $0x68] sm:$0xf]
      %v2116 = vld [vmem:[%s4 + $0x6c] sm:$0xf]
      %v2117 = vld [vmem:[%s4 + $0x70] sm:$0xf]
      %v2118 = vld [vmem:[%s4 + $0x74] sm:$0xf]
      %v2119 = vld [vmem:[%s4 + $0x78] sm:$0xf]
      %v2120 = vld [vmem:[%s4 + $0x7c] sm:$0xf]
      %v2121 = vld [vmem:[%s4 + $0x80] sm:$0xf]
      %v2122 = vld [vmem:[%s4 + $0x84] sm:$0xf]
      %v2123 = vld [vmem:[%s4 + $0x88] sm:$0xf]
      %v2124 = vld [vmem:[%s4 + $0x8c] sm:$0xf]
      %v2125 = vld [vmem:[%s4 + $0x90] sm:$0xf]
      %v2126 = vld [vmem:[%s4 + $0x94] sm:$0xf]
      %v2127 = vld [vmem:[%s4 + $0x98] sm:$0xf]
      %v2128 = vld [vmem:[%s4 + $0x9c] sm:$0xf]
      %v2129 = vld [vmem:[%s4 + $0xa0] sm:$0xf]
      %v2130 = vld [vmem:[%s4 + $0xa4] sm:$0xf]
      %v2131 = vld [vmem:[%s4 + $0xa8] sm:$0xf]
      %v2132 = vld [vmem:[%s4 + $0xac] sm:$0xf]
      %v2133 = vld [vmem:[%s4 + $0xb0] sm:$0xf]
      %v2134 = vld [vmem:[%s4 + $0xb4] sm:$0xf]
      %v2135 = vld [vmem:[%s4 + $0xb8] sm:$0xf]
      %v2136 = vld [vmem:[%s4 + $0xbc] sm:$0xf]
      %v2137 = vld [vmem:[%s4 + $0xc0] sm:$0xf]
      %v2138 = vld [vmem:[%s4 + $0xc4] sm:$0xf]
      %v2139 = vld [vmem:[%s4 + $0xc8] sm:$0xf]
      %v2140 = vld [vmem:[%s4 + $0xcc] sm:$0xf]
      %v2141 = vld [vmem:[%s4 + $0xd0] sm:$0xf]
      %v2142 = vld [vmem:[%s4 + $0xd4] sm:$0xf]
      %v2143 = vld [vmem:[%s4 + $0xd8] sm:$0xf]
      %v2144 = vld [vmem:[%s4 + $0xdc] sm:$0xf]
      %v2145 = vld [vmem:[%s4 + $0xe0] sm:$0xf]
      %v2146 = vld [vmem:[%s4 + $0xe4] sm:$0xf]
      %v2147 = vld [vmem:[%s4 + $0xe8] sm:$0xf]
      %v2148 = vld [vmem:[%s4 + $0xec] sm:$0xf]
      %v2149 = vld [vmem:[%s4 + $0xf0] sm:$0xf]
      %v2150 = vld [vmem:[%s4 + $0xf4] sm:$0xf]
      %v2151 = vld [vmem:[%s4 + $0xf8] sm:$0xf]
      %v2152 = vld [vmem:[%s4 + $0xfc] sm:$0xf]
      %v2153 = vlaneseq
      %v2154 = vshrl.u32 %v2153, 7
      %v2155 = vsub.s32 3, %v2154
      %v2156 = vrot.slane %v261, %v2155
      %v2221 = vunpack.c.l.b16 %v2089
      %v2222 = vunpack.c.l.b16 %v2090
      %v2223 = vunpack.c.l.b16 %v2091
      %v2224 = vunpack.c.l.b16 %v2092
      %v2225 = vunpack.c.l.b16 %v2093
      %v2226 = vunpack.c.l.b16 %v2094
      %v2227 = vunpack.c.l.b16 %v2095
      %v2228 = vunpack.c.l.b16 %v2096
      %v2229 = vunpack.c.l.b16 %v2097
      %v2230 = vunpack.c.l.b16 %v2098
      %v2231 = vunpack.c.l.b16 %v2099
      %v2232 = vunpack.c.l.b16 %v2100
      %v2233 = vunpack.c.l.b16 %v2101
      %v2234 = vunpack.c.l.b16 %v2102
      %v2235 = vunpack.c.l.b16 %v2103
      %v2236 = vunpack.c.l.b16 %v2104
      %v2237 = vunpack.c.l.b16 %v2105
      %v2238 = vunpack.c.l.b16 %v2106
      %v2239 = vunpack.c.l.b16 %v2107
      %v2240 = vunpack.c.l.b16 %v2108
      %v2241 = vunpack.c.l.b16 %v2109
      %v2242 = vunpack.c.l.b16 %v2110
      %v2243 = vunpack.c.l.b16 %v2111
      %v2244 = vunpack.c.l.b16 %v2112
      %v2245 = vunpack.c.l.b16 %v2113
      %v2246 = vunpack.c.l.b16 %v2114
      %v2247 = vunpack.c.l.b16 %v2115
      %v2248 = vunpack.c.l.b16 %v2116
      %v2249 = vunpack.c.l.b16 %v2117
      %v2250 = vunpack.c.l.b16 %v2118
      %v2251 = vunpack.c.l.b16 %v2119
      %v2252 = vunpack.c.l.b16 %v2120
      %v2253 = vunpack.c.l.b16 %v2121
      %v2254 = vunpack.c.l.b16 %v2122
      %v2255 = vunpack.c.l.b16 %v2123
      %v2256 = vunpack.c.l.b16 %v2124
      %v2257 = vunpack.c.l.b16 %v2125
      %v2258 = vunpack.c.l.b16 %v2126
      %v2259 = vunpack.c.l.b16 %v2127
      %v2260 = vunpack.c.l.b16 %v2128
      %v2261 = vunpack.c.l.b16 %v2129
      %v2262 = vunpack.c.l.b16 %v2130
      %v2263 = vunpack.c.l.b16 %v2131
      %v2264 = vunpack.c.l.b16 %v2132
      %v2265 = vunpack.c.l.b16 %v2133
      %v2266 = vunpack.c.l.b16 %v2134
      %v2267 = vunpack.c.l.b16 %v2135
      %v2268 = vunpack.c.l.b16 %v2136
      %v2269 = vunpack.c.l.b16 %v2137
      %v2270 = vunpack.c.l.b16 %v2138
      %v2271 = vunpack.c.l.b16 %v2139
      %v2272 = vunpack.c.l.b16 %v2140
      %v2273 = vunpack.c.l.b16 %v2141
      %v2274 = vunpack.c.l.b16 %v2142
      %v2275 = vunpack.c.l.b16 %v2143
      %v2276 = vunpack.c.l.b16 %v2144
      %v2277 = vunpack.c.l.b16 %v2145
      %v2278 = vunpack.c.l.b16 %v2146
      %v2279 = vunpack.c.l.b16 %v2147
      %v2280 = vunpack.c.l.b16 %v2148
      %v2281 = vunpack.c.l.b16 %v2149
      %v2282 = vunpack.c.l.b16 %v2150
      %v2283 = vunpack.c.l.b16 %v2151
      %v2284 = vunpack.c.l.b16 %v2152
      %v2285 = vpack.c.b16 %v2222, %v2221
      %v2286 = vpack.c.b16 %v2224, %v2223
      %v2287 = vpack.c.b16 %v2226, %v2225
      %v2288 = vpack.c.b16 %v2228, %v2227
      %v2289 = vpack.c.b16 %v2230, %v2229
      %v2290 = vpack.c.b16 %v2232, %v2231
      %v2291 = vpack.c.b16 %v2234, %v2233
      %v2292 = vpack.c.b16 %v2236, %v2235
      %v2293 = vpack.c.b16 %v2238, %v2237
      %v2294 = vpack.c.b16 %v2240, %v2239
      %v2295 = vpack.c.b16 %v2242, %v2241
      %v2296 = vpack.c.b16 %v2244, %v2243
      %v2297 = vpack.c.b16 %v2246, %v2245
      %v2298 = vpack.c.b16 %v2248, %v2247
      %v2299 = vpack.c.b16 %v2250, %v2249
      %v2300 = vpack.c.b16 %v2252, %v2251
      %v2301 = vpack.c.b16 %v2254, %v2253
      %v2302 = vpack.c.b16 %v2256, %v2255
      %v2303 = vpack.c.b16 %v2258, %v2257
      %v2304 = vpack.c.b16 %v2260, %v2259
      %v2305 = vpack.c.b16 %v2262, %v2261
      %v2306 = vpack.c.b16 %v2264, %v2263
      %v2307 = vpack.c.b16 %v2266, %v2265
      %v2308 = vpack.c.b16 %v2268, %v2267
      %v2309 = vpack.c.b16 %v2270, %v2269
      %v2310 = vpack.c.b16 %v2272, %v2271
      %v2311 = vpack.c.b16 %v2274, %v2273
      %v2312 = vpack.c.b16 %v2276, %v2275
      %v2313 = vpack.c.b16 %v2278, %v2277
      %v2314 = vpack.c.b16 %v2280, %v2279
      %v2315 = vpack.c.b16 %v2282, %v2281
      %v2316 = vpack.c.b16 %v2284, %v2283
      %2349 = vmatprep.subr.bf16.mxu0 0
      %2350 = vmatpush1.bf16.msra.mxu0 %v2292
      %2351 = vmatprep.subr.bf16.mxu0 0
      %2352 = vmatpush1.bf16.msra.mxu0 %v2291
      %2353 = vmatprep.subr.bf16.mxu0 0
      %2354 = vmatpush1.bf16.msra.mxu0 %v2290
      %2355 = vmatprep.subr.bf16.mxu0 0
      %2356 = vmatpush1.bf16.msra.mxu0 %v2289
      %2357 = vmatprep.subr.bf16.mxu0 0
      %2358 = vmatpush1.bf16.msra.mxu0 %v2288
      %2359 = vmatprep.subr.bf16.mxu0 0
      %2360 = vmatpush1.bf16.msra.mxu0 %v2287
      %2361 = vmatprep.subr.bf16.mxu0 0
      %2362 = vmatpush1.bf16.msra.mxu0 %v2286
      %2363 = vmatprep.subr.bf16.mxu0 0
      %2364 = vmatpush1.bf16.msra.mxu0 %v2285
      %2365 = vmatprep.subr.bf16.mxu0 0
      %2366 = vmatpush2.bf16.msra.mxu0 %v2300
      %2367 = vmatprep.subr.bf16.mxu0 0
      %2368 = vmatpush2.bf16.msra.mxu0 %v2299
      %2369 = vmatprep.subr.bf16.mxu0 0
      %2370 = vmatpush2.bf16.msra.mxu0 %v2298
      %2371 = vmatprep.subr.bf16.mxu0 0
      %2372 = vmatpush2.bf16.msra.mxu0 %v2297
      %2373 = vmatprep.subr.bf16.mxu0 0
      %2374 = vmatpush2.bf16.msra.mxu0 %v2296
      %2375 = vmatprep.subr.bf16.mxu0 0
      %2376 = vmatpush2.bf16.msra.mxu0 %v2295
      %2377 = vmatprep.subr.bf16.mxu0 0
      %2378 = vmatpush2.bf16.msra.mxu0 %v2294
      %2379 = vmatprep.subr.bf16.mxu0 0
      %2380 = vmatpush2.bf16.msra.mxu0 %v2293
      %2381 = vmatprep.mubr.bf16.mxu0 %v2078
      %2382 = vmatmul.mubr.bf16.gmra.mxu0 %v2077
      %v2383 = vpop.f32.mrf.mxu0
      %v2384 = vadd.f32 %v2156, %v2383
      %v2385 = vpop.f32.mrf.mxu0
      %v2386 = vpop.f32.mrf.mxu0
      %v2387 = vadd.f32 %v2156, %v2386
      %v2388 = vpop.f32.mrf.mxu0
      %2389 = vmatprep.mubr.bf16.mxu0 %v2082
      %2390 = vmatmul.mubr.bf16.gmra.mxu0 %v2081
      %v2391 = vpop.f32.mrf.mxu0
      %v2392 = vadd.f32 %v2156, %v2391
      %v2393 = vpop.f32.mrf.mxu0
      %v2394 = vpop.f32.mrf.mxu0
      %v2395 = vadd.f32 %v2156, %v2394
      %v2396 = vpop.f32.mrf.mxu0
      %2397 = vmatprep.mubr.bf16.mxu0 %v2086
      %2398 = vmatmul.mubr.bf16.gmra.mxu0 %v2085
      %v2399 = vpop.f32.mrf.mxu0
      %v2400 = vadd.f32 %v2156, %v2399
      %v2401 = vpop.f32.mrf.mxu0
      %v2402 = vpop.f32.mrf.mxu0
      %v2403 = vadd.f32 %v2156, %v2402
      %v2404 = vpop.f32.mrf.mxu0
      %2405 = vdwg.mxu0
      %2406 = vmatprep.subr.bf16.mxu0 0
      %2407 = vmatpush1.bf16.msra.mxu0 %v2308
      %2408 = vmatprep.subr.bf16.mxu0 0
      %2409 = vmatpush1.bf16.msra.mxu0 %v2307
      %2410 = vmatprep.subr.bf16.mxu0 0
      %2411 = vmatpush1.bf16.msra.mxu0 %v2306
      %2412 = vmatprep.subr.bf16.mxu0 0
      %2413 = vmatpush1.bf16.msra.mxu0 %v2305
      %2414 = vmatprep.subr.bf16.mxu0 0
      %2415 = vmatpush1.bf16.msra.mxu0 %v2304
      %2416 = vmatprep.subr.bf16.mxu0 0
      %2417 = vmatpush1.bf16.msra.mxu0 %v2303
      %2418 = vmatprep.subr.bf16.mxu0 0
      %2419 = vmatpush1.bf16.msra.mxu0 %v2302
      %2420 = vmatprep.subr.bf16.mxu0 0
      %2421 = vmatpush1.bf16.msra.mxu0 %v2301
      %2422 = vmatprep.subr.bf16.mxu0 0
      %2423 = vmatpush2.bf16.msra.mxu0 %v2316
      %2424 = vmatprep.subr.bf16.mxu0 0
      %2425 = vmatpush2.bf16.msra.mxu0 %v2315
      %2426 = vmatprep.subr.bf16.mxu0 0
      %2427 = vmatpush2.bf16.msra.mxu0 %v2314
      %2428 = vmatprep.subr.bf16.mxu0 0
      %2429 = vmatpush2.bf16.msra.mxu0 %v2313
      %2430 = vmatprep.subr.bf16.mxu0 0
      %2431 = vmatpush2.bf16.msra.mxu0 %v2312
      %2432 = vmatprep.subr.bf16.mxu0 0
      %2433 = vmatpush2.bf16.msra.mxu0 %v2311
      %2434 = vmatprep.subr.bf16.mxu0 0
      %2435 = vmatpush2.bf16.msra.mxu0 %v2310
      %2436 = vmatprep.subr.bf16.mxu0 0
      %2437 = vmatpush2.bf16.msra.mxu0 %v2309
      %2438 = vmatprep.mubr.bf16.mxu0 %v2080
      %2439 = vmatmul.mubr.bf16.gmra.mxu0 %v2079
      %v2440 = vpop.f32.mrf.mxu0
      %v2441 = vadd.f32 %v2384, %v2440
      %v2442 = vpop.f32.mrf.mxu0
      %v2443 = vpop.f32.mrf.mxu0
      %v2444 = vadd.f32 %v2387, %v2443
      %v2445 = vpop.f32.mrf.mxu0
      %2446 = vmatprep.mubr.bf16.mxu0 %v2084
      %2447 = vmatmul.mubr.bf16.gmra.mxu0 %v2083
      %v2448 = vpop.f32.mrf.mxu0
      %v2449 = vadd.f32 %v2392, %v2448
      %v2450 = vpop.f32.mrf.mxu0
      %v2451 = vpop.f32.mrf.mxu0
      %v2452 = vadd.f32 %v2395, %v2451
      %v2453 = vpop.f32.mrf.mxu0
      %2454 = vmatprep.mubr.bf16.mxu0 %v2088
      %2455 = vmatmul.mubr.bf16.gmra.mxu0 %v2087
      %v2456 = vpop.f32.mrf.mxu0
      %v2457 = vadd.f32 %v2400, %v2456
      %v2458 = vpop.f32.mrf.mxu0
      %v2459 = vpop.f32.mrf.mxu0
      %v2460 = vadd.f32 %v2403, %v2459
      %v2461 = vpop.f32.mrf.mxu0
      %2462 = vdwg.mxu0
      %v2463 = vadd.f32 %v1518, %v2441
      %v2464 = vadd.f32 %v1519, %v2444
      %v2465 = vadd.f32 %v1520, %v2449
      %v2466 = vadd.f32 %v1521, %v2452
      %v2467 = vadd.f32 %v1522, %v2457
      %v2468 = vadd.f32 %v1523, %v2460
      %2469 = vadd.xlane.f32.xlu0 %v2463
      %v2470 = vpop.xlane.xlu0 %2469
      %2471 = vadd.xlane.f32.xlu0 %v2464
      %v2472 = vpop.xlane.xlu0 %2471
      %2473 = vadd.xlane.f32.xlu0 %v2465
      %v2474 = vpop.xlane.xlu0 %2473
      %2475 = vadd.xlane.f32.xlu0 %v2466
      %v2476 = vpop.xlane.xlu0 %2475
      %2477 = vadd.xlane.f32.xlu0 %v2467
      %v2478 = vpop.xlane.xlu0 %2477
      %2479 = vadd.xlane.f32.xlu0 %v2468
      %v2480 = vpop.xlane.xlu0 %2479
      %v2481 = vmul.f32 %v2470, %v1449
      %v2482 = vmul.f32 %v2472, %v1449
      %v2483 = vmul.f32 %v2474, %v1449
      %v2484 = vmul.f32 %v2476, %v1449
      %v2485 = vmul.f32 %v2478, %v1449
      %v2486 = vmul.f32 %v2480, %v1449
      %v2487 = vsub.f32 %v2463, %v2481
      %v2488 = vsub.f32 %v2464, %v2482
      %v2489 = vsub.f32 %v2465, %v2483
      %v2490 = vsub.f32 %v2466, %v2484
      %v2491 = vsub.f32 %v2467, %v2485
      %v2492 = vsub.f32 %v2468, %v2486
      %v2493 = vmul.f32 %v2487, %v2487
      %v2494 = vmul.f32 %v2488, %v2488
      %v2495 = vmul.f32 %v2489, %v2489
      %v2496 = vmul.f32 %v2490, %v2490
      %v2497 = vmul.f32 %v2491, %v2491
      %v2498 = vmul.f32 %v2492, %v2492
      %2499 = vadd.xlane.f32.xlu0 %v2493
      %v2500 = vpop.xlane.xlu0 %2499
      %2501 = vadd.xlane.f32.xlu0 %v2494
      %v2502 = vpop.xlane.xlu0 %2501
      %2503 = vadd.xlane.f32.xlu0 %v2495
      %v2504 = vpop.xlane.xlu0 %2503
      %2505 = vadd.xlane.f32.xlu0 %v2496
      %v2506 = vpop.xlane.xlu0 %2505
      %2507 = vadd.xlane.f32.xlu0 %v2497
      %v2508 = vpop.xlane.xlu0 %2507
      %2509 = vadd.xlane.f32.xlu0 %v2498
      %v2510 = vpop.xlane.xlu0 %2509
      %v2511 = vmul.f32 %v2500, %v1449
      %v2512 = vmul.f32 %v2502, %v1449
      %v2513 = vmul.f32 %v2504, %v1449
      %v2514 = vmul.f32 %v2506, %v1449
      %v2515 = vmul.f32 %v2508, %v1449
      %v2516 = vmul.f32 %v2510, %v1449
      %v2517 = vadd.f32 %v2511, 1e-05
      %v2518 = vadd.f32 %v2512, 1e-05
      %v2519 = vadd.f32 %v2513, 1e-05
      %v2520 = vadd.f32 %v2514, 1e-05
      %v2521 = vadd.f32 %v2515, 1e-05
      %v2522 = vadd.f32 %v2516, 1e-05
      %v2523 = vrsqrt.pop %v2517
      %v2524 = vrsqrt.pop %v2518
      %v2525 = vrsqrt.pop %v2519
      %v2526 = vrsqrt.pop %v2520
      %v2527 = vrsqrt.pop %v2521
      %v2528 = vrsqrt.pop %v2522
      %v2529 = vmul.f32 %v2487, %v2523
      %v2530 = vmul.f32 %v2488, %v2524
      %v2531 = vmul.f32 %v2489, %v2525
      %v2532 = vmul.f32 %v2490, %v2526
      %v2533 = vmul.f32 %v2491, %v2527
      %v2534 = vmul.f32 %v2492, %v2528
      %v2535 = vlaneseq
      %v2536 = vshrl.u32 %v2535, 7
      %v2537 = vsub.s32 6, %v2536
      %v2538 = vrot.slane %v261, %v2537
      %v2539 = vmul.f32 %v2529, %v2538
      %v2540 = vmul.f32 %v2530, %v2538
      %v2541 = vmul.f32 %v2531, %v2538
      %v2542 = vmul.f32 %v2532, %v2538
      %v2543 = vmul.f32 %v2533, %v2538
      %v2544 = vmul.f32 %v2534, %v2538
      %v2545 = vlaneseq
      %v2546 = vshrl.u32 %v2545, 7
      %v2547 = vsub.s32 7, %v2546
      %v2548 = vrot.slane %v261, %v2547
      %v2549 = vadd.f32 %v2539, %v2548
      %v2550 = vadd.f32 %v2540, %v2548
      %v2551 = vadd.f32 %v2541, %v2548
      %v2552 = vadd.f32 %v2542, %v2548
      %v2553 = vadd.f32 %v2543, %v2548
      %v2554 = vadd.f32 %v2544, %v2548
      %2555 = vst [vmem:[%s258] sm:$0xff] %v2549
      %2556 = vst [vmem:[%s258 + $0x8] sm:$0xff] %v2550
      %2557 = vst [vmem:[%s258 + $0x10] sm:$0xff] %v2551
      %2558 = vst [vmem:[%s258 + $0x18] sm:$0xff] %v2552
      %2559 = vst [vmem:[%s258 + $0x20] sm:$0xff] %v2553
      %2560 = vst [vmem:[%s258 + $0x28] sm:$0xff] %v2554
      %s2561 = smul.u32 2, %s17
      %p2562 = scmp.lt.s32.totalorder %s2561, 3
      %s2563 = scalar_select %p2562, %s2561, 3
      %s2564 = smul.addr %s2563, 3
      %s2565 = smul.addr %s2564, 8
      %s2566 = scalar_lea.vmem %s6, %s2565
      // Predicated region
      $region45: #{reinformer_forward.5} parent=43 // pred_check
        %p2567 = pneg %p166
      $region46: #{reinformer_forward.5} parent=43 // pred_check_branch
        %2569 = sbr.rel (%p2567) target = $region48
      $region47: #{reinformer_forward.5} parent=43 // pred_region
        %s2570 = smul.u32 2, %s17
      $region48: #{reinformer_forward.5} parent=43 // pred_fallthru
        _
    $region44: #{reinformer_forward.5} parent=5 // pred_fallthru
      _
    %p2571 = scmp.le.s32.totalorder 2, %s12
    // Predicated region
    $region49: #{reinformer_forward.5} parent=5 // pred_check
      %p2572 = pneg %p2571
    $region50: #{reinformer_forward.5} parent=5 // pred_check_branch
      %2574 = sbr.rel (%p2572) target = $region52
    $region51: #{reinformer_forward.5} parent=5 // pred_region
      %s2575 = ssub.s32 %s12, 2
      // Predicated region
      $region53: #{reinformer_forward.5} parent=51 // pred_check
        %p2576 = pneg %p172
      $region54: #{reinformer_forward.5} parent=51 // pred_check_branch
        %2578 = sbr.rel (%p2576) target = $region56
      $region55: #{reinformer_forward.5} parent=51 // pred_region
        %s2579 = smul.u32 2, %s18
        %p2580 = scmp.lt.s32.totalorder %s2579, 3
        %s2581 = scalar_select %p2580, %s2579, 3
        %s2582 = smul.addr %s2581, 3
        %s2583 = smul.addr %s2582, 8
        %s2584 = scalar_lea.vmem %s6, %s2583
      $region56: #{reinformer_forward.5} parent=51 // pred_fallthru
        _
    $region52: #{reinformer_forward.5} parent=5 // pred_fallthru
      _
  $region6: #{reinformer_forward.5} parent=0 // loop_footer
    %s16 = sadd.s32 1, %s12
  $region7: #{reinformer_forward.5} parent=0 // loop_footer_branch
    %11 = sbr.rel target = $region3
  $region8: #{reinformer_forward.5} parent=0 // loop_exit
    _

// kernel: reinformer_forward.7
$region0: #{reinformer_forward.7}
  #allocation0 [shape = 'u32[]', space=smem, size = 0x4, offset = 0x4, fixed_abs, tag = 'smem constant byte address 0x4 - core index']
  #allocation1 [shape = 'u32[144,128]{1,0:T(1,128)}', space=vmem, size = 0x12000, scoped, tag = 'internal scratch']
  %s0 = inlined_call_operand.vmem [shape: f32[4,24,128], index: 0, kind: input, shape index: {}]
  %s1 = inlined_call_operand.vmem [shape: bf16[128,128], index: 1, kind: input, shape index: {}]
  %s2 = inlined_call_operand.vmem [shape: f32[1,128], index: 2, kind: input, shape index: {}]
  %s3 = inlined_call_operand.vmem [shape: f32[4,24,128], index: 3, kind: output, shape index: {}]
  %s4 = sld [smem:[#allocation0]]
  $region45: #{reinformer_forward.7} parent=0
    _
  %s6 = ssub.s32 1, %s4
  %s7 = scalar_select 0, %s6, %s4
  loop: start=0, step=1, limit=4
  $region2: #{reinformer_forward.7} parent=0 // loop_pre_header
    _
  $region3: #{reinformer_forward.7} parent=0 // loop_header
    %s9 = sphi 0, %s13
    %p10 = scmp.ge.s32.totalorder %s9, 4
    %s19 = sphi 0, %s21
    %s22 = sphi 0, %s19
    %s23 = sphi 0, %s22
    %s39 = sphi 0, %s23
    %s43 = sphi 0, %s43
    %s45 = sphi 0, %s43
    %s46 = sphi 0, %s45
    %s60 = sphi 0, %s46
    %s64 = sphi 0, %s64
    %s66 = sphi 0, %s64
    %s67 = sphi 0, %s66
    %s81 = sphi 0, %s67
    %s87 = sphi 0, %s89
    %s90 = sphi 0, %s87
    %s91 = sphi 0, %s90
    %s107 = sphi 0, %s91
  $region4: #{reinformer_forward.7} parent=0 // loop_header_branch
    %12 = sbr.rel (%p10) target = $region8
  $region5: #{reinformer_forward.7} parent=0 // loop_body
    %s14 = ssub.s32 %s9, 1
    %s15 = ssub.s32 %s9, 2
    %s16 = sadd.s32 %s9, 1
    %s17 = ssub.s32 %s9, %s16
    %p18 = scmp.eq.s32.totalorder %s17, 0
    %s20 = sadd.s32 %s19, 1
    %s21 = scalar_select %p18, %s19, %s20
    %p24 = pneg %p18
    %p25 = scmp.eq.s32.totalorder %s9, 1
    %p26 = por %p24, %p25
    %p27 = scmp.ne.s32.totalorder %s19, %s22
    %p28 = scmp.eq.s32.totalorder %s9, 0
    %p29 = por %p27, %p28
    %p30 = scmp.ne.s32.totalorder %s19, %s22
    %p31 = scmp.eq.s32.totalorder %s14, 1
    %p32 = por %p30, %p31
    %p33 = scmp.ne.s32.totalorder %s22, %s23
    %p34 = scmp.eq.s32.totalorder %s14, 0
    %p35 = por %p33, %p34
    %p36 = scmp.ne.s32.totalorder %s22, %s23
    %p37 = scmp.eq.s32.totalorder %s15, 1
    %p38 = por %p36, %p37
    %p40 = scmp.ne.s32.totalorder %s23, %s39
    %p41 = scmp.eq.s32.totalorder %s15, 0
    %p42 = por %p40, %p41
    %s44 = sadd.s32 %s43, 1
    %p47 = scmp.eq.s32.totalorder %s9, 1
    %p48 = scmp.ne.s32.totalorder %s43, %s45
    %p49 = scmp.eq.s32.totalorder %s9, 0
    %p50 = por %p48, %p49
    %p51 = scmp.ne.s32.totalorder %s43, %s45
    %p52 = scmp.eq.s32.totalorder %s14, 1
    %p53 = por %p51, %p52
    %p54 = scmp.ne.s32.totalorder %s45, %s46
    %p55 = scmp.eq.s32.totalorder %s14, 0
    %p56 = por %p54, %p55
    %p57 = scmp.ne.s32.totalorder %s45, %s46
    %p58 = scmp.eq.s32.totalorder %s15, 1
    %p59 = por %p57, %p58
    %p61 = scmp.ne.s32.totalorder %s46, %s60
    %p62 = scmp.eq.s32.totalorder %s15, 0
    %p63 = por %p61, %p62
    %s65 = sadd.s32 %s64, 1
    %p68 = scmp.eq.s32.totalorder %s9, 1
    %p69 = scmp.ne.s32.totalorder %s64, %s66
    %p70 = scmp.eq.s32.totalorder %s9, 0
    %p71 = por %p69, %p70
    %p72 = scmp.ne.s32.totalorder %s64, %s66
    %p73 = scmp.eq.s32.totalorder %s14, 1
    %p74 = por %p72, %p73
    %p75 = scmp.ne.s32.totalorder %s66, %s67
    %p76 = scmp.eq.s32.totalorder %s14, 0
    %p77 = por %p75, %p76
    %p78 = scmp.ne.s32.totalorder %s66, %s67
    %p79 = scmp.eq.s32.totalorder %s15, 1
    %p80 = por %p78, %p79
    %p82 = scmp.ne.s32.totalorder %s67, %s81
    %p83 = scmp.eq.s32.totalorder %s15, 0
    %p84 = por %p82, %p83
    %s85 = ssub.s32 %s9, %s16
    %p86 = scmp.eq.s32.totalorder %s85, 0
    %s88 = sadd.s32 %s87, 1
    %s89 = scalar_select %p86, %s87, %s88
    %p92 = pneg %p86
    %p93 = scmp.eq.s32.totalorder %s9, 1
    %p94 = por %p92, %p93
    %p95 = scmp.ne.s32.totalorder %s87, %s90
    %p96 = scmp.eq.s32.totalorder %s9, 0
    %p97 = por %p95, %p96
    %p98 = scmp.ne.s32.totalorder %s87, %s90
    %p99 = scmp.eq.s32.totalorder %s14, 1
    %p100 = por %p98, %p99
    %p101 = scmp.ne.s32.totalorder %s90, %s91
    %p102 = scmp.eq.s32.totalorder %s14, 0
    %p103 = por %p101, %p102
    %p104 = scmp.ne.s32.totalorder %s90, %s91
    %p105 = scmp.eq.s32.totalorder %s15, 1
    %p106 = por %p104, %p105
    %p108 = scmp.ne.s32.totalorder %s91, %s107
    %p109 = scmp.eq.s32.totalorder %s15, 0
    %p110 = por %p108, %p109
    %p111 = scmp.le.s32.totalorder 1, %s9
    %p112 = scmp.lt.s32.totalorder %s9, 3
    %p113 = pnand %p111, %p112
    %p114 = pneg %p113
    // Predicated region
    $region9: #{reinformer_forward.7} parent=5 // pred_check
      _
    $region10: #{reinformer_forward.7} parent=5 // pred_check_branch
      %116 = sbr.rel (%p113) target = $region12
    $region11: #{reinformer_forward.7} parent=5 // pred_region
      %s117 = ssub.s32 %s9, 1
      // Predicated region
      $region13: #{reinformer_forward.7} parent=11 // pred_check
        %p118 = pneg %p56
      $region14: #{reinformer_forward.7} parent=11 // pred_check_branch
        %120 = sbr.rel (%p118) target = $region16
      $region15: #{reinformer_forward.7} parent=11 // pred_region
        _
      $region16: #{reinformer_forward.7} parent=11 // pred_fallthru
        _
      // Predicated region
      $region17: #{reinformer_forward.7} parent=11 // pred_check
        %p121 = pneg %p77
      $region18: #{reinformer_forward.7} parent=11 // pred_check_branch
        %123 = sbr.rel (%p121) target = $region20
      $region19: #{reinformer_forward.7} parent=11 // pred_region
        _
      $region20: #{reinformer_forward.7} parent=11 // pred_fallthru
        _
    $region12: #{reinformer_forward.7} parent=5 // pred_fallthru
      _
    %p124 = scmp.lt.s32.totalorder %s9, 2
    // Predicated region
    $region21: #{reinformer_forward.7} parent=5 // pred_check
      %p125 = pneg %p124
    $region22: #{reinformer_forward.7} parent=5 // pred_check_branch
      %127 = sbr.rel (%p125) target = $region24
    $region23: #{reinformer_forward.7} parent=5 // pred_region
      // Predicated region
      $region25: #{reinformer_forward.7} parent=23 // pred_check
        %p128 = pneg %p29
      $region26: #{reinformer_forward.7} parent=23 // pred_check_branch
        %130 = sbr.rel (%p128) target = $region28
      $region27: #{reinformer_forward.7} parent=23 // pred_region
        %s131 = smul.u32 2, %s9
        %p132 = scmp.lt.s32.totalorder %s131, 3
        %s133 = scalar_select %p132, %s131, 3
        %s134 = smul.addr %s133, 3
        %s135 = smul.addr %s134, 8
        %s136 = scalar_lea.vmem %s0, %s135
        %s137 = smul.u32 2, %s9
      $region28: #{reinformer_forward.7} parent=23 // pred_fallthru
        _
    $region24: #{reinformer_forward.7} parent=5 // pred_fallthru
      _
    %p138 = scmp.le.s32.totalorder 1, %s9
    %p139 = scmp.lt.s32.totalorder %s9, 3
    %p140 = pnand %p138, %p139
    %p141 = pneg %p140
    // Predicated region
    $region29: #{reinformer_forward.7} parent=5 // pred_check
      _
    $region30: #{reinformer_forward.7} parent=5 // pred_check_branch
      %143 = sbr.rel (%p140) target = $region32
    $region31: #{reinformer_forward.7} parent=5 // pred_region
      %s144 = ssub.s32 %s9, 1
      %s145 = smul.u32 2, %s14
      %p146 = scmp.lt.s32.totalorder %s145, 3
      %s147 = scalar_select %p146, %s145, 3
      %s148 = smul.addr %s147, 3
      %s149 = smul.addr %s148, 8
      %s150 = scalar_lea.vmem %s0, %s149
      %p151 = pneg %p35
      %p152 = pneg %p32
      %p153 = pneg %p56
      %p154 = pneg %p53
      %p155 = pneg %p77
      %p156 = pneg %p74
      %p157 = pneg %p103
      %p158 = pneg %p100
      %s159 = smul.u32 2, %s14
      %p160 = scmp.lt.s32.totalorder %s159, 3
      %s161 = scalar_select %p160, %s159, 3
      %s162 = smul.addr %s161, 3
      %s163 = smul.addr %s162, 8
      %s164 = scalar_lea.vmem %s3, %s163
      %s165 = smul.u32 2, %s14
      %p166 = scmp.lt.s32.totalorder %s165, 3
      %s167 = scalar_select %p166, %s165, 3
      %s168 = smul.addr %s167, 3
      %s169 = smul.addr %s168, 8
      %s170 = scalar_lea.vmem %s0, %s169
      %s171 = smul.u32 2, %s14
      %s172 = smul.u32 2, %s14
      %p173 = scmp.lt.s32.totalorder %s172, 3
      %s174 = scalar_select %p173, %s172, 3
      %s175 = smul.addr %s174, 3
      %s176 = smul.addr %s175, 8
      %s177 = scalar_lea.vmem %s3, %s176
      %s178 = smul.u32 2, %s14
      %v180 = vld [vmem:[%s170] sm:$0xff]
      %v181 = vld [vmem:[%s170 + $0x8] sm:$0xff]
      %v182 = vld [vmem:[%s170 + $0x10] sm:$0xff]
      %v183 = vld [vmem:[%s170 + $0x18] sm:$0xff]
      %v184 = vld [vmem:[%s170 + $0x20] sm:$0xff]
      %v185 = vld [vmem:[%s170 + $0x28] sm:$0xff]
      %v186 = vpack.c.bf16 %v181, %v180
      %v187 = vpack.c.bf16 %v183, %v182
      %v188 = vpack.c.bf16 %v185, %v184
      %v189 = vld [vmem:[%s1] sm:$0xf]
      %v190 = vld [vmem:[%s1 + $0x4] sm:$0xf]
      %v191 = vld [vmem:[%s1 + $0x8] sm:$0xf]
      %v192 = vld [vmem:[%s1 + $0xc] sm:$0xf]
      %v193 = vld [vmem:[%s1 + $0x10] sm:$0xf]
      %v194 = vld [vmem:[%s1 + $0x14] sm:$0xf]
      %v195 = vld [vmem:[%s1 + $0x18] sm:$0xf]
      %v196 = vld [vmem:[%s1 + $0x1c] sm:$0xf]
      %v197 = vld [vmem:[%s1 + $0x20] sm:$0xf]
      %v198 = vld [vmem:[%s1 + $0x24] sm:$0xf]
      %v199 = vld [vmem:[%s1 + $0x28] sm:$0xf]
      %v200 = vld [vmem:[%s1 + $0x2c] sm:$0xf]
      %v201 = vld [vmem:[%s1 + $0x30] sm:$0xf]
      %v202 = vld [vmem:[%s1 + $0x34] sm:$0xf]
      %v203 = vld [vmem:[%s1 + $0x38] sm:$0xf]
      %v204 = vld [vmem:[%s1 + $0x3c] sm:$0xf]
      %v205 = vld [vmem:[%s2] sm:$0x1]
      %v207 = vlaneseq
      %v208 = vshrl.u32 %v207, 7
      %v209 = vsub.s32 0, %v208
      %v210 = vrot.slane %v205, %v209
      %v228 = vunpack.c.l.b16 %v189
      %v229 = vunpack.c.l.b16 %v190
      %v230 = vunpack.c.l.b16 %v191
      %v231 = vunpack.c.l.b16 %v192
      %v232 = vunpack.c.l.b16 %v193
      %v233 = vunpack.c.l.b16 %v194
      %v234 = vunpack.c.l.b16 %v195
      %v235 = vunpack.c.l.b16 %v196
      %v236 = vunpack.c.l.b16 %v197
      %v237 = vunpack.c.l.b16 %v198
      %v238 = vunpack.c.l.b16 %v199
      %v239 = vunpack.c.l.b16 %v200
      %v240 = vunpack.c.l.b16 %v201
      %v241 = vunpack.c.l.b16 %v202
      %v242 = vunpack.c.l.b16 %v203
      %v243 = vunpack.c.l.b16 %v204
      %v244 = vpack.c.b16 %v229, %v228
      %v245 = vpack.c.b16 %v231, %v230
      %v246 = vpack.c.b16 %v233, %v232
      %v247 = vpack.c.b16 %v235, %v234
      %v248 = vpack.c.b16 %v237, %v236
      %v249 = vpack.c.b16 %v239, %v238
      %v250 = vpack.c.b16 %v241, %v240
      %v251 = vpack.c.b16 %v243, %v242
      %260 = vmatprep.subr.bf16.mxu0 0
      %261 = vmatpush1.bf16.msra.mxu0 %v251
      %262 = vmatprep.subr.bf16.mxu0 0
      %263 = vmatpush1.bf16.msra.mxu0 %v250
      %264 = vmatprep.subr.bf16.mxu0 0
      %265 = vmatpush1.bf16.msra.mxu0 %v249
      %266 = vmatprep.subr.bf16.mxu0 0
      %267 = vmatpush1.bf16.msra.mxu0 %v248
      %268 = vmatprep.subr.bf16.mxu0 0
      %269 = vmatpush1.bf16.msra.mxu0 %v247
      %270 = vmatprep.subr.bf16.mxu0 0
      %271 = vmatpush1.bf16.msra.mxu0 %v246
      %272 = vmatprep.subr.bf16.mxu0 0
      %273 = vmatpush1.bf16.msra.mxu0 %v245
      %274 = vmatprep.subr.bf16.mxu0 0
      %275 = vmatpush1.bf16.msra.mxu0 %v244
      %276 = vmatprep.subr.bf16.mxu0 0
      %277 = vmatpush2.bf16.msra.mxu0 0
      %278 = vmatprep.subr.bf16.mxu0 0
      %279 = vmatpush2.bf16.msra.mxu0 0
      %280 = vmatprep.subr.bf16.mxu0 0
      %281 = vmatpush2.bf16.msra.mxu0 0
      %282 = vmatprep.subr.bf16.mxu0 0
      %283 = vmatpush2.bf16.msra.mxu0 0
      %284 = vmatprep.subr.bf16.mxu0 0
      %285 = vmatpush2.bf16.msra.mxu0 0
      %286 = vmatprep.subr.bf16.mxu0 0
      %287 = vmatpush2.bf16.msra.mxu0 0
      %288 = vmatprep.subr.bf16.mxu0 0
      %289 = vmatpush2.bf16.msra.mxu0 0
      %290 = vmatprep.subr.bf16.mxu0 0
      %291 = vmatpush2.bf16.msra.mxu0 0
      %292 = vmatprep.mubr.bf16.mxu0 0
      %293 = vmatmul.mubr.bf16.gmra.mxu0 %v186
      %v294 = vpop.f32.mrf.mxu0
      %v295 = vadd.f32 %v210, %v294
      %v296 = vpop.f32.mrf.mxu0
      %v297 = vpop.f32.mrf.mxu0
      %v298 = vadd.f32 %v210, %v297
      %v299 = vpop.f32.mrf.mxu0
      %300 = vmatprep.mubr.bf16.mxu0 0
      %301 = vmatmul.mubr.bf16.gmra.mxu0 %v187
      %v302 = vpop.f32.mrf.mxu0
      %v303 = vadd.f32 %v210, %v302
      %v304 = vpop.f32.mrf.mxu0
      %v305 = vpop.f32.mrf.mxu0
      %v306 = vadd.f32 %v210, %v305
      %v307 = vpop.f32.mrf.mxu0
      %308 = vmatprep.mubr.bf16.mxu0 0
      %309 = vmatmul.mubr.bf16.gmra.mxu0 %v188
      %v310 = vpop.f32.mrf.mxu0
      %v311 = vadd.f32 %v210, %v310
      %v312 = vpop.f32.mrf.mxu0
      %v313 = vpop.f32.mrf.mxu0
      %v314 = vadd.f32 %v210, %v313
      %v315 = vpop.f32.mrf.mxu0
      %316 = vdwg.mxu0
      %317 = vst [vmem:[%s177] sm:$0xff] %v295
      %318 = vst [vmem:[%s177 + $0x8] sm:$0xff] %v298
      %319 = vst [vmem:[%s177 + $0x10] sm:$0xff] %v303
      %320 = vst [vmem:[%s177 + $0x18] sm:$0xff] %v306
      %321 = vst [vmem:[%s177 + $0x20] sm:$0xff] %v311
      %322 = vst [vmem:[%s177 + $0x28] sm:$0xff] %v314
      %s323 = smul.u32 2, %s14
      %p324 = scmp.lt.s32.totalorder %s323, 3
      %s325 = scalar_select %p324, %s323, 3
      %s326 = smul.addr %s325, 3
      %s327 = smul.addr %s326, 8
      %s328 = scalar_lea.vmem %s3, %s327
      // Predicated region
      $region33: #{reinformer_forward.7} parent=31 // pred_check
        %p329 = pneg %p100
      $region34: #{reinformer_forward.7} parent=31 // pred_check_branch
        %331 = sbr.rel (%p329) target = $region36
      $region35: #{reinformer_forward.7} parent=31 // pred_region
        %s332 = smul.u32 2, %s14
      $region36: #{reinformer_forward.7} parent=31 // pred_fallthru
        _
    $region32: #{reinformer_forward.7} parent=5 // pred_fallthru
      _
    %p333 = scmp.le.s32.totalorder 2, %s9
    // Predicated region
    $region37: #{reinformer_forward.7} parent=5 // pred_check
      %p334 = pneg %p333
    $region38: #{reinformer_forward.7} parent=5 // pred_check_branch
      %336 = sbr.rel (%p334) target = $region40
    $region39: #{reinformer_forward.7} parent=5 // pred_region
      %s337 = ssub.s32 %s9, 2
      // Predicated region
      $region41: #{reinformer_forward.7} parent=39 // pred_check
        %p338 = pneg %p106
      $region42: #{reinformer_forward.7} parent=39 // pred_check_branch
        %340 = sbr.rel (%p338) target = $region44
      $region43: #{reinformer_forward.7} parent=39 // pred_region
        %s341 = smul.u32 2, %s15
        %p342 = scmp.lt.s32.totalorder %s341, 3
        %s343 = scalar_select %p342, %s341, 3
        %s344 = smul.addr %s343, 3
        %s345 = smul.addr %s344, 8
        %s346 = scalar_lea.vmem %s3, %s345
      $region44: #{reinformer_forward.7} parent=39 // pred_fallthru
        _
    $region40: #{reinformer_forward.7} parent=5 // pred_fallthru
      _
  $region6: #{reinformer_forward.7} parent=0 // loop_footer
    %s13 = sadd.s32 1, %s9
  $region7: #{reinformer_forward.7} parent=0 // loop_footer_branch
    %8 = sbr.rel target = $region3
  $region8: #{reinformer_forward.7} parent=0 // loop_exit
    _

// kernel: reinformer_forward.4
$region0: #{reinformer_forward.4}
  #allocation0 [shape = 'u32[]', space=smem, size = 0x4, offset = 0x4, fixed_abs, tag = 'smem constant byte address 0x4 - core index']
  #allocation1 [shape = 'u32[144,128]{1,0:T(1,128)}', space=vmem, size = 0x12000, scoped, tag = 'internal scratch']
  %s0 = inlined_call_operand.vmem [shape: f32[4,8,6], index: 0, kind: input, shape index: {}]
  %s1 = inlined_call_operand.vmem [shape: f32[4,8,3], index: 1, kind: input, shape index: {}]
  %s2 = inlined_call_operand.vmem [shape: f32[4,8,1], index: 2, kind: input, shape index: {}]
  %s3 = inlined_call_operand.vmem [shape: f32[4,8,128], index: 3, kind: input, shape index: {}]
  %s4 = inlined_call_operand.vmem [shape: bf16[6,128], index: 4, kind: input, shape index: {}]
  %s5 = inlined_call_operand.vmem [shape: bf16[3,128], index: 5, kind: input, shape index: {}]
  %s6 = inlined_call_operand.vmem [shape: f32[8,128], index: 6, kind: input, shape index: {}]
  %s7 = inlined_call_operand.vmem [shape: f32[4,8,3,128], index: 7, kind: output, shape index: {}]
  %s8 = sld [smem:[#allocation0]]
  $region61: #{reinformer_forward.4} parent=0
    _
  %s10 = ssub.s32 1, %s8
  %s11 = scalar_select 0, %s10, %s8
  loop: start=0, step=1, limit=4
  $region2: #{reinformer_forward.4} parent=0 // loop_pre_header
    _
  $region3: #{reinformer_forward.4} parent=0 // loop_header
    %s13 = sphi 0, %s17
    %p14 = scmp.ge.s32.totalorder %s13, 4
    %s23 = sphi 0, %s25
    %s26 = sphi 0, %s23
    %s27 = sphi 0, %s26
    %s43 = sphi 0, %s27
    %s49 = sphi 0, %s51
    %s52 = sphi 0, %s49
    %s53 = sphi 0, %s52
    %s69 = sphi 0, %s53
    %s75 = sphi 0, %s77
    %s78 = sphi 0, %s75
    %s79 = sphi 0, %s78
    %s95 = sphi 0, %s79
    %s101 = sphi 0, %s103
    %s104 = sphi 0, %s101
    %s105 = sphi 0, %s104
    %s121 = sphi 0, %s105
    %s125 = sphi 0, %s125
    %s127 = sphi 0, %s125
    %s128 = sphi 0, %s127
    %s142 = sphi 0, %s128
    %s146 = sphi 0, %s146
    %s148 = sphi 0, %s146
    %s149 = sphi 0, %s148
    %s163 = sphi 0, %s149
    %s167 = sphi 0, %s167
    %s169 = sphi 0, %s167
    %s170 = sphi 0, %s169
    %s184 = sphi 0, %s170
    %s190 = sphi 0, %s192
    %s193 = sphi 0, %s190
    %s194 = sphi 0, %s193
    %s210 = sphi 0, %s194
  $region4: #{reinformer_forward.4} parent=0 // loop_header_branch
    %16 = sbr.rel (%p14) target = $region8
  $region5: #{reinformer_forward.4} parent=0 // loop_body
    %s18 = ssub.s32 %s13, 1
    %s19 = ssub.s32 %s13, 2
    %s20 = sadd.s32 %s13, 1
    %s21 = ssub.s32 %s13, %s20
    %p22 = scmp.eq.s32.totalorder %s21, 0
    %s24 = sadd.s32 %s23, 1
    %s25 = scalar_select %p22, %s23, %s24
    %p28 = pneg %p22
    %p29 = scmp.eq.s32.totalorder %s13, 1
    %p30 = por %p28, %p29
    %p31 = scmp.ne.s32.totalorder %s23, %s26
    %p32 = scmp.eq.s32.totalorder %s13, 0
    %p33 = por %p31, %p32
    %p34 = scmp.ne.s32.totalorder %s23, %s26
    %p35 = scmp.eq.s32.totalorder %s18, 1
    %p36 = por %p34, %p35
    %p37 = scmp.ne.s32.totalorder %s26, %s27
    %p38 = scmp.eq.s32.totalorder %s18, 0
    %p39 = por %p37, %p38
    %p40 = scmp.ne.s32.totalorder %s26, %s27
    %p41 = scmp.eq.s32.totalorder %s19, 1
    %p42 = por %p40, %p41
    %p44 = scmp.ne.s32.totalorder %s27, %s43
    %p45 = scmp.eq.s32.totalorder %s19, 0
    %p46 = por %p44, %p45
    %s47 = ssub.s32 %s13, %s20
    %p48 = scmp.eq.s32.totalorder %s47, 0
    %s50 = sadd.s32 %s49, 1
    %s51 = scalar_select %p48, %s49, %s50
    %p54 = pneg %p48
    %p55 = scmp.eq.s32.totalorder %s13, 1
    %p56 = por %p54, %p55
    %p57 = scmp.ne.s32.totalorder %s49, %s52
    %p58 = scmp.eq.s32.totalorder %s13, 0
    %p59 = por %p57, %p58
    %p60 = scmp.ne.s32.totalorder %s49, %s52
    %p61 = scmp.eq.s32.totalorder %s18, 1
    %p62 = por %p60, %p61
    %p63 = scmp.ne.s32.totalorder %s52, %s53
    %p64 = scmp.eq.s32.totalorder %s18, 0
    %p65 = por %p63, %p64
    %p66 = scmp.ne.s32.totalorder %s52, %s53
    %p67 = scmp.eq.s32.totalorder %s19, 1
    %p68 = por %p66, %p67
    %p70 = scmp.ne.s32.totalorder %s53, %s69
    %p71 = scmp.eq.s32.totalorder %s19, 0
    %p72 = por %p70, %p71
    %s73 = ssub.s32 %s13, %s20
    %p74 = scmp.eq.s32.totalorder %s73, 0
    %s76 = sadd.s32 %s75, 1
    %s77 = scalar_select %p74, %s75, %s76
    %p80 = pneg %p74
    %p81 = scmp.eq.s32.totalorder %s13, 1
    %p82 = por %p80, %p81
    %p83 = scmp.ne.s32.totalorder %s75, %s78
    %p84 = scmp.eq.s32.totalorder %s13, 0
    %p85 = por %p83, %p84
    %p86 = scmp.ne.s32.totalorder %s75, %s78
    %p87 = scmp.eq.s32.totalorder %s18, 1
    %p88 = por %p86, %p87
    %p89 = scmp.ne.s32.totalorder %s78, %s79
    %p90 = scmp.eq.s32.totalorder %s18, 0
    %p91 = por %p89, %p90
    %p92 = scmp.ne.s32.totalorder %s78, %s79
    %p93 = scmp.eq.s32.totalorder %s19, 1
    %p94 = por %p92, %p93
    %p96 = scmp.ne.s32.totalorder %s79, %s95
    %p97 = scmp.eq.s32.totalorder %s19, 0
    %p98 = por %p96, %p97
    %s99 = ssub.s32 %s13, %s20
    %p100 = scmp.eq.s32.totalorder %s99, 0
    %s102 = sadd.s32 %s101, 1
    %s103 = scalar_select %p100, %s101, %s102
    %p106 = pneg %p100
    %p107 = scmp.eq.s32.totalorder %s13, 1
    %p108 = por %p106, %p107
    %p109 = scmp.ne.s32.totalorder %s101, %s104
    %p110 = scmp.eq.s32.totalorder %s13, 0
    %p111 = por %p109, %p110
    %p112 = scmp.ne.s32.totalorder %s101, %s104
    %p113 = scmp.eq.s32.totalorder %s18, 1
    %p114 = por %p112, %p113
    %p115 = scmp.ne.s32.totalorder %s104, %s105
    %p116 = scmp.eq.s32.totalorder %s18, 0
    %p117 = por %p115, %p116
    %p118 = scmp.ne.s32.totalorder %s104, %s105
    %p119 = scmp.eq.s32.totalorder %s19, 1
    %p120 = por %p118, %p119
    %p122 = scmp.ne.s32.totalorder %s105, %s121
    %p123 = scmp.eq.s32.totalorder %s19, 0
    %p124 = por %p122, %p123
    %s126 = sadd.s32 %s125, 1
    %p129 = scmp.eq.s32.totalorder %s13, 1
    %p130 = scmp.ne.s32.totalorder %s125, %s127
    %p131 = scmp.eq.s32.totalorder %s13, 0
    %p132 = por %p130, %p131
    %p133 = scmp.ne.s32.totalorder %s125, %s127
    %p134 = scmp.eq.s32.totalorder %s18, 1
    %p135 = por %p133, %p134
    %p136 = scmp.ne.s32.totalorder %s127, %s128
    %p137 = scmp.eq.s32.totalorder %s18, 0
    %p138 = por %p136, %p137
    %p139 = scmp.ne.s32.totalorder %s127, %s128
    %p140 = scmp.eq.s32.totalorder %s19, 1
    %p141 = por %p139, %p140
    %p143 = scmp.ne.s32.totalorder %s128, %s142
    %p144 = scmp.eq.s32.totalorder %s19, 0
    %p145 = por %p143, %p144
    %s147 = sadd.s32 %s146, 1
    %p150 = scmp.eq.s32.totalorder %s13, 1
    %p151 = scmp.ne.s32.totalorder %s146, %s148
    %p152 = scmp.eq.s32.totalorder %s13, 0
    %p153 = por %p151, %p152
    %p154 = scmp.ne.s32.totalorder %s146, %s148
    %p155 = scmp.eq.s32.totalorder %s18, 1
    %p156 = por %p154, %p155
    %p157 = scmp.ne.s32.totalorder %s148, %s149
    %p158 = scmp.eq.s32.totalorder %s18, 0
    %p159 = por %p157, %p158
    %p160 = scmp.ne.s32.totalorder %s148, %s149
    %p161 = scmp.eq.s32.totalorder %s19, 1
    %p162 = por %p160, %p161
    %p164 = scmp.ne.s32.totalorder %s149, %s163
    %p165 = scmp.eq.s32.totalorder %s19, 0
    %p166 = por %p164, %p165
    %s168 = sadd.s32 %s167, 1
    %p171 = scmp.eq.s32.totalorder %s13, 1
    %p172 = scmp.ne.s32.totalorder %s167, %s169
    %p173 = scmp.eq.s32.totalorder %s13, 0
    %p174 = por %p172, %p173
    %p175 = scmp.ne.s32.totalorder %s167, %s169
    %p176 = scmp.eq.s32.totalorder %s18, 1
    %p177 = por %p175, %p176
    %p178 = scmp.ne.s32.totalorder %s169, %s170
    %p179 = scmp.eq.s32.totalorder %s18, 0
    %p180 = por %p178, %p179
    %p181 = scmp.ne.s32.totalorder %s169, %s170
    %p182 = scmp.eq.s32.totalorder %s19, 1
    %p183 = por %p181, %p182
    %p185 = scmp.ne.s32.totalorder %s170, %s184
    %p186 = scmp.eq.s32.totalorder %s19, 0
    %p187 = por %p185, %p186
    %s188 = ssub.s32 %s13, %s20
    %p189 = scmp.eq.s32.totalorder %s188, 0
    %s191 = sadd.s32 %s190, 1
    %s192 = scalar_select %p189, %s190, %s191
    %p195 = pneg %p189
    %p196 = scmp.eq.s32.totalorder %s13, 1
    %p197 = por %p195, %p196
    %p198 = scmp.ne.s32.totalorder %s190, %s193
    %p199 = scmp.eq.s32.totalorder %s13, 0
    %p200 = por %p198, %p199
    %p201 = scmp.ne.s32.totalorder %s190, %s193
    %p202 = scmp.eq.s32.totalorder %s18, 1
    %p203 = por %p201, %p202
    %p204 = scmp.ne.s32.totalorder %s193, %s194
    %p205 = scmp.eq.s32.totalorder %s18, 0
    %p206 = por %p204, %p205
    %p207 = scmp.ne.s32.totalorder %s193, %s194
    %p208 = scmp.eq.s32.totalorder %s19, 1
    %p209 = por %p207, %p208
    %p211 = scmp.ne.s32.totalorder %s194, %s210
    %p212 = scmp.eq.s32.totalorder %s19, 0
    %p213 = por %p211, %p212
    %p214 = scmp.le.s32.totalorder 1, %s13
    %p215 = scmp.lt.s32.totalorder %s13, 3
    %p216 = pnand %p214, %p215
    %p217 = pneg %p216
    // Predicated region
    $region9: #{reinformer_forward.4} parent=5 // pred_check
      _
    $region10: #{reinformer_forward.4} parent=5 // pred_check_branch
      %219 = sbr.rel (%p216) target = $region12
    $region11: #{reinformer_forward.4} parent=5 // pred_region
      %s220 = ssub.s32 %s13, 1
      // Predicated region
      $region13: #{reinformer_forward.4} parent=11 // pred_check
        %p221 = pneg %p138
      $region14: #{reinformer_forward.4} parent=11 // pred_check_branch
        %223 = sbr.rel (%p221) target = $region16
      $region15: #{reinformer_forward.4} parent=11 // pred_region
        _
      $region16: #{reinformer_forward.4} parent=11 // pred_fallthru
        _
      // Predicated region
      $region17: #{reinformer_forward.4} parent=11 // pred_check
        %p224 = pneg %p159
      $region18: #{reinformer_forward.4} parent=11 // pred_check_branch
        %226 = sbr.rel (%p224) target = $region20
      $region19: #{reinformer_forward.4} parent=11 // pred_region
        _
      $region20: #{reinformer_forward.4} parent=11 // pred_fallthru
        _
      // Predicated region
      $region21: #{reinformer_forward.4} parent=11 // pred_check
        %p227 = pneg %p180
      $region22: #{reinformer_forward.4} parent=11 // pred_check_branch
        %229 = sbr.rel (%p227) target = $region24
      $region23: #{reinformer_forward.4} parent=11 // pred_region
        _
      $region24: #{reinformer_forward.4} parent=11 // pred_fallthru
        _
    $region12: #{reinformer_forward.4} parent=5 // pred_fallthru
      _
    %p230 = scmp.lt.s32.totalorder %s13, 2
    // Predicated region
    $region25: #{reinformer_forward.4} parent=5 // pred_check
      %p231 = pneg %p230
    $region26: #{reinformer_forward.4} parent=5 // pred_check_branch
      %233 = sbr.rel (%p231) target = $region28
    $region27: #{reinformer_forward.4} parent=5 // pred_region
      // Predicated region
      $region29: #{reinformer_forward.4} parent=27 // pred_check
        %p234 = pneg %p33
      $region30: #{reinformer_forward.4} parent=27 // pred_check_branch
        %236 = sbr.rel (%p234) target = $region32
      $region31: #{reinformer_forward.4} parent=27 // pred_region
        %s237 = smul.u32 2, %s13
        %p238 = scmp.lt.s32.totalorder %s237, 3
        %s239 = scalar_select %p238, %s237, 3
        %s240 = smul.addr %s239, 8
        %s241 = scalar_lea.vmem %s0, %s240
        %s242 = smul.u32 2, %s13
      $region32: #{reinformer_forward.4} parent=27 // pred_fallthru
        _
      // Predicated region
      $region33: #{reinformer_forward.4} parent=27 // pred_check
        %p243 = pneg %p59
      $region34: #{reinformer_forward.4} parent=27 // pred_check_branch
        %245 = sbr.rel (%p243) target = $region36
      $region35: #{reinformer_forward.4} parent=27 // pred_region
        %s246 = smul.u32 2, %s13
        %p247 = scmp.lt.s32.totalorder %s246, 3
        %s248 = scalar_select %p247, %s246, 3
        %s249 = smul.addr %s248, 8
        %s250 = scalar_lea.vmem %s1, %s249
        %s251 = smul.u32 2, %s13
      $region36: #{reinformer_forward.4} parent=27 // pred_fallthru
        _
      // Predicated region
      $region37: #{reinformer_forward.4} parent=27 // pred_check
        %p252 = pneg %p85
      $region38: #{reinformer_forward.4} parent=27 // pred_check_branch
        %254 = sbr.rel (%p252) target = $region40
      $region39: #{reinformer_forward.4} parent=27 // pred_region
        %s255 = smul.u32 2, %s13
        %p256 = scmp.lt.s32.totalorder %s255, 3
        %s257 = scalar_select %p256, %s255, 3
        %s258 = smul.addr %s257, 8
        %s259 = scalar_lea.vmem %s2, %s258
        %s260 = smul.u32 2, %s13
      $region40: #{reinformer_forward.4} parent=27 // pred_fallthru
        _
      // Predicated region
      $region41: #{reinformer_forward.4} parent=27 // pred_check
        %p261 = pneg %p111
      $region42: #{reinformer_forward.4} parent=27 // pred_check_branch
        %263 = sbr.rel (%p261) target = $region44
      $region43: #{reinformer_forward.4} parent=27 // pred_region
        %s264 = smul.u32 2, %s13
        %p265 = scmp.lt.s32.totalorder %s264, 3
        %s266 = scalar_select %p265, %s264, 3
        %s267 = smul.addr %s266, 8
        %s268 = scalar_lea.vmem %s3, %s267
        %s269 = smul.u32 2, %s13
      $region44: #{reinformer_forward.4} parent=27 // pred_fallthru
        _
    $region28: #{reinformer_forward.4} parent=5 // pred_fallthru
      _
    %p270 = scmp.le.s32.totalorder 1, %s13
    %p271 = scmp.lt.s32.totalorder %s13, 3
    %p272 = pnand %p270, %p271
    %p273 = pneg %p272
    // Predicated region
    $region45: #{reinformer_forward.4} parent=5 // pred_check
      _
    $region46: #{reinformer_forward.4} parent=5 // pred_check_branch
      %275 = sbr.rel (%p272) target = $region48
    $region47: #{reinformer_forward.4} parent=5 // pred_region
      %s276 = ssub.s32 %s13, 1
      %s277 = smul.u32 2, %s18
      %p278 = scmp.lt.s32.totalorder %s277, 3
      %s279 = scalar_select %p278, %s277, 3
      %s280 = smul.addr %s279, 8
      %s281 = scalar_lea.vmem %s0, %s280
      %p282 = pneg %p39
      %p283 = pneg %p36
      %s284 = smul.u32 2, %s18
      %p285 = scmp.lt.s32.totalorder %s284, 3
      %s286 = scalar_select %p285, %s284, 3
      %s287 = smul.addr %s286, 8
      %s288 = scalar_lea.vmem %s1, %s287
      %p289 = pneg %p65
      %p290 = pneg %p62
      %s291 = smul.u32 2, %s18
      %p292 = scmp.lt.s32.totalorder %s291, 3
      %s293 = scalar_select %p292, %s291, 3
      %s294 = smul.addr %s293, 8
      %s295 = scalar_lea.vmem %s2, %s294
      %p296 = pneg %p91
      %p297 = pneg %p88
      %s298 = smul.u32 2, %s18
      %p299 = scmp.lt.s32.totalorder %s298, 3
      %s300 = scalar_select %p299, %s298, 3
      %s301 = smul.addr %s300, 8
      %s302 = scalar_lea.vmem %s3, %s301
      %p303 = pneg %p117
      %p304 = pneg %p114
      %p305 = pneg %p138
      %p306 = pneg %p135
      %p307 = pneg %p159
      %p308 = pneg %p156
      %p309 = pneg %p180
      %p310 = pneg %p177
      %p311 = pneg %p206
      %p312 = pneg %p203
      %s313 = smul.u32 2, %s18
      %p314 = scmp.lt.s32.totalorder %s313, 3
      %s315 = scalar_select %p314, %s313, 3
      %s316 = smul.addr %s315, 8
      %s317 = smul.addr %s316, 4
      %s318 = scalar_lea.vmem %s7, %s317
      %s319 = smul.u32 2, %s18
      %p320 = scmp.lt.s32.totalorder %s319, 3
      %s321 = scalar_select %p320, %s319, 3
      %s322 = smul.addr %s321, 8
      %s323 = scalar_lea.vmem %s0, %s322
      %s324 = smul.u32 2, %s18
      %s325 = smul.u32 2, %s18
      %p326 = scmp.lt.s32.totalorder %s325, 3
      %s327 = scalar_select %p326, %s325, 3
      %s328 = smul.addr %s327, 8
      %s329 = scalar_lea.vmem %s1, %s328
      %s330 = smul.u32 2, %s18
      %s331 = smul.u32 2, %s18
      %p332 = scmp.lt.s32.totalorder %s331, 3
      %s333 = scalar_select %p332, %s331, 3
      %s334 = smul.addr %s333, 8
      %s335 = scalar_lea.vmem %s2, %s334
      %s336 = smul.u32 2, %s18
      %s337 = smul.u32 2, %s18
      %p338 = scmp.lt.s32.totalorder %s337, 3
      %s339 = scalar_select %p338, %s337, 3
      %s340 = smul.addr %s339, 8
      %s341 = scalar_lea.vmem %s3, %s340
      %s342 = smul.u32 2, %s18
      %s343 = smul.u32 2, %s18
      %p344 = scmp.lt.s32.totalorder %s343, 3
      %s345 = scalar_select %p344, %s343, 3
      %s346 = smul.addr %s345, 8
      %s347 = smul.addr %s346, 4
      %s348 = scalar_lea.vmem %s7, %s347
      %s349 = smul.u32 2, %s18
      %v351 = vld [vmem:[%s6] sm:$0xff]
      %v352 = vld [vmem:[%s341] sm:$0xff]
      %v353 = vld [vmem:[%s341 + $0x8] sm:$0xff]
      %v354 = vld [vmem:[%s323] sm:$0xff]
      %v355 = vld [vmem:[%s323 + $0x8] sm:$0xff]
      %v356 = vld [vmem:[%s329] sm:$0xff]
      %v357 = vld [vmem:[%s329 + $0x8] sm:$0xff]
      %v358 = vld [vmem:[%s335] sm:$0xff]
      %v359 = vld [vmem:[%s335 + $0x8] sm:$0xff]
      %v360 = vpack.c.bf16 %v355, %v354
      %v361 = vld [vmem:[%s4] sm:$0x7]
      %v362 = vlaneseq
      %v363 = vshrl.u32 %v362, 7
      %v364 = vsub.s32 0, %v363
      %v365 = vrot.slane %v351, %v364
      %vm366 = vcmask 48128
      %v368 = vsel %vm366, %v360, 0
      %vm370 = vcmask 1042432
      %v372 = vsel %vm370, %v361, 0
      %374 = vmatprep.subr.bf16.mxu0 0
      %375 = vmatpush1.bf16.msra.mxu0 0
      %376 = vmatprep.subr.bf16.mxu0 0
      %377 = vmatpush1.bf16.msra.mxu0 0
      %378 = vmatprep.subr.bf16.mxu0 0
      %379 = vmatpush1.bf16.msra.mxu0 0
      %380 = vmatprep.subr.bf16.mxu0 0
      %381 = vmatpush1.bf16.msra.mxu0 0
      %382 = vmatprep.subr.bf16.mxu0 0
      %383 = vmatpush1.bf16.msra.mxu0 0
      %384 = vmatprep.subr.bf16.mxu0 0
      %385 = vmatpush1.bf16.msra.mxu0 0
      %386 = vmatprep.subr.bf16.mxu0 0
      %387 = vmatpush1.bf16.msra.mxu0 0
      %388 = vmatprep.subr.bf16.mxu0 0
      %389 = vmatpush1.bf16.msra.mxu0 %v372
      %390 = vmatprep.subr.bf16.mxu0 0
      %391 = vmatpush2.bf16.msra.mxu0 0
      %392 = vmatprep.subr.bf16.mxu0 0
      %393 = vmatpush2.bf16.msra.mxu0 0
      %394 = vmatprep.subr.bf16.mxu0 0
      %395 = vmatpush2.bf16.msra.mxu0 0
      %396 = vmatprep.subr.bf16.mxu0 0
      %397 = vmatpush2.bf16.msra.mxu0 0
      %398 = vmatprep.subr.bf16.mxu0 0
      %399 = vmatpush2.bf16.msra.mxu0 0
      %400 = vmatprep.subr.bf16.mxu0 0
      %401 = vmatpush2.bf16.msra.mxu0 0
      %402 = vmatprep.subr.bf16.mxu0 0
      %403 = vmatpush2.bf16.msra.mxu0 0
      %404 = vmatprep.subr.bf16.mxu0 0
      %405 = vmatpush2.bf16.msra.mxu0 0
      %406 = vmatprep.mubr.bf16.mxu0 0
      %407 = vmatmul.mubr.bf16.gmra.mxu0 %v368
      %v408 = vpop.f32.mrf.mxu0
      %v409 = vadd.f32 %v365, %v408
      %v410 = vpop.f32.mrf.mxu0
      %v411 = vpop.f32.mrf.mxu0
      %v412 = vadd.f32 %v365, %v411
      %v413 = vpop.f32.mrf.mxu0
      %414 = vdwg.mxu0
      %v415 = vadd.f32 %v409, %v352
      %v416 = vadd.f32 %v412, %v353
      %v417 = vpack.c.bf16 %v357, %v356
      %v418 = vld [vmem:[%s5] sm:$0x3]
      %v419 = vlaneseq
      %v420 = vshrl.u32 %v419, 7
      %v421 = vsub.s32 1, %v420
      %v422 = vrot.slane %v351, %v421
      %vm423 = vcmask 23552
      %v425 = vsel %vm423, %v417, 0
      %vm427 = vcmask 1040384
      %vm428 = vcmask 1041408
      %v429 = vsel %vm427, 4294967295, 65535
      %v430 = vsel %vm428, %v429, 0
      %v432 = vand.u32 %v418, %v430
      %434 = vmatprep.subr.bf16.mxu0 0
      %435 = vmatpush1.bf16.msra.mxu0 0
      %436 = vmatprep.subr.bf16.mxu0 0
      %437 = vmatpush1.bf16.msra.mxu0 0
      %438 = vmatprep.subr.bf16.mxu0 0
      %439 = vmatpush1.bf16.msra.mxu0 0
      %440 = vmatprep.subr.bf16.mxu0 0
      %441 = vmatpush1.bf16.msra.mxu0 0
      %442 = vmatprep.subr.bf16.mxu0 0
      %443 = vmatpush1.bf16.msra.mxu0 0
      %444 = vmatprep.subr.bf16.mxu0 0
      %445 = vmatpush1.bf16.msra.mxu0 0
      %446 = vmatprep.subr.bf16.mxu0 0
      %447 = vmatpush1.bf16.msra.mxu0 0
      %448 = vmatprep.subr.bf16.mxu0 0
      %449 = vmatpush1.bf16.msra.mxu0 %v432
      %450 = vmatprep.subr.bf16.mxu0 0
      %451 = vmatpush2.bf16.msra.mxu0 0
      %452 = vmatprep.subr.bf16.mxu0 0
      %453 = vmatpush2.bf16.msra.mxu0 0
      %454 = vmatprep.subr.bf16.mxu0 0
      %455 = vmatpush2.bf16.msra.mxu0 0
      %456 = vmatprep.subr.bf16.mxu0 0
      %457 = vmatpush2.bf16.msra.mxu0 0
      %458 = vmatprep.subr.bf16.mxu0 0
      %459 = vmatpush2.bf16.msra.mxu0 0
      %460 = vmatprep.subr.bf16.mxu0 0
      %461 = vmatpush2.bf16.msra.mxu0 0
      %462 = vmatprep.subr.bf16.mxu0 0
      %463 = vmatpush2.bf16.msra.mxu0 0
      %464 = vmatprep.subr.bf16.mxu0 0
      %465 = vmatpush2.bf16.msra.mxu0 0
      %466 = vmatprep.mubr.bf16.mxu0 0
      %467 = vmatmul.mubr.bf16.gmra.mxu0 %v425
      %v468 = vpop.f32.mrf.mxu0
      %v469 = vadd.f32 %v422, %v468
      %v470 = vpop.f32.mrf.mxu0
      %v471 = vpop.f32.mrf.mxu0
      %v472 = vadd.f32 %v422, %v471
      %v473 = vpop.f32.mrf.mxu0
      %474 = vdwg.mxu0
      %v475 = vadd.f32 %v469, %v352
      %v476 = vadd.f32 %v472, %v353
      %478 = vset.pattern.permute.xlu0 0
      %479 = vperm.xlu0 %478, %v358
      %v480 = vpop.permute.xlu0 %479
      %483 = vset.pattern.permute.xlu0 0
      %484 = vperm.xlu0 %483, %v359
      %v485 = vpop.permute.xlu0 %484
      %v487 = vlaneseq
      %v488 = vshrl.u32 %v487, 7
      %v489 = vsub.s32 3, %v488
      %v490 = vrot.slane %v351, %v489
      %v491 = vmul.f32 %v480, %v490
      %v492 = vmul.f32 %v485, %v490
      %v493 = vlaneseq
      %v494 = vshrl.u32 %v493, 7
      %v495 = vsub.s32 2, %v494
      %v496 = vrot.slane %v351, %v495
      %v497 = vadd.f32 %v491, %v496
      %v498 = vadd.f32 %v492, %v496
      %v499 = vadd.f32 %v497, %v352
      %v500 = vadd.f32 %v498, %v353
      %501 = vadd.xlane.f32.xlu0 %v415
      %v502 = vpop.xlane.xlu0 %501
      %503 = vadd.xlane.f32.xlu0 %v416
      %v504 = vpop.xlane.xlu0 %503
      %v505 = vrcp.pop 128.0
      %v506 = vmul.f32 %v502, %v505
      %v507 = vmul.f32 %v504, %v505
      %v508 = vsub.f32 %v415, %v506
      %v509 = vsub.f32 %v416, %v507
      %v510 = vmul.f32 %v508, %v508
      %v511 = vmul.f32 %v509, %v509
      %512 = vadd.xlane.f32.xlu0 %v510
      %v513 = vpop.xlane.xlu0 %512
      %514 = vadd.xlane.f32.xlu0 %v511
      %v515 = vpop.xlane.xlu0 %514
      %v516 = vmul.f32 %v513, %v505
      %v517 = vmul.f32 %v515, %v505
      %v518 = vadd.f32 %v516, 1e-05
      %v519 = vadd.f32 %v517, 1e-05
      %v520 = vrsqrt.pop %v518
      %v521 = vrsqrt.pop %v519
      %v522 = vmul.f32 %v508, %v520
      %v523 = vmul.f32 %v509, %v521
      %v524 = vlaneseq
      %v525 = vshrl.u32 %v524, 7
      %v526 = vsub.s32 4, %v525
      %v527 = vrot.slane %v351, %v526
      %v528 = vmul.f32 %v522, %v527
      %v529 = vmul.f32 %v523, %v527
      %v530 = vlaneseq
      %v531 = vshrl.u32 %v530, 7
      %v532 = vsub.s32 5, %v531
      %v533 = vrot.slane %v351, %v532
      %v534 = vadd.f32 %v528, %v533
      %v535 = vadd.f32 %v529, %v533
      %v538 = vcombine.high %v534, %v534
      %v540 = vunpack.c.l.s4 1966171168
      %v541 = vunpack.c.0.s8 %v540
      %v542 = vlaneseq
      %v543 = vshrl.u32 %v542, 7
      %v544 = vsub.s32 %v541, %v543
      %v545 = vrot.slane %v534, %v544
      %v547 = vunpack.c.l.s4 1966171168
      %v548 = vunpack.c.0.s8 %v547
      %v549 = vlaneseq
      %v550 = vshrl.u32 %v549, 7
      %v551 = vsub.s32 %v548, %v550
      %v552 = vrot.slane %v538, %v551
      %v553 = vcombine.high %v545, %v545
      %v554 = vcombine.high %v552, %v552
      %v556 = vunpack.c.l.s4 1966171168
      %v557 = vunpack.c.0.s8 %v556
      %v558 = vlaneseq
      %v559 = vshrl.u32 %v558, 7
      %v560 = vsub.s32 %v557, %v559
      %v561 = vrot.slane %v545, %v560
      %v563 = vunpack.c.l.s4 1966171168
      %v564 = vunpack.c.0.s8 %v563
      %v565 = vlaneseq
      %v566 = vshrl.u32 %v565, 7
      %v567 = vsub.s32 %v564, %v566
      %v568 = vrot.slane %v552, %v567
      %v570 = vunpack.c.l.s4 1966171168
      %v571 = vunpack.c.0.s8 %v570
      %v572 = vlaneseq
      %v573 = vshrl.u32 %v572, 7
      %v574 = vsub.s32 %v571, %v573
      %v575 = vrot.slane %v553, %v574
      %v577 = vunpack.c.l.s4 1966171168
      %v578 = vunpack.c.0.s8 %v577
      %v579 = vlaneseq
      %v580 = vshrl.u32 %v579, 7
      %v581 = vsub.s32 %v578, %v580
      %v582 = vrot.slane %v554, %v581
      %v583 = vcombine.high %v561, %v561
      %v584 = vcombine.high %v568, %v568
      %v585 = vcombine.high %v575, %v575
      %v586 = vcombine.high %v582, %v582
      %v587 = vcombine.high %v535, %v535
      %v589 = vunpack.c.l.s4 1966171168
      %v590 = vunpack.c.0.s8 %v589
      %v591 = vlaneseq
      %v592 = vshrl.u32 %v591, 7
      %v593 = vsub.s32 %v590, %v592
      %v594 = vrot.slane %v535, %v593
      %v596 = vunpack.c.l.s4 1966171168
      %v597 = vunpack.c.0.s8 %v596
      %v598 = vlaneseq
      %v599 = vshrl.u32 %v598, 7
      %v600 = vsub.s32 %v597, %v599
      %v601 = vrot.slane %v587, %v600
      %v602 = vcombine.high %v594, %v594
      %v603 = vcombine.high %v601, %v601
      %v605 = vunpack.c.l.s4 1966171168
      %v606 = vunpack.c.0.s8 %v605
      %v607 = vlaneseq
      %v608 = vshrl.u32 %v607, 7
      %v609 = vsub.s32 %v606, %v608
      %v610 = vrot.slane %v594, %v609
      %v612 = vunpack.c.l.s4 1966171168
      %v613 = vunpack.c.0.s8 %v612
      %v614 = vlaneseq
      %v615 = vshrl.u32 %v614, 7
      %v616 = vsub.s32 %v613, %v615
      %v617 = vrot.slane %v601, %v616
      %v619 = vunpack.c.l.s4 1966171168
      %v620 = vunpack.c.0.s8 %v619
      %v621 = vlaneseq
      %v622 = vshrl.u32 %v621, 7
      %v623 = vsub.s32 %v620, %v622
      %v624 = vrot.slane %v602, %v623
      %v626 = vunpack.c.l.s4 1966171168
      %v627 = vunpack.c.0.s8 %v626
      %v628 = vlaneseq
      %v629 = vshrl.u32 %v628, 7
      %v630 = vsub.s32 %v627, %v629
      %v631 = vrot.slane %v603, %v630
      %v632 = vcombine.high %v610, %v610
      %v633 = vcombine.high %v617, %v617
      %v634 = vcombine.high %v624, %v624
      %v635 = vcombine.high %v631, %v631
      %652 = vst [vmem:[%s348] sm:$0x1] %v561
      %653 = vst [vmem:[%s348 + $0x4] sm:$0x1] %v575
      %654 = vst [vmem:[%s348 + $0x8] sm:$0x1] %v583
      %655 = vst [vmem:[%s348 + $0xc] sm:$0x1] %v585
      %656 = vst [vmem:[%s348 + $0x10] sm:$0x1] %v568
      %657 = vst [vmem:[%s348 + $0x14] sm:$0x1] %v582
      %658 = vst [vmem:[%s348 + $0x18] sm:$0x1] %v584
      %659 = vst [vmem:[%s348 + $0x1c] sm:$0x1] %v586
      %660 = vst [vmem:[%s348 + $0x20] sm:$0x1] %v610
      %661 = vst [vmem:[%s348 + $0x24] sm:$0x1] %v624
      %662 = vst [vmem:[%s348 + $0x28] sm:$0x1] %v632
      %663 = vst [vmem:[%s348 + $0x2c] sm:$0x1] %v634
      %664 = vst [vmem:[%s348 + $0x30] sm:$0x1] %v617
      %665 = vst [vmem:[%s348 + $0x34] sm:$0x1] %v631
      %666 = vst [vmem:[%s348 + $0x38] sm:$0x1] %v633
      %667 = vst [vmem:[%s348 + $0x3c] sm:$0x1] %v635
      %668 = vadd.xlane.f32.xlu0 %v499
      %v669 = vpop.xlane.xlu0 %668
      %670 = vadd.xlane.f32.xlu0 %v500
      %v671 = vpop.xlane.xlu0 %670
      %v672 = vmul.f32 %v669, %v505
      %v673 = vmul.f32 %v671, %v505
      %v674 = vsub.f32 %v499, %v672
      %v675 = vsub.f32 %v500, %v673
      %v676 = vmul.f32 %v674, %v674
      %v677 = vmul.f32 %v675, %v675
      %678 = vadd.xlane.f32.xlu0 %v676
      %v679 = vpop.xlane.xlu0 %678
      %680 = vadd.xlane.f32.xlu0 %v677
      %v681 = vpop.xlane.xlu0 %680
      %v682 = vmul.f32 %v679, %v505
      %v683 = vmul.f32 %v681, %v505
      %v684 = vadd.f32 %v682, 1e-05
      %v685 = vadd.f32 %v683, 1e-05
      %v686 = vrsqrt.pop %v684
      %v687 = vrsqrt.pop %v685
      %v688 = vmul.f32 %v674, %v686
      %v689 = vmul.f32 %v675, %v687
      %v690 = vmul.f32 %v688, %v527
      %v691 = vmul.f32 %v689, %v527
      %v692 = vadd.f32 %v690, %v533
      %v693 = vadd.f32 %v691, %v533
      %v696 = vcombine.high %v692, %v692
      %v698 = vunpack.c.l.s4 1966171168
      %v699 = vunpack.c.0.s8 %v698
      %v700 = vlaneseq
      %v701 = vshrl.u32 %v700, 7
      %v702 = vsub.s32 %v699, %v701
      %v703 = vrot.slane %v692, %v702
      %v705 = vunpack.c.l.s4 1966171168
      %v706 = vunpack.c.0.s8 %v705
      %v707 = vlaneseq
      %v708 = vshrl.u32 %v707, 7
      %v709 = vsub.s32 %v706, %v708
      %v710 = vrot.slane %v696, %v709
      %v711 = vcombine.high %v703, %v703
      %v712 = vcombine.high %v710, %v710
      %v714 = vunpack.c.l.s4 1966171168
      %v715 = vunpack.c.0.s8 %v714
      %v716 = vlaneseq
      %v717 = vshrl.u32 %v716, 7
      %v718 = vsub.s32 %v715, %v717
      %v719 = vrot.slane %v703, %v718
      %v721 = vunpack.c.l.s4 1966171168
      %v722 = vunpack.c.0.s8 %v721
      %v723 = vlaneseq
      %v724 = vshrl.u32 %v723, 7
      %v725 = vsub.s32 %v722, %v724
      %v726 = vrot.slane %v710, %v725
      %v728 = vunpack.c.l.s4 1966171168
      %v729 = vunpack.c.0.s8 %v728
      %v730 = vlaneseq
      %v731 = vshrl.u32 %v730, 7
      %v732 = vsub.s32 %v729, %v731
      %v733 = vrot.slane %v711, %v732
      %v735 = vunpack.c.l.s4 1966171168
      %v736 = vunpack.c.0.s8 %v735
      %v737 = vlaneseq
      %v738 = vshrl.u32 %v737, 7
      %v739 = vsub.s32 %v736, %v738
      %v740 = vrot.slane %v712, %v739
      %v741 = vcombine.high %v719, %v719
      %v742 = vcombine.high %v726, %v726
      %v743 = vcombine.high %v733, %v733
      %v744 = vcombine.high %v740, %v740
      %v745 = vcombine.high %v693, %v693
      %v747 = vunpack.c.l.s4 1966171168
      %v748 = vunpack.c.0.s8 %v747
      %v749 = vlaneseq
      %v750 = vshrl.u32 %v749, 7
      %v751 = vsub.s32 %v748, %v750
      %v752 = vrot.slane %v693, %v751
      %v754 = vunpack.c.l.s4 1966171168
      %v755 = vunpack.c.0.s8 %v754
      %v756 = vlaneseq
      %v757 = vshrl.u32 %v756, 7
      %v758 = vsub.s32 %v755, %v757
      %v759 = vrot.slane %v745, %v758
      %v760 = vcombine.high %v752, %v752
      %v761 = vcombine.high %v759, %v759
      %v763 = vunpack.c.l.s4 1966171168
      %v764 = vunpack.c.0.s8 %v763
      %v765 = vlaneseq
      %v766 = vshrl.u32 %v765, 7
      %v767 = vsub.s32 %v764, %v766
      %v768 = vrot.slane %v752, %v767
      %v770 = vunpack.c.l.s4 1966171168
      %v771 = vunpack.c.0.s8 %v770
      %v772 = vlaneseq
      %v773 = vshrl.u32 %v772, 7
      %v774 = vsub.s32 %v771, %v773
      %v775 = vrot.slane %v759, %v774
      %v777 = vunpack.c.l.s4 1966171168
      %v778 = vunpack.c.0.s8 %v777
      %v779 = vlaneseq
      %v780 = vshrl.u32 %v779, 7
      %v781 = vsub.s32 %v778, %v780
      %v782 = vrot.slane %v760, %v781
      %v784 = vunpack.c.l.s4 1966171168
      %v785 = vunpack.c.0.s8 %v784
      %v786 = vlaneseq
      %v787 = vshrl.u32 %v786, 7
      %v788 = vsub.s32 %v785, %v787
      %v789 = vrot.slane %v761, %v788
      %v790 = vcombine.high %v768, %v768
      %v791 = vcombine.high %v775, %v775
      %v792 = vcombine.high %v782, %v782
      %v793 = vcombine.high %v789, %v789
      %810 = vst [vmem:[%s348 + $0x1] sm:$0x1] %v719
      %811 = vst [vmem:[%s348 + $0x5] sm:$0x1] %v733
      %812 = vst [vmem:[%s348 + $0x9] sm:$0x1] %v741
      %813 = vst [vmem:[%s348 + $0xd] sm:$0x1] %v743
      %814 = vst [vmem:[%s348 + $0x11] sm:$0x1] %v726
      %815 = vst [vmem:[%s348 + $0x15] sm:$0x1] %v740
      %816 = vst [vmem:[%s348 + $0x19] sm:$0x1] %v742
      %817 = vst [vmem:[%s348 + $0x1d] sm:$0x1] %v744
      %818 = vst [vmem:[%s348 + $0x21] sm:$0x1] %v768
      %819 = vst [vmem:[%s348 + $0x25] sm:$0x1] %v782
      %820 = vst [vmem:[%s348 + $0x29] sm:$0x1] %v790
      %821 = vst [vmem:[%s348 + $0x2d] sm:$0x1] %v792
      %822 = vst [vmem:[%s348 + $0x31] sm:$0x1] %v775
      %823 = vst [vmem:[%s348 + $0x35] sm:$0x1] %v789
      %824 = vst [vmem:[%s348 + $0x39] sm:$0x1] %v791
      %825 = vst [vmem:[%s348 + $0x3d] sm:$0x1] %v793
      %826 = vadd.xlane.f32.xlu0 %v475
      %v827 = vpop.xlane.xlu0 %826
      %828 = vadd.xlane.f32.xlu0 %v476
      %v829 = vpop.xlane.xlu0 %828
      %v830 = vmul.f32 %v827, %v505
      %v831 = vmul.f32 %v829, %v505
      %v832 = vsub.f32 %v475, %v830
      %v833 = vsub.f32 %v476, %v831
      %v834 = vmul.f32 %v832, %v832
      %v835 = vmul.f32 %v833, %v833
      %836 = vadd.xlane.f32.xlu0 %v834
      %v837 = vpop.xlane.xlu0 %836
      %838 = vadd.xlane.f32.xlu0 %v835
      %v839 = vpop.xlane.xlu0 %838
      %v840 = vmul.f32 %v837, %v505
      %v841 = vmul.f32 %v839, %v505
      %v842 = vadd.f32 %v840, 1e-05
      %v843 = vadd.f32 %v841, 1e-05
      %v844 = vrsqrt.pop %v842
      %v845 = vrsqrt.pop %v843
      %v846 = vmul.f32 %v832, %v844
      %v847 = vmul.f32 %v833, %v845
      %v848 = vmul.f32 %v846, %v527
      %v849 = vmul.f32 %v847, %v527
      %v850 = vadd.f32 %v848, %v533
      %v851 = vadd.f32 %v849, %v533
      %v854 = vcombine.high %v850, %v850
      %v856 = vunpack.c.l.s4 1966171168
      %v857 = vunpack.c.0.s8 %v856
      %v858 = vlaneseq
      %v859 = vshrl.u32 %v858, 7
      %v860 = vsub.s32 %v857, %v859
      %v861 = vrot.slane %v850, %v860
      %v863 = vunpack.c.l.s4 1966171168
      %v864 = vunpack.c.0.s8 %v863
      %v865 = vlaneseq
      %v866 = vshrl.u32 %v865, 7
      %v867 = vsub.s32 %v864, %v866
      %v868 = vrot.slane %v854, %v867
      %v869 = vcombine.high %v861, %v861
      %v870 = vcombine.high %v868, %v868
      %v872 = vunpack.c.l.s4 1966171168
      %v873 = vunpack.c.0.s8 %v872
      %v874 = vlaneseq
      %v875 = vshrl.u32 %v874, 7
      %v876 = vsub.s32 %v873, %v875
      %v877 = vrot.slane %v861, %v876
      %v879 = vunpack.c.l.s4 1966171168
      %v880 = vunpack.c.0.s8 %v879
      %v881 = vlaneseq
      %v882 = vshrl.u32 %v881, 7
      %v883 = vsub.s32 %v880, %v882
      %v884 = vrot.slane %v868, %v883
      %v886 = vunpack.c.l.s4 1966171168
      %v887 = vunpack.c.0.s8 %v886
      %v888 = vlaneseq
      %v889 = vshrl.u32 %v888, 7
      %v890 = vsub.s32 %v887, %v889
      %v891 = vrot.slane %v869, %v890
      %v893 = vunpack.c.l.s4 1966171168
      %v894 = vunpack.c.0.s8 %v893
      %v895 = vlaneseq
      %v896 = vshrl.u32 %v895, 7
      %v897 = vsub.s32 %v894, %v896
      %v898 = vrot.slane %v870, %v897
      %v899 = vcombine.high %v877, %v877
      %v900 = vcombine.high %v884, %v884
      %v901 = vcombine.high %v891, %v891
      %v902 = vcombine.high %v898, %v898
      %v903 = vcombine.high %v851, %v851
      %v905 = vunpack.c.l.s4 1966171168
      %v906 = vunpack.c.0.s8 %v905
      %v907 = vlaneseq
      %v908 = vshrl.u32 %v907, 7
      %v909 = vsub.s32 %v906, %v908
      %v910 = vrot.slane %v851, %v909
      %v912 = vunpack.c.l.s4 1966171168
      %v913 = vunpack.c.0.s8 %v912
      %v914 = vlaneseq
      %v915 = vshrl.u32 %v914, 7
      %v916 = vsub.s32 %v913, %v915
      %v917 = vrot.slane %v903, %v916
      %v918 = vcombine.high %v910, %v910
      %v919 = vcombine.high %v917, %v917
      %v921 = vunpack.c.l.s4 1966171168
      %v922 = vunpack.c.0.s8 %v921
      %v923 = vlaneseq
      %v924 = vshrl.u32 %v923, 7
      %v925 = vsub.s32 %v922, %v924
      %v926 = vrot.slane %v910, %v925
      %v928 = vunpack.c.l.s4 1966171168
      %v929 = vunpack.c.0.s8 %v928
      %v930 = vlaneseq
      %v931 = vshrl.u32 %v930, 7
      %v932 = vsub.s32 %v929, %v931
      %v933 = vrot.slane %v917, %v932
      %v935 = vunpack.c.l.s4 1966171168
      %v936 = vunpack.c.0.s8 %v935
      %v937 = vlaneseq
      %v938 = vshrl.u32 %v937, 7
      %v939 = vsub.s32 %v936, %v938
      %v940 = vrot.slane %v918, %v939
      %v942 = vunpack.c.l.s4 1966171168
      %v943 = vunpack.c.0.s8 %v942
      %v944 = vlaneseq
      %v945 = vshrl.u32 %v944, 7
      %v946 = vsub.s32 %v943, %v945
      %v947 = vrot.slane %v919, %v946
      %v948 = vcombine.high %v926, %v926
      %v949 = vcombine.high %v933, %v933
      %v950 = vcombine.high %v940, %v940
      %v951 = vcombine.high %v947, %v947
      %968 = vst [vmem:[%s348 + $0x2] sm:$0x1] %v877
      %969 = vst [vmem:[%s348 + $0x6] sm:$0x1] %v891
      %970 = vst [vmem:[%s348 + $0xa] sm:$0x1] %v899
      %971 = vst [vmem:[%s348 + $0xe] sm:$0x1] %v901
      %972 = vst [vmem:[%s348 + $0x12] sm:$0x1] %v884
      %973 = vst [vmem:[%s348 + $0x16] sm:$0x1] %v898
      %974 = vst [vmem:[%s348 + $0x1a] sm:$0x1] %v900
      %975 = vst [vmem:[%s348 + $0x1e] sm:$0x1] %v902
      %976 = vst [vmem:[%s348 + $0x22] sm:$0x1] %v926
      %977 = vst [vmem:[%s348 + $0x26] sm:$0x1] %v940
      %978 = vst [vmem:[%s348 + $0x2a] sm:$0x1] %v948
      %979 = vst [vmem:[%s348 + $0x2e] sm:$0x1] %v950
      %980 = vst [vmem:[%s348 + $0x32] sm:$0x1] %v933
      %981 = vst [vmem:[%s348 + $0x36] sm:$0x1] %v947
      %982 = vst [vmem:[%s348 + $0x3a] sm:$0x1] %v949
      %983 = vst [vmem:[%s348 + $0x3e] sm:$0x1] %v951
      %s984 = smul.u32 2, %s18
      %p985 = scmp.lt.s32.totalorder %s984, 3
      %s986 = scalar_select %p985, %s984, 3
      %s987 = smul.addr %s986, 8
      %s988 = smul.addr %s987, 4
      %s989 = scalar_lea.vmem %s7, %s988
      // Predicated region
      $region49: #{reinformer_forward.4} parent=47 // pred_check
        %p990 = pneg %p203
      $region50: #{reinformer_forward.4} parent=47 // pred_check_branch
        %992 = sbr.rel (%p990) target = $region52
      $region51: #{reinformer_forward.4} parent=47 // pred_region
        %s993 = smul.u32 2, %s18
      $region52: #{reinformer_forward.4} parent=47 // pred_fallthru
        _
    $region48: #{reinformer_forward.4} parent=5 // pred_fallthru
      _
    %p994 = scmp.le.s32.totalorder 2, %s13
    // Predicated region
    $region53: #{reinformer_forward.4} parent=5 // pred_check
      %p995 = pneg %p994
    $region54: #{reinformer_forward.4} parent=5 // pred_check_branch
      %997 = sbr.rel (%p995) target = $region56
    $region55: #{reinformer_forward.4} parent=5 // pred_region
      %s998 = ssub.s32 %s13, 2
      // Predicated region
      $region57: #{reinformer_forward.4} parent=55 // pred_check
        %p999 = pneg %p209
      $region58: #{reinformer_forward.4} parent=55 // pred_check_branch
        %1001 = sbr.rel (%p999) target = $region60
      $region59: #{reinformer_forward.4} parent=55 // pred_region
        %s1002 = smul.u32 2, %s19
        %p1003 = scmp.lt.s32.totalorder %s1002, 3
        %s1004 = scalar_select %p1003, %s1002, 3
        %s1005 = smul.addr %s1004, 8
        %s1006 = smul.addr %s1005, 4
        %s1007 = scalar_lea.vmem %s7, %s1006
      $region60: #{reinformer_forward.4} parent=55 // pred_fallthru
        _
    $region56: #{reinformer_forward.4} parent=5 // pred_fallthru
      _
  $region6: #{reinformer_forward.4} parent=0 // loop_footer
    %s17 = sadd.s32 1, %s13
  $region7: #{reinformer_forward.4} parent=0 // loop_footer_branch
    %12 = sbr.rel target = $region3
  $region8: #{reinformer_forward.4} parent=0 // loop_exit
    _

// kernel: reinformer_forward.5
$region0: #{reinformer_forward.5}
  #allocation0 [shape = 'u32[]', space=smem, size = 0x4, offset = 0x4, fixed_abs, tag = 'smem constant byte address 0x4 - core index']
  #allocation1 [shape = 'u32[144,128]{1,0:T(1,128)}', space=vmem, size = 0x12000, scoped, tag = 'internal scratch']
  #allocation2 [shape = 'f32[48,128]{1,0:T(8,128)}', space=vmem, size = 0x6000, scoped, tag = 'scratch operand']
  %s0 = inlined_call_operand.vmem [shape: f32[4,24,128], index: 0, kind: input, shape index: {}]
  %s1 = inlined_call_operand.vmem [shape: bf16[128,384], index: 1, kind: input, shape index: {}]
  %s2 = inlined_call_operand.vmem [shape: bf16[128,128], index: 2, kind: input, shape index: {}]
  %s3 = inlined_call_operand.vmem [shape: bf16[128,512], index: 3, kind: input, shape index: {}]
  %s4 = inlined_call_operand.vmem [shape: bf16[512,128], index: 4, kind: input, shape index: {}]
  %s5 = inlined_call_operand.vmem [shape: f32[8,512], index: 5, kind: input, shape index: {}]
  %s6 = inlined_call_operand.vmem [shape: f32[4,24,128], index: 6, kind: output, shape index: {}]
  %s7 = sld [smem:[#allocation0]]
  $region57: #{reinformer_forward.5} parent=0
    _
  %s9 = ssub.s32 1, %s7
  %s10 = scalar_select 0, %s9, %s7
  loop: start=0, step=1, limit=4
  $region2: #{reinformer_forward.5} parent=0 // loop_pre_header
    _
  $region3: #{reinformer_forward.5} parent=0 // loop_header
    %s12 = sphi 0, %s16
    %p13 = scmp.ge.s32.totalorder %s12, 4
    %s22 = sphi 0, %s24
    %s25 = sphi 0, %s22
    %s26 = sphi 0, %s25
    %s42 = sphi 0, %s26
    %s46 = sphi 0, %s46
    %s48 = sphi 0, %s46
    %s49 = sphi 0, %s48
    %s63 = sphi 0, %s49
    %s67 = sphi 0, %s67
    %s69 = sphi 0, %s67
    %s70 = sphi 0, %s69
    %s84 = sphi 0, %s70
    %s88 = sphi 0, %s88
    %s90 = sphi 0, %s88
    %s91 = sphi 0, %s90
    %s105 = sphi 0, %s91
    %s109 = sphi 0, %s109
    %s111 = sphi 0, %s109
    %s112 = sphi 0, %s111
    %s126 = sphi 0, %s112
    %s130 = sphi 0, %s130
    %s132 = sphi 0, %s130
    %s133 = sphi 0, %s132
    %s147 = sphi 0, %s133
    %s153 = sphi 0, %s155
    %s156 = sphi 0, %s153
    %s157 = sphi 0, %s156
    %s173 = sphi 0, %s157
  $region4: #{reinformer_forward.5} parent=0 // loop_header_branch
    %15 = sbr.rel (%p13) target = $region8
  $region5: #{reinformer_forward.5} parent=0 // loop_body
    %s17 = ssub.s32 %s12, 1
    %s18 = ssub.s32 %s12, 2
    %s19 = sadd.s32 %s12, 1
    %s20 = ssub.s32 %s12, %s19
    %p21 = scmp.eq.s32.totalorder %s20, 0
    %s23 = sadd.s32 %s22, 1
    %s24 = scalar_select %p21, %s22, %s23
    %p27 = pneg %p21
    %p28 = scmp.eq.s32.totalorder %s12, 1
    %p29 = por %p27, %p28
    %p30 = scmp.ne.s32.totalorder %s22, %s25
    %p31 = scmp.eq.s32.totalorder %s12, 0
    %p32 = por %p30, %p31
    %p33 = scmp.ne.s32.totalorder %s22, %s25
    %p34 = scmp.eq.s32.totalorder %s17, 1
    %p35 = por %p33, %p34
    %p36 = scmp.ne.s32.totalorder %s25, %s26
    %p37 = scmp.eq.s32.totalorder %s17, 0
    %p38 = por %p36, %p37
    %p39 = scmp.ne.s32.totalorder %s25, %s26
    %p40 = scmp.eq.s32.totalorder %s18, 1
    %p41 = por %p39, %p40
    %p43 = scmp.ne.s32.totalorder %s26, %s42
    %p44 = scmp.eq.s32.totalorder %s18, 0
    %p45 = por %p43, %p44
    %s47 = sadd.s32 %s46, 1
    %p50 = scmp.eq.s32.totalorder %s12, 1
    %p51 = scmp.ne.s32.totalorder %s46, %s48
    %p52 = scmp.eq.s32.totalorder %s12, 0
    %p53 = por %p51, %p52
    %p54 = scmp.ne.s32.totalorder %s46, %s48
    %p55 = scmp.eq.s32.totalorder %s17, 1
    %p56 = por %p54, %p55
    %p57 = scmp.ne.s32.totalorder %s48, %s49
    %p58 = scmp.eq.s32.totalorder %s17, 0
    %p59 = por %p57, %p58
    %p60 = scmp.ne.s32.totalorder %s48, %s49
    %p61 = scmp.eq.s32.totalorder %s18, 1
    %p62 = por %p60, %p61
    %p64 = scmp.ne.s32.totalorder %s49, %s63
    %p65 = scmp.eq.s32.totalorder %s18, 0
    %p66 = por %p64, %p65
    %s68 = sadd.s32 %s67, 1
    %p71 = scmp.eq.s32.totalorder %s12, 1
    %p72 = scmp.ne.s32.totalorder %s67, %s69
    %p73 = scmp.eq.s32.totalorder %s12, 0
    %p74 = por %p72, %p73
    %p75 = scmp.ne.s32.totalorder %s67, %s69
    %p76 = scmp.eq.s32.totalorder %s17, 1
    %p77 = por %p75, %p76
    %p78 = scmp.ne.s32.totalorder %s69, %s70
    %p79 = scmp.eq.s32.totalorder %s17, 0
    %p80 = por %p78, %p79
    %p81 = scmp.ne.s32.totalorder %s69, %s70
    %p82 = scmp.eq.s32.totalorder %s18, 1
    %p83 = por %p81, %p82
    %p85 = scmp.ne.s32.totalorder %s70, %s84
    %p86 = scmp.eq.s32.totalorder %s18, 0
    %p87 = por %p85, %p86
    %s89 = sadd.s32 %s88, 1
    %p92 = scmp.eq.s32.totalorder %s12, 1
    %p93 = scmp.ne.s32.totalorder %s88, %s90
    %p94 = scmp.eq.s32.totalorder %s12, 0
    %p95 = por %p93, %p94
    %p96 = scmp.ne.s32.totalorder %s88, %s90
    %p97 = scmp.eq.s32.totalorder %s17, 1
    %p98 = por %p96, %p97
    %p99 = scmp.ne.s32.totalorder %s90, %s91
    %p100 = scmp.eq.s32.totalorder %s17, 0
    %p101 = por %p99, %p100
    %p102 = scmp.ne.s32.totalorder %s90, %s91
    %p103 = scmp.eq.s32.totalorder %s18, 1
    %p104 = por %p102, %p103
    %p106 = scmp.ne.s32.totalorder %s91, %s105
    %p107 = scmp.eq.s32.totalorder %s18, 0
    %p108 = por %p106, %p107
    %s110 = sadd.s32 %s109, 1
    %p113 = scmp.eq.s32.totalorder %s12, 1
    %p114 = scmp.ne.s32.totalorder %s109, %s111
    %p115 = scmp.eq.s32.totalorder %s12, 0
    %p116 = por %p114, %p115
    %p117 = scmp.ne.s32.totalorder %s109, %s111
    %p118 = scmp.eq.s32.totalorder %s17, 1
    %p119 = por %p117, %p118
    %p120 = scmp.ne.s32.totalorder %s111, %s112
    %p121 = scmp.eq.s32.totalorder %s17, 0
    %p122 = por %p120, %p121
    %p123 = scmp.ne.s32.totalorder %s111, %s112
    %p124 = scmp.eq.s32.totalorder %s18, 1
    %p125 = por %p123, %p124
    %p127 = scmp.ne.s32.totalorder %s112, %s126
    %p128 = scmp.eq.s32.totalorder %s18, 0
    %p129 = por %p127, %p128
    %s131 = sadd.s32 %s130, 1
    %p134 = scmp.eq.s32.totalorder %s12, 1
    %p135 = scmp.ne.s32.totalorder %s130, %s132
    %p136 = scmp.eq.s32.totalorder %s12, 0
    %p137 = por %p135, %p136
    %p138 = scmp.ne.s32.totalorder %s130, %s132
    %p139 = scmp.eq.s32.totalorder %s17, 1
    %p140 = por %p138, %p139
    %p141 = scmp.ne.s32.totalorder %s132, %s133
    %p142 = scmp.eq.s32.totalorder %s17, 0
    %p143 = por %p141, %p142
    %p144 = scmp.ne.s32.totalorder %s132, %s133
    %p145 = scmp.eq.s32.totalorder %s18, 1
    %p146 = por %p144, %p145
    %p148 = scmp.ne.s32.totalorder %s133, %s147
    %p149 = scmp.eq.s32.totalorder %s18, 0
    %p150 = por %p148, %p149
    %s151 = ssub.s32 %s12, %s19
    %p152 = scmp.eq.s32.totalorder %s151, 0
    %s154 = sadd.s32 %s153, 1
    %s155 = scalar_select %p152, %s153, %s154
    %p158 = pneg %p152
    %p159 = scmp.eq.s32.totalorder %s12, 1
    %p160 = por %p158, %p159
    %p161 = scmp.ne.s32.totalorder %s153, %s156
    %p162 = scmp.eq.s32.totalorder %s12, 0
    %p163 = por %p161, %p162
    %p164 = scmp.ne.s32.totalorder %s153, %s156
    %p165 = scmp.eq.s32.totalorder %s17, 1
    %p166 = por %p164, %p165
    %p167 = scmp.ne.s32.totalorder %s156, %s157
    %p168 = scmp.eq.s32.totalorder %s17, 0
    %p169 = por %p167, %p168
    %p170 = scmp.ne.s32.totalorder %s156, %s157
    %p171 = scmp.eq.s32.totalorder %s18, 1
    %p172 = por %p170, %p171
    %p174 = scmp.ne.s32.totalorder %s157, %s173
    %p175 = scmp.eq.s32.totalorder %s18, 0
    %p176 = por %p174, %p175
    %p177 = scmp.le.s32.totalorder 1, %s12
    %p178 = scmp.lt.s32.totalorder %s12, 3
    %p179 = pnand %p177, %p178
    %p180 = pneg %p179
    // Predicated region
    $region9: #{reinformer_forward.5} parent=5 // pred_check
      _
    $region10: #{reinformer_forward.5} parent=5 // pred_check_branch
      %182 = sbr.rel (%p179) target = $region12
    $region11: #{reinformer_forward.5} parent=5 // pred_region
      %s183 = ssub.s32 %s12, 1
      // Predicated region
      $region13: #{reinformer_forward.5} parent=11 // pred_check
        %p184 = pneg %p59
      $region14: #{reinformer_forward.5} parent=11 // pred_check_branch
        %186 = sbr.rel (%p184) target = $region16
      $region15: #{reinformer_forward.5} parent=11 // pred_region
        _
      $region16: #{reinformer_forward.5} parent=11 // pred_fallthru
        _
      // Predicated region
      $region17: #{reinformer_forward.5} parent=11 // pred_check
        %p187 = pneg %p80
      $region18: #{reinformer_forward.5} parent=11 // pred_check_branch
        %189 = sbr.rel (%p187) target = $region20
      $region19: #{reinformer_forward.5} parent=11 // pred_region
        _
      $region20: #{reinformer_forward.5} parent=11 // pred_fallthru
        _
      // Predicated region
      $region21: #{reinformer_forward.5} parent=11 // pred_check
        %p190 = pneg %p101
      $region22: #{reinformer_forward.5} parent=11 // pred_check_branch
        %192 = sbr.rel (%p190) target = $region24
      $region23: #{reinformer_forward.5} parent=11 // pred_region
        _
      $region24: #{reinformer_forward.5} parent=11 // pred_fallthru
        _
      // Predicated region
      $region25: #{reinformer_forward.5} parent=11 // pred_check
        %p193 = pneg %p122
      $region26: #{reinformer_forward.5} parent=11 // pred_check_branch
        %195 = sbr.rel (%p193) target = $region28
      $region27: #{reinformer_forward.5} parent=11 // pred_region
        _
      $region28: #{reinformer_forward.5} parent=11 // pred_fallthru
        _
      // Predicated region
      $region29: #{reinformer_forward.5} parent=11 // pred_check
        %p196 = pneg %p143
      $region30: #{reinformer_forward.5} parent=11 // pred_check_branch
        %198 = sbr.rel (%p196) target = $region32
      $region31: #{reinformer_forward.5} parent=11 // pred_region
        _
      $region32: #{reinformer_forward.5} parent=11 // pred_fallthru
        _
    $region12: #{reinformer_forward.5} parent=5 // pred_fallthru
      _
    %p199 = scmp.lt.s32.totalorder %s12, 2
    // Predicated region
    $region33: #{reinformer_forward.5} parent=5 // pred_check
      %p200 = pneg %p199
    $region34: #{reinformer_forward.5} parent=5 // pred_check_branch
      %202 = sbr.rel (%p200) target = $region36
    $region35: #{reinformer_forward.5} parent=5 // pred_region
      // Predicated region
      $region37: #{reinformer_forward.5} parent=35 // pred_check
        %p203 = pneg %p32
      $region38: #{reinformer_forward.5} parent=35 // pred_check_branch
        %205 = sbr.rel (%p203) target = $region40
      $region39: #{reinformer_forward.5} parent=35 // pred_region
        %s206 = smul.u32 2, %s12
        %p207 = scmp.lt.s32.totalorder %s206, 3
        %s208 = scalar_select %p207, %s206, 3
        %s209 = smul.addr %s208, 3
        %s210 = smul.addr %s209, 8
        %s211 = scalar_lea.vmem %s0, %s210
        %s212 = smul.u32 2, %s12
      $region40: #{reinformer_forward.5} parent=35 // pred_fallthru
        _
    $region36: #{reinformer_forward.5} parent=5 // pred_fallthru
      _
    %p213 = scmp.le.s32.totalorder 1, %s12
    %p214 = scmp.lt.s32.totalorder %s12, 3
    %p215 = pnand %p213, %p214
    %p216 = pneg %p215
    // Predicated region
    $region41: #{reinformer_forward.5} parent=5 // pred_check
      _
    $region42: #{reinformer_forward.5} parent=5 // pred_check_branch
      %218 = sbr.rel (%p215) target = $region44
    $region43: #{reinformer_forward.5} parent=5 // pred_region
      %s219 = ssub.s32 %s12, 1
      %s220 = smul.u32 2, %s17
      %p221 = scmp.lt.s32.totalorder %s220, 3
      %s222 = scalar_select %p221, %s220, 3
      %s223 = smul.addr %s222, 3
      %s224 = smul.addr %s223, 8
      %s225 = scalar_lea.vmem %s0, %s224
      %p226 = pneg %p38
      %p227 = pneg %p35
      %p228 = pneg %p59
      %p229 = pneg %p56
      %p230 = pneg %p80
      %p231 = pneg %p77
      %p232 = pneg %p101
      %p233 = pneg %p98
      %p234 = pneg %p122
      %p235 = pneg %p119
      %p236 = pneg %p143
      %p237 = pneg %p140
      %p238 = pneg %p169
      %p239 = pneg %p166
      %s240 = smul.u32 2, %s17
      %p241 = scmp.lt.s32.totalorder %s240, 3
      %s242 = scalar_select %p241, %s240, 3
      %s243 = smul.addr %s242, 3
      %s244 = smul.addr %s243, 8
      %s245 = scalar_lea.vmem %s6, %s244
      %s246 = smul.u32 2, %s17
      %p247 = scmp.lt.s32.totalorder %s246, 3
      %s248 = scalar_select %p247, %s246, 3
      %s249 = smul.addr %s248, 3
      %s250 = smul.addr %s249, 8
      %s251 = scalar_lea.vmem %s0, %s250
      %s252 = smul.u32 2, %s17
      %s253 = smul.u32 2, %s17
      %p254 = scmp.lt.s32.totalorder %s253, 3
      %s255 = scalar_select %p254, %s253, 3
      %s256 = smul.addr %s255, 3
      %s257 = smul.addr %s256, 8
      %s258 = scalar_lea.vmem %s6, %s257
      %s259 = smul.u32 2, %s17
      %v261 = vld [vmem:[%s5] sm:$0xff]
      %v262 = vld [vmem:[%s5 + $0x8] sm:$0xff]
      %v263 = vld [vmem:[%s5 + $0x10] sm:$0xff]
      %v264 = vld [vmem:[%s5 + $0x18] sm:$0xff]
      %v265 = vld [vmem:[%s251] sm:$0xff]
      %v266 = vld [vmem:[%s251 + $0x8] sm:$0xff]
      %v267 = vld [vmem:[%s251 + $0x10] sm:$0xff]
      %v268 = vld [vmem:[%s251 + $0x18] sm:$0xff]
      %v269 = vld [vmem:[%s251 + $0x20] sm:$0xff]
      %v270 = vld [vmem:[%s251 + $0x28] sm:$0xff]
      %v271 = vpack.c.bf16 %v266, %v265
      %v272 = vpack.c.bf16 %v268, %v267
      %v273 = vpack.c.bf16 %v270, %v269
      %v274 = vld [vmem:[%s1] sm:$0xff]
      %v275 = vld [vmem:[%s1 + $0x8] sm:$0xf]
      %v276 = vld [vmem:[%s1 + $0xc] sm:$0xff]
      %v277 = vld [vmem:[%s1 + $0x14] sm:$0xf]
      %v278 = vld [vmem:[%s1 + $0x18] sm:$0xff]
      %v279 = vld [vmem:[%s1 + $0x20] sm:$0xf]
      %v280 = vld [vmem:[%s1 + $0x24] sm:$0xff]
      %v281 = vld [vmem:[%s1 + $0x2c] sm:$0xf]
      %v282 = vld [vmem:[%s1 + $0x30] sm:$0xff]
      %v283 = vld [vmem:[%s1 + $0x38] sm:$0xf]
      %v284 = vld [vmem:[%s1 + $0x3c] sm:$0xff]
      %v285 = vld [vmem:[%s1 + $0x44] sm:$0xf]
      %v286 = vld [vmem:[%s1 + $0x48] sm:$0xff]
      %v287 = vld [vmem:[%s1 + $0x50] sm:$0xf]
      %v288 = vld [vmem:[%s1 + $0x54] sm:$0xff]
      %v289 = vld [vmem:[%s1 + $0x5c] sm:$0xf]
      %v290 = vld [vmem:[%s1 + $0x60] sm:$0xff]
      %v291 = vld [vmem:[%s1 + $0x68] sm:$0xf]
      %v292 = vld [vmem:[%s1 + $0x6c] sm:$0xff]
      %v293 = vld [vmem:[%s1 + $0x74] sm:$0xf]
      %v294 = vld [vmem:[%s1 + $0x78] sm:$0xff]
      %v295 = vld [vmem:[%s1 + $0x80] sm:$0xf]
      %v296 = vld [vmem:[%s1 + $0x84] sm:$0xff]
      %v297 = vld [vmem:[%s1 + $0x8c] sm:$0xf]
      %v298 = vld [vmem:[%s1 + $0x90] sm:$0xff]
      %v299 = vld [vmem:[%s1 + $0x98] sm:$0xf]
      %v300 = vld [vmem:[%s1 + $0x9c] sm:$0xff]
      %v301 = vld [vmem:[%s1 + $0xa4] sm:$0xf]
      %v302 = vld [vmem:[%s1 + $0xa8] sm:$0xff]
      %v303 = vld [vmem:[%s1 + $0xb0] sm:$0xf]
      %v304 = vld [vmem:[%s1 + $0xb4] sm:$0xff]
      %v305 = vld [vmem:[%s1 + $0xbc] sm:$0xf]
      %v306 = vlaneseq
      %v307 = vshrl.u32 %v306, 7
      %v308 = vsub.s32 0, %v307
      %v309 = vrot.slane %v261, %v308
      %v310 = vlaneseq
      %v311 = vshrl.u32 %v310, 7
      %v312 = vsub.s32 0, %v311
      %v313 = vrot.slane %v262, %v312
      %v314 = vlaneseq
      %v315 = vshrl.u32 %v314, 7
      %v316 = vsub.s32 0, %v315
      %v317 = vrot.slane %v263, %v316
      %v350 = vunpack.c.l.b16 %v274
      %v351 = vunpack.c.h.b16 %v274
      %v352 = vunpack.c.l.b16 %v275
      %v353 = vunpack.c.l.b16 %v276
      %v354 = vunpack.c.h.b16 %v276
      %v355 = vunpack.c.l.b16 %v277
      %v356 = vunpack.c.l.b16 %v278
      %v357 = vunpack.c.h.b16 %v278
      %v358 = vunpack.c.l.b16 %v279
      %v359 = vunpack.c.l.b16 %v280
      %v360 = vunpack.c.h.b16 %v280
      %v361 = vunpack.c.l.b16 %v281
      %v362 = vunpack.c.l.b16 %v282
      %v363 = vunpack.c.h.b16 %v282
      %v364 = vunpack.c.l.b16 %v283
      %v365 = vunpack.c.l.b16 %v284
      %v366 = vunpack.c.h.b16 %v284
      %v367 = vunpack.c.l.b16 %v285
      %v368 = vunpack.c.l.b16 %v286
      %v369 = vunpack.c.h.b16 %v286
      %v370 = vunpack.c.l.b16 %v287
      %v371 = vunpack.c.l.b16 %v288
      %v372 = vunpack.c.h.b16 %v288
      %v373 = vunpack.c.l.b16 %v289
      %v374 = vunpack.c.l.b16 %v290
      %v375 = vunpack.c.h.b16 %v290
      %v376 = vunpack.c.l.b16 %v291
      %v377 = vunpack.c.l.b16 %v292
      %v378 = vunpack.c.h.b16 %v292
      %v379 = vunpack.c.l.b16 %v293
      %v380 = vunpack.c.l.b16 %v294
      %v381 = vunpack.c.h.b16 %v294
      %v382 = vunpack.c.l.b16 %v295
      %v383 = vunpack.c.l.b16 %v296
      %v384 = vunpack.c.h.b16 %v296
      %v385 = vunpack.c.l.b16 %v297
      %v386 = vunpack.c.l.b16 %v298
      %v387 = vunpack.c.h.b16 %v298
      %v388 = vunpack.c.l.b16 %v299
      %v389 = vunpack.c.l.b16 %v300
      %v390 = vunpack.c.h.b16 %v300
      %v391 = vunpack.c.l.b16 %v301
      %v392 = vunpack.c.l.b16 %v302
      %v393 = vunpack.c.h.b16 %v302
      %v394 = vunpack.c.l.b16 %v303
      %v395 = vunpack.c.l.b16 %v304
      %v396 = vunpack.c.h.b16 %v304
      %v397 = vunpack.c.l.b16 %v305
      %v398 = vpack.c.b16 %v353, %v350
      %v399 = vpack.c.b16 %v354, %v351
      %v400 = vpack.c.b16 %v355, %v352
      %v401 = vpack.c.b16 %v359, %v356
      %v402 = vpack.c.b16 %v360, %v357
      %v403 = vpack.c.b16 %v361, %v358
      %v404 = vpack.c.b16 %v365, %v362
      %v405 = vpack.c.b16 %v366, %v363
      %v406 = vpack.c.b16 %v367, %v364
      %v407 = vpack.c.b16 %v371, %v368
      %v408 = vpack.c.b16 %v372, %v369
      %v409 = vpack.c.b16 %v373, %v370
      %v410 = vpack.c.b16 %v377, %v374
      %v411 = vpack.c.b16 %v378, %v375
      %v412 = vpack.c.b16 %v379, %v376
      %v413 = vpack.c.b16 %v383, %v380
      %v414 = vpack.c.b16 %v384, %v381
      %v415 = vpack.c.b16 %v385, %v382
      %v416 = vpack.c.b16 %v389, %v386
      %v417 = vpack.c.b16 %v390, %v387
      %v418 = vpack.c.b16 %v391, %v388
      %v419 = vpack.c.b16 %v395, %v392
      %v420 = vpack.c.b16 %v396, %v393
      %v421 = vpack.c.b16 %v397, %v394
      %446 = vmatprep.subr.bf16.mxu0 %v420
      %447 = vmatpush1.bf16.msra.mxu0 %v419
      %448 = vmatprep.subr.bf16.mxu0 %v417
      %449 = vmatpush1.bf16.msra.mxu0 %v416
      %450 = vmatprep.subr.bf16.mxu0 %v414
      %451 = vmatpush1.bf16.msra.mxu0 %v413
      %452 = vmatprep.subr.bf16.mxu0 %v411
      %453 = vmatpush1.bf16.msra.mxu0 %v410
      %454 = vmatprep.subr.bf16.mxu0 %v408
      %455 = vmatpush1.bf16.msra.mxu0 %v407
      %456 = vmatprep.subr.bf16.mxu0 %v405
      %457 = vmatpush1.bf16.msra.mxu0 %v404
      %458 = vmatprep.subr.bf16.mxu0 %v402
      %459 = vmatpush1.bf16.msra.mxu0 %v401
      %460 = vmatprep.subr.bf16.mxu0 %v399
      %461 = vmatpush1.bf16.msra.mxu0 %v398
      %462 = vmatprep.subr.bf16.mxu0 0
      %463 = vmatpush2.bf16.msra.mxu0 0
      %464 = vmatprep.subr.bf16.mxu0 0
      %465 = vmatpush2.bf16.msra.mxu0 0
      %466 = vmatprep.subr.bf16.mxu0 0
      %467 = vmatpush2.bf16.msra.mxu0 0
      %468 = vmatprep.subr.bf16.mxu0 0
      %469 = vmatpush2.bf16.msra.mxu0 0
      %470 = vmatprep.subr.bf16.mxu0 0
      %471 = vmatpush2.bf16.msra.mxu0 0
      %472 = vmatprep.subr.bf16.mxu0 0
      %473 = vmatpush2.bf16.msra.mxu0 0
      %474 = vmatprep.subr.bf16.mxu0 0
      %475 = vmatpush2.bf16.msra.mxu0 0
      %476 = vmatprep.subr.bf16.mxu0 0
      %477 = vmatpush2.bf16.msra.mxu0 0
      %478 = vmatprep.mubr.bf16.mxu0 0
      %479 = vmatmul.mubr.bf16.gmra.mxu0 %v271
      %v480 = vpop.f32.mrf.mxu0
      %v481 = vadd.f32 %v309, %v480
      %v482 = vpop.f32.mrf.mxu0
      %v483 = vadd.f32 %v313, %v482
      %v484 = vpop.f32.mrf.mxu0
      %v485 = vadd.f32 %v309, %v484
      %v486 = vpop.f32.mrf.mxu0
      %v487 = vadd.f32 %v313, %v486
      %488 = vmatprep.mubr.bf16.mxu0 0
      %489 = vmatmul.mubr.bf16.gmra.mxu0 %v272
      %v490 = vpop.f32.mrf.mxu0
      %v491 = vadd.f32 %v309, %v490
      %v492 = vpop.f32.mrf.mxu0
      %v493 = vadd.f32 %v313, %v492
      %v494 = vpop.f32.mrf.mxu0
      %v495 = vadd.f32 %v309, %v494
      %v496 = vpop.f32.mrf.mxu0
      %v497 = vadd.f32 %v313, %v496
      %498 = vmatprep.mubr.bf16.mxu0 0
      %499 = vmatmul.mubr.bf16.gmra.mxu0 %v273
      %v500 = vpop.f32.mrf.mxu0
      %v501 = vadd.f32 %v309, %v500
      %v502 = vpop.f32.mrf.mxu0
      %v503 = vadd.f32 %v313, %v502
      %v504 = vpop.f32.mrf.mxu0
      %v505 = vadd.f32 %v309, %v504
      %v506 = vpop.f32.mrf.mxu0
      %v507 = vadd.f32 %v313, %v506
      %508 = vdwg.mxu0
      %509 = vmatprep.subr.bf16.mxu0 0
      %510 = vmatpush1.bf16.msra.mxu0 %v421
      %511 = vmatprep.subr.bf16.mxu0 0
      %512 = vmatpush1.bf16.msra.mxu0 %v418
      %513 = vmatprep.subr.bf16.mxu0 0
      %514 = vmatpush1.bf16.msra.mxu0 %v415
      %515 = vmatprep.subr.bf16.mxu0 0
      %516 = vmatpush1.bf16.msra.mxu0 %v412
      %517 = vmatprep.subr.bf16.mxu0 0
      %518 = vmatpush1.bf16.msra.mxu0 %v409
      %519 = vmatprep.subr.bf16.mxu0 0
      %520 = vmatpush1.bf16.msra.mxu0 %v406
      %521 = vmatprep.subr.bf16.mxu0 0
      %522 = vmatpush1.bf16.msra.mxu0 %v403
      %523 = vmatprep.subr.bf16.mxu0 0
      %524 = vmatpush1.bf16.msra.mxu0 %v400
      %525 = vmatprep.subr.bf16.mxu0 0
      %526 = vmatpush2.bf16.msra.mxu0 0
      %527 = vmatprep.subr.bf16.mxu0 0
      %528 = vmatpush2.bf16.msra.mxu0 0
      %529 = vmatprep.subr.bf16.mxu0 0
      %530 = vmatpush2.bf16.msra.mxu0 0
      %531 = vmatprep.subr.bf16.mxu0 0
      %532 = vmatpush2.bf16.msra.mxu0 0
      %533 = vmatprep.subr.bf16.mxu0 0
      %534 = vmatpush2.bf16.msra.mxu0 0
      %535 = vmatprep.subr.bf16.mxu0 0
      %536 = vmatpush2.bf16.msra.mxu0 0
      %537 = vmatprep.subr.bf16.mxu0 0
      %538 = vmatpush2.bf16.msra.mxu0 0
      %539 = vmatprep.subr.bf16.mxu0 0
      %540 = vmatpush2.bf16.msra.mxu0 0
      %541 = vmatprep.mubr.bf16.mxu0 0
      %542 = vmatmul.mubr.bf16.gmra.mxu0 %v271
      %v543 = vpop.f32.mrf.mxu0
      %v544 = vadd.f32 %v317, %v543
      %v545 = vpop.f32.mrf.mxu0
      %v546 = vpop.f32.mrf.mxu0
      %v547 = vadd.f32 %v317, %v546
      %v548 = vpop.f32.mrf.mxu0
      %549 = vmatprep.mubr.bf16.mxu0 0
      %550 = vmatmul.mubr.bf16.gmra.mxu0 %v272
      %v551 = vpop.f32.mrf.mxu0
      %v552 = vadd.f32 %v317, %v551
      %v553 = vpop.f32.mrf.mxu0
      %v554 = vpop.f32.mrf.mxu0
      %v555 = vadd.f32 %v317, %v554
      %v556 = vpop.f32.mrf.mxu0
      %557 = vmatprep.mubr.bf16.mxu0 0
      %558 = vmatmul.mubr.bf16.gmra.mxu0 %v273
      %v559 = vpop.f32.mrf.mxu0
      %v560 = vadd.f32 %v317, %v559
      %v561 = vpop.f32.mrf.mxu0
      %v562 = vpop.f32.mrf.mxu0
      %v563 = vadd.f32 %v317, %v562
      %v564 = vpop.f32.mrf.mxu0
      %565 = vdwg.mxu0
      %v566 = vlaneseq
      %v567 = vshrl.u32 %v566, 7
      %v568 = vadd.s32 %v567, 8
      %v569 = vadd.s32 %v567, 16
      %v570 = vlaneseq
      %v571 = vand.u32 %v570, 127
      %vm572 = vcmp.ge.s32.totalorder %v567, %v571
      %vm573 = vcmp.ge.s32.totalorder %v568, %v571
      %vm574 = vcmp.ge.s32.totalorder %v569, %v571
      %v575 = vpack.c.bf16 %v485, %v481
      %v576 = vpack.c.bf16 %v491, %v491
      %v577 = vpack.c.bf16 %v487, %v483
      %v578 = vpack.c.bf16 %v493, %v493
      %v579 = vpack.c.bf16 %v547, %v544
      %v580 = vpack.c.bf16 %v552, %v552
      %vm581 = vcmask 523264
      %v583 = vsel %vm581, %v575, 0
      %v586 = vsel %vm581, %v576, 0
      %v589 = vsel %vm581, %v577, 0
      %v592 = vsel %vm581, %v578, 0
      %594 = vmatprep.subr.bf16.mxu0 0
      %595 = vmatpush1.bf16.xpose.msra.mxu0 0
      %596 = vmatprep.subr.bf16.mxu0 0
      %597 = vmatpush1.bf16.xpose.msra.mxu0 0
      %598 = vmatprep.subr.bf16.mxu0 0
      %599 = vmatpush1.bf16.xpose.msra.mxu0 0
      %600 = vmatprep.subr.bf16.mxu0 0
      %601 = vmatpush1.bf16.xpose.msra.mxu0 0
      %602 = vmatprep.subr.bf16.mxu0 0
      %603 = vmatpush1.bf16.xpose.msra.mxu0 0
      %604 = vmatprep.subr.bf16.mxu0 0
      %605 = vmatpush1.bf16.xpose.msra.mxu0 0
      %606 = vmatprep.subr.bf16.mxu0 0
      %607 = vmatpush1.bf16.xpose.msra.mxu0 %v592
      %608 = vmatprep.subr.bf16.mxu0 0
      %609 = vmatpush1.bf16.xpose.msra.mxu0 %v589
      %610 = vmatprep.subr.bf16.mxu0 0
      %611 = vmatpush2.bf16.xpose.msra.mxu0 0
      %612 = vmatprep.subr.bf16.mxu0 0
      %613 = vmatpush2.bf16.xpose.msra.mxu0 0
      %614 = vmatprep.subr.bf16.mxu0 0
      %615 = vmatpush2.bf16.xpose.msra.mxu0 0
      %616 = vmatprep.subr.bf16.mxu0 0
      %617 = vmatpush2.bf16.xpose.msra.mxu0 0
      %618 = vmatprep.subr.bf16.mxu0 0
      %619 = vmatpush2.bf16.xpose.msra.mxu0 0
      %620 = vmatprep.subr.bf16.mxu0 0
      %621 = vmatpush2.bf16.xpose.msra.mxu0 0
      %622 = vmatprep.subr.bf16.mxu0 0
      %623 = vmatpush2.bf16.xpose.msra.mxu0 0
      %624 = vmatprep.subr.bf16.mxu0 0
      %625 = vmatpush2.bf16.xpose.msra.mxu0 0
      %626 = vmatprep.mubr.bf16.mxu0 0
      %627 = vmatmul.mubr.bf16.gmra.mxu0 %v583
      %v628 = vpop.f32.mrf.mxu0
      %v629 = vadd.f32 0.0, %v628
      %v630 = vpop.f32.mrf.mxu0
      %v631 = vpop.f32.mrf.mxu0
      %v632 = vadd.f32 0.0, %v631
      %v633 = vpop.f32.mrf.mxu0
      %634 = vmatprep.mubr.bf16.mxu0 0
      %635 = vmatmul.mubr.bf16.gmra.mxu0 %v586
      %v636 = vpop.f32.mrf.mxu0
      %v637 = vadd.f32 0.0, %v636
      %v638 = vpop.f32.mrf.mxu0
      %v639 = vpop.f32.mrf.mxu0
      %v640 = vpop.f32.mrf.mxu0
      %641 = vdwg.mxu0
      %v642 = vmul.f32 %v629, 0.125
      %v643 = vmul.f32 %v632, 0.125
      %v644 = vmul.f32 %v637, 0.125
      %v645 = vsel %vm572, %v642, -1e+30
      %v646 = vsel %vm573, %v643, -1e+30
      %v647 = vsel %vm574, %v644, -1e+30
      %vm648 = vcmask 195584
      %v649 = vsel %vm648, %v645, -inf
      %650 = vmax.xlane.f32.xlu0 %v649
      %v651 = vpop.xlane.xlu0 %650
      %v652 = vsel %vm648, %v646, -inf
      %653 = vmax.xlane.f32.xlu0 %v652
      %v654 = vpop.xlane.xlu0 %653
      %v655 = vsel %vm648, %v647, -inf
      %656 = vmax.xlane.f32.xlu0 %v655
      %v657 = vpop.xlane.xlu0 %656
      %v658 = vsub.f32 %v645, %v651
      %v659 = vsub.f32 %v646, %v654
      %v660 = vsub.f32 %v647, %v657
      %v661 = vmul.f32 %v658, 1.442695
      %v662 = vpow.pop %v661
      %v663 = vmul.f32 %v659, 1.442695
      %v664 = vpow.pop %v663
      %v665 = vmul.f32 %v660, 1.442695
      %v666 = vpow.pop %v665
      %v667 = vsel %vm648, %v662, 0.0
      %668 = vadd.xlane.f32.xlu0 %v667
      %v669 = vpop.xlane.xlu0 %668
      %v670 = vsel %vm648, %v664, 0.0
      %671 = vadd.xlane.f32.xlu0 %v670
      %v672 = vpop.xlane.xlu0 %671
      %v673 = vsel %vm648, %v666, 0.0
      %674 = vadd.xlane.f32.xlu0 %v673
      %v675 = vpop.xlane.xlu0 %674
      %v676 = vrcp.pop %v669
      %v677 = vrcp.pop %v672
      %v678 = vrcp.pop %v675
      %v679 = vmul.f32 %v662, %v676
      %v680 = vmul.f32 %v664, %v677
      %v681 = vmul.f32 %v666, %v678
      %v682 = vpack.c.bf16 %v680, %v679
      %v683 = vpack.c.bf16 %v681, %v681
      %v685 = vsel %vm648, %v682, 0
      %v688 = vsel %vm648, %v683, 0
      %vm690 = vcmask 1043456
      %v692 = vsel %vm690, %v580, 0
      %694 = vmatprep.subr.bf16.mxu0 0
      %695 = vmatpush1.bf16.msra.mxu0 0
      %696 = vmatprep.subr.bf16.mxu0 0
      %697 = vmatpush1.bf16.msra.mxu0 0
      %698 = vmatprep.subr.bf16.mxu0 0
      %699 = vmatpush1.bf16.msra.mxu0 0
      %700 = vmatprep.subr.bf16.mxu0 0
      %701 = vmatpush1.bf16.msra.mxu0 0
      %702 = vmatprep.subr.bf16.mxu0 0
      %703 = vmatpush1.bf16.msra.mxu0 0
      %704 = vmatprep.subr.bf16.mxu0 0
      %705 = vmatpush1.bf16.msra.mxu0 0
      %706 = vmatprep.subr.bf16.mxu0 0
      %707 = vmatpush1.bf16.msra.mxu0 %v692
      %708 = vmatprep.subr.bf16.mxu0 0
      %709 = vmatpush1.bf16.msra.mxu0 %v579
      %710 = vmatprep.subr.bf16.mxu0 0
      %711 = vmatpush2.bf16.msra.mxu0 0
      %712 = vmatprep.subr.bf16.mxu0 0
      %713 = vmatpush2.bf16.msra.mxu0 0
      %714 = vmatprep.subr.bf16.mxu0 0
      %715 = vmatpush2.bf16.msra.mxu0 0
      %716 = vmatprep.subr.bf16.mxu0 0
      %717 = vmatpush2.bf16.msra.mxu0 0
      %718 = vmatprep.subr.bf16.mxu0 0
      %719 = vmatpush2.bf16.msra.mxu0 0
      %720 = vmatprep.subr.bf16.mxu0 0
      %721 = vmatpush2.bf16.msra.mxu0 0
      %722 = vmatprep.subr.bf16.mxu0 0
      %723 = vmatpush2.bf16.msra.mxu0 0
      %724 = vmatprep.subr.bf16.mxu0 0
      %725 = vmatpush2.bf16.msra.mxu0 0
      %726 = vmatprep.mubr.bf16.mxu0 0
      %727 = vmatmul.mubr.bf16.gmra.mxu0 %v685
      %v728 = vpop.f32.mrf.mxu0
      %v729 = vadd.f32 0.0, %v728
      %v730 = vpop.f32.mrf.mxu0
      %v731 = vpop.f32.mrf.mxu0
      %v732 = vadd.f32 0.0, %v731
      %v733 = vpop.f32.mrf.mxu0
      %734 = vmatprep.mubr.bf16.mxu0 0
      %735 = vmatmul.mubr.bf16.gmra.mxu0 %v688
      %v736 = vpop.f32.mrf.mxu0
      %v737 = vadd.f32 0.0, %v736
      %v738 = vpop.f32.mrf.mxu0
      %v739 = vpop.f32.mrf.mxu0
      %v740 = vpop.f32.mrf.mxu0
      %741 = vdwg.mxu0
      %742 = vst.msk [vmem:[#allocation2] sm:$0xff] %vm581, %v729
      %743 = vst.msk [vmem:[#allocation2 + $0x8] sm:$0xff] %vm581, %v732
      %744 = vst.msk [vmem:[#allocation2 + $0x10] sm:$0xff] %vm581, %v737
      %747 = vrot.lane.b32.xlu0 %v575, 64
      %v748 = vpop.permute.xlu0 %747
      %749 = vrot.lane.b32.xlu0 %v576, 64
      %v750 = vpop.permute.xlu0 %749
      %753 = vrot.lane.b32.xlu0 %v577, 64
      %v754 = vpop.permute.xlu0 %753
      %755 = vrot.lane.b32.xlu0 %v578, 64
      %v756 = vpop.permute.xlu0 %755
      %v758 = vsel %vm581, %v748, 0
      %v761 = vsel %vm581, %v750, 0
      %v764 = vsel %vm581, %v754, 0
      %v767 = vsel %vm581, %v756, 0
      %769 = vmatprep.subr.bf16.mxu0 0
      %770 = vmatpush1.bf16.xpose.msra.mxu0 0
      %771 = vmatprep.subr.bf16.mxu0 0
      %772 = vmatpush1.bf16.xpose.msra.mxu0 0
      %773 = vmatprep.subr.bf16.mxu0 0
      %774 = vmatpush1.bf16.xpose.msra.mxu0 0
      %775 = vmatprep.subr.bf16.mxu0 0
      %776 = vmatpush1.bf16.xpose.msra.mxu0 0
      %777 = vmatprep.subr.bf16.mxu0 0
      %778 = vmatpush1.bf16.xpose.msra.mxu0 0
      %779 = vmatprep.subr.bf16.mxu0 0
      %780 = vmatpush1.bf16.xpose.msra.mxu0 0
      %781 = vmatprep.subr.bf16.mxu0 0
      %782 = vmatpush1.bf16.xpose.msra.mxu0 %v767
      %783 = vmatprep.subr.bf16.mxu0 0
      %784 = vmatpush1.bf16.xpose.msra.mxu0 %v764
      %785 = vmatprep.subr.bf16.mxu0 0
      %786 = vmatpush2.bf16.xpose.msra.mxu0 0
      %787 = vmatprep.subr.bf16.mxu0 0
      %788 = vmatpush2.bf16.xpose.msra.mxu0 0
      %789 = vmatprep.subr.bf16.mxu0 0
      %790 = vmatpush2.bf16.xpose.msra.mxu0 0
      %791 = vmatprep.subr.bf16.mxu0 0
      %792 = vmatpush2.bf16.xpose.msra.mxu0 0
      %793 = vmatprep.subr.bf16.mxu0 0
      %794 = vmatpush2.bf16.xpose.msra.mxu0 0
      %795 = vmatprep.subr.bf16.mxu0 0
      %796 = vmatpush2.bf16.xpose.msra.mxu0 0
      %797 = vmatprep.subr.bf16.mxu0 0
      %798 = vmatpush2.bf16.xpose.msra.mxu0 0
      %799 = vmatprep.subr.bf16.mxu0 0
      %800 = vmatpush2.bf16.xpose.msra.mxu0 0
      %801 = vmatprep.mubr.bf16.mxu0 0
      %802 = vmatmul.mubr.bf16.gmra.mxu0 %v758
      %v803 = vpop.f32.mrf.mxu0
      %v804 = vadd.f32 0.0, %v803
      %v805 = vpop.f32.mrf.mxu0
      %v806 = vpop.f32.mrf.mxu0
      %v807 = vadd.f32 0.0, %v806
      %v808 = vpop.f32.mrf.mxu0
      %809 = vmatprep.mubr.bf16.mxu0 0
      %810 = vmatmul.mubr.bf16.gmra.mxu0 %v761
      %v811 = vpop.f32.mrf.mxu0
      %v812 = vadd.f32 0.0, %v811
      %v813 = vpop.f32.mrf.mxu0
      %v814 = vpop.f32.mrf.mxu0
      %v815 = vpop.f32.mrf.mxu0
      %816 = vdwg.mxu0
      %v817 = vmul.f32 %v804, 0.125
      %v818 = vmul.f32 %v807, 0.125
      %v819 = vmul.f32 %v812, 0.125
      %v820 = vsel %vm572, %v817, -1e+30
      %v821 = vsel %vm573, %v818, -1e+30
      %v822 = vsel %vm574, %v819, -1e+30
      %v823 = vsel %vm648, %v820, -inf
      %824 = vmax.xlane.f32.xlu0 %v823
      %v825 = vpop.xlane.xlu0 %824
      %v826 = vsel %vm648, %v821, -inf
      %827 = vmax.xlane.f32.xlu0 %v826
      %v828 = vpop.xlane.xlu0 %827
      %v829 = vsel %vm648, %v822, -inf
      %830 = vmax.xlane.f32.xlu0 %v829
      %v831 = vpop.xlane.xlu0 %830
      %v832 = vsub.f32 %v820, %v825
      %v833 = vsub.f32 %v821, %v828
      %v834 = vsub.f32 %v822, %v831
      %v835 = vmul.f32 %v832, 1.442695
      %v836 = vpow.pop %v835
      %v837 = vmul.f32 %v833, 1.442695
      %v838 = vpow.pop %v837
      %v839 = vmul.f32 %v834, 1.442695
      %v840 = vpow.pop %v839
      %v841 = vsel %vm648, %v836, 0.0
      %842 = vadd.xlane.f32.xlu0 %v841
      %v843 = vpop.xlane.xlu0 %842
      %v844 = vsel %vm648, %v838, 0.0
      %845 = vadd.xlane.f32.xlu0 %v844
      %v846 = vpop.xlane.xlu0 %845
      %v847 = vsel %vm648, %v840, 0.0
      %848 = vadd.xlane.f32.xlu0 %v847
      %v849 = vpop.xlane.xlu0 %848
      %v850 = vrcp.pop %v843
      %v851 = vrcp.pop %v846
      %v852 = vrcp.pop %v849
      %v853 = vmul.f32 %v836, %v850
      %v854 = vmul.f32 %v838, %v851
      %v855 = vmul.f32 %v840, %v852
      %v856 = vpack.c.bf16 %v854, %v853
      %v857 = vpack.c.bf16 %v855, %v855
      %860 = vrot.lane.b32.xlu0 %v579, 64
      %v861 = vpop.permute.xlu0 %860
      %862 = vrot.lane.b32.xlu0 %v580, 64
      %v863 = vpop.permute.xlu0 %862
      %v866 = vsel %vm648, %v856, 0
      %v869 = vsel %vm648, %v857, 0
      %v872 = vsel %vm690, %v863, 0
      %874 = vmatprep.subr.bf16.mxu0 0
      %875 = vmatpush1.bf16.msra.mxu0 0
      %876 = vmatprep.subr.bf16.mxu0 0
      %877 = vmatpush1.bf16.msra.mxu0 0
      %878 = vmatprep.subr.bf16.mxu0 0
      %879 = vmatpush1.bf16.msra.mxu0 0
      %880 = vmatprep.subr.bf16.mxu0 0
      %881 = vmatpush1.bf16.msra.mxu0 0
      %882 = vmatprep.subr.bf16.mxu0 0
      %883 = vmatpush1.bf16.msra.mxu0 0
      %884 = vmatprep.subr.bf16.mxu0 0
      %885 = vmatpush1.bf16.msra.mxu0 0
      %886 = vmatprep.subr.bf16.mxu0 0
      %887 = vmatpush1.bf16.msra.mxu0 %v872
      %888 = vmatprep.subr.bf16.mxu0 0
      %889 = vmatpush1.bf16.msra.mxu0 %v861
      %890 = vmatprep.subr.bf16.mxu0 0
      %891 = vmatpush2.bf16.msra.mxu0 0
      %892 = vmatprep.subr.bf16.mxu0 0
      %893 = vmatpush2.bf16.msra.mxu0 0
      %894 = vmatprep.subr.bf16.mxu0 0
      %895 = vmatpush2.bf16.msra.mxu0 0
      %896 = vmatprep.subr.bf16.mxu0 0
      %897 = vmatpush2.bf16.msra.mxu0 0
      %898 = vmatprep.subr.bf16.mxu0 0
      %899 = vmatpush2.bf16.msra.mxu0 0
      %900 = vmatprep.subr.bf16.mxu0 0
      %901 = vmatpush2.bf16.msra.mxu0 0
      %902 = vmatprep.subr.bf16.mxu0 0
      %903 = vmatpush2.bf16.msra.mxu0 0
      %904 = vmatprep.subr.bf16.mxu0 0
      %905 = vmatpush2.bf16.msra.mxu0 0
      %906 = vmatprep.mubr.bf16.mxu0 0
      %907 = vmatmul.mubr.bf16.gmra.mxu0 %v866
      %v908 = vpop.f32.mrf.mxu0
      %v909 = vadd.f32 0.0, %v908
      %v910 = vpop.f32.mrf.mxu0
      %v911 = vpop.f32.mrf.mxu0
      %v912 = vadd.f32 0.0, %v911
      %v913 = vpop.f32.mrf.mxu0
      %914 = vmatprep.mubr.bf16.mxu0 0
      %915 = vmatmul.mubr.bf16.gmra.mxu0 %v869
      %v916 = vpop.f32.mrf.mxu0
      %v917 = vadd.f32 0.0, %v916
      %v918 = vpop.f32.mrf.mxu0
      %v919 = vpop.f32.mrf.mxu0
      %v920 = vpop.f32.mrf.mxu0
      %921 = vdwg.mxu0
      %925 = vrot.lane.b32.xlu0 %v909, 64
      %v926 = vpop.permute.xlu0 %925
      %927 = vrot.lane.b32.xlu0 %v912, 64
      %v928 = vpop.permute.xlu0 %927
      %929 = vrot.lane.b32.xlu0 %v917, 64
      %v930 = vpop.permute.xlu0 %929
      %vm934 = vcmask 1048064
      %935 = vst.msk [vmem:[#allocation2] sm:$0xff] %vm934, %v926
      %936 = vst.msk [vmem:[#allocation2 + $0x8] sm:$0xff] %vm934, %v928
      %937 = vst.msk [vmem:[#allocation2 + $0x10] sm:$0xff] %vm934, %v930
      %v938 = vpack.c.bf16 %v501, %v495
      %v939 = vpack.c.bf16 %v505, %v505
      %v940 = vpack.c.bf16 %v503, %v497
      %v941 = vpack.c.bf16 %v507, %v507
      %v942 = vpack.c.bf16 %v560, %v555
      %v943 = vpack.c.bf16 %v563, %v563
      %v945 = vsel %vm581, %v938, 0
      %v948 = vsel %vm581, %v939, 0
      %v951 = vsel %vm581, %v940, 0
      %v954 = vsel %vm581, %v941, 0
      %956 = vmatprep.subr.bf16.mxu0 0
      %957 = vmatpush1.bf16.xpose.msra.mxu0 0
      %958 = vmatprep.subr.bf16.mxu0 0
      %959 = vmatpush1.bf16.xpose.msra.mxu0 0
      %960 = vmatprep.subr.bf16.mxu0 0
      %961 = vmatpush1.bf16.xpose.msra.mxu0 0
      %962 = vmatprep.subr.bf16.mxu0 0
      %963 = vmatpush1.bf16.xpose.msra.mxu0 0
      %964 = vmatprep.subr.bf16.mxu0 0
      %965 = vmatpush1.bf16.xpose.msra.mxu0 0
      %966 = vmatprep.subr.bf16.mxu0 0
      %967 = vmatpush1.bf16.xpose.msra.mxu0 0
      %968 = vmatprep.subr.bf16.mxu0 0
      %969 = vmatpush1.bf16.xpose.msra.mxu0 %v954
      %970 = vmatprep.subr.bf16.mxu0 0
      %971 = vmatpush1.bf16.xpose.msra.mxu0 %v951
      %972 = vmatprep.subr.bf16.mxu0 0
      %973 = vmatpush2.bf16.xpose.msra.mxu0 0
      %974 = vmatprep.subr.bf16.mxu0 0
      %975 = vmatpush2.bf16.xpose.msra.mxu0 0
      %976 = vmatprep.subr.bf16.mxu0 0
      %977 = vmatpush2.bf16.xpose.msra.mxu0 0
      %978 = vmatprep.subr.bf16.mxu0 0
      %979 = vmatpush2.bf16.xpose.msra.mxu0 0
      %980 = vmatprep.subr.bf16.mxu0 0
      %981 = vmatpush2.bf16.xpose.msra.mxu0 0
      %982 = vmatprep.subr.bf16.mxu0 0
      %983 = vmatpush2.bf16.xpose.msra.mxu0 0
      %984 = vmatprep.subr.bf16.mxu0 0
      %985 = vmatpush2.bf16.xpose.msra.mxu0 0
      %986 = vmatprep.subr.bf16.mxu0 0
      %987 = vmatpush2.bf16.xpose.msra.mxu0 0
      %988 = vmatprep.mubr.bf16.mxu0 0
      %989 = vmatmul.mubr.bf16.gmra.mxu0 %v945
      %v990 = vpop.f32.mrf.mxu0
      %v991 = vadd.f32 0.0, %v990
      %v992 = vpop.f32.mrf.mxu0
      %v993 = vpop.f32.mrf.mxu0
      %v994 = vadd.f32 0.0, %v993
      %v995 = vpop.f32.mrf.mxu0
      %996 = vmatprep.mubr.bf16.mxu0 0
      %997 = vmatmul.mubr.bf16.gmra.mxu0 %v948
      %v998 = vpop.f32.mrf.mxu0
      %v999 = vadd.f32 0.0, %v998
      %v1000 = vpop.f32.mrf.mxu0
      %v1001 = vpop.f32.mrf.mxu0
      %v1002 = vpop.f32.mrf.mxu0
      %1003 = vdwg.mxu0
      %v1004 = vmul.f32 %v991, 0.125
      %v1005 = vmul.f32 %v994, 0.125
      %v1006 = vmul.f32 %v999, 0.125
      %v1007 = vsel %vm572, %v1004, -1e+30
      %v1008 = vsel %vm573, %v1005, -1e+30
      %v1009 = vsel %vm574, %v1006, -1e+30
      %v1010 = vsel %vm648, %v1007, -inf
      %1011 = vmax.xlane.f32.xlu0 %v1010
      %v1012 = vpop.xlane.xlu0 %1011
      %v1013 = vsel %vm648, %v1008, -inf
      %1014 = vmax.xlane.f32.xlu0 %v1013
      %v1015 = vpop.xlane.xlu0 %1014
      %v1016 = vsel %vm648, %v1009, -inf
      %1017 = vmax.xlane.f32.xlu0 %v1016
      %v1018 = vpop.xlane.xlu0 %1017
      %v1019 = vsub.f32 %v1007, %v1012
      %v1020 = vsub.f32 %v1008, %v1015
      %v1021 = vsub.f32 %v1009, %v1018
      %v1022 = vmul.f32 %v1019, 1.442695
      %v1023 = vpow.pop %v1022
      %v1024 = vmul.f32 %v1020, 1.442695
      %v1025 = vpow.pop %v1024
      %v1026 = vmul.f32 %v1021, 1.442695
      %v1027 = vpow.pop %v1026
      %v1028 = vsel %vm648, %v1023, 0.0
      %1029 = vadd.xlane.f32.xlu0 %v1028
      %v1030 = vpop.xlane.xlu0 %1029
      %v1031 = vsel %vm648, %v1025, 0.0
      %1032 = vadd.xlane.f32.xlu0 %v1031
      %v1033 = vpop.xlane.xlu0 %1032
      %v1034 = vsel %vm648, %v1027, 0.0
      %1035 = vadd.xlane.f32.xlu0 %v1034
      %v1036 = vpop.xlane.xlu0 %1035
      %v1037 = vrcp.pop %v1030
      %v1038 = vrcp.pop %v1033
      %v1039 = vrcp.pop %v1036
      %v1040 = vmul.f32 %v1023, %v1037
      %v1041 = vmul.f32 %v1025, %v1038
      %v1042 = vmul.f32 %v1027, %v1039
      %v1043 = vpack.c.bf16 %v1041, %v1040
      %v1044 = vpack.c.bf16 %v1042, %v1042
      %v1046 = vsel %vm648, %v1043, 0
      %v1049 = vsel %vm648, %v1044, 0
      %v1052 = vsel %vm690, %v943, 0
      %1054 = vmatprep.subr.bf16.mxu0 0
      %1055 = vmatpush1.bf16.msra.mxu0 0
      %1056 = vmatprep.subr.bf16.mxu0 0
      %1057 = vmatpush1.bf16.msra.mxu0 0
      %1058 = vmatprep.subr.bf16.mxu0 0
      %1059 = vmatpush1.bf16.msra.mxu0 0
      %1060 = vmatprep.subr.bf16.mxu0 0
      %1061 = vmatpush1.bf16.msra.mxu0 0
      %1062 = vmatprep.subr.bf16.mxu0 0
      %1063 = vmatpush1.bf16.msra.mxu0 0
      %1064 = vmatprep.subr.bf16.mxu0 0
      %1065 = vmatpush1.bf16.msra.mxu0 0
      %1066 = vmatprep.subr.bf16.mxu0 0
      %1067 = vmatpush1.bf16.msra.mxu0 %v1052
      %1068 = vmatprep.subr.bf16.mxu0 0
      %1069 = vmatpush1.bf16.msra.mxu0 %v942
      %1070 = vmatprep.subr.bf16.mxu0 0
      %1071 = vmatpush2.bf16.msra.mxu0 0
      %1072 = vmatprep.subr.bf16.mxu0 0
      %1073 = vmatpush2.bf16.msra.mxu0 0
      %1074 = vmatprep.subr.bf16.mxu0 0
      %1075 = vmatpush2.bf16.msra.mxu0 0
      %1076 = vmatprep.subr.bf16.mxu0 0
      %1077 = vmatpush2.bf16.msra.mxu0 0
      %1078 = vmatprep.subr.bf16.mxu0 0
      %1079 = vmatpush2.bf16.msra.mxu0 0
      %1080 = vmatprep.subr.bf16.mxu0 0
      %1081 = vmatpush2.bf16.msra.mxu0 0
      %1082 = vmatprep.subr.bf16.mxu0 0
      %1083 = vmatpush2.bf16.msra.mxu0 0
      %1084 = vmatprep.subr.bf16.mxu0 0
      %1085 = vmatpush2.bf16.msra.mxu0 0
      %1086 = vmatprep.mubr.bf16.mxu0 0
      %1087 = vmatmul.mubr.bf16.gmra.mxu0 %v1046
      %v1088 = vpop.f32.mrf.mxu0
      %v1089 = vadd.f32 0.0, %v1088
      %v1090 = vpop.f32.mrf.mxu0
      %v1091 = vpop.f32.mrf.mxu0
      %v1092 = vadd.f32 0.0, %v1091
      %v1093 = vpop.f32.mrf.mxu0
      %1094 = vmatprep.mubr.bf16.mxu0 0
      %1095 = vmatmul.mubr.bf16.gmra.mxu0 %v1049
      %v1096 = vpop.f32.mrf.mxu0
      %v1097 = vadd.f32 0.0, %v1096
      %v1098 = vpop.f32.mrf.mxu0
      %v1099 = vpop.f32.mrf.mxu0
      %v1100 = vpop.f32.mrf.mxu0
      %1101 = vdwg.mxu0
      %1102 = vst.msk [vmem:[#allocation2 + $0x18] sm:$0xff] %vm581, %v1089
      %1103 = vst.msk [vmem:[#allocation2 + $0x20] sm:$0xff] %vm581, %v1092
      %1104 = vst.msk [vmem:[#allocation2 + $0x28] sm:$0xff] %vm581, %v1097
      %1107 = vrot.lane.b32.xlu0 %v938, 64
      %v1108 = vpop.permute.xlu0 %1107
      %1109 = vrot.lane.b32.xlu0 %v939, 64
      %v1110 = vpop.permute.xlu0 %1109
      %1113 = vrot.lane.b32.xlu0 %v940, 64
      %v1114 = vpop.permute.xlu0 %1113
      %1115 = vrot.lane.b32.xlu0 %v941, 64
      %v1116 = vpop.permute.xlu0 %1115
      %v1118 = vsel %vm581, %v1108, 0
      %v1121 = vsel %vm581, %v1110, 0
      %v1124 = vsel %vm581, %v1114, 0
      %v1127 = vsel %vm581, %v1116, 0
      %1129 = vmatprep.subr.bf16.mxu0 0
      %1130 = vmatpush1.bf16.xpose.msra.mxu0 0
      %1131 = vmatprep.subr.bf16.mxu0 0
      %1132 = vmatpush1.bf16.xpose.msra.mxu0 0
      %1133 = vmatprep.subr.bf16.mxu0 0
      %1134 = vmatpush1.bf16.xpose.msra.mxu0 0
      %1135 = vmatprep.subr.bf16.mxu0 0
      %1136 = vmatpush1.bf16.xpose.msra.mxu0 0
      %1137 = vmatprep.subr.bf16.mxu0 0
      %1138 = vmatpush1.bf16.xpose.msra.mxu0 0
      %1139 = vmatprep.subr.bf16.mxu0 0
      %1140 = vmatpush1.bf16.xpose.msra.mxu0 0
      %1141 = vmatprep.subr.bf16.mxu0 0
      %1142 = vmatpush1.bf16.xpose.msra.mxu0 %v1127
      %1143 = vmatprep.subr.bf16.mxu0 0
      %1144 = vmatpush1.bf16.xpose.msra.mxu0 %v1124
      %1145 = vmatprep.subr.bf16.mxu0 0
      %1146 = vmatpush2.bf16.xpose.msra.mxu0 0
      %1147 = vmatprep.subr.bf16.mxu0 0
      %1148 = vmatpush2.bf16.xpose.msra.mxu0 0
      %1149 = vmatprep.subr.bf16.mxu0 0
      %1150 = vmatpush2.bf16.xpose.msra.mxu0 0
      %1151 = vmatprep.subr.bf16.mxu0 0
      %1152 = vmatpush2.bf16.xpose.msra.mxu0 0
      %1153 = vmatprep.subr.bf16.mxu0 0
      %1154 = vmatpush2.bf16.xpose.msra.mxu0 0
      %1155 = vmatprep.subr.bf16.mxu0 0
      %1156 = vmatpush2.bf16.xpose.msra.mxu0 0
      %1157 = vmatprep.subr.bf16.mxu0 0
      %1158 = vmatpush2.bf16.xpose.msra.mxu0 0
      %1159 = vmatprep.subr.bf16.mxu0 0
      %1160 = vmatpush2.bf16.xpose.msra.mxu0 0
      %1161 = vmatprep.mubr.bf16.mxu0 0
      %1162 = vmatmul.mubr.bf16.gmra.mxu0 %v1118
      %v1163 = vpop.f32.mrf.mxu0
      %v1164 = vadd.f32 0.0, %v1163
      %v1165 = vpop.f32.mrf.mxu0
      %v1166 = vpop.f32.mrf.mxu0
      %v1167 = vadd.f32 0.0, %v1166
      %v1168 = vpop.f32.mrf.mxu0
      %1169 = vmatprep.mubr.bf16.mxu0 0
      %1170 = vmatmul.mubr.bf16.gmra.mxu0 %v1121
      %v1171 = vpop.f32.mrf.mxu0
      %v1172 = vadd.f32 0.0, %v1171
      %v1173 = vpop.f32.mrf.mxu0
      %v1174 = vpop.f32.mrf.mxu0
      %v1175 = vpop.f32.mrf.mxu0
      %1176 = vdwg.mxu0
      %v1177 = vmul.f32 %v1164, 0.125
      %v1178 = vmul.f32 %v1167, 0.125
      %v1179 = vmul.f32 %v1172, 0.125
      %v1180 = vsel %vm572, %v1177, -1e+30
      %v1181 = vsel %vm573, %v1178, -1e+30
      %v1182 = vsel %vm574, %v1179, -1e+30
      %v1183 = vsel %vm648, %v1180, -inf
      %1184 = vmax.xlane.f32.xlu0 %v1183
      %v1185 = vpop.xlane.xlu0 %1184
      %v1186 = vsel %vm648, %v1181, -inf
      %1187 = vmax.xlane.f32.xlu0 %v1186
      %v1188 = vpop.xlane.xlu0 %1187
      %v1189 = vsel %vm648, %v1182, -inf
      %1190 = vmax.xlane.f32.xlu0 %v1189
      %v1191 = vpop.xlane.xlu0 %1190
      %v1192 = vsub.f32 %v1180, %v1185
      %v1193 = vsub.f32 %v1181, %v1188
      %v1194 = vsub.f32 %v1182, %v1191
      %v1195 = vmul.f32 %v1192, 1.442695
      %v1196 = vpow.pop %v1195
      %v1197 = vmul.f32 %v1193, 1.442695
      %v1198 = vpow.pop %v1197
      %v1199 = vmul.f32 %v1194, 1.442695
      %v1200 = vpow.pop %v1199
      %v1201 = vsel %vm648, %v1196, 0.0
      %1202 = vadd.xlane.f32.xlu0 %v1201
      %v1203 = vpop.xlane.xlu0 %1202
      %v1204 = vsel %vm648, %v1198, 0.0
      %1205 = vadd.xlane.f32.xlu0 %v1204
      %v1206 = vpop.xlane.xlu0 %1205
      %v1207 = vsel %vm648, %v1200, 0.0
      %1208 = vadd.xlane.f32.xlu0 %v1207
      %v1209 = vpop.xlane.xlu0 %1208
      %v1210 = vrcp.pop %v1203
      %v1211 = vrcp.pop %v1206
      %v1212 = vrcp.pop %v1209
      %v1213 = vmul.f32 %v1196, %v1210
      %v1214 = vmul.f32 %v1198, %v1211
      %v1215 = vmul.f32 %v1200, %v1212
      %v1216 = vpack.c.bf16 %v1214, %v1213
      %v1217 = vpack.c.bf16 %v1215, %v1215
      %1220 = vrot.lane.b32.xlu0 %v942, 64
      %v1221 = vpop.permute.xlu0 %1220
      %1222 = vrot.lane.b32.xlu0 %v943, 64
      %v1223 = vpop.permute.xlu0 %1222
      %v1226 = vsel %vm648, %v1216, 0
      %v1229 = vsel %vm648, %v1217, 0
      %v1232 = vsel %vm690, %v1223, 0
      %1234 = vmatprep.subr.bf16.mxu0 0
      %1235 = vmatpush1.bf16.msra.mxu0 0
      %1236 = vmatprep.subr.bf16.mxu0 0
      %1237 = vmatpush1.bf16.msra.mxu0 0
      %1238 = vmatprep.subr.bf16.mxu0 0
      %1239 = vmatpush1.bf16.msra.mxu0 0
      %1240 = vmatprep.subr.bf16.mxu0 0
      %1241 = vmatpush1.bf16.msra.mxu0 0
      %1242 = vmatprep.subr.bf16.mxu0 0
      %1243 = vmatpush1.bf16.msra.mxu0 0
      %1244 = vmatprep.subr.bf16.mxu0 0
      %1245 = vmatpush1.bf16.msra.mxu0 0
      %1246 = vmatprep.subr.bf16.mxu0 0
      %1247 = vmatpush1.bf16.msra.mxu0 %v1232
      %1248 = vmatprep.subr.bf16.mxu0 0
      %1249 = vmatpush1.bf16.msra.mxu0 %v1221
      %1250 = vmatprep.subr.bf16.mxu0 0
      %1251 = vmatpush2.bf16.msra.mxu0 0
      %1252 = vmatprep.subr.bf16.mxu0 0
      %1253 = vmatpush2.bf16.msra.mxu0 0
      %1254 = vmatprep.subr.bf16.mxu0 0
      %1255 = vmatpush2.bf16.msra.mxu0 0
      %1256 = vmatprep.subr.bf16.mxu0 0
      %1257 = vmatpush2.bf16.msra.mxu0 0
      %1258 = vmatprep.subr.bf16.mxu0 0
      %1259 = vmatpush2.bf16.msra.mxu0 0
      %1260 = vmatprep.subr.bf16.mxu0 0
      %1261 = vmatpush2.bf16.msra.mxu0 0
      %1262 = vmatprep.subr.bf16.mxu0 0
      %1263 = vmatpush2.bf16.msra.mxu0 0
      %1264 = vmatprep.subr.bf16.mxu0 0
      %1265 = vmatpush2.bf16.msra.mxu0 0
      %1266 = vmatprep.mubr.bf16.mxu0 0
      %1267 = vmatmul.mubr.bf16.gmra.mxu0 %v1226
      %v1268 = vpop.f32.mrf.mxu0
      %v1269 = vadd.f32 0.0, %v1268
      %v1270 = vpop.f32.mrf.mxu0
      %v1271 = vpop.f32.mrf.mxu0
      %v1272 = vadd.f32 0.0, %v1271
      %v1273 = vpop.f32.mrf.mxu0
      %1274 = vmatprep.mubr.bf16.mxu0 0
      %1275 = vmatmul.mubr.bf16.gmra.mxu0 %v1229
      %v1276 = vpop.f32.mrf.mxu0
      %v1277 = vadd.f32 0.0, %v1276
      %v1278 = vpop.f32.mrf.mxu0
      %v1279 = vpop.f32.mrf.mxu0
      %v1280 = vpop.f32.mrf.mxu0
      %1281 = vdwg.mxu0
      %1285 = vrot.lane.b32.xlu0 %v1269, 64
      %v1286 = vpop.permute.xlu0 %1285
      %1287 = vrot.lane.b32.xlu0 %v1272, 64
      %v1288 = vpop.permute.xlu0 %1287
      %1289 = vrot.lane.b32.xlu0 %v1277, 64
      %v1290 = vpop.permute.xlu0 %1289
      %1294 = vst.msk [vmem:[#allocation2 + $0x18] sm:$0xff] %vm934, %v1286
      %1295 = vst.msk [vmem:[#allocation2 + $0x20] sm:$0xff] %vm934, %v1288
      %1296 = vst.msk [vmem:[#allocation2 + $0x28] sm:$0xff] %vm934, %v1290
      %v1297 = vld [vmem:[#allocation2] sm:$0xff]
      %v1298 = vld [vmem:[#allocation2 + $0x8] sm:$0xff]
      %v1299 = vld [vmem:[#allocation2 + $0x10] sm:$0xff]
      %v1300 = vld [vmem:[#allocation2 + $0x18] sm:$0xff]
      %v1301 = vld [vmem:[#allocation2 + $0x20] sm:$0xff]
      %v1302 = vld [vmem:[#allocation2 + $0x28] sm:$0xff]
      %v1303 = vpack.c.bf16 %v1298, %v1297
      %v1304 = vpack.c.bf16 %v1300, %v1299
      %v1305 = vpack.c.bf16 %v1302, %v1301
      %v1306 = vld [vmem:[%s2] sm:$0xf]
      %v1307 = vld [vmem:[%s2 + $0x4] sm:$0xf]
      %v1308 = vld [vmem:[%s2 + $0x8] sm:$0xf]
      %v1309 = vld [vmem:[%s2 + $0xc] sm:$0xf]
      %v1310 = vld [vmem:[%s2 + $0x10] sm:$0xf]
      %v1311 = vld [vmem:[%s2 + $0x14] sm:$0xf]
      %v1312 = vld [vmem:[%s2 + $0x18] sm:$0xf]
      %v1313 = vld [vmem:[%s2 + $0x1c] sm:$0xf]
      %v1314 = vld [vmem:[%s2 + $0x20] sm:$0xf]
      %v1315 = vld [vmem:[%s2 + $0x24] sm:$0xf]
      %v1316 = vld [vmem:[%s2 + $0x28] sm:$0xf]
      %v1317 = vld [vmem:[%s2 + $0x2c] sm:$0xf]
      %v1318 = vld [vmem:[%s2 + $0x30] sm:$0xf]
      %v1319 = vld [vmem:[%s2 + $0x34] sm:$0xf]
      %v1320 = vld [vmem:[%s2 + $0x38] sm:$0xf]
      %v1321 = vld [vmem:[%s2 + $0x3c] sm:$0xf]
      %v1322 = vlaneseq
      %v1323 = vshrl.u32 %v1322, 7
      %v1324 = vsub.s32 1, %v1323
      %v1325 = vrot.slane %v261, %v1324
      %v1342 = vunpack.c.l.b16 %v1306
      %v1343 = vunpack.c.l.b16 %v1307
      %v1344 = vunpack.c.l.b16 %v1308
      %v1345 = vunpack.c.l.b16 %v1309
      %v1346 = vunpack.c.l.b16 %v1310
      %v1347 = vunpack.c.l.b16 %v1311
      %v1348 = vunpack.c.l.b16 %v1312
      %v1349 = vunpack.c.l.b16 %v1313
      %v1350 = vunpack.c.l.b16 %v1314
      %v1351 = vunpack.c.l.b16 %v1315
      %v1352 = vunpack.c.l.b16 %v1316
      %v1353 = vunpack.c.l.b16 %v1317
      %v1354 = vunpack.c.l.b16 %v1318
      %v1355 = vunpack.c.l.b16 %v1319
      %v1356 = vunpack.c.l.b16 %v1320
      %v1357 = vunpack.c.l.b16 %v1321
      %v1358 = vpack.c.b16 %v1343, %v1342
      %v1359 = vpack.c.b16 %v1345, %v1344
      %v1360 = vpack.c.b16 %v1347, %v1346
      %v1361 = vpack.c.b16 %v1349, %v1348
      %v1362 = vpack.c.b16 %v1351, %v1350
      %v1363 = vpack.c.b16 %v1353, %v1352
      %v1364 = vpack.c.b16 %v1355, %v1354
      %v1365 = vpack.c.b16 %v1357, %v1356
      %1374 = vmatprep.subr.bf16.mxu0 0
      %1375 = vmatpush1.bf16.msra.mxu0 %v1365
      %1376 = vmatprep.subr.bf16.mxu0 0
      %1377 = vmatpush1.bf16.msra.mxu0 %v1364
      %1378 = vmatprep.subr.bf16.mxu0 0
      %1379 = vmatpush1.bf16.msra.mxu0 %v1363
      %1380 = vmatprep.subr.bf16.mxu0 0
      %1381 = vmatpush1.bf16.msra.mxu0 %v1362
      %1382 = vmatprep.subr.bf16.mxu0 0
      %1383 = vmatpush1.bf16.msra.mxu0 %v1361
      %1384 = vmatprep.subr.bf16.mxu0 0
      %1385 = vmatpush1.bf16.msra.mxu0 %v1360
      %1386 = vmatprep.subr.bf16.mxu0 0
      %1387 = vmatpush1.bf16.msra.mxu0 %v1359
      %1388 = vmatprep.subr.bf16.mxu0 0
      %1389 = vmatpush1.bf16.msra.mxu0 %v1358
      %1390 = vmatprep.subr.bf16.mxu0 0
      %1391 = vmatpush2.bf16.msra.mxu0 0
      %1392 = vmatprep.subr.bf16.mxu0 0
      %1393 = vmatpush2.bf16.msra.mxu0 0
      %1394 = vmatprep.subr.bf16.mxu0 0
      %1395 = vmatpush2.bf16.msra.mxu0 0
      %1396 = vmatprep.subr.bf16.mxu0 0
      %1397 = vmatpush2.bf16.msra.mxu0 0
      %1398 = vmatprep.subr.bf16.mxu0 0
      %1399 = vmatpush2.bf16.msra.mxu0 0
      %1400 = vmatprep.subr.bf16.mxu0 0
      %1401 = vmatpush2.bf16.msra.mxu0 0
      %1402 = vmatprep.subr.bf16.mxu0 0
      %1403 = vmatpush2.bf16.msra.mxu0 0
      %1404 = vmatprep.subr.bf16.mxu0 0
      %1405 = vmatpush2.bf16.msra.mxu0 0
      %1406 = vmatprep.mubr.bf16.mxu0 0
      %1407 = vmatmul.mubr.bf16.gmra.mxu0 %v1303
      %v1408 = vpop.f32.mrf.mxu0
      %v1409 = vadd.f32 %v1325, %v1408
      %v1410 = vpop.f32.mrf.mxu0
      %v1411 = vpop.f32.mrf.mxu0
      %v1412 = vadd.f32 %v1325, %v1411
      %v1413 = vpop.f32.mrf.mxu0
      %1414 = vmatprep.mubr.bf16.mxu0 0
      %1415 = vmatmul.mubr.bf16.gmra.mxu0 %v1304
      %v1416 = vpop.f32.mrf.mxu0
      %v1417 = vadd.f32 %v1325, %v1416
      %v1418 = vpop.f32.mrf.mxu0
      %v1419 = vpop.f32.mrf.mxu0
      %v1420 = vadd.f32 %v1325, %v1419
      %v1421 = vpop.f32.mrf.mxu0
      %1422 = vmatprep.mubr.bf16.mxu0 0
      %1423 = vmatmul.mubr.bf16.gmra.mxu0 %v1305
      %v1424 = vpop.f32.mrf.mxu0
      %v1425 = vadd.f32 %v1325, %v1424
      %v1426 = vpop.f32.mrf.mxu0
      %v1427 = vpop.f32.mrf.mxu0
      %v1428 = vadd.f32 %v1325, %v1427
      %v1429 = vpop.f32.mrf.mxu0
      %1430 = vdwg.mxu0
      %v1431 = vadd.f32 %v265, %v1409
      %v1432 = vadd.f32 %v266, %v1412
      %v1433 = vadd.f32 %v267, %v1417
      %v1434 = vadd.f32 %v268, %v1420
      %v1435 = vadd.f32 %v269, %v1425
      %v1436 = vadd.f32 %v270, %v1428
      %1437 = vadd.xlane.f32.xlu0 %v1431
      %v1438 = vpop.xlane.xlu0 %1437
      %1439 = vadd.xlane.f32.xlu0 %v1432
      %v1440 = vpop.xlane.xlu0 %1439
      %1441 = vadd.xlane.f32.xlu0 %v1433
      %v1442 = vpop.xlane.xlu0 %1441
      %1443 = vadd.xlane.f32.xlu0 %v1434
      %v1444 = vpop.xlane.xlu0 %1443
      %1445 = vadd.xlane.f32.xlu0 %v1435
      %v1446 = vpop.xlane.xlu0 %1445
      %1447 = vadd.xlane.f32.xlu0 %v1436
      %v1448 = vpop.xlane.xlu0 %1447
      %v1449 = vrcp.pop 128.0
      %v1450 = vmul.f32 %v1438, %v1449
      %v1451 = vmul.f32 %v1440, %v1449
      %v1452 = vmul.f32 %v1442, %v1449
      %v1453 = vmul.f32 %v1444, %v1449
      %v1454 = vmul.f32 %v1446, %v1449
      %v1455 = vmul.f32 %v1448, %v1449
      %v1456 = vsub.f32 %v1431, %v1450
      %v1457 = vsub.f32 %v1432, %v1451
      %v1458 = vsub.f32 %v1433, %v1452
      %v1459 = vsub.f32 %v1434, %v1453
      %v1460 = vsub.f32 %v1435, %v1454
      %v1461 = vsub.f32 %v1436, %v1455
      %v1462 = vmul.f32 %v1456, %v1456
      %v1463 = vmul.f32 %v1457, %v1457
      %v1464 = vmul.f32 %v1458, %v1458
      %v1465 = vmul.f32 %v1459, %v1459
      %v1466 = vmul.f32 %v1460, %v1460
      %v1467 = vmul.f32 %v1461, %v1461
      %1468 = vadd.xlane.f32.xlu0 %v1462
      %v1469 = vpop.xlane.xlu0 %1468
      %1470 = vadd.xlane.f32.xlu0 %v1463
      %v1471 = vpop.xlane.xlu0 %1470
      %1472 = vadd.xlane.f32.xlu0 %v1464
      %v1473 = vpop.xlane.xlu0 %1472
      %1474 = vadd.xlane.f32.xlu0 %v1465
      %v1475 = vpop.xlane.xlu0 %1474
      %1476 = vadd.xlane.f32.xlu0 %v1466
      %v1477 = vpop.xlane.xlu0 %1476
      %1478 = vadd.xlane.f32.xlu0 %v1467
      %v1479 = vpop.xlane.xlu0 %1478
      %v1480 = vmul.f32 %v1469, %v1449
      %v1481 = vmul.f32 %v1471, %v1449
      %v1482 = vmul.f32 %v1473, %v1449
      %v1483 = vmul.f32 %v1475, %v1449
      %v1484 = vmul.f32 %v1477, %v1449
      %v1485 = vmul.f32 %v1479, %v1449
      %v1486 = vadd.f32 %v1480, 1e-05
      %v1487 = vadd.f32 %v1481, 1e-05
      %v1488 = vadd.f32 %v1482, 1e-05
      %v1489 = vadd.f32 %v1483, 1e-05
      %v1490 = vadd.f32 %v1484, 1e-05
      %v1491 = vadd.f32 %v1485, 1e-05
      %v1492 = vrsqrt.pop %v1486
      %v1493 = vrsqrt.pop %v1487
      %v1494 = vrsqrt.pop %v1488
      %v1495 = vrsqrt.pop %v1489
      %v1496 = vrsqrt.pop %v1490
      %v1497 = vrsqrt.pop %v1491
      %v1498 = vmul.f32 %v1456, %v1492
      %v1499 = vmul.f32 %v1457, %v1493
      %v1500 = vmul.f32 %v1458, %v1494
      %v1501 = vmul.f32 %v1459, %v1495
      %v1502 = vmul.f32 %v1460, %v1496
      %v1503 = vmul.f32 %v1461, %v1497
      %v1504 = vlaneseq
      %v1505 = vshrl.u32 %v1504, 7
      %v1506 = vsub.s32 4, %v1505
      %v1507 = vrot.slane %v261, %v1506
      %v1508 = vmul.f32 %v1498, %v1507
      %v1509 = vmul.f32 %v1499, %v1507
      %v1510 = vmul.f32 %v1500, %v1507
      %v1511 = vmul.f32 %v1501, %v1507
      %v1512 = vmul.f32 %v1502, %v1507
      %v1513 = vmul.f32 %v1503, %v1507
      %v1514 = vlaneseq
      %v1515 = vshrl.u32 %v1514, 7
      %v1516 = vsub.s32 5, %v1515
      %v1517 = vrot.slane %v261, %v1516
      %v1518 = vadd.f32 %v1508, %v1517
      %v1519 = vadd.f32 %v1509, %v1517
      %v1520 = vadd.f32 %v1510, %v1517
      %v1521 = vadd.f32 %v1511, %v1517
      %v1522 = vadd.f32 %v1512, %v1517
      %v1523 = vadd.f32 %v1513, %v1517
      %v1524 = vpack.c.bf16 %v1519, %v1518
      %v1525 = vpack.c.bf16 %v1521, %v1520
      %v1526 = vpack.c.bf16 %v1523, %v1522
      %v1527 = vld [vmem:[%s3] sm:$0xff]
      %v1528 = vld [vmem:[%s3 + $0x8] sm:$0xff]
      %v1529 = vld [vmem:[%s3 + $0x10] sm:$0xff]
      %v1530 = vld [vmem:[%s3 + $0x18] sm:$0xff]
      %v1531 = vld [vmem:[%s3 + $0x20] sm:$0xff]
      %v1532 = vld [vmem:[%s3 + $0x28] sm:$0xff]
      %v1533 = vld [vmem:[%s3 + $0x30] sm:$0xff]
      %v1534 = vld [vmem:[%s3 + $0x38] sm:$0xff]
      %v1535 = vld [vmem:[%s3 + $0x40] sm:$0xff]
      %v1536 = vld [vmem:[%s3 + $0x48] sm:$0xff]
      %v1537 = vld [vmem:[%s3 + $0x50] sm:$0xff]
      %v1538 = vld [vmem:[%s3 + $0x58] sm:$0xff]
      %v1539 = vld [vmem:[%s3 + $0x60] sm:$0xff]
      %v1540 = vld [vmem:[%s3 + $0x68] sm:$0xff]
      %v1541 = vld [vmem:[%s3 + $0x70] sm:$0xff]
      %v1542 = vld [vmem:[%s3 + $0x78] sm:$0xff]
      %v1543 = vld [vmem:[%s3 + $0x80] sm:$0xff]
      %v1544 = vld [vmem:[%s3 + $0x88] sm:$0xff]
      %v1545 = vld [vmem:[%s3 + $0x90] sm:$0xff]
      %v1546 = vld [vmem:[%s3 + $0x98] sm:$0xff]
      %v1547 = vld [vmem:[%s3 + $0xa0] sm:$0xff]
      %v1548 = vld [vmem:[%s3 + $0xa8] sm:$0xff]
      %v1549 = vld [vmem:[%s3 + $0xb0] sm:$0xff]
      %v1550 = vld [vmem:[%s3 + $0xb8] sm:$0xff]
      %v1551 = vld [vmem:[%s3 + $0xc0] sm:$0xff]
      %v1552 = vld [vmem:[%s3 + $0xc8] sm:$0xff]
      %v1553 = vld [vmem:[%s3 + $0xd0] sm:$0xff]
      %v1554 = vld [vmem:[%s3 + $0xd8] sm:$0xff]
      %v1555 = vld [vmem:[%s3 + $0xe0] sm:$0xff]
      %v1556 = vld [vmem:[%s3 + $0xe8] sm:$0xff]
      %v1557 = vld [vmem:[%s3 + $0xf0] sm:$0xff]
      %v1558 = vld [vmem:[%s3 + $0xf8] sm:$0xff]
      %v1559 = vlaneseq
      %v1560 = vshrl.u32 %v1559, 7
      %v1561 = vsub.s32 2, %v1560
      %v1562 = vrot.slane %v261, %v1561
      %v1563 = vlaneseq
      %v1564 = vshrl.u32 %v1563, 7
      %v1565 = vsub.s32 2, %v1564
      %v1566 = vrot.slane %v262, %v1565
      %v1567 = vlaneseq
      %v1568 = vshrl.u32 %v1567, 7
      %v1569 = vsub.s32 2, %v1568
      %v1570 = vrot.slane %v263, %v1569
      %v1571 = vlaneseq
      %v1572 = vshrl.u32 %v1571, 7
      %v1573 = vsub.s32 2, %v1572
      %v1574 = vrot.slane %v264, %v1573
      %v1607 = vunpack.c.l.b16 %v1527
      %v1608 = vunpack.c.h.b16 %v1527
      %v1609 = vunpack.c.l.b16 %v1528
      %v1610 = vunpack.c.h.b16 %v1528
      %v1611 = vunpack.c.l.b16 %v1529
      %v1612 = vunpack.c.h.b16 %v1529
      %v1613 = vunpack.c.l.b16 %v1530
      %v1614 = vunpack.c.h.b16 %v1530
      %v1615 = vunpack.c.l.b16 %v1531
      %v1616 = vunpack.c.h.b16 %v1531
      %v1617 = vunpack.c.l.b16 %v1532
      %v1618 = vunpack.c.h.b16 %v1532
      %v1619 = vunpack.c.l.b16 %v1533
      %v1620 = vunpack.c.h.b16 %v1533
      %v1621 = vunpack.c.l.b16 %v1534
      %v1622 = vunpack.c.h.b16 %v1534
      %v1623 = vunpack.c.l.b16 %v1535
      %v1624 = vunpack.c.h.b16 %v1535
      %v1625 = vunpack.c.l.b16 %v1536
      %v1626 = vunpack.c.h.b16 %v1536
      %v1627 = vunpack.c.l.b16 %v1537
      %v1628 = vunpack.c.h.b16 %v1537
      %v1629 = vunpack.c.l.b16 %v1538
      %v1630 = vunpack.c.h.b16 %v1538
      %v1631 = vunpack.c.l.b16 %v1539
      %v1632 = vunpack.c.h.b16 %v1539
      %v1633 = vunpack.c.l.b16 %v1540
      %v1634 = vunpack.c.h.b16 %v1540
      %v1635 = vunpack.c.l.b16 %v1541
      %v1636 = vunpack.c.h.b16 %v1541
      %v1637 = vunpack.c.l.b16 %v1542
      %v1638 = vunpack.c.h.b16 %v1542
      %v1639 = vunpack.c.l.b16 %v1543
      %v1640 = vunpack.c.h.b16 %v1543
      %v1641 = vunpack.c.l.b16 %v1544
      %v1642 = vunpack.c.h.b16 %v1544
      %v1643 = vunpack.c.l.b16 %v1545
      %v1644 = vunpack.c.h.b16 %v1545
      %v1645 = vunpack.c.l.b16 %v1546
      %v1646 = vunpack.c.h.b16 %v1546
      %v1647 = vunpack.c.l.b16 %v1547
      %v1648 = vunpack.c.h.b16 %v1547
      %v1649 = vunpack.c.l.b16 %v1548
      %v1650 = vunpack.c.h.b16 %v1548
      %v1651 = vunpack.c.l.b16 %v1549
      %v1652 = vunpack.c.h.b16 %v1549
      %v1653 = vunpack.c.l.b16 %v1550
      %v1654 = vunpack.c.h.b16 %v1550
      %v1655 = vunpack.c.l.b16 %v1551
      %v1656 = vunpack.c.h.b16 %v1551
      %v1657 = vunpack.c.l.b16 %v1552
      %v1658 = vunpack.c.h.b16 %v1552
      %v1659 = vunpack.c.l.b16 %v1553
      %v1660 = vunpack.c.h.b16 %v1553
      %v1661 = vunpack.c.l.b16 %v1554
      %v1662 = vunpack.c.h.b16 %v1554
      %v1663 = vunpack.c.l.b16 %v1555
      %v1664 = vunpack.c.h.b16 %v1555
      %v1665 = vunpack.c.l.b16 %v1556
      %v1666 = vunpack.c.h.b16 %v1556
      %v1667 = vunpack.c.l.b16 %v1557
      %v1668 = vunpack.c.h.b16 %v1557
      %v1669 = vunpack.c.l.b16 %v1558
      %v1670 = vunpack.c.h.b16 %v1558
      %v1671 = vpack.c.b16 %v1611, %v1607
      %v1672 = vpack.c.b16 %v1612, %v1608
      %v1673 = vpack.c.b16 %v1613, %v1609
      %v1674 = vpack.c.b16 %v1614, %v1610
      %v1675 = vpack.c.b16 %v1619, %v1615
      %v1676 = vpack.c.b16 %v1620, %v1616
      %v1677 = vpack.c.b16 %v1621, %v1617
      %v1678 = vpack.c.b16 %v1622, %v1618
      %v1679 = vpack.c.b16 %v1627, %v1623
      %v1680 = vpack.c.b16 %v1628, %v1624
      %v1681 = vpack.c.b16 %v1629, %v1625
      %v1682 = vpack.c.b16 %v1630, %v1626
      %v1683 = vpack.c.b16 %v1635, %v1631
      %v1684 = vpack.c.b16 %v1636, %v1632
      %v1685 = vpack.c.b16 %v1637, %v1633
      %v1686 = vpack.c.b16 %v1638, %v1634
      %v1687 = vpack.c.b16 %v1643, %v1639
      %v1688 = vpack.c.b16 %v1644, %v1640
      %v1689 = vpack.c.b16 %v1645, %v1641
      %v1690 = vpack.c.b16 %v1646, %v1642
      %v1691 = vpack.c.b16 %v1651, %v1647
      %v1692 = vpack.c.b16 %v1652, %v1648
      %v1693 = vpack.c.b16 %v1653, %v1649
      %v1694 = vpack.c.b16 %v1654, %v1650
      %v1695 = vpack.c.b16 %v1659, %v1655
      %v1696 = vpack.c.b16 %v1660, %v1656
      %v1697 = vpack.c.b16 %v1661, %v1657
      %v1698 = vpack.c.b16 %v1662, %v1658
      %v1699 = vpack.c.b16 %v1667, %v1663
      %v1700 = vpack.c.b16 %v1668, %v1664
      %v1701 = vpack.c.b16 %v1669, %v1665
      %v1702 = vpack.c.b16 %v1670, %v1666
      %1735 = vmatprep.subr.bf16.mxu0 %v1700
      %1736 = vmatpush1.bf16.msra.mxu0 %v1699
      %1737 = vmatprep.subr.bf16.mxu0 %v1696
      %1738 = vmatpush1.bf16.msra.mxu0 %v1695
      %1739 = vmatprep.subr.bf16.mxu0 %v1692
      %1740 = vmatpush1.bf16.msra.mxu0 %v1691
      %1741 = vmatprep.subr.bf16.mxu0 %v1688
      %1742 = vmatpush1.bf16.msra.mxu0 %v1687
      %1743 = vmatprep.subr.bf16.mxu0 %v1684
      %1744 = vmatpush1.bf16.msra.mxu0 %v1683
      %1745 = vmatprep.subr.bf16.mxu0 %v1680
      %1746 = vmatpush1.bf16.msra.mxu0 %v1679
      %1747 = vmatprep.subr.bf16.mxu0 %v1676
      %1748 = vmatpush1.bf16.msra.mxu0 %v1675
      %1749 = vmatprep.subr.bf16.mxu0 %v1672
      %1750 = vmatpush1.bf16.msra.mxu0 %v1671
      %1751 = vmatprep.subr.bf16.mxu0 0
      %1752 = vmatpush2.bf16.msra.mxu0 0
      %1753 = vmatprep.subr.bf16.mxu0 0
      %1754 = vmatpush2.bf16.msra.mxu0 0
      %1755 = vmatprep.subr.bf16.mxu0 0
      %1756 = vmatpush2.bf16.msra.mxu0 0
      %1757 = vmatprep.subr.bf16.mxu0 0
      %1758 = vmatpush2.bf16.msra.mxu0 0
      %1759 = vmatprep.subr.bf16.mxu0 0
      %1760 = vmatpush2.bf16.msra.mxu0 0
      %1761 = vmatprep.subr.bf16.mxu0 0
      %1762 = vmatpush2.bf16.msra.mxu0 0
      %1763 = vmatprep.subr.bf16.mxu0 0
      %1764 = vmatpush2.bf16.msra.mxu0 0
      %1765 = vmatprep.subr.bf16.mxu0 0
      %1766 = vmatpush2.bf16.msra.mxu0 0
      %1767 = vmatprep.mubr.bf16.mxu0 0
      %1768 = vmatmul.mubr.bf16.gmra.mxu0 %v1524
      %v1769 = vpop.f32.mrf.mxu0
      %v1770 = vadd.f32 %v1562, %v1769
      %v1771 = vpop.f32.mrf.mxu0
      %v1772 = vadd.f32 %v1566, %v1771
      %v1773 = vpop.f32.mrf.mxu0
      %v1774 = vadd.f32 %v1562, %v1773
      %v1775 = vpop.f32.mrf.mxu0
      %v1776 = vadd.f32 %v1566, %v1775
      %1777 = vmatprep.mubr.bf16.mxu0 0
      %1778 = vmatmul.mubr.bf16.gmra.mxu0 %v1525
      %v1779 = vpop.f32.mrf.mxu0
      %v1780 = vadd.f32 %v1562, %v1779
      %v1781 = vpop.f32.mrf.mxu0
      %v1782 = vadd.f32 %v1566, %v1781
      %v1783 = vpop.f32.mrf.mxu0
      %v1784 = vadd.f32 %v1562, %v1783
      %v1785 = vpop.f32.mrf.mxu0
      %v1786 = vadd.f32 %v1566, %v1785
      %1787 = vmatprep.mubr.bf16.mxu0 0
      %1788 = vmatmul.mubr.bf16.gmra.mxu0 %v1526
      %v1789 = vpop.f32.mrf.mxu0
      %v1790 = vadd.f32 %v1562, %v1789
      %v1791 = vpop.f32.mrf.mxu0
      %v1792 = vadd.f32 %v1566, %v1791
      %v1793 = vpop.f32.mrf.mxu0
      %v1794 = vadd.f32 %v1562, %v1793
      %v1795 = vpop.f32.mrf.mxu0
      %v1796 = vadd.f32 %v1566, %v1795
      %1797 = vdwg.mxu0
      %1798 = vmatprep.subr.bf16.mxu0 %v1702
      %1799 = vmatpush1.bf16.msra.mxu0 %v1701
      %1800 = vmatprep.subr.bf16.mxu0 %v1698
      %1801 = vmatpush1.bf16.msra.mxu0 %v1697
      %1802 = vmatprep.subr.bf16.mxu0 %v1694
      %1803 = vmatpush1.bf16.msra.mxu0 %v1693
      %1804 = vmatprep.subr.bf16.mxu0 %v1690
      %1805 = vmatpush1.bf16.msra.mxu0 %v1689
      %1806 = vmatprep.subr.bf16.mxu0 %v1686
      %1807 = vmatpush1.bf16.msra.mxu0 %v1685
      %1808 = vmatprep.subr.bf16.mxu0 %v1682
      %1809 = vmatpush1.bf16.msra.mxu0 %v1681
      %1810 = vmatprep.subr.bf16.mxu0 %v1678
      %1811 = vmatpush1.bf16.msra.mxu0 %v1677
      %1812 = vmatprep.subr.bf16.mxu0 %v1674
      %1813 = vmatpush1.bf16.msra.mxu0 %v1673
      %1814 = vmatprep.subr.bf16.mxu0 0
      %1815 = vmatpush2.bf16.msra.mxu0 0
      %1816 = vmatprep.subr.bf16.mxu0 0
      %1817 = vmatpush2.bf16.msra.mxu0 0
      %1818 = vmatprep.subr.bf16.mxu0 0
      %1819 = vmatpush2.bf16.msra.mxu0 0
      %1820 = vmatprep.subr.bf16.mxu0 0
      %1821 = vmatpush2.bf16.msra.mxu0 0
      %1822 = vmatprep.subr.bf16.mxu0 0
      %1823 = vmatpush2.bf16.msra.mxu0 0
      %1824 = vmatprep.subr.bf16.mxu0 0
      %1825 = vmatpush2.bf16.msra.mxu0 0
      %1826 = vmatprep.subr.bf16.mxu0 0
      %1827 = vmatpush2.bf16.msra.mxu0 0
      %1828 = vmatprep.subr.bf16.mxu0 0
      %1829 = vmatpush2.bf16.msra.mxu0 0
      %1830 = vmatprep.mubr.bf16.mxu0 0
      %1831 = vmatmul.mubr.bf16.gmra.mxu0 %v1524
      %v1832 = vpop.f32.mrf.mxu0
      %v1833 = vadd.f32 %v1570, %v1832
      %v1834 = vpop.f32.mrf.mxu0
      %v1835 = vadd.f32 %v1574, %v1834
      %v1836 = vpop.f32.mrf.mxu0
      %v1837 = vadd.f32 %v1570, %v1836
      %v1838 = vpop.f32.mrf.mxu0
      %v1839 = vadd.f32 %v1574, %v1838
      %1840 = vmatprep.mubr.bf16.mxu0 0
      %1841 = vmatmul.mubr.bf16.gmra.mxu0 %v1525
      %v1842 = vpop.f32.mrf.mxu0
      %v1843 = vadd.f32 %v1570, %v1842
      %v1844 = vpop.f32.mrf.mxu0
      %v1845 = vadd.f32 %v1574, %v1844
      %v1846 = vpop.f32.mrf.mxu0
      %v1847 = vadd.f32 %v1570, %v1846
      %v1848 = vpop.f32.mrf.mxu0
      %v1849 = vadd.f32 %v1574, %v1848
      %1850 = vmatprep.mubr.bf16.mxu0 0
      %1851 = vmatmul.mubr.bf16.gmra.mxu0 %v1526
      %v1852 = vpop.f32.mrf.mxu0
      %v1853 = vadd.f32 %v1570, %v1852
      %v1854 = vpop.f32.mrf.mxu0
      %v1855 = vadd.f32 %v1574, %v1854
      %v1856 = vpop.f32.mrf.mxu0
      %v1857 = vadd.f32 %v1570, %v1856
      %v1858 = vpop.f32.mrf.mxu0
      %v1859 = vadd.f32 %v1574, %v1858
      %1860 = vdwg.mxu0
      %v1861 = vmul.f32 %v1770, %v1770
      %v1862 = vmul.f32 %v1772, %v1772
      %v1863 = vmul.f32 %v1833, %v1833
      %v1864 = vmul.f32 %v1835, %v1835
      %v1865 = vmul.f32 %v1774, %v1774
      %v1866 = vmul.f32 %v1776, %v1776
      %v1867 = vmul.f32 %v1837, %v1837
      %v1868 = vmul.f32 %v1839, %v1839
      %v1869 = vmul.f32 %v1780, %v1780
      %v1870 = vmul.f32 %v1782, %v1782
      %v1871 = vmul.f32 %v1843, %v1843
      %v1872 = vmul.f32 %v1845, %v1845
      %v1873 = vmul.f32 %v1784, %v1784
      %v1874 = vmul.f32 %v1786, %v1786
      %v1875 = vmul.f32 %v1847, %v1847
      %v1876 = vmul.f32 %v1849, %v1849
      %v1877 = vmul.f32 %v1790, %v1790
      %v1878 = vmul.f32 %v1792, %v1792
      %v1879 = vmul.f32 %v1853, %v1853
      %v1880 = vmul.f32 %v1855, %v1855
      %v1881 = vmul.f32 %v1794, %v1794
      %v1882 = vmul.f32 %v1796, %v1796
      %v1883 = vmul.f32 %v1857, %v1857
      %v1884 = vmul.f32 %v1859, %v1859
      %v1885 = vmul.f32 %v1770, %v1861
      %v1886 = vmul.f32 %v1772, %v1862
      %v1887 = vmul.f32 %v1833, %v1863
      %v1888 = vmul.f32 %v1835, %v1864
      %v1889 = vmul.f32 %v1774, %v1865
      %v1890 = vmul.f32 %v1776, %v1866
      %v1891 = vmul.f32 %v1837, %v1867
      %v1892 = vmul.f32 %v1839, %v1868
      %v1893 = vmul.f32 %v1780, %v1869
      %v1894 = vmul.f32 %v1782, %v1870
      %v1895 = vmul.f32 %v1843, %v1871
      %v1896 = vmul.f32 %v1845, %v1872
      %v1897 = vmul.f32 %v1784, %v1873
      %v1898 = vmul.f32 %v1786, %v1874
      %v1899 = vmul.f32 %v1847, %v1875
      %v1900 = vmul.f32 %v1849, %v1876
      %v1901 = vmul.f32 %v1790, %v1877
      %v1902 = vmul.f32 %v1792, %v1878
      %v1903 = vmul.f32 %v1853, %v1879
      %v1904 = vmul.f32 %v1855, %v1880
      %v1905 = vmul.f32 %v1794, %v1881
      %v1906 = vmul.f32 %v1796, %v1882
      %v1907 = vmul.f32 %v1857, %v1883
      %v1908 = vmul.f32 %v1859, %v1884
      %v1909 = vmul.f32 %v1885, 0.044715
      %v1910 = vmul.f32 %v1886, 0.044715
      %v1911 = vmul.f32 %v1887, 0.044715
      %v1912 = vmul.f32 %v1888, 0.044715
      %v1913 = vmul.f32 %v1889, 0.044715
      %v1914 = vmul.f32 %v1890, 0.044715
      %v1915 = vmul.f32 %v1891, 0.044715
      %v1916 = vmul.f32 %v1892, 0.044715
      %v1917 = vmul.f32 %v1893, 0.044715
      %v1918 = vmul.f32 %v1894, 0.044715
      %v1919 = vmul.f32 %v1895, 0.044715
      %v1920 = vmul.f32 %v1896, 0.044715
      %v1921 = vmul.f32 %v1897, 0.044715
      %v1922 = vmul.f32 %v1898, 0.044715
      %v1923 = vmul.f32 %v1899, 0.044715
      %v1924 = vmul.f32 %v1900, 0.044715
      %v1925 = vmul.f32 %v1901, 0.044715
      %v1926 = vmul.f32 %v1902, 0.044715
      %v1927 = vmul.f32 %v1903, 0.044715
      %v1928 = vmul.f32 %v1904, 0.044715
      %v1929 = vmul.f32 %v1905, 0.044715
      %v1930 = vmul.f32 %v1906, 0.044715
      %v1931 = vmul.f32 %v1907, 0.044715
      %v1932 = vmul.f32 %v1908, 0.044715
      %v1933 = vadd.f32 %v1770, %v1909
      %v1934 = vadd.f32 %v1772, %v1910
      %v1935 = vadd.f32 %v1833, %v1911
      %v1936 = vadd.f32 %v1835, %v1912
      %v1937 = vadd.f32 %v1774, %v1913
      %v1938 = vadd.f32 %v1776, %v1914
      %v1939 = vadd.f32 %v1837, %v1915
      %v1940 = vadd.f32 %v1839, %v1916
      %v1941 = vadd.f32 %v1780, %v1917
      %v1942 = vadd.f32 %v1782, %v1918
      %v1943 = vadd.f32 %v1843, %v1919
      %v1944 = vadd.f32 %v1845, %v1920
      %v1945 = vadd.f32 %v1784, %v1921
      %v1946 = vadd.f32 %v1786, %v1922
      %v1947 = vadd.f32 %v1847, %v1923
      %v1948 = vadd.f32 %v1849, %v1924
      %v1949 = vadd.f32 %v1790, %v1925
      %v1950 = vadd.f32 %v1792, %v1926
      %v1951 = vadd.f32 %v1853, %v1927
      %v1952 = vadd.f32 %v1855, %v1928
      %v1953 = vadd.f32 %v1794, %v1929
      %v1954 = vadd.f32 %v1796, %v1930
      %v1955 = vadd.f32 %v1857, %v1931
      %v1956 = vadd.f32 %v1859, %v1932
      %v1957 = vmul.f32 %v1933, 0.7978846
      %v1958 = vmul.f32 %v1934, 0.7978846
      %v1959 = vmul.f32 %v1935, 0.7978846
      %v1960 = vmul.f32 %v1936, 0.7978846
      %v1961 = vmul.f32 %v1937, 0.7978846
      %v1962 = vmul.f32 %v1938, 0.7978846
      %v1963 = vmul.f32 %v1939, 0.7978846
      %v1964 = vmul.f32 %v1940, 0.7978846
      %v1965 = vmul.f32 %v1941, 0.7978846
      %v1966 = vmul.f32 %v1942, 0.7978846
      %v1967 = vmul.f32 %v1943, 0.7978846
      %v1968 = vmul.f32 %v1944, 0.7978846
      %v1969 = vmul.f32 %v1945, 0.7978846
      %v1970 = vmul.f32 %v1946, 0.7978846
      %v1971 = vmul.f32 %v1947, 0.7978846
      %v1972 = vmul.f32 %v1948, 0.7978846
      %v1973 = vmul.f32 %v1949, 0.7978846
      %v1974 = vmul.f32 %v1950, 0.7978846
      %v1975 = vmul.f32 %v1951, 0.7978846
      %v1976 = vmul.f32 %v1952, 0.7978846
      %v1977 = vmul.f32 %v1953, 0.7978846
      %v1978 = vmul.f32 %v1954, 0.7978846
      %v1979 = vmul.f32 %v1955, 0.7978846
      %v1980 = vmul.f32 %v1956, 0.7978846
      %v1981 = vtanh.pop %v1957
      %v1982 = vtanh.pop %v1958
      %v1983 = vtanh.pop %v1959
      %v1984 = vtanh.pop %v1960
      %v1985 = vtanh.pop %v1961
      %v1986 = vtanh.pop %v1962
      %v1987 = vtanh.pop %v1963
      %v1988 = vtanh.pop %v1964
      %v1989 = vtanh.pop %v1965
      %v1990 = vtanh.pop %v1966
      %v1991 = vtanh.pop %v1967
      %v1992 = vtanh.pop %v1968
      %v1993 = vtanh.pop %v1969
      %v1994 = vtanh.pop %v1970
      %v1995 = vtanh.pop %v1971
      %v1996 = vtanh.pop %v1972
      %v1997 = vtanh.pop %v1973
      %v1998 = vtanh.pop %v1974
      %v1999 = vtanh.pop %v1975
      %v2000 = vtanh.pop %v1976
      %v2001 = vtanh.pop %v1977
      %v2002 = vtanh.pop %v1978
      %v2003 = vtanh.pop %v1979
      %v2004 = vtanh.pop %v1980
      %v2005 = vadd.f32 %v1981, 1.0
      %v2006 = vadd.f32 %v1982, 1.0
      %v2007 = vadd.f32 %v1983, 1.0
      %v2008 = vadd.f32 %v1984, 1.0
      %v2009 = vadd.f32 %v1985, 1.0
      %v2010 = vadd.f32 %v1986, 1.0
      %v2011 = vadd.f32 %v1987, 1.0
      %v2012 = vadd.f32 %v1988, 1.0
      %v2013 = vadd.f32 %v1989, 1.0
      %v2014 = vadd.f32 %v1990, 1.0
      %v2015 = vadd.f32 %v1991, 1.0
      %v2016 = vadd.f32 %v1992, 1.0
      %v2017 = vadd.f32 %v1993, 1.0
      %v2018 = vadd.f32 %v1994, 1.0
      %v2019 = vadd.f32 %v1995, 1.0
      %v2020 = vadd.f32 %v1996, 1.0
      %v2021 = vadd.f32 %v1997, 1.0
      %v2022 = vadd.f32 %v1998, 1.0
      %v2023 = vadd.f32 %v1999, 1.0
      %v2024 = vadd.f32 %v2000, 1.0
      %v2025 = vadd.f32 %v2001, 1.0
      %v2026 = vadd.f32 %v2002, 1.0
      %v2027 = vadd.f32 %v2003, 1.0
      %v2028 = vadd.f32 %v2004, 1.0
      %v2029 = vmul.f32 %v2005, 0.5
      %v2030 = vmul.f32 %v2006, 0.5
      %v2031 = vmul.f32 %v2007, 0.5
      %v2032 = vmul.f32 %v2008, 0.5
      %v2033 = vmul.f32 %v2009, 0.5
      %v2034 = vmul.f32 %v2010, 0.5
      %v2035 = vmul.f32 %v2011, 0.5
      %v2036 = vmul.f32 %v2012, 0.5
      %v2037 = vmul.f32 %v2013, 0.5
      %v2038 = vmul.f32 %v2014, 0.5
      %v2039 = vmul.f32 %v2015, 0.5
      %v2040 = vmul.f32 %v2016, 0.5
      %v2041 = vmul.f32 %v2017, 0.5
      %v2042 = vmul.f32 %v2018, 0.5
      %v2043 = vmul.f32 %v2019, 0.5
      %v2044 = vmul.f32 %v2020, 0.5
      %v2045 = vmul.f32 %v2021, 0.5
      %v2046 = vmul.f32 %v2022, 0.5
      %v2047 = vmul.f32 %v2023, 0.5
      %v2048 = vmul.f32 %v2024, 0.5
      %v2049 = vmul.f32 %v2025, 0.5
      %v2050 = vmul.f32 %v2026, 0.5
      %v2051 = vmul.f32 %v2027, 0.5
      %v2052 = vmul.f32 %v2028, 0.5
      %v2053 = vmul.f32 %v1770, %v2029
      %v2054 = vmul.f32 %v1772, %v2030
      %v2055 = vmul.f32 %v1833, %v2031
      %v2056 = vmul.f32 %v1835, %v2032
      %v2057 = vmul.f32 %v1774, %v2033
      %v2058 = vmul.f32 %v1776, %v2034
      %v2059 = vmul.f32 %v1837, %v2035
      %v2060 = vmul.f32 %v1839, %v2036
      %v2061 = vmul.f32 %v1780, %v2037
      %v2062 = vmul.f32 %v1782, %v2038
      %v2063 = vmul.f32 %v1843, %v2039
      %v2064 = vmul.f32 %v1845, %v2040
      %v2065 = vmul.f32 %v1784, %v2041
      %v2066 = vmul.f32 %v1786, %v2042
      %v2067 = vmul.f32 %v1847, %v2043
      %v2068 = vmul.f32 %v1849, %v2044
      %v2069 = vmul.f32 %v1790, %v2045
      %v2070 = vmul.f32 %v1792, %v2046
      %v2071 = vmul.f32 %v1853, %v2047
      %v2072 = vmul.f32 %v1855, %v2048
      %v2073 = vmul.f32 %v1794, %v2049
      %v2074 = vmul.f32 %v1796, %v2050
      %v2075 = vmul.f32 %v1857, %v2051
      %v2076 = vmul.f32 %v1859, %v2052
      %v2077 = vpack.c.bf16 %v2057, %v2053
      %v2078 = vpack.c.bf16 %v2058, %v2054
      %v2079 = vpack.c.bf16 %v2059, %v2055
      %v2080 = vpack.c.bf16 %v2060, %v2056
      %v2081 = vpack.c.bf16 %v2065, %v2061
      %v2082 = vpack.c.bf16 %v2066, %v2062
      %v2083 = vpack.c.bf16 %v2067, %v2063
      %v2084 = vpack.c.bf16 %v2068, %v2064
      %v2085 = vpack.c.bf16 %v2073, %v2069
      %v2086 = vpack.c.bf16 %v2074, %v2070
      %v2087 = vpack.c.bf16 %v2075, %v2071
      %v2088 = vpack.c.bf16 %v2076, %v2072
      %v2089 = vld [vmem:[%s4] sm:$0xf]
      %v2090 = vld [vmem:[%s4 + $0x4] sm:$0xf]
      %v2091 = vld [vmem:[%s4 + $0x8] sm:$0xf]
      %v2092 = vld [vmem:[%s4 + $0xc] sm:$0xf]
      %v2093 = vld [vmem:[%s4 + $0x10] sm:$0xf]
      %v2094 = vld [vmem:[%s4 + $0x14] sm:$0xf]
      %v2095 = vld [vmem:[%s4 + $0x18] sm:$0xf]
      %v2096 = vld [vmem:[%s4 + $0x1c] sm:$0xf]
      %v2097 = vld [vmem:[%s4 + $0x20] sm:$0xf]
      %v2098 = vld [vmem:[%s4 + $0x24] sm:$0xf]
      %v2099 = vld [vmem:[%s4 + $0x28] sm:$0xf]
      %v2100 = vld [vmem:[%s4 + $0x2c] sm:$0xf]
      %v2101 = vld [vmem:[%s4 + $0x30] sm:$0xf]
      %v2102 = vld [vmem:[%s4 + $0x34] sm:$0xf]
      %v2103 = vld [vmem:[%s4 + $0x38] sm:$0xf]
      %v2104 = vld [vmem:[%s4 + $0x3c] sm:$0xf]
      %v2105 = vld [vmem:[%s4 + $0x40] sm:$0xf]
      %v2106 = vld [vmem:[%s4 + $0x44] sm:$0xf]
      %v2107 = vld [vmem:[%s4 + $0x48] sm:$0xf]
      %v2108 = vld [vmem:[%s4 + $0x4c] sm:$0xf]
      %v2109 = vld [vmem:[%s4 + $0x50] sm:$0xf]
      %v2110 = vld [vmem:[%s4 + $0x54] sm:$0xf]
      %v2111 = vld [vmem:[%s4 + $0x58] sm:$0xf]
      %v2112 = vld [vmem:[%s4 + $0x5c] sm:$0xf]
      %v2113 = vld [vmem:[%s4 + $0x60] sm:$0xf]
      %v2114 = vld [vmem:[%s4 + $0x64] sm:$0xf]
      %v2115 = vld [vmem:[%s4 + $0x68] sm:$0xf]
      %v2116 = vld [vmem:[%s4 + $0x6c] sm:$0xf]
      %v2117 = vld [vmem:[%s4 + $0x70] sm:$0xf]
      %v2118 = vld [vmem:[%s4 + $0x74] sm:$0xf]
      %v2119 = vld [vmem:[%s4 + $0x78] sm:$0xf]
      %v2120 = vld [vmem:[%s4 + $0x7c] sm:$0xf]
      %v2121 = vld [vmem:[%s4 + $0x80] sm:$0xf]
      %v2122 = vld [vmem:[%s4 + $0x84] sm:$0xf]
      %v2123 = vld [vmem:[%s4 + $0x88] sm:$0xf]
      %v2124 = vld [vmem:[%s4 + $0x8c] sm:$0xf]
      %v2125 = vld [vmem:[%s4 + $0x90] sm:$0xf]
      %v2126 = vld [vmem:[%s4 + $0x94] sm:$0xf]
      %v2127 = vld [vmem:[%s4 + $0x98] sm:$0xf]
      %v2128 = vld [vmem:[%s4 + $0x9c] sm:$0xf]
      %v2129 = vld [vmem:[%s4 + $0xa0] sm:$0xf]
      %v2130 = vld [vmem:[%s4 + $0xa4] sm:$0xf]
      %v2131 = vld [vmem:[%s4 + $0xa8] sm:$0xf]
      %v2132 = vld [vmem:[%s4 + $0xac] sm:$0xf]
      %v2133 = vld [vmem:[%s4 + $0xb0] sm:$0xf]
      %v2134 = vld [vmem:[%s4 + $0xb4] sm:$0xf]
      %v2135 = vld [vmem:[%s4 + $0xb8] sm:$0xf]
      %v2136 = vld [vmem:[%s4 + $0xbc] sm:$0xf]
      %v2137 = vld [vmem:[%s4 + $0xc0] sm:$0xf]
      %v2138 = vld [vmem:[%s4 + $0xc4] sm:$0xf]
      %v2139 = vld [vmem:[%s4 + $0xc8] sm:$0xf]
      %v2140 = vld [vmem:[%s4 + $0xcc] sm:$0xf]
      %v2141 = vld [vmem:[%s4 + $0xd0] sm:$0xf]
      %v2142 = vld [vmem:[%s4 + $0xd4] sm:$0xf]
      %v2143 = vld [vmem:[%s4 + $0xd8] sm:$0xf]
      %v2144 = vld [vmem:[%s4 + $0xdc] sm:$0xf]
      %v2145 = vld [vmem:[%s4 + $0xe0] sm:$0xf]
      %v2146 = vld [vmem:[%s4 + $0xe4] sm:$0xf]
      %v2147 = vld [vmem:[%s4 + $0xe8] sm:$0xf]
      %v2148 = vld [vmem:[%s4 + $0xec] sm:$0xf]
      %v2149 = vld [vmem:[%s4 + $0xf0] sm:$0xf]
      %v2150 = vld [vmem:[%s4 + $0xf4] sm:$0xf]
      %v2151 = vld [vmem:[%s4 + $0xf8] sm:$0xf]
      %v2152 = vld [vmem:[%s4 + $0xfc] sm:$0xf]
      %v2153 = vlaneseq
      %v2154 = vshrl.u32 %v2153, 7
      %v2155 = vsub.s32 3, %v2154
      %v2156 = vrot.slane %v261, %v2155
      %v2221 = vunpack.c.l.b16 %v2089
      %v2222 = vunpack.c.l.b16 %v2090
      %v2223 = vunpack.c.l.b16 %v2091
      %v2224 = vunpack.c.l.b16 %v2092
      %v2225 = vunpack.c.l.b16 %v2093
      %v2226 = vunpack.c.l.b16 %v2094
      %v2227 = vunpack.c.l.b16 %v2095
      %v2228 = vunpack.c.l.b16 %v2096
      %v2229 = vunpack.c.l.b16 %v2097
      %v2230 = vunpack.c.l.b16 %v2098
      %v2231 = vunpack.c.l.b16 %v2099
      %v2232 = vunpack.c.l.b16 %v2100
      %v2233 = vunpack.c.l.b16 %v2101
      %v2234 = vunpack.c.l.b16 %v2102
      %v2235 = vunpack.c.l.b16 %v2103
      %v2236 = vunpack.c.l.b16 %v2104
      %v2237 = vunpack.c.l.b16 %v2105
      %v2238 = vunpack.c.l.b16 %v2106
      %v2239 = vunpack.c.l.b16 %v2107
      %v2240 = vunpack.c.l.b16 %v2108
      %v2241 = vunpack.c.l.b16 %v2109
      %v2242 = vunpack.c.l.b16 %v2110
      %v2243 = vunpack.c.l.b16 %v2111
      %v2244 = vunpack.c.l.b16 %v2112
      %v2245 = vunpack.c.l.b16 %v2113
      %v2246 = vunpack.c.l.b16 %v2114
      %v2247 = vunpack.c.l.b16 %v2115
      %v2248 = vunpack.c.l.b16 %v2116
      %v2249 = vunpack.c.l.b16 %v2117
      %v2250 = vunpack.c.l.b16 %v2118
      %v2251 = vunpack.c.l.b16 %v2119
      %v2252 = vunpack.c.l.b16 %v2120
      %v2253 = vunpack.c.l.b16 %v2121
      %v2254 = vunpack.c.l.b16 %v2122
      %v2255 = vunpack.c.l.b16 %v2123
      %v2256 = vunpack.c.l.b16 %v2124
      %v2257 = vunpack.c.l.b16 %v2125
      %v2258 = vunpack.c.l.b16 %v2126
      %v2259 = vunpack.c.l.b16 %v2127
      %v2260 = vunpack.c.l.b16 %v2128
      %v2261 = vunpack.c.l.b16 %v2129
      %v2262 = vunpack.c.l.b16 %v2130
      %v2263 = vunpack.c.l.b16 %v2131
      %v2264 = vunpack.c.l.b16 %v2132
      %v2265 = vunpack.c.l.b16 %v2133
      %v2266 = vunpack.c.l.b16 %v2134
      %v2267 = vunpack.c.l.b16 %v2135
      %v2268 = vunpack.c.l.b16 %v2136
      %v2269 = vunpack.c.l.b16 %v2137
      %v2270 = vunpack.c.l.b16 %v2138
      %v2271 = vunpack.c.l.b16 %v2139
      %v2272 = vunpack.c.l.b16 %v2140
      %v2273 = vunpack.c.l.b16 %v2141
      %v2274 = vunpack.c.l.b16 %v2142
      %v2275 = vunpack.c.l.b16 %v2143
      %v2276 = vunpack.c.l.b16 %v2144
      %v2277 = vunpack.c.l.b16 %v2145
      %v2278 = vunpack.c.l.b16 %v2146
      %v2279 = vunpack.c.l.b16 %v2147
      %v2280 = vunpack.c.l.b16 %v2148
      %v2281 = vunpack.c.l.b16 %v2149
      %v2282 = vunpack.c.l.b16 %v2150
      %v2283 = vunpack.c.l.b16 %v2151
      %v2284 = vunpack.c.l.b16 %v2152
      %v2285 = vpack.c.b16 %v2222, %v2221
      %v2286 = vpack.c.b16 %v2224, %v2223
      %v2287 = vpack.c.b16 %v2226, %v2225
      %v2288 = vpack.c.b16 %v2228, %v2227
      %v2289 = vpack.c.b16 %v2230, %v2229
      %v2290 = vpack.c.b16 %v2232, %v2231
      %v2291 = vpack.c.b16 %v2234, %v2233
      %v2292 = vpack.c.b16 %v2236, %v2235
      %v2293 = vpack.c.b16 %v2238, %v2237
      %v2294 = vpack.c.b16 %v2240, %v2239
      %v2295 = vpack.c.b16 %v2242, %v2241
      %v2296 = vpack.c.b16 %v2244, %v2243
      %v2297 = vpack.c.b16 %v2246, %v2245
      %v2298 = vpack.c.b16 %v2248, %v2247
      %v2299 = vpack.c.b16 %v2250, %v2249
      %v2300 = vpack.c.b16 %v2252, %v2251
      %v2301 = vpack.c.b16 %v2254, %v2253
      %v2302 = vpack.c.b16 %v2256, %v2255
      %v2303 = vpack.c.b16 %v2258, %v2257
      %v2304 = vpack.c.b16 %v2260, %v2259
      %v2305 = vpack.c.b16 %v2262, %v2261
      %v2306 = vpack.c.b16 %v2264, %v2263
      %v2307 = vpack.c.b16 %v2266, %v2265
      %v2308 = vpack.c.b16 %v2268, %v2267
      %v2309 = vpack.c.b16 %v2270, %v2269
      %v2310 = vpack.c.b16 %v2272, %v2271
      %v2311 = vpack.c.b16 %v2274, %v2273
      %v2312 = vpack.c.b16 %v2276, %v2275
      %v2313 = vpack.c.b16 %v2278, %v2277
      %v2314 = vpack.c.b16 %v2280, %v2279
      %v2315 = vpack.c.b16 %v2282, %v2281
      %v2316 = vpack.c.b16 %v2284, %v2283
      %2349 = vmatprep.subr.bf16.mxu0 0
      %2350 = vmatpush1.bf16.msra.mxu0 %v2292
      %2351 = vmatprep.subr.bf16.mxu0 0
      %2352 = vmatpush1.bf16.msra.mxu0 %v2291
      %2353 = vmatprep.subr.bf16.mxu0 0
      %2354 = vmatpush1.bf16.msra.mxu0 %v2290
      %2355 = vmatprep.subr.bf16.mxu0 0
      %2356 = vmatpush1.bf16.msra.mxu0 %v2289
      %2357 = vmatprep.subr.bf16.mxu0 0
      %2358 = vmatpush1.bf16.msra.mxu0 %v2288
      %2359 = vmatprep.subr.bf16.mxu0 0
      %2360 = vmatpush1.bf16.msra.mxu0 %v2287
      %2361 = vmatprep.subr.bf16.mxu0 0
      %2362 = vmatpush1.bf16.msra.mxu0 %v2286
      %2363 = vmatprep.subr.bf16.mxu0 0
      %2364 = vmatpush1.bf16.msra.mxu0 %v2285
      %2365 = vmatprep.subr.bf16.mxu0 0
      %2366 = vmatpush2.bf16.msra.mxu0 %v2300
      %2367 = vmatprep.subr.bf16.mxu0 0
      %2368 = vmatpush2.bf16.msra.mxu0 %v2299
      %2369 = vmatprep.subr.bf16.mxu0 0
      %2370 = vmatpush2.bf16.msra.mxu0 %v2298
      %2371 = vmatprep.subr.bf16.mxu0 0
      %2372 = vmatpush2.bf16.msra.mxu0 %v2297
      %2373 = vmatprep.subr.bf16.mxu0 0
      %2374 = vmatpush2.bf16.msra.mxu0 %v2296
      %2375 = vmatprep.subr.bf16.mxu0 0
      %2376 = vmatpush2.bf16.msra.mxu0 %v2295
      %2377 = vmatprep.subr.bf16.mxu0 0
      %2378 = vmatpush2.bf16.msra.mxu0 %v2294
      %2379 = vmatprep.subr.bf16.mxu0 0
      %2380 = vmatpush2.bf16.msra.mxu0 %v2293
      %2381 = vmatprep.mubr.bf16.mxu0 %v2078
      %2382 = vmatmul.mubr.bf16.gmra.mxu0 %v2077
      %v2383 = vpop.f32.mrf.mxu0
      %v2384 = vadd.f32 %v2156, %v2383
      %v2385 = vpop.f32.mrf.mxu0
      %v2386 = vpop.f32.mrf.mxu0
      %v2387 = vadd.f32 %v2156, %v2386
      %v2388 = vpop.f32.mrf.mxu0
      %2389 = vmatprep.mubr.bf16.mxu0 %v2082
      %2390 = vmatmul.mubr.bf16.gmra.mxu0 %v2081
      %v2391 = vpop.f32.mrf.mxu0
      %v2392 = vadd.f32 %v2156, %v2391
      %v2393 = vpop.f32.mrf.mxu0
      %v2394 = vpop.f32.mrf.mxu0
      %v2395 = vadd.f32 %v2156, %v2394
      %v2396 = vpop.f32.mrf.mxu0
      %2397 = vmatprep.mubr.bf16.mxu0 %v2086
      %2398 = vmatmul.mubr.bf16.gmra.mxu0 %v2085
      %v2399 = vpop.f32.mrf.mxu0
      %v2400 = vadd.f32 %v2156, %v2399
      %v2401 = vpop.f32.mrf.mxu0
      %v2402 = vpop.f32.mrf.mxu0
      %v2403 = vadd.f32 %v2156, %v2402
      %v2404 = vpop.f32.mrf.mxu0
      %2405 = vdwg.mxu0
      %2406 = vmatprep.subr.bf16.mxu0 0
      %2407 = vmatpush1.bf16.msra.mxu0 %v2308
      %2408 = vmatprep.subr.bf16.mxu0 0
      %2409 = vmatpush1.bf16.msra.mxu0 %v2307
      %2410 = vmatprep.subr.bf16.mxu0 0
      %2411 = vmatpush1.bf16.msra.mxu0 %v2306
      %2412 = vmatprep.subr.bf16.mxu0 0
      %2413 = vmatpush1.bf16.msra.mxu0 %v2305
      %2414 = vmatprep.subr.bf16.mxu0 0
      %2415 = vmatpush1.bf16.msra.mxu0 %v2304
      %2416 = vmatprep.subr.bf16.mxu0 0
      %2417 = vmatpush1.bf16.msra.mxu0 %v2303
      %2418 = vmatprep.subr.bf16.mxu0 0
      %2419 = vmatpush1.bf16.msra.mxu0 %v2302
      %2420 = vmatprep.subr.bf16.mxu0 0
      %2421 = vmatpush1.bf16.msra.mxu0 %v2301
      %2422 = vmatprep.subr.bf16.mxu0 0
      %2423 = vmatpush2.bf16.msra.mxu0 %v2316
      %2424 = vmatprep.subr.bf16.mxu0 0
      %2425 = vmatpush2.bf16.msra.mxu0 %v2315
      %2426 = vmatprep.subr.bf16.mxu0 0
      %2427 = vmatpush2.bf16.msra.mxu0 %v2314
      %2428 = vmatprep.subr.bf16.mxu0 0
      %2429 = vmatpush2.bf16.msra.mxu0 %v2313
      %2430 = vmatprep.subr.bf16.mxu0 0
      %2431 = vmatpush2.bf16.msra.mxu0 %v2312
      %2432 = vmatprep.subr.bf16.mxu0 0
      %2433 = vmatpush2.bf16.msra.mxu0 %v2311
      %2434 = vmatprep.subr.bf16.mxu0 0
      %2435 = vmatpush2.bf16.msra.mxu0 %v2310
      %2436 = vmatprep.subr.bf16.mxu0 0
      %2437 = vmatpush2.bf16.msra.mxu0 %v2309
      %2438 = vmatprep.mubr.bf16.mxu0 %v2080
      %2439 = vmatmul.mubr.bf16.gmra.mxu0 %v2079
      %v2440 = vpop.f32.mrf.mxu0
      %v2441 = vadd.f32 %v2384, %v2440
      %v2442 = vpop.f32.mrf.mxu0
      %v2443 = vpop.f32.mrf.mxu0
      %v2444 = vadd.f32 %v2387, %v2443
      %v2445 = vpop.f32.mrf.mxu0
      %2446 = vmatprep.mubr.bf16.mxu0 %v2084
      %2447 = vmatmul.mubr.bf16.gmra.mxu0 %v2083
      %v2448 = vpop.f32.mrf.mxu0
      %v2449 = vadd.f32 %v2392, %v2448
      %v2450 = vpop.f32.mrf.mxu0
      %v2451 = vpop.f32.mrf.mxu0
      %v2452 = vadd.f32 %v2395, %v2451
      %v2453 = vpop.f32.mrf.mxu0
      %2454 = vmatprep.mubr.bf16.mxu0 %v2088
      %2455 = vmatmul.mubr.bf16.gmra.mxu0 %v2087
      %v2456 = vpop.f32.mrf.mxu0
      %v2457 = vadd.f32 %v2400, %v2456
      %v2458 = vpop.f32.mrf.mxu0
      %v2459 = vpop.f32.mrf.mxu0
      %v2460 = vadd.f32 %v2403, %v2459
      %v2461 = vpop.f32.mrf.mxu0
      %2462 = vdwg.mxu0
      %v2463 = vadd.f32 %v1518, %v2441
      %v2464 = vadd.f32 %v1519, %v2444
      %v2465 = vadd.f32 %v1520, %v2449
      %v2466 = vadd.f32 %v1521, %v2452
      %v2467 = vadd.f32 %v1522, %v2457
      %v2468 = vadd.f32 %v1523, %v2460
      %2469 = vadd.xlane.f32.xlu0 %v2463
      %v2470 = vpop.xlane.xlu0 %2469
      %2471 = vadd.xlane.f32.xlu0 %v2464
      %v2472 = vpop.xlane.xlu0 %2471
      %2473 = vadd.xlane.f32.xlu0 %v2465
      %v2474 = vpop.xlane.xlu0 %2473
      %2475 = vadd.xlane.f32.xlu0 %v2466
      %v2476 = vpop.xlane.xlu0 %2475
      %2477 = vadd.xlane.f32.xlu0 %v2467
      %v2478 = vpop.xlane.xlu0 %2477
      %2479 = vadd.xlane.f32.xlu0 %v2468
      %v2480 = vpop.xlane.xlu0 %2479
      %v2481 = vmul.f32 %v2470, %v1449
      %v2482 = vmul.f32 %v2472, %v1449
      %v2483 = vmul.f32 %v2474, %v1449
      %v2484 = vmul.f32 %v2476, %v1449
      %v2485 = vmul.f32 %v2478, %v1449
      %v2486 = vmul.f32 %v2480, %v1449
      %v2487 = vsub.f32 %v2463, %v2481
      %v2488 = vsub.f32 %v2464, %v2482
      %v2489 = vsub.f32 %v2465, %v2483
      %v2490 = vsub.f32 %v2466, %v2484
      %v2491 = vsub.f32 %v2467, %v2485
      %v2492 = vsub.f32 %v2468, %v2486
      %v2493 = vmul.f32 %v2487, %v2487
      %v2494 = vmul.f32 %v2488, %v2488
      %v2495 = vmul.f32 %v2489, %v2489
      %v2496 = vmul.f32 %v2490, %v2490
      %v2497 = vmul.f32 %v2491, %v2491
      %v2498 = vmul.f32 %v2492, %v2492
      %2499 = vadd.xlane.f32.xlu0 %v2493
      %v2500 = vpop.xlane.xlu0 %2499
      %2501 = vadd.xlane.f32.xlu0 %v2494
      %v2502 = vpop.xlane.xlu0 %2501
      %2503 = vadd.xlane.f32.xlu0 %v2495
      %v2504 = vpop.xlane.xlu0 %2503
      %2505 = vadd.xlane.f32.xlu0 %v2496
      %v2506 = vpop.xlane.xlu0 %2505
      %2507 = vadd.xlane.f32.xlu0 %v2497
      %v2508 = vpop.xlane.xlu0 %2507
      %2509 = vadd.xlane.f32.xlu0 %v2498
      %v2510 = vpop.xlane.xlu0 %2509
      %v2511 = vmul.f32 %v2500, %v1449
      %v2512 = vmul.f32 %v2502, %v1449
      %v2513 = vmul.f32 %v2504, %v1449
      %v2514 = vmul.f32 %v2506, %v1449
      %v2515 = vmul.f32 %v2508, %v1449
      %v2516 = vmul.f32 %v2510, %v1449
      %v2517 = vadd.f32 %v2511, 1e-05
      %v2518 = vadd.f32 %v2512, 1e-05
      %v2519 = vadd.f32 %v2513, 1e-05
      %v2520 = vadd.f32 %v2514, 1e-05
      %v2521 = vadd.f32 %v2515, 1e-05
      %v2522 = vadd.f32 %v2516, 1e-05
      %v2523 = vrsqrt.pop %v2517
      %v2524 = vrsqrt.pop %v2518
      %v2525 = vrsqrt.pop %v2519
      %v2526 = vrsqrt.pop %v2520
      %v2527 = vrsqrt.pop %v2521
      %v2528 = vrsqrt.pop %v2522
      %v2529 = vmul.f32 %v2487, %v2523
      %v2530 = vmul.f32 %v2488, %v2524
      %v2531 = vmul.f32 %v2489, %v2525
      %v2532 = vmul.f32 %v2490, %v2526
      %v2533 = vmul.f32 %v2491, %v2527
      %v2534 = vmul.f32 %v2492, %v2528
      %v2535 = vlaneseq
      %v2536 = vshrl.u32 %v2535, 7
      %v2537 = vsub.s32 6, %v2536
      %v2538 = vrot.slane %v261, %v2537
      %v2539 = vmul.f32 %v2529, %v2538
      %v2540 = vmul.f32 %v2530, %v2538
      %v2541 = vmul.f32 %v2531, %v2538
      %v2542 = vmul.f32 %v2532, %v2538
      %v2543 = vmul.f32 %v2533, %v2538
      %v2544 = vmul.f32 %v2534, %v2538
      %v2545 = vlaneseq
      %v2546 = vshrl.u32 %v2545, 7
      %v2547 = vsub.s32 7, %v2546
      %v2548 = vrot.slane %v261, %v2547
      %v2549 = vadd.f32 %v2539, %v2548
      %v2550 = vadd.f32 %v2540, %v2548
      %v2551 = vadd.f32 %v2541, %v2548
      %v2552 = vadd.f32 %v2542, %v2548
      %v2553 = vadd.f32 %v2543, %v2548
      %v2554 = vadd.f32 %v2544, %v2548
      %2555 = vst [vmem:[%s258] sm:$0xff] %v2549
      %2556 = vst [vmem:[%s258 + $0x8] sm:$0xff] %v2550
      %2557 = vst [vmem:[%s258 + $0x10] sm:$0xff] %v2551
      %2558 = vst [vmem:[%s258 + $0x18] sm:$0xff] %v2552
      %2559 = vst [vmem:[%s258 + $0x20] sm:$0xff] %v2553
      %2560 = vst [vmem:[%s258 + $0x28] sm:$0xff] %v2554
      %s2561 = smul.u32 2, %s17
      %p2562 = scmp.lt.s32.totalorder %s2561, 3
      %s2563 = scalar_select %p2562, %s2561, 3
      %s2564 = smul.addr %s2563, 3
      %s2565 = smul.addr %s2564, 8
      %s2566 = scalar_lea.vmem %s6, %s2565
      // Predicated region
      $region45: #{reinformer_forward.5} parent=43 // pred_check
        %p2567 = pneg %p166
      $region46: #{reinformer_forward.5} parent=43 // pred_check_branch
        %2569 = sbr.rel (%p2567) target = $region48
      $region47: #{reinformer_forward.5} parent=43 // pred_region
        %s2570 = smul.u32 2, %s17
      $region48: #{reinformer_forward.5} parent=43 // pred_fallthru
        _
    $region44: #{reinformer_forward.5} parent=5 // pred_fallthru
      _
    %p2571 = scmp.le.s32.totalorder 2, %s12
    // Predicated region
    $region49: #{reinformer_forward.5} parent=5 // pred_check
      %p2572 = pneg %p2571
    $region50: #{reinformer_forward.5} parent=5 // pred_check_branch
      %2574 = sbr.rel (%p2572) target = $region52
    $region51: #{reinformer_forward.5} parent=5 // pred_region
      %s2575 = ssub.s32 %s12, 2
      // Predicated region
      $region53: #{reinformer_forward.5} parent=51 // pred_check
        %p2576 = pneg %p172
      $region54: #{reinformer_forward.5} parent=51 // pred_check_branch
        %2578 = sbr.rel (%p2576) target = $region56
      $region55: #{reinformer_forward.5} parent=51 // pred_region
        %s2579 = smul.u32 2, %s18
        %p2580 = scmp.lt.s32.totalorder %s2579, 3
        %s2581 = scalar_select %p2580, %s2579, 3
        %s2582 = smul.addr %s2581, 3
        %s2583 = smul.addr %s2582, 8
        %s2584 = scalar_lea.vmem %s6, %s2583
      $region56: #{reinformer_forward.5} parent=51 // pred_fallthru
        _
    $region52: #{reinformer_forward.5} parent=5 // pred_fallthru
      _
  $region6: #{reinformer_forward.5} parent=0 // loop_footer
    %s16 = sadd.s32 1, %s12
  $region7: #{reinformer_forward.5} parent=0 // loop_footer_branch
    %11 = sbr.rel target = $region3
  $region8: #{reinformer_forward.5} parent=0 // loop_exit
    _

</llo_original>
